<compile_context>
chip_gen: v5e
topology: v5e:2x2
jax: 0.10.0
libtpu: 0.0.40
codegen_flags: <defaults>
</compile_context>

<pallas_src>
import functools

import jax
import jax.numpy as jnp
from jax.experimental import pallas as pl
from jax.experimental.pallas import tpu as pltpu

EPS = 1e-5


def bottleneck_kernel(x_ref, segs_ref, segb_ref, w1wc_ref, w2_ref, w3_ref,
                      fc1w_ref, fc1b_ref, fc2w_ref, fc2b_ref, spaw_ref,
                      o_ref, *, H, W, C, tap_plan, n_groups):
    """One grid step = `Bt` whole samples, flattened to (N, C) with N=Bt*H*W."""
    HW = H * W
    N = x_ref.shape[0]
    inv_hw = 1.0 / float(HW)

    seg_sum = segs_ref[...]       # (Bt, N)  block-diagonal ones -> per-sample sums
    seg_bcast = segb_ref[...]     # (N, Bt)  per-sample broadcast back

    def inorm(h):
        # single-pass per-sample InstanceNorm: reductions AND the per-sample
        # broadcast-back both run on the (otherwise idle) MXU, keeping the
        # XLU free for the 3x3-conv rolls.
        s1 = jnp.dot(seg_sum, h, preferred_element_type=jnp.float32)       # (Bt, C)
        s2 = jnp.dot(seg_sum, h * h, preferred_element_type=jnp.float32)   # (Bt, C)
        mean = s1 * inv_hw
        a = jax.lax.rsqrt(s2 * inv_hw - mean * mean + EPS)                 # 1/std
        ab = jnp.concatenate([a, -mean * a], axis=1)                       # (Bt, 2C)
        ab_full = jnp.dot(seg_bcast, ab, preferred_element_type=jnp.float32)  # (N, 2C)
        return h * ab_full[:, :C] + ab_full[:, C:]

    x = x_ref[...]                                            # (N, Cin)

    # ---- fused left 1x1 + shortcut 1x1:  x @ [w1 | wc] ----------------------
    h0 = jnp.dot(x, w1wc_ref[...], preferred_element_type=jnp.float32)     # (N, 2C)
    h = jnp.maximum(inorm(h0[:, :C]), 0.0)        # left: 1x1 -> IN -> ReLU
    idn = inorm(h0[:, C:])                        # shortcut: 1x1 -> IN (early)

    # ---- boundary-validity masks (computed once, no mask input DMA) ---------
    p = jax.lax.broadcasted_iota(jnp.int32, (N, C), 0)
    q = p % HW                                    # position within image
    col = p % W                                   # column within image
    rmask = {-1: (q >= W).astype(jnp.float32),          # row >= 1
             1: (q < HW - W).astype(jnp.float32)}        # row <  H-1
    cmask = {-1: (col >= 1).astype(jnp.float32),         # col >= 1
             1: (col < W - 1).astype(jnp.float32)}       # col <  W-1

    # ---- 3x3 conv, padding=1, as packed accumulating matmuls ----------------
    # Each tap occupies a lane slot inside a 128-lane group (packed im2col K);
    # cross-sample / out-of-image wrap rows are exactly the masked ones, so a
    # single roll over the whole flattened batch is safe.
    groups = [None] * n_groups
    j = 0
    for dh in (-1, 0, 1):
        for dw in (-1, 0, 1):
            k = dh * W + dw
            tap = h if k == 0 else pltpu.roll(h, shift=(-k) % N, axis=0)
            if dh != 0:
                tap = tap * rmask[dh]
            if dw != 0:
                tap = tap * cmask[dw]
            g, lane_shift = tap_plan[j]
            if lane_shift:
                tap = pltpu.roll(tap, shift=lane_shift, axis=1)
            groups[g] = tap if groups[g] is None else groups[g] + tap
            j += 1

    gw = w2_ref.shape[0] // n_groups
    h3 = None
    for g in range(n_groups):
        part = jnp.dot(groups[g], w2_ref[g * gw:(g + 1) * gw, :],
                       preferred_element_type=jnp.float32)
        h3 = part if h3 is None else h3 + part
    h = jnp.maximum(inorm(h3), 0.0)

    # ---- 1x1 conv -> InstanceNorm --------------------------------------------
    h = inorm(jnp.dot(h, w3_ref[...], preferred_element_type=jnp.float32))

    # ---- SCSE attention -------------------------------------------------------
    chn = jnp.dot(seg_sum, h, preferred_element_type=jnp.float32) * inv_hw  # (Bt, C)
    hid = jnp.maximum(
        jnp.dot(chn, fc1w_ref[...], preferred_element_type=jnp.float32)
        + fc1b_ref[...], 0.0)                                                # (Bt, Cr)
    csc = jax.nn.sigmoid(
        jnp.dot(hid, fc2w_ref[...], preferred_element_type=jnp.float32)
        + fc2b_ref[...])                                                     # (Bt, C)
    csc_full = jnp.dot(seg_bcast, csc, preferred_element_type=jnp.float32)   # (N, C)
    # spa_w is replicated across lanes in the wrapper -> already lane-broadcast
    ssc = jax.nn.sigmoid(
        jnp.dot(h, spaw_ref[...], preferred_element_type=jnp.float32))       # (N, C)
    h = h * (csc_full + ssc)                      # == h*cscale + h*sscale

    # ---- residual add + ReLU --------------------------------------------------
    o_ref[...] = jnp.maximum(h + idn, 0.0)


def _pad_to(a, shape):
    return jnp.pad(a, [(0, t - s) for s, t in zip(a.shape, shape)])


def bottleneck_forward(x_nchw, params, samples_per_step=None):
    B, Cin, H, W = x_nchw.shape
    Cout = params["w1"].shape[1]
    Cr = params["fc1_w"].shape[1]
    HW = H * W

    # Fold the whole batch into one grid step by default (best on single-TC
    # v5e/v6e); pass samples_per_step=1 to split samples across v7x's 2 TCs.
    Bt = B if samples_per_step is None else samples_per_step
    assert B % Bt == 0
    N = Bt * HW

    # lane-dense padded channel sizes (multiples of 128)
    Cpad = max(128, ((Cout + 127) // 128) * 128)
    Crpad = max(128, ((Cr + 127) // 128) * 128)

    # ---- weight preparation (plain JAX glue; zero padding preserves semantics)
    w1p = _pad_to(params["w1"], (Cin, Cpad))
    wcp = _pad_to(params["wc"], (Cin, Cpad))
    w1wc = jnp.concatenate([w1p, wcp], axis=1)                  # (Cin, 2*Cpad)
    w3p = _pad_to(params["w3"], (Cpad, Cpad))
    fc1wp = _pad_to(params["fc1_w"], (Cpad, Crpad))
    fc1bp = jnp.tile(_pad_to(params["fc1_b"], (1, Crpad)), (Bt, 1))
    fc2wp = _pad_to(params["fc2_w"], (Crpad, Cpad))
    fc2bp = jnp.tile(_pad_to(params["fc2_b"], (1, Cpad)), (Bt, 1))
    # spatial-SE weight replicated across all Cpad output lanes
    spawp = jnp.broadcast_to(_pad_to(params["spa_w"], (Cpad, 1)), (Cpad, Cpad))

    # ---- packed im2col weight: several taps per 128-lane group ---------------
    if Cout <= 128 and 128 % Cout == 0:
        slot_w, taps_per_group, group_w = Cout, 128 // Cout, 128
    else:  # fallback: one tap per Cpad-wide group (original unpacked layout)
        slot_w, taps_per_group, group_w = Cpad, 1, Cpad
    n_groups = -(-9 // taps_per_group)
    w2packed = jnp.zeros((n_groups * group_w, Cpad), jnp.float32)
    tap_plan = []
    for j in range(9):
        g, s = divmod(j, taps_per_group)
        off = g * group_w + s * slot_w
        w2packed = w2packed.at[off:off + Cout, :Cout].set(params["w2"][j])
        tap_plan.append((g, s * slot_w))
    tap_plan = tuple(tap_plan)

    # per-sample sum / broadcast-back matrices (block-diagonal ones)
    eye = jnp.eye(Bt, dtype=jnp.float32)
    seg_sum = jnp.repeat(eye, HW, axis=1)                       # (Bt, N)
    seg_bcast = seg_sum.T                                       # (N, Bt)

    # NCHW -> channels-last, batch+spatially flattened
    x2d = jnp.transpose(x_nchw, (0, 2, 3, 1)).reshape(B * HW, Cin)

    kernel = functools.partial(bottleneck_kernel, H=H, W=W, C=Cpad,
                               tap_plan=tap_plan, n_groups=n_groups)

    def const_spec(arr):
        return pl.BlockSpec(arr.shape, lambda i: (0, 0))

    out = pl.pallas_call(
        kernel,
        out_shape=jax.ShapeDtypeStruct((B * HW, Cpad), jnp.float32),
        grid=(B // Bt,),
        in_specs=[
            pl.BlockSpec((N, Cin), lambda i: (i, 0)),
            const_spec(seg_sum), const_spec(seg_bcast),
            const_spec(w1wc), const_spec(w2packed), const_spec(w3p),
            const_spec(fc1wp), const_spec(fc1bp),
            const_spec(fc2wp), const_spec(fc2bp), const_spec(spawp),
        ],
        out_specs=pl.BlockSpec((N, Cpad), lambda i: (i, 0)),
        compiler_params=pltpu.CompilerParams(
            dimension_semantics=("parallel",)),
    )(x2d, seg_sum, seg_bcast, w1wc, w2packed, w3p,
      fc1wp, fc1bp, fc2wp, fc2bp, spawp)

    # (B*HW, Cpad) -> slice real channels -> NCHW
    out = out[:, :Cout].reshape(B, H, W, Cout)
    return jnp.transpose(out, (0, 3, 1, 2))


def reference_forward(x_nchw, params):
    """Pure-JAX reference mirroring the PyTorch forward semantics."""
    B, Cin, H, W = x_nchw.shape
    Cout = params["w1"].shape[1]
    x = jnp.transpose(x_nchw, (0, 2, 3, 1))                 # NHWC

    def inorm(h):
        mean = jnp.mean(h, axis=(1, 2), keepdims=True)
        var = jnp.mean(jnp.square(h - mean), axis=(1, 2), keepdims=True)
        return (h - mean) / jnp.sqrt(var + EPS)

    h = jnp.einsum("bhwc,cd->bhwd", x, params["w1"])
    h = jax.nn.relu(inorm(h))
    w3x3 = params["w2"].reshape(3, 3, Cout, Cout)           # HWIO
    h = jax.lax.conv_general_dilated(
        h, w3x3, (1, 1), "SAME",
        dimension_numbers=("NHWC", "HWIO", "NHWC"))
    h = jax.nn.relu(inorm(h))
    h = inorm(jnp.einsum("bhwc,cd->bhwd", h, params["w3"]))
    # SCSE
    chn = jnp.mean(h, axis=(1, 2))                          # (B, Cout)
    hid = jax.nn.relu(chn @ params["fc1_w"] + params["fc1_b"])
    cs = jax.nn.sigmoid(hid @ params["fc2_w"] + params["fc2_b"])[:, None, None, :]
    ss = jax.nn.sigmoid(jnp.einsum("bhwc,co->bhwo", h, params["spa_w"]))
    h = h * cs + h * ss
    idn = inorm(jnp.einsum("bhwc,cd->bhwd", x, params["wc"]))
    out = jax.nn.relu(h + idn)
    return jnp.transpose(out, (0, 3, 1, 2))


if __name__ == "__main__":
    B, Cin, H, W = 2, 4, 16, 16
    Cout, reduction = 32, 16
    Cr = Cout // reduction

    key = jax.random.PRNGKey(0)
    ks = jax.random.split(key, 10)
    params = {
        "w1":    0.1 * jax.random.normal(ks[0], (Cin, Cout), jnp.float32),
        "w2":    0.1 * jax.random.normal(ks[1], (9, Cout, Cout), jnp.float32),
        "w3":    0.1 * jax.random.normal(ks[2], (Cout, Cout), jnp.float32),
        "wc":    0.1 * jax.random.normal(ks[3], (Cin, Cout), jnp.float32),
        "fc1_w": 0.1 * jax.random.normal(ks[4], (Cout, Cr), jnp.float32),
        "fc1_b": 0.1 * jax.random.normal(ks[5], (1, Cr), jnp.float32),
        "fc2_w": 0.1 * jax.random.normal(ks[6], (Cr, Cout), jnp.float32),
        "fc2_b": 0.1 * jax.random.normal(ks[7], (1, Cout), jnp.float32),
        "spa_w": 0.1 * jax.random.normal(ks[8], (Cout, 1), jnp.float32),
    }
    x = jax.random.normal(ks[9], (B, Cin, H, W), jnp.float32)

    out = jax.block_until_ready(bottleneck_forward(x, params))
    ref = jax.block_until_ready(reference_forward(x, params))

    assert out.shape == (B, Cout, H, W), out.shape
    err = float(jnp.max(jnp.abs(out - ref)))
    assert err < 1e-3, f"max abs error vs reference: {err}"
    print("KERNEL_OK")
</pallas_src>

<mosaic_0001>
module attributes {stable_mosaic.version = 11 : i64} {
  func.func @bottleneck_kernel(%arg0: i32, %arg1: memref<512x4xf32, #tpu.memory_space<vmem>>, %arg2: memref<2x512xf32, #tpu.memory_space<vmem>>, %arg3: memref<512x2xf32, #tpu.memory_space<vmem>>, %arg4: memref<4x256xf32, #tpu.memory_space<vmem>>, %arg5: memref<384x128xf32, #tpu.memory_space<vmem>>, %arg6: memref<128x128xf32, #tpu.memory_space<vmem>>, %arg7: memref<128x128xf32, #tpu.memory_space<vmem>>, %arg8: memref<2x128xf32, #tpu.memory_space<vmem>>, %arg9: memref<128x128xf32, #tpu.memory_space<vmem>>, %arg10: memref<2x128xf32, #tpu.memory_space<vmem>>, %arg11: memref<128x128xf32, #tpu.memory_space<vmem>>, %arg12: memref<512x128xf32, #tpu.memory_space<vmem>>) attributes {dimension_semantics = [#tpu.dimension_semantics<parallel>], iteration_bounds = array<i64: 1>, scalar_prefetch = 0 : i64, scratch_operands = 0 : i64, tpu.core_type = #tpu.core_type<tc>, window_params = [{transform_indices = @transform_0, window_bounds = array<i64: 512, 4>}, {pipeline_mode = #tpu.pipeline_mode<synchronous>, transform_indices = @transform_1, window_bounds = array<i64: 2, 512>}, {pipeline_mode = #tpu.pipeline_mode<synchronous>, transform_indices = @transform_2, window_bounds = array<i64: 512, 2>}, {pipeline_mode = #tpu.pipeline_mode<synchronous>, transform_indices = @transform_3, window_bounds = array<i64: 4, 256>}, {pipeline_mode = #tpu.pipeline_mode<synchronous>, transform_indices = @transform_4, window_bounds = array<i64: 384, 128>}, {pipeline_mode = #tpu.pipeline_mode<synchronous>, transform_indices = @transform_5, window_bounds = array<i64: 128, 128>}, {pipeline_mode = #tpu.pipeline_mode<synchronous>, transform_indices = @transform_6, window_bounds = array<i64: 128, 128>}, {pipeline_mode = #tpu.pipeline_mode<synchronous>, transform_indices = @transform_7, window_bounds = array<i64: 2, 128>}, {pipeline_mode = #tpu.pipeline_mode<synchronous>, transform_indices = @transform_8, window_bounds = array<i64: 128, 128>}, {pipeline_mode = #tpu.pipeline_mode<synchronous>, transform_indices = @transform_9, window_bounds = array<i64: 2, 128>}, {pipeline_mode = #tpu.pipeline_mode<synchronous>, transform_indices = @transform_10, window_bounds = array<i64: 128, 128>}, {transform_indices = @transform_11, window_bounds = array<i64: 512, 128>}]} {
    %c0 = arith.constant 0 : index
    %c0_0 = arith.constant 0 : index
    %0 = vector.load %arg2[%c0, %c0_0] : memref<2x512xf32, #tpu.memory_space<vmem>>, vector<2x512xf32>
    %c0_1 = arith.constant 0 : index
    %c0_2 = arith.constant 0 : index
    %1 = vector.load %arg3[%c0_1, %c0_2] : memref<512x2xf32, #tpu.memory_space<vmem>>, vector<512x2xf32>
    %c0_3 = arith.constant 0 : index
    %c0_4 = arith.constant 0 : index
    %2 = vector.load %arg1[%c0_3, %c0_4] : memref<512x4xf32, #tpu.memory_space<vmem>>, vector<512x4xf32>
    %c0_5 = arith.constant 0 : index
    %c0_6 = arith.constant 0 : index
    %3 = vector.load %arg4[%c0_5, %c0_6] : memref<4x256xf32, #tpu.memory_space<vmem>>, vector<4x256xf32>
    %cst = arith.constant dense<0.000000e+00> : vector<512x256xf32>
    %4 = tpu.matmul %2, %3, %cst {dimension_numbers = #tpu.dot_dimension_numbers<[1], [0], [0], [1], [0, 0, 1, 1], [], []>} : vector<512x4xf32>, vector<4x256xf32>, vector<512x256xf32> -> vector<512x256xf32>
    %5 = vector.extract_strided_slice %4 {offsets = [0, 0], sizes = [512, 128], strides = [1, 1]} : vector<512x256xf32> to vector<512x128xf32>
    %cst_7 = arith.constant dense<0.000000e+00> : vector<2x128xf32>
    %6 = tpu.matmul %0, %5, %cst_7 {dimension_numbers = #tpu.dot_dimension_numbers<[1], [0], [0], [1], [0, 0, 1, 1], [], []>} : vector<2x512xf32>, vector<512x128xf32>, vector<2x128xf32> -> vector<2x128xf32>
    %7 = arith.mulf %5, %5 : vector<512x128xf32>
    %cst_8 = arith.constant dense<0.000000e+00> : vector<2x128xf32>
    %8 = tpu.matmul %0, %7, %cst_8 {dimension_numbers = #tpu.dot_dimension_numbers<[1], [0], [0], [1], [0, 0, 1, 1], [], []>} : vector<2x512xf32>, vector<512x128xf32>, vector<2x128xf32> -> vector<2x128xf32>
    %cst_9 = arith.constant 3.906250e-03 : f32
    %9 = vector.broadcast %cst_9 : f32 to vector<2x128xf32>
    %10 = arith.mulf %6, %9 : vector<2x128xf32>
    %cst_10 = arith.constant 3.906250e-03 : f32
    %11 = vector.broadcast %cst_10 : f32 to vector<2x128xf32>
    %12 = arith.mulf %8, %11 : vector<2x128xf32>
    %13 = arith.mulf %10, %10 : vector<2x128xf32>
    %14 = arith.subf %12, %13 : vector<2x128xf32>
    %cst_11 = arith.constant 9.99999974E-6 : f32
    %15 = vector.broadcast %cst_11 : f32 to vector<2x128xf32>
    %16 = arith.addf %14, %15 : vector<2x128xf32>
    %17 = math.rsqrt %16 : vector<2x128xf32>
    %cst_12 = arith.constant 0.000000e+00 : f32
    %18 = vector.broadcast %cst_12 : f32 to vector<2x128xf32>
    %19 = arith.subf %18, %10 : vector<2x128xf32>
    %20 = arith.mulf %19, %17 : vector<2x128xf32>
    %21 = tpu.concatenate %17, %20 in 1 : vector<2x128xf32>, vector<2x128xf32> -> vector<2x256xf32>
    %cst_13 = arith.constant dense<0.000000e+00> : vector<512x256xf32>
    %22 = tpu.matmul %1, %21, %cst_13 {dimension_numbers = #tpu.dot_dimension_numbers<[1], [0], [0], [1], [0, 0, 1, 1], [], []>} : vector<512x2xf32>, vector<2x256xf32>, vector<512x256xf32> -> vector<512x256xf32>
    %23 = vector.extract_strided_slice %22 {offsets = [0, 0], sizes = [512, 128], strides = [1, 1]} : vector<512x256xf32> to vector<512x128xf32>
    %24 = arith.mulf %5, %23 : vector<512x128xf32>
    %25 = vector.extract_strided_slice %22 {offsets = [0, 128], sizes = [512, 128], strides = [1, 1]} : vector<512x256xf32> to vector<512x128xf32>
    %26 = arith.addf %24, %25 : vector<512x128xf32>
    %cst_14 = arith.constant 0.000000e+00 : f32
    %27 = vector.broadcast %cst_14 : f32 to vector<512x128xf32>
    %28 = arith.maximumf %26, %27 : vector<512x128xf32>
    %29 = vector.extract_strided_slice %4 {offsets = [0, 128], sizes = [512, 128], strides = [1, 1]} : vector<512x256xf32> to vector<512x128xf32>
    %cst_15 = arith.constant dense<0.000000e+00> : vector<2x128xf32>
    %30 = tpu.matmul %0, %29, %cst_15 {dimension_numbers = #tpu.dot_dimension_numbers<[1], [0], [0], [1], [0, 0, 1, 1], [], []>} : vector<2x512xf32>, vector<512x128xf32>, vector<2x128xf32> -> vector<2x128xf32>
    %31 = arith.mulf %29, %29 : vector<512x128xf32>
    %cst_16 = arith.constant dense<0.000000e+00> : vector<2x128xf32>
    %32 = tpu.matmul %0, %31, %cst_16 {dimension_numbers = #tpu.dot_dimension_numbers<[1], [0], [0], [1], [0, 0, 1, 1], [], []>} : vector<2x512xf32>, vector<512x128xf32>, vector<2x128xf32> -> vector<2x128xf32>
    %cst_17 = arith.constant 3.906250e-03 : f32
    %33 = vector.broadcast %cst_17 : f32 to vector<2x128xf32>
    %34 = arith.mulf %30, %33 : vector<2x128xf32>
    %cst_18 = arith.constant 3.906250e-03 : f32
    %35 = vector.broadcast %cst_18 : f32 to vector<2x128xf32>
    %36 = arith.mulf %32, %35 : vector<2x128xf32>
    %37 = arith.mulf %34, %34 : vector<2x128xf32>
    %38 = arith.subf %36, %37 : vector<2x128xf32>
    %cst_19 = arith.constant 9.99999974E-6 : f32
    %39 = vector.broadcast %cst_19 : f32 to vector<2x128xf32>
    %40 = arith.addf %38, %39 : vector<2x128xf32>
    %41 = math.rsqrt %40 : vector<2x128xf32>
    %cst_20 = arith.constant 0.000000e+00 : f32
    %42 = vector.broadcast %cst_20 : f32 to vector<2x128xf32>
    %43 = arith.subf %42, %34 : vector<2x128xf32>
    %44 = arith.mulf %43, %41 : vector<2x128xf32>
    %45 = tpu.concatenate %41, %44 in 1 : vector<2x128xf32>, vector<2x128xf32> -> vector<2x256xf32>
    %cst_21 = arith.constant dense<0.000000e+00> : vector<512x256xf32>
    %46 = tpu.matmul %1, %45, %cst_21 {dimension_numbers = #tpu.dot_dimension_numbers<[1], [0], [0], [1], [0, 0, 1, 1], [], []>} : vector<512x2xf32>, vector<2x256xf32>, vector<512x256xf32> -> vector<512x256xf32>
    %47 = vector.extract_strided_slice %46 {offsets = [0, 0], sizes = [512, 128], strides = [1, 1]} : vector<512x256xf32> to vector<512x128xf32>
    %48 = arith.mulf %29, %47 : vector<512x128xf32>
    %49 = vector.extract_strided_slice %46 {offsets = [0, 128], sizes = [512, 128], strides = [1, 1]} : vector<512x256xf32> to vector<512x128xf32>
    %50 = arith.addf %48, %49 : vector<512x128xf32>
    %51 = tpu.iota {dimensions = array<i32: 0>} : vector<512x128xi32>
    %c256_i32 = arith.constant 256 : i32
    %c0_i32 = arith.constant 0 : i32
    %52 = arith.cmpi eq, %c256_i32, %c0_i32 : i32
    %c1_i32 = arith.constant 1 : i32
    %53 = arith.select %52, %c1_i32, %c256_i32 : i32
    %54 = vector.broadcast %53 : i32 to vector<512x128xi32>
    %55 = arith.remsi %51, %54 : vector<512x128xi32>
    %c0_i32_22 = arith.constant 0 : i32
    %56 = vector.broadcast %c0_i32_22 : i32 to vector<512x128xi32>
    %57 = arith.cmpi ne, %55, %56 : vector<512x128xi32>
    %c0_i32_23 = arith.constant 0 : i32
    %58 = vector.broadcast %c0_i32_23 : i32 to vector<512x128xi32>
    %59 = arith.cmpi slt, %55, %58 : vector<512x128xi32>
    %c0_i32_24 = arith.constant 0 : i32
    %60 = arith.cmpi slt, %53, %c0_i32_24 : i32
    %61 = vector.broadcast %60 : i1 to vector<512x128xi1>
    %62 = vector.broadcast %61 : vector<512x128xi1> to vector<512x128xi1>
    %63 = arith.xori %59, %62 : vector<512x128xi1>
    %64 = arith.andi %63, %57 : vector<512x128xi1>
    %65 = vector.broadcast %53 : i32 to vector<512x128xi32>
    %66 = arith.addi %55, %65 : vector<512x128xi32>
    %67 = arith.select %64, %66, %55 : vector<512x128xi1>, vector<512x128xi32>
    %c16_i32 = arith.constant 16 : i32
    %c0_i32_25 = arith.constant 0 : i32
    %68 = arith.cmpi eq, %c16_i32, %c0_i32_25 : i32
    %c1_i32_26 = arith.constant 1 : i32
    %69 = arith.select %68, %c1_i32_26, %c16_i32 : i32
    %70 = vector.broadcast %69 : i32 to vector<512x128xi32>
    %71 = arith.remsi %51, %70 : vector<512x128xi32>
    %c0_i32_27 = arith.constant 0 : i32
    %72 = vector.broadcast %c0_i32_27 : i32 to vector<512x128xi32>
    %73 = arith.cmpi ne, %71, %72 : vector<512x128xi32>
    %c0_i32_28 = arith.constant 0 : i32
    %74 = vector.broadcast %c0_i32_28 : i32 to vector<512x128xi32>
    %75 = arith.cmpi slt, %71, %74 : vector<512x128xi32>
    %c0_i32_29 = arith.constant 0 : i32
    %76 = arith.cmpi slt, %69, %c0_i32_29 : i32
    %77 = vector.broadcast %76 : i1 to vector<512x128xi1>
    %78 = vector.broadcast %77 : vector<512x128xi1> to vector<512x128xi1>
    %79 = arith.xori %75, %78 : vector<512x128xi1>
    %80 = arith.andi %79, %73 : vector<512x128xi1>
    %81 = vector.broadcast %69 : i32 to vector<512x128xi32>
    %82 = arith.addi %71, %81 : vector<512x128xi32>
    %83 = arith.select %80, %82, %71 : vector<512x128xi1>, vector<512x128xi32>
    %c16_i32_30 = arith.constant 16 : i32
    %84 = vector.broadcast %c16_i32_30 : i32 to vector<512x128xi32>
    %85 = arith.cmpi sge, %67, %84 : vector<512x128xi32>
    %86 = arith.extui %85 : vector<512x128xi1> to vector<512x128xi32>
    %87 = arith.sitofp %86 : vector<512x128xi32> to vector<512x128xf32>
    %c240_i32 = arith.constant 240 : i32
    %88 = vector.broadcast %c240_i32 : i32 to vector<512x128xi32>
    %89 = arith.cmpi slt, %67, %88 : vector<512x128xi32>
    %90 = arith.extui %89 : vector<512x128xi1> to vector<512x128xi32>
    %91 = arith.sitofp %90 : vector<512x128xi32> to vector<512x128xf32>
    %c1_i32_31 = arith.constant 1 : i32
    %92 = vector.broadcast %c1_i32_31 : i32 to vector<512x128xi32>
    %93 = arith.cmpi sge, %83, %92 : vector<512x128xi32>
    %94 = arith.extui %93 : vector<512x128xi1> to vector<512x128xi32>
    %95 = arith.sitofp %94 : vector<512x128xi32> to vector<512x128xf32>
    %c15_i32 = arith.constant 15 : i32
    %96 = vector.broadcast %c15_i32 : i32 to vector<512x128xi32>
    %97 = arith.cmpi slt, %83, %96 : vector<512x128xi32>
    %98 = arith.extui %97 : vector<512x128xi1> to vector<512x128xi32>
    %99 = arith.sitofp %98 : vector<512x128xi32> to vector<512x128xf32>
    %c17_i32 = arith.constant 17 : i32
    %100 = tpu.dynamic_rotate %28 by %c17_i32 dim 0 : vector<512x128xf32>, i32 -> vector<512x128xf32>
    %101 = arith.mulf %100, %87 : vector<512x128xf32>
    %102 = arith.mulf %101, %95 : vector<512x128xf32>
    %c16_i32_32 = arith.constant 16 : i32
    %103 = tpu.dynamic_rotate %28 by %c16_i32_32 dim 0 : vector<512x128xf32>, i32 -> vector<512x128xf32>
    %104 = arith.mulf %103, %87 : vector<512x128xf32>
    %c32_i32 = arith.constant 32 : i32
    %105 = tpu.dynamic_rotate %104 by %c32_i32 dim 1 : vector<512x128xf32>, i32 -> vector<512x128xf32>
    %106 = arith.addf %102, %105 : vector<512x128xf32>
    %c15_i32_33 = arith.constant 15 : i32
    %107 = tpu.dynamic_rotate %28 by %c15_i32_33 dim 0 : vector<512x128xf32>, i32 -> vector<512x128xf32>
    %108 = arith.mulf %107, %87 : vector<512x128xf32>
    %109 = arith.mulf %108, %99 : vector<512x128xf32>
    %c64_i32 = arith.constant 64 : i32
    %110 = tpu.dynamic_rotate %109 by %c64_i32 dim 1 : vector<512x128xf32>, i32 -> vector<512x128xf32>
    %111 = arith.addf %106, %110 : vector<512x128xf32>
    %c1_i32_34 = arith.constant 1 : i32
    %112 = tpu.dynamic_rotate %28 by %c1_i32_34 dim 0 : vector<512x128xf32>, i32 -> vector<512x128xf32>
    %113 = arith.mulf %112, %95 : vector<512x128xf32>
    %c96_i32 = arith.constant 96 : i32
    %114 = tpu.dynamic_rotate %113 by %c96_i32 dim 1 : vector<512x128xf32>, i32 -> vector<512x128xf32>
    %115 = arith.addf %111, %114 : vector<512x128xf32>
    %c511_i32 = arith.constant 511 : i32
    %116 = tpu.dynamic_rotate %28 by %c511_i32 dim 0 : vector<512x128xf32>, i32 -> vector<512x128xf32>
    %117 = arith.mulf %116, %99 : vector<512x128xf32>
    %c32_i32_35 = arith.constant 32 : i32
    %118 = tpu.dynamic_rotate %117 by %c32_i32_35 dim 1 : vector<512x128xf32>, i32 -> vector<512x128xf32>
    %119 = arith.addf %28, %118 : vector<512x128xf32>
    %c497_i32 = arith.constant 497 : i32
    %120 = tpu.dynamic_rotate %28 by %c497_i32 dim 0 : vector<512x128xf32>, i32 -> vector<512x128xf32>
    %121 = arith.mulf %120, %91 : vector<512x128xf32>
    %122 = arith.mulf %121, %95 : vector<512x128xf32>
    %c64_i32_36 = arith.constant 64 : i32
    %123 = tpu.dynamic_rotate %122 by %c64_i32_36 dim 1 : vector<512x128xf32>, i32 -> vector<512x128xf32>
    %124 = arith.addf %119, %123 : vector<512x128xf32>
    %c496_i32 = arith.constant 496 : i32
    %125 = tpu.dynamic_rotate %28 by %c496_i32 dim 0 : vector<512x128xf32>, i32 -> vector<512x128xf32>
    %126 = arith.mulf %125, %91 : vector<512x128xf32>
    %c96_i32_37 = arith.constant 96 : i32
    %127 = tpu.dynamic_rotate %126 by %c96_i32_37 dim 1 : vector<512x128xf32>, i32 -> vector<512x128xf32>
    %128 = arith.addf %124, %127 : vector<512x128xf32>
    %c495_i32 = arith.constant 495 : i32
    %129 = tpu.dynamic_rotate %28 by %c495_i32 dim 0 : vector<512x128xf32>, i32 -> vector<512x128xf32>
    %130 = arith.mulf %129, %91 : vector<512x128xf32>
    %131 = arith.mulf %130, %99 : vector<512x128xf32>
    %c0_38 = arith.constant 0 : index
    %c0_39 = arith.constant 0 : index
    %132 = vector.load %arg5[%c0_38, %c0_39] : memref<384x128xf32, #tpu.memory_space<vmem>>, vector<128x128xf32>
    %cst_40 = arith.constant dense<0.000000e+00> : vector<512x128xf32>
    %133 = tpu.matmul %115, %132, %cst_40 {dimension_numbers = #tpu.dot_dimension_numbers<[1], [0], [0], [1], [0, 0, 1, 1], [], []>} : vector<512x128xf32>, vector<128x128xf32>, vector<512x128xf32> -> vector<512x128xf32>
    %c128 = arith.constant 128 : index
    %c0_41 = arith.constant 0 : index
    %134 = vector.load %arg5[%c128, %c0_41] : memref<384x128xf32, #tpu.memory_space<vmem>>, vector<128x128xf32>
    %cst_42 = arith.constant dense<0.000000e+00> : vector<512x128xf32>
    %135 = tpu.matmul %128, %134, %cst_42 {dimension_numbers = #tpu.dot_dimension_numbers<[1], [0], [0], [1], [0, 0, 1, 1], [], []>} : vector<512x128xf32>, vector<128x128xf32>, vector<512x128xf32> -> vector<512x128xf32>
    %136 = arith.addf %133, %135 : vector<512x128xf32>
    %c256 = arith.constant 256 : index
    %c0_43 = arith.constant 0 : index
    %137 = vector.load %arg5[%c256, %c0_43] : memref<384x128xf32, #tpu.memory_space<vmem>>, vector<128x128xf32>
    %cst_44 = arith.constant dense<0.000000e+00> : vector<512x128xf32>
    %138 = tpu.matmul %131, %137, %cst_44 {dimension_numbers = #tpu.dot_dimension_numbers<[1], [0], [0], [1], [0, 0, 1, 1], [], []>} : vector<512x128xf32>, vector<128x128xf32>, vector<512x128xf32> -> vector<512x128xf32>
    %139 = arith.addf %136, %138 : vector<512x128xf32>
    %cst_45 = arith.constant dense<0.000000e+00> : vector<2x128xf32>
    %140 = tpu.matmul %0, %139, %cst_45 {dimension_numbers = #tpu.dot_dimension_numbers<[1], [0], [0], [1], [0, 0, 1, 1], [], []>} : vector<2x512xf32>, vector<512x128xf32>, vector<2x128xf32> -> vector<2x128xf32>
    %141 = arith.mulf %139, %139 : vector<512x128xf32>
    %cst_46 = arith.constant dense<0.000000e+00> : vector<2x128xf32>
    %142 = tpu.matmul %0, %141, %cst_46 {dimension_numbers = #tpu.dot_dimension_numbers<[1], [0], [0], [1], [0, 0, 1, 1], [], []>} : vector<2x512xf32>, vector<512x128xf32>, vector<2x128xf32> -> vector<2x128xf32>
    %cst_47 = arith.constant 3.906250e-03 : f32
    %143 = vector.broadcast %cst_47 : f32 to vector<2x128xf32>
    %144 = arith.mulf %140, %143 : vector<2x128xf32>
    %cst_48 = arith.constant 3.906250e-03 : f32
    %145 = vector.broadcast %cst_48 : f32 to vector<2x128xf32>
    %146 = arith.mulf %142, %145 : vector<2x128xf32>
    %147 = arith.mulf %144, %144 : vector<2x128xf32>
    %148 = arith.subf %146, %147 : vector<2x128xf32>
    %cst_49 = arith.constant 9.99999974E-6 : f32
    %149 = vector.broadcast %cst_49 : f32 to vector<2x128xf32>
    %150 = arith.addf %148, %149 : vector<2x128xf32>
    %151 = math.rsqrt %150 : vector<2x128xf32>
    %cst_50 = arith.constant 0.000000e+00 : f32
    %152 = vector.broadcast %cst_50 : f32 to vector<2x128xf32>
    %153 = arith.subf %152, %144 : vector<2x128xf32>
    %154 = arith.mulf %153, %151 : vector<2x128xf32>
    %155 = tpu.concatenate %151, %154 in 1 : vector<2x128xf32>, vector<2x128xf32> -> vector<2x256xf32>
    %cst_51 = arith.constant dense<0.000000e+00> : vector<512x256xf32>
    %156 = tpu.matmul %1, %155, %cst_51 {dimension_numbers = #tpu.dot_dimension_numbers<[1], [0], [0], [1], [0, 0, 1, 1], [], []>} : vector<512x2xf32>, vector<2x256xf32>, vector<512x256xf32> -> vector<512x256xf32>
    %157 = vector.extract_strided_slice %156 {offsets = [0, 0], sizes = [512, 128], strides = [1, 1]} : vector<512x256xf32> to vector<512x128xf32>
    %158 = arith.mulf %139, %157 : vector<512x128xf32>
    %159 = vector.extract_strided_slice %156 {offsets = [0, 128], sizes = [512, 128], strides = [1, 1]} : vector<512x256xf32> to vector<512x128xf32>
    %160 = arith.addf %158, %159 : vector<512x128xf32>
    %cst_52 = arith.constant 0.000000e+00 : f32
    %161 = vector.broadcast %cst_52 : f32 to vector<512x128xf32>
    %162 = arith.maximumf %160, %161 : vector<512x128xf32>
    %c0_53 = arith.constant 0 : index
    %c0_54 = arith.constant 0 : index
    %163 = vector.load %arg6[%c0_53, %c0_54] : memref<128x128xf32, #tpu.memory_space<vmem>>, vector<128x128xf32>
    %cst_55 = arith.constant dense<0.000000e+00> : vector<512x128xf32>
    %164 = tpu.matmul %162, %163, %cst_55 {dimension_numbers = #tpu.dot_dimension_numbers<[1], [0], [0], [1], [0, 0, 1, 1], [], []>} : vector<512x128xf32>, vector<128x128xf32>, vector<512x128xf32> -> vector<512x128xf32>
    %cst_56 = arith.constant dense<0.000000e+00> : vector<2x128xf32>
    %165 = tpu.matmul %0, %164, %cst_56 {dimension_numbers = #tpu.dot_dimension_numbers<[1], [0], [0], [1], [0, 0, 1, 1], [], []>} : vector<2x512xf32>, vector<512x128xf32>, vector<2x128xf32> -> vector<2x128xf32>
    %166 = arith.mulf %164, %164 : vector<512x128xf32>
    %cst_57 = arith.constant dense<0.000000e+00> : vector<2x128xf32>
    %167 = tpu.matmul %0, %166, %cst_57 {dimension_numbers = #tpu.dot_dimension_numbers<[1], [0], [0], [1], [0, 0, 1, 1], [], []>} : vector<2x512xf32>, vector<512x128xf32>, vector<2x128xf32> -> vector<2x128xf32>
    %cst_58 = arith.constant 3.906250e-03 : f32
    %168 = vector.broadcast %cst_58 : f32 to vector<2x128xf32>
    %169 = arith.mulf %165, %168 : vector<2x128xf32>
    %cst_59 = arith.constant 3.906250e-03 : f32
    %170 = vector.broadcast %cst_59 : f32 to vector<2x128xf32>
    %171 = arith.mulf %167, %170 : vector<2x128xf32>
    %172 = arith.mulf %169, %169 : vector<2x128xf32>
    %173 = arith.subf %171, %172 : vector<2x128xf32>
    %cst_60 = arith.constant 9.99999974E-6 : f32
    %174 = vector.broadcast %cst_60 : f32 to vector<2x128xf32>
    %175 = arith.addf %173, %174 : vector<2x128xf32>
    %176 = math.rsqrt %175 : vector<2x128xf32>
    %cst_61 = arith.constant 0.000000e+00 : f32
    %177 = vector.broadcast %cst_61 : f32 to vector<2x128xf32>
    %178 = arith.subf %177, %169 : vector<2x128xf32>
    %179 = arith.mulf %178, %176 : vector<2x128xf32>
    %180 = tpu.concatenate %176, %179 in 1 : vector<2x128xf32>, vector<2x128xf32> -> vector<2x256xf32>
    %cst_62 = arith.constant dense<0.000000e+00> : vector<512x256xf32>
    %181 = tpu.matmul %1, %180, %cst_62 {dimension_numbers = #tpu.dot_dimension_numbers<[1], [0], [0], [1], [0, 0, 1, 1], [], []>} : vector<512x2xf32>, vector<2x256xf32>, vector<512x256xf32> -> vector<512x256xf32>
    %182 = vector.extract_strided_slice %181 {offsets = [0, 0], sizes = [512, 128], strides = [1, 1]} : vector<512x256xf32> to vector<512x128xf32>
    %183 = arith.mulf %164, %182 : vector<512x128xf32>
    %184 = vector.extract_strided_slice %181 {offsets = [0, 128], sizes = [512, 128], strides = [1, 1]} : vector<512x256xf32> to vector<512x128xf32>
    %185 = arith.addf %183, %184 : vector<512x128xf32>
    %cst_63 = arith.constant dense<0.000000e+00> : vector<2x128xf32>
    %186 = tpu.matmul %0, %185, %cst_63 {dimension_numbers = #tpu.dot_dimension_numbers<[1], [0], [0], [1], [0, 0, 1, 1], [], []>} : vector<2x512xf32>, vector<512x128xf32>, vector<2x128xf32> -> vector<2x128xf32>
    %cst_64 = arith.constant 3.906250e-03 : f32
    %187 = vector.broadcast %cst_64 : f32 to vector<2x128xf32>
    %188 = arith.mulf %186, %187 : vector<2x128xf32>
    %c0_65 = arith.constant 0 : index
    %c0_66 = arith.constant 0 : index
    %189 = vector.load %arg7[%c0_65, %c0_66] : memref<128x128xf32, #tpu.memory_space<vmem>>, vector<128x128xf32>
    %cst_67 = arith.constant dense<0.000000e+00> : vector<2x128xf32>
    %190 = tpu.matmul %188, %189, %cst_67 {dimension_numbers = #tpu.dot_dimension_numbers<[1], [0], [0], [1], [0, 0, 1, 1], [], []>} : vector<2x128xf32>, vector<128x128xf32>, vector<2x128xf32> -> vector<2x128xf32>
    %c0_68 = arith.constant 0 : index
    %c0_69 = arith.constant 0 : index
    %191 = vector.load %arg8[%c0_68, %c0_69] : memref<2x128xf32, #tpu.memory_space<vmem>>, vector<2x128xf32>
    %192 = arith.addf %190, %191 : vector<2x128xf32>
    %cst_70 = arith.constant 0.000000e+00 : f32
    %193 = vector.broadcast %cst_70 : f32 to vector<2x128xf32>
    %194 = arith.maximumf %192, %193 : vector<2x128xf32>
    %c0_71 = arith.constant 0 : index
    %c0_72 = arith.constant 0 : index
    %195 = vector.load %arg9[%c0_71, %c0_72] : memref<128x128xf32, #tpu.memory_space<vmem>>, vector<128x128xf32>
    %cst_73 = arith.constant dense<0.000000e+00> : vector<2x128xf32>
    %196 = tpu.matmul %194, %195, %cst_73 {dimension_numbers = #tpu.dot_dimension_numbers<[1], [0], [0], [1], [0, 0, 1, 1], [], []>} : vector<2x128xf32>, vector<128x128xf32>, vector<2x128xf32> -> vector<2x128xf32>
    %c0_74 = arith.constant 0 : index
    %c0_75 = arith.constant 0 : index
    %197 = vector.load %arg10[%c0_74, %c0_75] : memref<2x128xf32, #tpu.memory_space<vmem>>, vector<2x128xf32>
    %198 = arith.addf %196, %197 : vector<2x128xf32>
    %199 = arith.negf %198 : vector<2x128xf32>
    %200 = math.exp %199 : vector<2x128xf32>
    %cst_76 = arith.constant 1.000000e+00 : f32
    %201 = vector.broadcast %cst_76 : f32 to vector<2x128xf32>
    %202 = arith.addf %201, %200 : vector<2x128xf32>
    %203 = arith.divf %201, %202 : vector<2x128xf32>
    %cst_77 = arith.constant dense<0.000000e+00> : vector<512x128xf32>
    %204 = tpu.matmul %1, %203, %cst_77 {dimension_numbers = #tpu.dot_dimension_numbers<[1], [0], [0], [1], [0, 0, 1, 1], [], []>} : vector<512x2xf32>, vector<2x128xf32>, vector<512x128xf32> -> vector<512x128xf32>
    %c0_78 = arith.constant 0 : index
    %c0_79 = arith.constant 0 : index
    %205 = vector.load %arg11[%c0_78, %c0_79] : memref<128x128xf32, #tpu.memory_space<vmem>>, vector<128x128xf32>
    %cst_80 = arith.constant dense<0.000000e+00> : vector<512x128xf32>
    %206 = tpu.matmul %185, %205, %cst_80 {dimension_numbers = #tpu.dot_dimension_numbers<[1], [0], [0], [1], [0, 0, 1, 1], [], []>} : vector<512x128xf32>, vector<128x128xf32>, vector<512x128xf32> -> vector<512x128xf32>
    %207 = arith.negf %206 : vector<512x128xf32>
    %208 = math.exp %207 : vector<512x128xf32>
    %cst_81 = arith.constant 1.000000e+00 : f32
    %209 = vector.broadcast %cst_81 : f32 to vector<512x128xf32>
    %210 = arith.addf %209, %208 : vector<512x128xf32>
    %211 = arith.divf %209, %210 : vector<512x128xf32>
    %212 = arith.addf %204, %211 : vector<512x128xf32>
    %213 = arith.mulf %185, %212 : vector<512x128xf32>
    %214 = arith.addf %213, %50 : vector<512x128xf32>
    %cst_82 = arith.constant 0.000000e+00 : f32
    %215 = vector.broadcast %cst_82 : f32 to vector<512x128xf32>
    %216 = arith.maximumf %214, %215 : vector<512x128xf32>
    %c0_83 = arith.constant 0 : index
    %c0_84 = arith.constant 0 : index
    %217 = vector.load %arg12[%c0_83, %c0_84] : memref<512x128xf32, #tpu.memory_space<vmem>>, vector<512x128xf32>
    tpu.vector_store %arg12[%c0_83, %c0_84], %216 {strides = array<i32>} : memref<512x128xf32, #tpu.memory_space<vmem>>, vector<512x128xf32>,
    return
  }
  func.func @transform_0(%arg0: i32) -> (i32, i32) {
    %c0_i32 = arith.constant 0 : i32
    %c0_i32_0 = arith.constant 0 : i32
    return %arg0, %c0_i32 : i32, i32
  }
  func.func @transform_1(%arg0: i32) -> (i32, i32) {
    %c0_i32 = arith.constant 0 : i32
    %c0_i32_0 = arith.constant 0 : i32
    %c0_i32_1 = arith.constant 0 : i32
    return %c0_i32, %c0_i32_0 : i32, i32
  }
  func.func @transform_2(%arg0: i32) -> (i32, i32) {
    %c0_i32 = arith.constant 0 : i32
    %c0_i32_0 = arith.constant 0 : i32
    %c0_i32_1 = arith.constant 0 : i32
    return %c0_i32, %c0_i32_0 : i32, i32
  }
  func.func @transform_3(%arg0: i32) -> (i32, i32) {
    %c0_i32 = arith.constant 0 : i32
    %c0_i32_0 = arith.constant 0 : i32
    %c0_i32_1 = arith.constant 0 : i32
    return %c0_i32, %c0_i32_0 : i32, i32
  }
  func.func @transform_4(%arg0: i32) -> (i32, i32) {
    %c0_i32 = arith.constant 0 : i32
    %c0_i32_0 = arith.constant 0 : i32
    %c0_i32_1 = arith.constant 0 : i32
    return %c0_i32, %c0_i32_0 : i32, i32
  }
  func.func @transform_5(%arg0: i32) -> (i32, i32) {
    %c0_i32 = arith.constant 0 : i32
    %c0_i32_0 = arith.constant 0 : i32
    %c0_i32_1 = arith.constant 0 : i32
    return %c0_i32, %c0_i32_0 : i32, i32
  }
  func.func @transform_6(%arg0: i32) -> (i32, i32) {
    %c0_i32 = arith.constant 0 : i32
    %c0_i32_0 = arith.constant 0 : i32
    %c0_i32_1 = arith.constant 0 : i32
    return %c0_i32, %c0_i32_0 : i32, i32
  }
  func.func @transform_7(%arg0: i32) -> (i32, i32) {
    %c0_i32 = arith.constant 0 : i32
    %c0_i32_0 = arith.constant 0 : i32
    %c0_i32_1 = arith.constant 0 : i32
    return %c0_i32, %c0_i32_0 : i32, i32
  }
  func.func @transform_8(%arg0: i32) -> (i32, i32) {
    %c0_i32 = arith.constant 0 : i32
    %c0_i32_0 = arith.constant 0 : i32
    %c0_i32_1 = arith.constant 0 : i32
    return %c0_i32, %c0_i32_0 : i32, i32
  }
  func.func @transform_9(%arg0: i32) -> (i32, i32) {
    %c0_i32 = arith.constant 0 : i32
    %c0_i32_0 = arith.constant 0 : i32
    %c0_i32_1 = arith.constant 0 : i32
    return %c0_i32, %c0_i32_0 : i32, i32
  }
  func.func @transform_10(%arg0: i32) -> (i32, i32) {
    %c0_i32 = arith.constant 0 : i32
    %c0_i32_0 = arith.constant 0 : i32
    %c0_i32_1 = arith.constant 0 : i32
    return %c0_i32, %c0_i32_0 : i32, i32
  }
  func.func @transform_11(%arg0: i32) -> (i32, i32) {
    %c0_i32 = arith.constant 0 : i32
    %c0_i32_0 = arith.constant 0 : i32
    return %arg0, %c0_i32 : i32, i32
  }
}

</mosaic_0001>

<llo_original>
// kernel: tpu_custom_call.1
$region0: #{tpu_custom_call.1}
  #allocation0 [shape = 'u32[]', space=smem, size = 0x4, offset = 0x4, fixed_abs, tag = 'smem constant byte address 0x4 - core index']
  #allocation1 [shape = 'u32[72,128]{1,0:T(1,128)}', space=vmem, size = 0x9000, scoped, tag = 'internal scratch']
  %s0 = inlined_call_operand.vmem [shape: f32[512,4], index: 0, kind: input, shape index: {}]
  %s1 = inlined_call_operand.vmem [shape: f32[2,512], index: 1, kind: input, shape index: {}]
  %s2 = inlined_call_operand.vmem [shape: f32[512,2], index: 2, kind: input, shape index: {}]
  %s3 = inlined_call_operand.vmem [shape: f32[4,256], index: 3, kind: input, shape index: {}]
  %s4 = inlined_call_operand.vmem [shape: f32[384,128], index: 4, kind: input, shape index: {}]
  %s5 = inlined_call_operand.vmem [shape: f32[128,128], index: 5, kind: input, shape index: {}]
  %s6 = inlined_call_operand.vmem [shape: f32[128,128], index: 6, kind: input, shape index: {}]
  %s7 = inlined_call_operand.vmem [shape: f32[2,128], index: 7, kind: input, shape index: {}]
  %s8 = inlined_call_operand.vmem [shape: f32[128,128], index: 8, kind: input, shape index: {}]
  %s9 = inlined_call_operand.vmem [shape: f32[2,128], index: 9, kind: input, shape index: {}]
  %s10 = inlined_call_operand.vmem [shape: f32[128,128], index: 10, kind: input, shape index: {}]
  %s11 = inlined_call_operand.hbm [shape: f32[512,128], index: 11, kind: output, shape index: {}]
  %s12 = sld [smem:[#allocation0]]
  $region54: #{tpu_custom_call.1} parent=0
    _
  %s14 = ssub.s32 1, %s12
  %s15 = scalar_select 0, %s14, %s12
  $region1: #{tpu_custom_call.1} parent=0
    #allocation2 [shape = 'u8[262144]{0}', space=vmem, size = 0x40000, scoped, tag = 'output window, operand 0, single buffered']
    #allocation3 [shape = 's32[1]{0}', space=sflag, size = 0x4, scoped, tag = 'scoped memory for tpu_custom_call.1']
    %16 = vsyncpa [#allocation3], 0
    // Predicated region
    $region2: #{tpu_custom_call.1} parent=1 // pred_check
      _
    $region3: #{tpu_custom_call.1} parent=1 // pred_check_branch
      %18 = sbr.rel (0) target = $region5
    $region4: #{tpu_custom_call.1} parent=1 // pred_region
      _
    $region5: #{tpu_custom_call.1} parent=1 // pred_fallthru
      _
    // Predicated region
    $region6: #{tpu_custom_call.1} parent=1 // pred_check
      _
    $region7: #{tpu_custom_call.1} parent=1 // pred_check_branch
      %20 = sbr.rel (0) target = $region9
    $region8: #{tpu_custom_call.1} parent=1 // pred_region
      _
    $region9: #{tpu_custom_call.1} parent=1 // pred_fallthru
      _
    // Predicated region
    $region10: #{tpu_custom_call.1} parent=1 // pred_check
      _
    $region11: #{tpu_custom_call.1} parent=1 // pred_check_branch
      %22 = sbr.rel (0) target = $region13
    $region12: #{tpu_custom_call.1} parent=1 // pred_region
      _
    $region13: #{tpu_custom_call.1} parent=1 // pred_fallthru
      _
    // Predicated region
    $region14: #{tpu_custom_call.1} parent=1 // pred_check
      _
    $region15: #{tpu_custom_call.1} parent=1 // pred_check_branch
      %24 = sbr.rel (0) target = $region17
    $region16: #{tpu_custom_call.1} parent=1 // pred_region
      _
    $region17: #{tpu_custom_call.1} parent=1 // pred_fallthru
      _
    // Predicated region
    $region18: #{tpu_custom_call.1} parent=1 // pred_check
      _
    $region19: #{tpu_custom_call.1} parent=1 // pred_check_branch
      %26 = sbr.rel (0) target = $region21
    $region20: #{tpu_custom_call.1} parent=1 // pred_region
      _
    $region21: #{tpu_custom_call.1} parent=1 // pred_fallthru
      _
    // Predicated region
    $region22: #{tpu_custom_call.1} parent=1 // pred_check
      _
    $region23: #{tpu_custom_call.1} parent=1 // pred_check_branch
      %28 = sbr.rel (0) target = $region25
    $region24: #{tpu_custom_call.1} parent=1 // pred_region
      _
    $region25: #{tpu_custom_call.1} parent=1 // pred_fallthru
      _
    // Predicated region
    $region26: #{tpu_custom_call.1} parent=1 // pred_check
      _
    $region27: #{tpu_custom_call.1} parent=1 // pred_check_branch
      %30 = sbr.rel (0) target = $region29
    $region28: #{tpu_custom_call.1} parent=1 // pred_region
      _
    $region29: #{tpu_custom_call.1} parent=1 // pred_fallthru
      _
    // Predicated region
    $region30: #{tpu_custom_call.1} parent=1 // pred_check
      _
    $region31: #{tpu_custom_call.1} parent=1 // pred_check_branch
      %32 = sbr.rel (0) target = $region33
    $region32: #{tpu_custom_call.1} parent=1 // pred_region
      _
    $region33: #{tpu_custom_call.1} parent=1 // pred_fallthru
      _
    // Predicated region
    $region34: #{tpu_custom_call.1} parent=1 // pred_check
      _
    $region35: #{tpu_custom_call.1} parent=1 // pred_check_branch
      %34 = sbr.rel (0) target = $region37
    $region36: #{tpu_custom_call.1} parent=1 // pred_region
      _
    $region37: #{tpu_custom_call.1} parent=1 // pred_fallthru
      _
    // Predicated region
    $region38: #{tpu_custom_call.1} parent=1 // pred_check
      _
    $region39: #{tpu_custom_call.1} parent=1 // pred_check_branch
      %36 = sbr.rel (0) target = $region41
    $region40: #{tpu_custom_call.1} parent=1 // pred_region
      _
    $region41: #{tpu_custom_call.1} parent=1 // pred_fallthru
      _
    // Predicated region
    $region42: #{tpu_custom_call.1} parent=1 // pred_check
      _
    $region43: #{tpu_custom_call.1} parent=1 // pred_check_branch
      %38 = sbr.rel (0) target = $region45
    $region44: #{tpu_custom_call.1} parent=1 // pred_region
      _
    $region45: #{tpu_custom_call.1} parent=1 // pred_fallthru
      _
    %v39 = vld [vmem:[%s1] sm:$0xff]
    %v40 = vld [vmem:[%s2] sm:$0xff]
    %v41 = vld [vmem:[%s2 + $0x8] sm:$0xff]
    %v42 = vld [vmem:[%s2 + $0x10] sm:$0xff]
    %v43 = vld [vmem:[%s2 + $0x18] sm:$0xff]
    %v44 = vld [vmem:[%s2 + $0x20] sm:$0xff]
    %v45 = vld [vmem:[%s2 + $0x28] sm:$0xff]
    %v46 = vld [vmem:[%s2 + $0x30] sm:$0xff]
    %v47 = vld [vmem:[%s2 + $0x38] sm:$0xff]
    %v48 = vld [vmem:[%s2 + $0x40] sm:$0xff]
    %v49 = vld [vmem:[%s2 + $0x48] sm:$0xff]
    %v50 = vld [vmem:[%s2 + $0x50] sm:$0xff]
    %v51 = vld [vmem:[%s2 + $0x58] sm:$0xff]
    %v52 = vld [vmem:[%s2 + $0x60] sm:$0xff]
    %v53 = vld [vmem:[%s2 + $0x68] sm:$0xff]
    %v54 = vld [vmem:[%s2 + $0x70] sm:$0xff]
    %v55 = vld [vmem:[%s2 + $0x78] sm:$0xff]
    %v56 = vld [vmem:[%s2 + $0x80] sm:$0xff]
    %v57 = vld [vmem:[%s2 + $0x88] sm:$0xff]
    %v58 = vld [vmem:[%s2 + $0x90] sm:$0xff]
    %v59 = vld [vmem:[%s2 + $0x98] sm:$0xff]
    %v60 = vld [vmem:[%s2 + $0xa0] sm:$0xff]
    %v61 = vld [vmem:[%s2 + $0xa8] sm:$0xff]
    %v62 = vld [vmem:[%s2 + $0xb0] sm:$0xff]
    %v63 = vld [vmem:[%s2 + $0xb8] sm:$0xff]
    %v64 = vld [vmem:[%s2 + $0xc0] sm:$0xff]
    %v65 = vld [vmem:[%s2 + $0xc8] sm:$0xff]
    %v66 = vld [vmem:[%s2 + $0xd0] sm:$0xff]
    %v67 = vld [vmem:[%s2 + $0xd8] sm:$0xff]
    %v68 = vld [vmem:[%s2 + $0xe0] sm:$0xff]
    %v69 = vld [vmem:[%s2 + $0xe8] sm:$0xff]
    %v70 = vld [vmem:[%s2 + $0xf0] sm:$0xff]
    %v71 = vld [vmem:[%s2 + $0xf8] sm:$0xff]
    %v72 = vld [vmem:[%s2 + $0x100] sm:$0xff]
    %v73 = vld [vmem:[%s2 + $0x108] sm:$0xff]
    %v74 = vld [vmem:[%s2 + $0x110] sm:$0xff]
    %v75 = vld [vmem:[%s2 + $0x118] sm:$0xff]
    %v76 = vld [vmem:[%s2 + $0x120] sm:$0xff]
    %v77 = vld [vmem:[%s2 + $0x128] sm:$0xff]
    %v78 = vld [vmem:[%s2 + $0x130] sm:$0xff]
    %v79 = vld [vmem:[%s2 + $0x138] sm:$0xff]
    %v80 = vld [vmem:[%s2 + $0x140] sm:$0xff]
    %v81 = vld [vmem:[%s2 + $0x148] sm:$0xff]
    %v82 = vld [vmem:[%s2 + $0x150] sm:$0xff]
    %v83 = vld [vmem:[%s2 + $0x158] sm:$0xff]
    %v84 = vld [vmem:[%s2 + $0x160] sm:$0xff]
    %v85 = vld [vmem:[%s2 + $0x168] sm:$0xff]
    %v86 = vld [vmem:[%s2 + $0x170] sm:$0xff]
    %v87 = vld [vmem:[%s2 + $0x178] sm:$0xff]
    %v88 = vld [vmem:[%s2 + $0x180] sm:$0xff]
    %v89 = vld [vmem:[%s2 + $0x188] sm:$0xff]
    %v90 = vld [vmem:[%s2 + $0x190] sm:$0xff]
    %v91 = vld [vmem:[%s2 + $0x198] sm:$0xff]
    %v92 = vld [vmem:[%s2 + $0x1a0] sm:$0xff]
    %v93 = vld [vmem:[%s2 + $0x1a8] sm:$0xff]
    %v94 = vld [vmem:[%s2 + $0x1b0] sm:$0xff]
    %v95 = vld [vmem:[%s2 + $0x1b8] sm:$0xff]
    %v96 = vld [vmem:[%s2 + $0x1c0] sm:$0xff]
    %v97 = vld [vmem:[%s2 + $0x1c8] sm:$0xff]
    %v98 = vld [vmem:[%s2 + $0x1d0] sm:$0xff]
    %v99 = vld [vmem:[%s2 + $0x1d8] sm:$0xff]
    %v100 = vld [vmem:[%s2 + $0x1e0] sm:$0xff]
    %v101 = vld [vmem:[%s2 + $0x1e8] sm:$0xff]
    %v102 = vld [vmem:[%s2 + $0x1f0] sm:$0xff]
    %v103 = vld [vmem:[%s2 + $0x1f8] sm:$0xff]
    %v104 = vld [vmem:[%s0] sm:$0xff]
    %v105 = vld [vmem:[%s0 + $0x8] sm:$0xff]
    %v106 = vld [vmem:[%s0 + $0x10] sm:$0xff]
    %v107 = vld [vmem:[%s0 + $0x18] sm:$0xff]
    %v108 = vld [vmem:[%s0 + $0x20] sm:$0xff]
    %v109 = vld [vmem:[%s0 + $0x28] sm:$0xff]
    %v110 = vld [vmem:[%s0 + $0x30] sm:$0xff]
    %v111 = vld [vmem:[%s0 + $0x38] sm:$0xff]
    %v112 = vld [vmem:[%s0 + $0x40] sm:$0xff]
    %v113 = vld [vmem:[%s0 + $0x48] sm:$0xff]
    %v114 = vld [vmem:[%s0 + $0x50] sm:$0xff]
    %v115 = vld [vmem:[%s0 + $0x58] sm:$0xff]
    %v116 = vld [vmem:[%s0 + $0x60] sm:$0xff]
    %v117 = vld [vmem:[%s0 + $0x68] sm:$0xff]
    %v118 = vld [vmem:[%s0 + $0x70] sm:$0xff]
    %v119 = vld [vmem:[%s0 + $0x78] sm:$0xff]
    %v120 = vld [vmem:[%s0 + $0x80] sm:$0xff]
    %v121 = vld [vmem:[%s0 + $0x88] sm:$0xff]
    %v122 = vld [vmem:[%s0 + $0x90] sm:$0xff]
    %v123 = vld [vmem:[%s0 + $0x98] sm:$0xff]
    %v124 = vld [vmem:[%s0 + $0xa0] sm:$0xff]
    %v125 = vld [vmem:[%s0 + $0xa8] sm:$0xff]
    %v126 = vld [vmem:[%s0 + $0xb0] sm:$0xff]
    %v127 = vld [vmem:[%s0 + $0xb8] sm:$0xff]
    %v128 = vld [vmem:[%s0 + $0xc0] sm:$0xff]
    %v129 = vld [vmem:[%s0 + $0xc8] sm:$0xff]
    %v130 = vld [vmem:[%s0 + $0xd0] sm:$0xff]
    %v131 = vld [vmem:[%s0 + $0xd8] sm:$0xff]
    %v132 = vld [vmem:[%s0 + $0xe0] sm:$0xff]
    %v133 = vld [vmem:[%s0 + $0xe8] sm:$0xff]
    %v134 = vld [vmem:[%s0 + $0xf0] sm:$0xff]
    %v135 = vld [vmem:[%s0 + $0xf8] sm:$0xff]
    %v136 = vld [vmem:[%s0 + $0x100] sm:$0xff]
    %v137 = vld [vmem:[%s0 + $0x108] sm:$0xff]
    %v138 = vld [vmem:[%s0 + $0x110] sm:$0xff]
    %v139 = vld [vmem:[%s0 + $0x118] sm:$0xff]
    %v140 = vld [vmem:[%s0 + $0x120] sm:$0xff]
    %v141 = vld [vmem:[%s0 + $0x128] sm:$0xff]
    %v142 = vld [vmem:[%s0 + $0x130] sm:$0xff]
    %v143 = vld [vmem:[%s0 + $0x138] sm:$0xff]
    %v144 = vld [vmem:[%s0 + $0x140] sm:$0xff]
    %v145 = vld [vmem:[%s0 + $0x148] sm:$0xff]
    %v146 = vld [vmem:[%s0 + $0x150] sm:$0xff]
    %v147 = vld [vmem:[%s0 + $0x158] sm:$0xff]
    %v148 = vld [vmem:[%s0 + $0x160] sm:$0xff]
    %v149 = vld [vmem:[%s0 + $0x168] sm:$0xff]
    %v150 = vld [vmem:[%s0 + $0x170] sm:$0xff]
    %v151 = vld [vmem:[%s0 + $0x178] sm:$0xff]
    %v152 = vld [vmem:[%s0 + $0x180] sm:$0xff]
    %v153 = vld [vmem:[%s0 + $0x188] sm:$0xff]
    %v154 = vld [vmem:[%s0 + $0x190] sm:$0xff]
    %v155 = vld [vmem:[%s0 + $0x198] sm:$0xff]
    %v156 = vld [vmem:[%s0 + $0x1a0] sm:$0xff]
    %v157 = vld [vmem:[%s0 + $0x1a8] sm:$0xff]
    %v158 = vld [vmem:[%s0 + $0x1b0] sm:$0xff]
    %v159 = vld [vmem:[%s0 + $0x1b8] sm:$0xff]
    %v160 = vld [vmem:[%s0 + $0x1c0] sm:$0xff]
    %v161 = vld [vmem:[%s0 + $0x1c8] sm:$0xff]
    %v162 = vld [vmem:[%s0 + $0x1d0] sm:$0xff]
    %v163 = vld [vmem:[%s0 + $0x1d8] sm:$0xff]
    %v164 = vld [vmem:[%s0 + $0x1e0] sm:$0xff]
    %v165 = vld [vmem:[%s0 + $0x1e8] sm:$0xff]
    %v166 = vld [vmem:[%s0 + $0x1f0] sm:$0xff]
    %v167 = vld [vmem:[%s0 + $0x1f8] sm:$0xff]
    %v168 = vld [vmem:[%s3] sm:$0xff]
    %170 = vst [vmem:[#allocation1] ss:$2 sm:$0xff] %v168
    %v171 = vld.sshfl [vmem:[#allocation1] sm:$0xff pattern:$0x75316420]
    %v172 = vld.sshfl [vmem:[#allocation1 + $0x8] sm:$0xff pattern:$0x75316420]
    %vm173 = vcmask 31744
    %v175 = vsel %vm173, %v104, 0
    %v178 = vsel %vm173, %v105, 0
    %v181 = vsel %vm173, %v106, 0
    %v184 = vsel %vm173, %v107, 0
    %v187 = vsel %vm173, %v108, 0
    %v190 = vsel %vm173, %v109, 0
    %v193 = vsel %vm173, %v110, 0
    %v196 = vsel %vm173, %v111, 0
    %v199 = vsel %vm173, %v112, 0
    %v202 = vsel %vm173, %v113, 0
    %v205 = vsel %vm173, %v114, 0
    %v208 = vsel %vm173, %v115, 0
    %v211 = vsel %vm173, %v116, 0
    %v214 = vsel %vm173, %v117, 0
    %v217 = vsel %vm173, %v118, 0
    %v220 = vsel %vm173, %v119, 0
    %v223 = vsel %vm173, %v120, 0
    %v226 = vsel %vm173, %v121, 0
    %v229 = vsel %vm173, %v122, 0
    %v232 = vsel %vm173, %v123, 0
    %v235 = vsel %vm173, %v124, 0
    %v238 = vsel %vm173, %v125, 0
    %v241 = vsel %vm173, %v126, 0
    %v244 = vsel %vm173, %v127, 0
    %v247 = vsel %vm173, %v128, 0
    %v250 = vsel %vm173, %v129, 0
    %v253 = vsel %vm173, %v130, 0
    %v256 = vsel %vm173, %v131, 0
    %v259 = vsel %vm173, %v132, 0
    %v262 = vsel %vm173, %v133, 0
    %v265 = vsel %vm173, %v134, 0
    %v268 = vsel %vm173, %v135, 0
    %v271 = vsel %vm173, %v136, 0
    %v274 = vsel %vm173, %v137, 0
    %v277 = vsel %vm173, %v138, 0
    %v280 = vsel %vm173, %v139, 0
    %v283 = vsel %vm173, %v140, 0
    %v286 = vsel %vm173, %v141, 0
    %v289 = vsel %vm173, %v142, 0
    %v292 = vsel %vm173, %v143, 0
    %v295 = vsel %vm173, %v144, 0
    %v298 = vsel %vm173, %v145, 0
    %v301 = vsel %vm173, %v146, 0
    %v304 = vsel %vm173, %v147, 0
    %v307 = vsel %vm173, %v148, 0
    %v310 = vsel %vm173, %v149, 0
    %v313 = vsel %vm173, %v150, 0
    %v316 = vsel %vm173, %v151, 0
    %v319 = vsel %vm173, %v152, 0
    %v322 = vsel %vm173, %v153, 0
    %v325 = vsel %vm173, %v154, 0
    %v328 = vsel %vm173, %v155, 0
    %v331 = vsel %vm173, %v156, 0
    %v334 = vsel %vm173, %v157, 0
    %v337 = vsel %vm173, %v158, 0
    %v340 = vsel %vm173, %v159, 0
    %v343 = vsel %vm173, %v160, 0
    %v346 = vsel %vm173, %v161, 0
    %v349 = vsel %vm173, %v162, 0
    %v352 = vsel %vm173, %v163, 0
    %v355 = vsel %vm173, %v164, 0
    %v358 = vsel %vm173, %v165, 0
    %v361 = vsel %vm173, %v166, 0
    %v364 = vsel %vm173, %v167, 0
    %vm366 = vcmask 1043456
    %v367 = vsel %vm366, %v171, 0
    %v369 = vsel %vm366, %v172, 0
    %371 = vmatpush.msra.mxu0 0.0
    %372 = vmatpush.msra.mxu0 0.0
    %373 = vmatpush.msra.mxu0 0.0
    %374 = vmatpush.msra.mxu0 0.0
    %375 = vmatpush.msra.mxu0 0.0
    %376 = vmatpush.msra.mxu0 0.0
    %377 = vmatpush.msra.mxu0 0.0
    %378 = vmatpush.msra.mxu0 0.0
    %379 = vmatpush.msra.mxu0 0.0
    %380 = vmatpush.msra.mxu0 0.0
    %381 = vmatpush.msra.mxu0 0.0
    %382 = vmatpush.msra.mxu0 0.0
    %383 = vmatpush.msra.mxu0 0.0
    %384 = vmatpush.msra.mxu0 0.0
    %385 = vmatpush.msra.mxu0 0.0
    %386 = vmatpush.msra.mxu0 %v367
    %387 = vmatmul.f32.gmra.mxu0 %v175
    %v388 = vpop.f32.mrf.mxu0
    %v389 = vadd.f32 0.0, %v388
    %390 = vmatmul.f32.gmra.mxu0 %v178
    %v391 = vpop.f32.mrf.mxu0
    %v392 = vadd.f32 0.0, %v391
    %393 = vmatmul.f32.gmra.mxu0 %v181
    %v394 = vpop.f32.mrf.mxu0
    %v395 = vadd.f32 0.0, %v394
    %396 = vmatmul.f32.gmra.mxu0 %v184
    %v397 = vpop.f32.mrf.mxu0
    %v398 = vadd.f32 0.0, %v397
    %399 = vmatmul.f32.gmra.mxu0 %v187
    %v400 = vpop.f32.mrf.mxu0
    %v401 = vadd.f32 0.0, %v400
    %402 = vmatmul.f32.gmra.mxu0 %v190
    %v403 = vpop.f32.mrf.mxu0
    %v404 = vadd.f32 0.0, %v403
    %405 = vmatmul.f32.gmra.mxu0 %v193
    %v406 = vpop.f32.mrf.mxu0
    %v407 = vadd.f32 0.0, %v406
    %408 = vmatmul.f32.gmra.mxu0 %v196
    %v409 = vpop.f32.mrf.mxu0
    %v410 = vadd.f32 0.0, %v409
    %411 = vmatmul.f32.gmra.mxu0 %v199
    %v412 = vpop.f32.mrf.mxu0
    %v413 = vadd.f32 0.0, %v412
    %414 = vmatmul.f32.gmra.mxu0 %v202
    %v415 = vpop.f32.mrf.mxu0
    %v416 = vadd.f32 0.0, %v415
    %417 = vmatmul.f32.gmra.mxu0 %v205
    %v418 = vpop.f32.mrf.mxu0
    %v419 = vadd.f32 0.0, %v418
    %420 = vmatmul.f32.gmra.mxu0 %v208
    %v421 = vpop.f32.mrf.mxu0
    %v422 = vadd.f32 0.0, %v421
    %423 = vmatmul.f32.gmra.mxu0 %v211
    %v424 = vpop.f32.mrf.mxu0
    %v425 = vadd.f32 0.0, %v424
    %426 = vmatmul.f32.gmra.mxu0 %v214
    %v427 = vpop.f32.mrf.mxu0
    %v428 = vadd.f32 0.0, %v427
    %429 = vmatmul.f32.gmra.mxu0 %v217
    %v430 = vpop.f32.mrf.mxu0
    %v431 = vadd.f32 0.0, %v430
    %432 = vmatmul.f32.gmra.mxu0 %v220
    %v433 = vpop.f32.mrf.mxu0
    %v434 = vadd.f32 0.0, %v433
    %435 = vmatmul.f32.gmra.mxu0 %v223
    %v436 = vpop.f32.mrf.mxu0
    %v437 = vadd.f32 0.0, %v436
    %438 = vmatmul.f32.gmra.mxu0 %v226
    %v439 = vpop.f32.mrf.mxu0
    %v440 = vadd.f32 0.0, %v439
    %441 = vmatmul.f32.gmra.mxu0 %v229
    %v442 = vpop.f32.mrf.mxu0
    %v443 = vadd.f32 0.0, %v442
    %444 = vmatmul.f32.gmra.mxu0 %v232
    %v445 = vpop.f32.mrf.mxu0
    %v446 = vadd.f32 0.0, %v445
    %447 = vmatmul.f32.gmra.mxu0 %v235
    %v448 = vpop.f32.mrf.mxu0
    %v449 = vadd.f32 0.0, %v448
    %450 = vmatmul.f32.gmra.mxu0 %v238
    %v451 = vpop.f32.mrf.mxu0
    %v452 = vadd.f32 0.0, %v451
    %453 = vmatmul.f32.gmra.mxu0 %v241
    %v454 = vpop.f32.mrf.mxu0
    %v455 = vadd.f32 0.0, %v454
    %456 = vmatmul.f32.gmra.mxu0 %v244
    %v457 = vpop.f32.mrf.mxu0
    %v458 = vadd.f32 0.0, %v457
    %459 = vmatmul.f32.gmra.mxu0 %v247
    %v460 = vpop.f32.mrf.mxu0
    %v461 = vadd.f32 0.0, %v460
    %462 = vmatmul.f32.gmra.mxu0 %v250
    %v463 = vpop.f32.mrf.mxu0
    %v464 = vadd.f32 0.0, %v463
    %465 = vmatmul.f32.gmra.mxu0 %v253
    %v466 = vpop.f32.mrf.mxu0
    %v467 = vadd.f32 0.0, %v466
    %468 = vmatmul.f32.gmra.mxu0 %v256
    %v469 = vpop.f32.mrf.mxu0
    %v470 = vadd.f32 0.0, %v469
    %471 = vmatmul.f32.gmra.mxu0 %v259
    %v472 = vpop.f32.mrf.mxu0
    %v473 = vadd.f32 0.0, %v472
    %474 = vmatmul.f32.gmra.mxu0 %v262
    %v475 = vpop.f32.mrf.mxu0
    %v476 = vadd.f32 0.0, %v475
    %477 = vmatmul.f32.gmra.mxu0 %v265
    %v478 = vpop.f32.mrf.mxu0
    %v479 = vadd.f32 0.0, %v478
    %480 = vmatmul.f32.gmra.mxu0 %v268
    %v481 = vpop.f32.mrf.mxu0
    %v482 = vadd.f32 0.0, %v481
    %483 = vmatmul.f32.gmra.mxu0 %v271
    %v484 = vpop.f32.mrf.mxu0
    %v485 = vadd.f32 0.0, %v484
    %486 = vmatmul.f32.gmra.mxu0 %v274
    %v487 = vpop.f32.mrf.mxu0
    %v488 = vadd.f32 0.0, %v487
    %489 = vmatmul.f32.gmra.mxu0 %v277
    %v490 = vpop.f32.mrf.mxu0
    %v491 = vadd.f32 0.0, %v490
    %492 = vmatmul.f32.gmra.mxu0 %v280
    %v493 = vpop.f32.mrf.mxu0
    %v494 = vadd.f32 0.0, %v493
    %495 = vmatmul.f32.gmra.mxu0 %v283
    %v496 = vpop.f32.mrf.mxu0
    %v497 = vadd.f32 0.0, %v496
    %498 = vmatmul.f32.gmra.mxu0 %v286
    %v499 = vpop.f32.mrf.mxu0
    %v500 = vadd.f32 0.0, %v499
    %501 = vmatmul.f32.gmra.mxu0 %v289
    %v502 = vpop.f32.mrf.mxu0
    %v503 = vadd.f32 0.0, %v502
    %504 = vmatmul.f32.gmra.mxu0 %v292
    %v505 = vpop.f32.mrf.mxu0
    %v506 = vadd.f32 0.0, %v505
    %507 = vmatmul.f32.gmra.mxu0 %v295
    %v508 = vpop.f32.mrf.mxu0
    %v509 = vadd.f32 0.0, %v508
    %510 = vmatmul.f32.gmra.mxu0 %v298
    %v511 = vpop.f32.mrf.mxu0
    %v512 = vadd.f32 0.0, %v511
    %513 = vmatmul.f32.gmra.mxu0 %v301
    %v514 = vpop.f32.mrf.mxu0
    %v515 = vadd.f32 0.0, %v514
    %516 = vmatmul.f32.gmra.mxu0 %v304
    %v517 = vpop.f32.mrf.mxu0
    %v518 = vadd.f32 0.0, %v517
    %519 = vmatmul.f32.gmra.mxu0 %v307
    %v520 = vpop.f32.mrf.mxu0
    %v521 = vadd.f32 0.0, %v520
    %522 = vmatmul.f32.gmra.mxu0 %v310
    %v523 = vpop.f32.mrf.mxu0
    %v524 = vadd.f32 0.0, %v523
    %525 = vmatmul.f32.gmra.mxu0 %v313
    %v526 = vpop.f32.mrf.mxu0
    %v527 = vadd.f32 0.0, %v526
    %528 = vmatmul.f32.gmra.mxu0 %v316
    %v529 = vpop.f32.mrf.mxu0
    %v530 = vadd.f32 0.0, %v529
    %531 = vmatmul.f32.gmra.mxu0 %v319
    %v532 = vpop.f32.mrf.mxu0
    %v533 = vadd.f32 0.0, %v532
    %534 = vmatmul.f32.gmra.mxu0 %v322
    %v535 = vpop.f32.mrf.mxu0
    %v536 = vadd.f32 0.0, %v535
    %537 = vmatmul.f32.gmra.mxu0 %v325
    %v538 = vpop.f32.mrf.mxu0
    %v539 = vadd.f32 0.0, %v538
    %540 = vmatmul.f32.gmra.mxu0 %v328
    %v541 = vpop.f32.mrf.mxu0
    %v542 = vadd.f32 0.0, %v541
    %543 = vmatmul.f32.gmra.mxu0 %v331
    %v544 = vpop.f32.mrf.mxu0
    %v545 = vadd.f32 0.0, %v544
    %546 = vmatmul.f32.gmra.mxu0 %v334
    %v547 = vpop.f32.mrf.mxu0
    %v548 = vadd.f32 0.0, %v547
    %549 = vmatmul.f32.gmra.mxu0 %v337
    %v550 = vpop.f32.mrf.mxu0
    %v551 = vadd.f32 0.0, %v550
    %552 = vmatmul.f32.gmra.mxu0 %v340
    %v553 = vpop.f32.mrf.mxu0
    %v554 = vadd.f32 0.0, %v553
    %555 = vmatmul.f32.gmra.mxu0 %v343
    %v556 = vpop.f32.mrf.mxu0
    %v557 = vadd.f32 0.0, %v556
    %558 = vmatmul.f32.gmra.mxu0 %v346
    %v559 = vpop.f32.mrf.mxu0
    %v560 = vadd.f32 0.0, %v559
    %561 = vmatmul.f32.gmra.mxu0 %v349
    %v562 = vpop.f32.mrf.mxu0
    %v563 = vadd.f32 0.0, %v562
    %564 = vmatmul.f32.gmra.mxu0 %v352
    %v565 = vpop.f32.mrf.mxu0
    %v566 = vadd.f32 0.0, %v565
    %567 = vmatmul.f32.gmra.mxu0 %v355
    %v568 = vpop.f32.mrf.mxu0
    %v569 = vadd.f32 0.0, %v568
    %570 = vmatmul.f32.gmra.mxu0 %v358
    %v571 = vpop.f32.mrf.mxu0
    %v572 = vadd.f32 0.0, %v571
    %573 = vmatmul.f32.gmra.mxu0 %v361
    %v574 = vpop.f32.mrf.mxu0
    %v575 = vadd.f32 0.0, %v574
    %576 = vmatmul.f32.gmra.mxu0 %v364
    %v577 = vpop.f32.mrf.mxu0
    %v578 = vadd.f32 0.0, %v577
    %579 = vdwg.mxu0
    %580 = vmatpush.msra.mxu0 0.0
    %581 = vmatpush.msra.mxu0 0.0
    %582 = vmatpush.msra.mxu0 0.0
    %583 = vmatpush.msra.mxu0 0.0
    %584 = vmatpush.msra.mxu0 0.0
    %585 = vmatpush.msra.mxu0 0.0
    %586 = vmatpush.msra.mxu0 0.0
    %587 = vmatpush.msra.mxu0 0.0
    %588 = vmatpush.msra.mxu0 0.0
    %589 = vmatpush.msra.mxu0 0.0
    %590 = vmatpush.msra.mxu0 0.0
    %591 = vmatpush.msra.mxu0 0.0
    %592 = vmatpush.msra.mxu0 0.0
    %593 = vmatpush.msra.mxu0 0.0
    %594 = vmatpush.msra.mxu0 0.0
    %595 = vmatpush.msra.mxu0 %v369
    %596 = vmatmul.f32.gmra.mxu0 %v175
    %v597 = vpop.f32.mrf.mxu0
    %v598 = vadd.f32 0.0, %v597
    %599 = vmatmul.f32.gmra.mxu0 %v178
    %v600 = vpop.f32.mrf.mxu0
    %v601 = vadd.f32 0.0, %v600
    %602 = vmatmul.f32.gmra.mxu0 %v181
    %v603 = vpop.f32.mrf.mxu0
    %v604 = vadd.f32 0.0, %v603
    %605 = vmatmul.f32.gmra.mxu0 %v184
    %v606 = vpop.f32.mrf.mxu0
    %v607 = vadd.f32 0.0, %v606
    %608 = vmatmul.f32.gmra.mxu0 %v187
    %v609 = vpop.f32.mrf.mxu0
    %v610 = vadd.f32 0.0, %v609
    %611 = vmatmul.f32.gmra.mxu0 %v190
    %v612 = vpop.f32.mrf.mxu0
    %v613 = vadd.f32 0.0, %v612
    %614 = vmatmul.f32.gmra.mxu0 %v193
    %v615 = vpop.f32.mrf.mxu0
    %v616 = vadd.f32 0.0, %v615
    %617 = vmatmul.f32.gmra.mxu0 %v196
    %v618 = vpop.f32.mrf.mxu0
    %v619 = vadd.f32 0.0, %v618
    %620 = vmatmul.f32.gmra.mxu0 %v199
    %v621 = vpop.f32.mrf.mxu0
    %v622 = vadd.f32 0.0, %v621
    %623 = vmatmul.f32.gmra.mxu0 %v202
    %v624 = vpop.f32.mrf.mxu0
    %v625 = vadd.f32 0.0, %v624
    %626 = vmatmul.f32.gmra.mxu0 %v205
    %v627 = vpop.f32.mrf.mxu0
    %v628 = vadd.f32 0.0, %v627
    %629 = vmatmul.f32.gmra.mxu0 %v208
    %v630 = vpop.f32.mrf.mxu0
    %v631 = vadd.f32 0.0, %v630
    %632 = vmatmul.f32.gmra.mxu0 %v211
    %v633 = vpop.f32.mrf.mxu0
    %v634 = vadd.f32 0.0, %v633
    %635 = vmatmul.f32.gmra.mxu0 %v214
    %v636 = vpop.f32.mrf.mxu0
    %v637 = vadd.f32 0.0, %v636
    %638 = vmatmul.f32.gmra.mxu0 %v217
    %v639 = vpop.f32.mrf.mxu0
    %v640 = vadd.f32 0.0, %v639
    %641 = vmatmul.f32.gmra.mxu0 %v220
    %v642 = vpop.f32.mrf.mxu0
    %v643 = vadd.f32 0.0, %v642
    %644 = vmatmul.f32.gmra.mxu0 %v223
    %v645 = vpop.f32.mrf.mxu0
    %v646 = vadd.f32 0.0, %v645
    %647 = vmatmul.f32.gmra.mxu0 %v226
    %v648 = vpop.f32.mrf.mxu0
    %v649 = vadd.f32 0.0, %v648
    %650 = vmatmul.f32.gmra.mxu0 %v229
    %v651 = vpop.f32.mrf.mxu0
    %v652 = vadd.f32 0.0, %v651
    %653 = vmatmul.f32.gmra.mxu0 %v232
    %v654 = vpop.f32.mrf.mxu0
    %v655 = vadd.f32 0.0, %v654
    %656 = vmatmul.f32.gmra.mxu0 %v235
    %v657 = vpop.f32.mrf.mxu0
    %v658 = vadd.f32 0.0, %v657
    %659 = vmatmul.f32.gmra.mxu0 %v238
    %v660 = vpop.f32.mrf.mxu0
    %v661 = vadd.f32 0.0, %v660
    %662 = vmatmul.f32.gmra.mxu0 %v241
    %v663 = vpop.f32.mrf.mxu0
    %v664 = vadd.f32 0.0, %v663
    %665 = vmatmul.f32.gmra.mxu0 %v244
    %v666 = vpop.f32.mrf.mxu0
    %v667 = vadd.f32 0.0, %v666
    %668 = vmatmul.f32.gmra.mxu0 %v247
    %v669 = vpop.f32.mrf.mxu0
    %v670 = vadd.f32 0.0, %v669
    %671 = vmatmul.f32.gmra.mxu0 %v250
    %v672 = vpop.f32.mrf.mxu0
    %v673 = vadd.f32 0.0, %v672
    %674 = vmatmul.f32.gmra.mxu0 %v253
    %v675 = vpop.f32.mrf.mxu0
    %v676 = vadd.f32 0.0, %v675
    %677 = vmatmul.f32.gmra.mxu0 %v256
    %v678 = vpop.f32.mrf.mxu0
    %v679 = vadd.f32 0.0, %v678
    %680 = vmatmul.f32.gmra.mxu0 %v259
    %v681 = vpop.f32.mrf.mxu0
    %v682 = vadd.f32 0.0, %v681
    %683 = vmatmul.f32.gmra.mxu0 %v262
    %v684 = vpop.f32.mrf.mxu0
    %v685 = vadd.f32 0.0, %v684
    %686 = vmatmul.f32.gmra.mxu0 %v265
    %v687 = vpop.f32.mrf.mxu0
    %v688 = vadd.f32 0.0, %v687
    %689 = vmatmul.f32.gmra.mxu0 %v268
    %v690 = vpop.f32.mrf.mxu0
    %v691 = vadd.f32 0.0, %v690
    %692 = vmatmul.f32.gmra.mxu0 %v271
    %v693 = vpop.f32.mrf.mxu0
    %v694 = vadd.f32 0.0, %v693
    %695 = vmatmul.f32.gmra.mxu0 %v274
    %v696 = vpop.f32.mrf.mxu0
    %v697 = vadd.f32 0.0, %v696
    %698 = vmatmul.f32.gmra.mxu0 %v277
    %v699 = vpop.f32.mrf.mxu0
    %v700 = vadd.f32 0.0, %v699
    %701 = vmatmul.f32.gmra.mxu0 %v280
    %v702 = vpop.f32.mrf.mxu0
    %v703 = vadd.f32 0.0, %v702
    %704 = vmatmul.f32.gmra.mxu0 %v283
    %v705 = vpop.f32.mrf.mxu0
    %v706 = vadd.f32 0.0, %v705
    %707 = vmatmul.f32.gmra.mxu0 %v286
    %v708 = vpop.f32.mrf.mxu0
    %v709 = vadd.f32 0.0, %v708
    %710 = vmatmul.f32.gmra.mxu0 %v289
    %v711 = vpop.f32.mrf.mxu0
    %v712 = vadd.f32 0.0, %v711
    %713 = vmatmul.f32.gmra.mxu0 %v292
    %v714 = vpop.f32.mrf.mxu0
    %v715 = vadd.f32 0.0, %v714
    %716 = vmatmul.f32.gmra.mxu0 %v295
    %v717 = vpop.f32.mrf.mxu0
    %v718 = vadd.f32 0.0, %v717
    %719 = vmatmul.f32.gmra.mxu0 %v298
    %v720 = vpop.f32.mrf.mxu0
    %v721 = vadd.f32 0.0, %v720
    %722 = vmatmul.f32.gmra.mxu0 %v301
    %v723 = vpop.f32.mrf.mxu0
    %v724 = vadd.f32 0.0, %v723
    %725 = vmatmul.f32.gmra.mxu0 %v304
    %v726 = vpop.f32.mrf.mxu0
    %v727 = vadd.f32 0.0, %v726
    %728 = vmatmul.f32.gmra.mxu0 %v307
    %v729 = vpop.f32.mrf.mxu0
    %v730 = vadd.f32 0.0, %v729
    %731 = vmatmul.f32.gmra.mxu0 %v310
    %v732 = vpop.f32.mrf.mxu0
    %v733 = vadd.f32 0.0, %v732
    %734 = vmatmul.f32.gmra.mxu0 %v313
    %v735 = vpop.f32.mrf.mxu0
    %v736 = vadd.f32 0.0, %v735
    %737 = vmatmul.f32.gmra.mxu0 %v316
    %v738 = vpop.f32.mrf.mxu0
    %v739 = vadd.f32 0.0, %v738
    %740 = vmatmul.f32.gmra.mxu0 %v319
    %v741 = vpop.f32.mrf.mxu0
    %v742 = vadd.f32 0.0, %v741
    %743 = vmatmul.f32.gmra.mxu0 %v322
    %v744 = vpop.f32.mrf.mxu0
    %v745 = vadd.f32 0.0, %v744
    %746 = vmatmul.f32.gmra.mxu0 %v325
    %v747 = vpop.f32.mrf.mxu0
    %v748 = vadd.f32 0.0, %v747
    %749 = vmatmul.f32.gmra.mxu0 %v328
    %v750 = vpop.f32.mrf.mxu0
    %v751 = vadd.f32 0.0, %v750
    %752 = vmatmul.f32.gmra.mxu0 %v331
    %v753 = vpop.f32.mrf.mxu0
    %v754 = vadd.f32 0.0, %v753
    %755 = vmatmul.f32.gmra.mxu0 %v334
    %v756 = vpop.f32.mrf.mxu0
    %v757 = vadd.f32 0.0, %v756
    %758 = vmatmul.f32.gmra.mxu0 %v337
    %v759 = vpop.f32.mrf.mxu0
    %v760 = vadd.f32 0.0, %v759
    %761 = vmatmul.f32.gmra.mxu0 %v340
    %v762 = vpop.f32.mrf.mxu0
    %v763 = vadd.f32 0.0, %v762
    %764 = vmatmul.f32.gmra.mxu0 %v343
    %v765 = vpop.f32.mrf.mxu0
    %v766 = vadd.f32 0.0, %v765
    %767 = vmatmul.f32.gmra.mxu0 %v346
    %v768 = vpop.f32.mrf.mxu0
    %v769 = vadd.f32 0.0, %v768
    %770 = vmatmul.f32.gmra.mxu0 %v349
    %v771 = vpop.f32.mrf.mxu0
    %v772 = vadd.f32 0.0, %v771
    %773 = vmatmul.f32.gmra.mxu0 %v352
    %v774 = vpop.f32.mrf.mxu0
    %v775 = vadd.f32 0.0, %v774
    %776 = vmatmul.f32.gmra.mxu0 %v355
    %v777 = vpop.f32.mrf.mxu0
    %v778 = vadd.f32 0.0, %v777
    %779 = vmatmul.f32.gmra.mxu0 %v358
    %v780 = vpop.f32.mrf.mxu0
    %v781 = vadd.f32 0.0, %v780
    %782 = vmatmul.f32.gmra.mxu0 %v361
    %v783 = vpop.f32.mrf.mxu0
    %v784 = vadd.f32 0.0, %v783
    %785 = vmatmul.f32.gmra.mxu0 %v364
    %v786 = vpop.f32.mrf.mxu0
    %v787 = vadd.f32 0.0, %v786
    %788 = vdwg.mxu0
    %790 = vst [vmem:[#allocation1] ss:$4 sm:$0xff] %v39
    %v791 = vld.sshfl [vmem:[#allocation1] sm:$0xff pattern:$0x73625140]
    %v792 = vld.sshfl [vmem:[#allocation1 + $0x8] sm:$0xff pattern:$0x73625140]
    %v793 = vld.sshfl [vmem:[#allocation1 + $0x10] sm:$0xff pattern:$0x73625140]
    %v794 = vld.sshfl [vmem:[#allocation1 + $0x18] sm:$0xff pattern:$0x73625140]
    %799 = vmatpush.msra.mxu0 %v434
    %800 = vmatpush.msra.mxu0 %v431
    %801 = vmatpush.msra.mxu0 %v428
    %802 = vmatpush.msra.mxu0 %v425
    %803 = vmatpush.msra.mxu0 %v422
    %804 = vmatpush.msra.mxu0 %v419
    %805 = vmatpush.msra.mxu0 %v416
    %806 = vmatpush.msra.mxu0 %v413
    %807 = vmatpush.msra.mxu0 %v410
    %808 = vmatpush.msra.mxu0 %v407
    %809 = vmatpush.msra.mxu0 %v404
    %810 = vmatpush.msra.mxu0 %v401
    %811 = vmatpush.msra.mxu0 %v398
    %812 = vmatpush.msra.mxu0 %v395
    %813 = vmatpush.msra.mxu0 %v392
    %814 = vmatpush.msra.mxu0 %v389
    %815 = vmatmul.f32.gmra.mxu0 %v791
    %v816 = vpop.f32.mrf.mxu0
    %v817 = vadd.f32 0.0, %v816
    %818 = vdwg.mxu0
    %819 = vmatpush.msra.mxu0 %v482
    %820 = vmatpush.msra.mxu0 %v479
    %821 = vmatpush.msra.mxu0 %v476
    %822 = vmatpush.msra.mxu0 %v473
    %823 = vmatpush.msra.mxu0 %v470
    %824 = vmatpush.msra.mxu0 %v467
    %825 = vmatpush.msra.mxu0 %v464
    %826 = vmatpush.msra.mxu0 %v461
    %827 = vmatpush.msra.mxu0 %v458
    %828 = vmatpush.msra.mxu0 %v455
    %829 = vmatpush.msra.mxu0 %v452
    %830 = vmatpush.msra.mxu0 %v449
    %831 = vmatpush.msra.mxu0 %v446
    %832 = vmatpush.msra.mxu0 %v443
    %833 = vmatpush.msra.mxu0 %v440
    %834 = vmatpush.msra.mxu0 %v437
    %835 = vmatmul.f32.gmra.mxu0 %v792
    %v836 = vpop.f32.mrf.mxu0
    %v837 = vadd.f32 %v817, %v836
    %838 = vdwg.mxu0
    %839 = vmatpush.msra.mxu0 %v530
    %840 = vmatpush.msra.mxu0 %v527
    %841 = vmatpush.msra.mxu0 %v524
    %842 = vmatpush.msra.mxu0 %v521
    %843 = vmatpush.msra.mxu0 %v518
    %844 = vmatpush.msra.mxu0 %v515
    %845 = vmatpush.msra.mxu0 %v512
    %846 = vmatpush.msra.mxu0 %v509
    %847 = vmatpush.msra.mxu0 %v506
    %848 = vmatpush.msra.mxu0 %v503
    %849 = vmatpush.msra.mxu0 %v500
    %850 = vmatpush.msra.mxu0 %v497
    %851 = vmatpush.msra.mxu0 %v494
    %852 = vmatpush.msra.mxu0 %v491
    %853 = vmatpush.msra.mxu0 %v488
    %854 = vmatpush.msra.mxu0 %v485
    %855 = vmatmul.f32.gmra.mxu0 %v793
    %v856 = vpop.f32.mrf.mxu0
    %v857 = vadd.f32 %v837, %v856
    %858 = vdwg.mxu0
    %859 = vmatpush.msra.mxu0 %v578
    %860 = vmatpush.msra.mxu0 %v575
    %861 = vmatpush.msra.mxu0 %v572
    %862 = vmatpush.msra.mxu0 %v569
    %863 = vmatpush.msra.mxu0 %v566
    %864 = vmatpush.msra.mxu0 %v563
    %865 = vmatpush.msra.mxu0 %v560
    %866 = vmatpush.msra.mxu0 %v557
    %867 = vmatpush.msra.mxu0 %v554
    %868 = vmatpush.msra.mxu0 %v551
    %869 = vmatpush.msra.mxu0 %v548
    %870 = vmatpush.msra.mxu0 %v545
    %871 = vmatpush.msra.mxu0 %v542
    %872 = vmatpush.msra.mxu0 %v539
    %873 = vmatpush.msra.mxu0 %v536
    %874 = vmatpush.msra.mxu0 %v533
    %875 = vmatmul.f32.gmra.mxu0 %v794
    %v876 = vpop.f32.mrf.mxu0
    %v877 = vadd.f32 %v857, %v876
    %878 = vdwg.mxu0
    %v879 = vmul.f32 %v389, %v389
    %v880 = vmul.f32 %v392, %v392
    %v881 = vmul.f32 %v395, %v395
    %v882 = vmul.f32 %v398, %v398
    %v883 = vmul.f32 %v401, %v401
    %v884 = vmul.f32 %v404, %v404
    %v885 = vmul.f32 %v407, %v407
    %v886 = vmul.f32 %v410, %v410
    %v887 = vmul.f32 %v413, %v413
    %v888 = vmul.f32 %v416, %v416
    %v889 = vmul.f32 %v419, %v419
    %v890 = vmul.f32 %v422, %v422
    %v891 = vmul.f32 %v425, %v425
    %v892 = vmul.f32 %v428, %v428
    %v893 = vmul.f32 %v431, %v431
    %v894 = vmul.f32 %v434, %v434
    %v895 = vmul.f32 %v437, %v437
    %v896 = vmul.f32 %v440, %v440
    %v897 = vmul.f32 %v443, %v443
    %v898 = vmul.f32 %v446, %v446
    %v899 = vmul.f32 %v449, %v449
    %v900 = vmul.f32 %v452, %v452
    %v901 = vmul.f32 %v455, %v455
    %v902 = vmul.f32 %v458, %v458
    %v903 = vmul.f32 %v461, %v461
    %v904 = vmul.f32 %v464, %v464
    %v905 = vmul.f32 %v467, %v467
    %v906 = vmul.f32 %v470, %v470
    %v907 = vmul.f32 %v473, %v473
    %v908 = vmul.f32 %v476, %v476
    %v909 = vmul.f32 %v479, %v479
    %v910 = vmul.f32 %v482, %v482
    %v911 = vmul.f32 %v485, %v485
    %v912 = vmul.f32 %v488, %v488
    %v913 = vmul.f32 %v491, %v491
    %v914 = vmul.f32 %v494, %v494
    %v915 = vmul.f32 %v497, %v497
    %v916 = vmul.f32 %v500, %v500
    %v917 = vmul.f32 %v503, %v503
    %v918 = vmul.f32 %v506, %v506
    %v919 = vmul.f32 %v509, %v509
    %v920 = vmul.f32 %v512, %v512
    %v921 = vmul.f32 %v515, %v515
    %v922 = vmul.f32 %v518, %v518
    %v923 = vmul.f32 %v521, %v521
    %v924 = vmul.f32 %v524, %v524
    %v925 = vmul.f32 %v527, %v527
    %v926 = vmul.f32 %v530, %v530
    %v927 = vmul.f32 %v533, %v533
    %v928 = vmul.f32 %v536, %v536
    %v929 = vmul.f32 %v539, %v539
    %v930 = vmul.f32 %v542, %v542
    %v931 = vmul.f32 %v545, %v545
    %v932 = vmul.f32 %v548, %v548
    %v933 = vmul.f32 %v551, %v551
    %v934 = vmul.f32 %v554, %v554
    %v935 = vmul.f32 %v557, %v557
    %v936 = vmul.f32 %v560, %v560
    %v937 = vmul.f32 %v563, %v563
    %v938 = vmul.f32 %v566, %v566
    %v939 = vmul.f32 %v569, %v569
    %v940 = vmul.f32 %v572, %v572
    %v941 = vmul.f32 %v575, %v575
    %v942 = vmul.f32 %v578, %v578
    %943 = vst [vmem:[#allocation1] ss:$4 sm:$0xff] %v39
    %v944 = vld.sshfl [vmem:[#allocation1] sm:$0xff pattern:$0x73625140]
    %v945 = vld.sshfl [vmem:[#allocation1 + $0x8] sm:$0xff pattern:$0x73625140]
    %v946 = vld.sshfl [vmem:[#allocation1 + $0x10] sm:$0xff pattern:$0x73625140]
    %v947 = vld.sshfl [vmem:[#allocation1 + $0x18] sm:$0xff pattern:$0x73625140]
    %952 = vmatpush.msra.mxu0 %v894
    %953 = vmatpush.msra.mxu0 %v893
    %954 = vmatpush.msra.mxu0 %v892
    %955 = vmatpush.msra.mxu0 %v891
    %956 = vmatpush.msra.mxu0 %v890
    %957 = vmatpush.msra.mxu0 %v889
    %958 = vmatpush.msra.mxu0 %v888
    %959 = vmatpush.msra.mxu0 %v887
    %960 = vmatpush.msra.mxu0 %v886
    %961 = vmatpush.msra.mxu0 %v885
    %962 = vmatpush.msra.mxu0 %v884
    %963 = vmatpush.msra.mxu0 %v883
    %964 = vmatpush.msra.mxu0 %v882
    %965 = vmatpush.msra.mxu0 %v881
    %966 = vmatpush.msra.mxu0 %v880
    %967 = vmatpush.msra.mxu0 %v879
    %968 = vmatmul.f32.gmra.mxu0 %v944
    %v969 = vpop.f32.mrf.mxu0
    %v970 = vadd.f32 0.0, %v969
    %971 = vdwg.mxu0
    %972 = vmatpush.msra.mxu0 %v910
    %973 = vmatpush.msra.mxu0 %v909
    %974 = vmatpush.msra.mxu0 %v908
    %975 = vmatpush.msra.mxu0 %v907
    %976 = vmatpush.msra.mxu0 %v906
    %977 = vmatpush.msra.mxu0 %v905
    %978 = vmatpush.msra.mxu0 %v904
    %979 = vmatpush.msra.mxu0 %v903
    %980 = vmatpush.msra.mxu0 %v902
    %981 = vmatpush.msra.mxu0 %v901
    %982 = vmatpush.msra.mxu0 %v900
    %983 = vmatpush.msra.mxu0 %v899
    %984 = vmatpush.msra.mxu0 %v898
    %985 = vmatpush.msra.mxu0 %v897
    %986 = vmatpush.msra.mxu0 %v896
    %987 = vmatpush.msra.mxu0 %v895
    %988 = vmatmul.f32.gmra.mxu0 %v945
    %v989 = vpop.f32.mrf.mxu0
    %v990 = vadd.f32 %v970, %v989
    %991 = vdwg.mxu0
    %992 = vmatpush.msra.mxu0 %v926
    %993 = vmatpush.msra.mxu0 %v925
    %994 = vmatpush.msra.mxu0 %v924
    %995 = vmatpush.msra.mxu0 %v923
    %996 = vmatpush.msra.mxu0 %v922
    %997 = vmatpush.msra.mxu0 %v921
    %998 = vmatpush.msra.mxu0 %v920
    %999 = vmatpush.msra.mxu0 %v919
    %1000 = vmatpush.msra.mxu0 %v918
    %1001 = vmatpush.msra.mxu0 %v917
    %1002 = vmatpush.msra.mxu0 %v916
    %1003 = vmatpush.msra.mxu0 %v915
    %1004 = vmatpush.msra.mxu0 %v914
    %1005 = vmatpush.msra.mxu0 %v913
    %1006 = vmatpush.msra.mxu0 %v912
    %1007 = vmatpush.msra.mxu0 %v911
    %1008 = vmatmul.f32.gmra.mxu0 %v946
    %v1009 = vpop.f32.mrf.mxu0
    %v1010 = vadd.f32 %v990, %v1009
    %1011 = vdwg.mxu0
    %1012 = vmatpush.msra.mxu0 %v942
    %1013 = vmatpush.msra.mxu0 %v941
    %1014 = vmatpush.msra.mxu0 %v940
    %1015 = vmatpush.msra.mxu0 %v939
    %1016 = vmatpush.msra.mxu0 %v938
    %1017 = vmatpush.msra.mxu0 %v937
    %1018 = vmatpush.msra.mxu0 %v936
    %1019 = vmatpush.msra.mxu0 %v935
    %1020 = vmatpush.msra.mxu0 %v934
    %1021 = vmatpush.msra.mxu0 %v933
    %1022 = vmatpush.msra.mxu0 %v932
    %1023 = vmatpush.msra.mxu0 %v931
    %1024 = vmatpush.msra.mxu0 %v930
    %1025 = vmatpush.msra.mxu0 %v929
    %1026 = vmatpush.msra.mxu0 %v928
    %1027 = vmatpush.msra.mxu0 %v927
    %1028 = vmatmul.f32.gmra.mxu0 %v947
    %v1029 = vpop.f32.mrf.mxu0
    %v1030 = vadd.f32 %v1010, %v1029
    %1031 = vdwg.mxu0
    %v1032 = vmul.f32 %v877, 0.00390625
    %v1033 = vmul.f32 %v1030, 0.00390625
    %v1034 = vmul.f32 %v1032, %v1032
    %v1035 = vsub.f32 %v1033, %v1034
    %v1036 = vadd.f32 %v1035, 1e-05
    %v1037 = vrsqrt.pop %v1036
    %v1038 = vmul.f32 %v1037, %v1036
    %v1039 = vmul.f32 %v1038, %v1037
    %v1040 = vmul.f32 0.5, %v1039
    %v1041 = vsub.f32 1.5, %v1040
    %v1042 = vmul.f32 %v1037, %v1041
    %vm1043 = vweird.f32 %v1036
    %vm1044 = vweird.f32 %v1037
    %vm1045 = vmor %vm1043, %vm1044
    %v1046 = vsel %vm1045, %v1037, %v1042
    %v1047 = vsub.f32 0.0, %v1032
    %v1048 = vmul.f32 %v1047, %v1046
    %vm1049 = vcmask 15360
    %v1051 = vsel %vm1049, %v40, 0
    %v1054 = vsel %vm1049, %v41, 0
    %v1057 = vsel %vm1049, %v42, 0
    %v1060 = vsel %vm1049, %v43, 0
    %v1063 = vsel %vm1049, %v44, 0
    %v1066 = vsel %vm1049, %v45, 0
    %v1069 = vsel %vm1049, %v46, 0
    %v1072 = vsel %vm1049, %v47, 0
    %v1075 = vsel %vm1049, %v48, 0
    %v1078 = vsel %vm1049, %v49, 0
    %v1081 = vsel %vm1049, %v50, 0
    %v1084 = vsel %vm1049, %v51, 0
    %v1087 = vsel %vm1049, %v52, 0
    %v1090 = vsel %vm1049, %v53, 0
    %v1093 = vsel %vm1049, %v54, 0
    %v1096 = vsel %vm1049, %v55, 0
    %v1099 = vsel %vm1049, %v56, 0
    %v1102 = vsel %vm1049, %v57, 0
    %v1105 = vsel %vm1049, %v58, 0
    %v1108 = vsel %vm1049, %v59, 0
    %v1111 = vsel %vm1049, %v60, 0
    %v1114 = vsel %vm1049, %v61, 0
    %v1117 = vsel %vm1049, %v62, 0
    %v1120 = vsel %vm1049, %v63, 0
    %v1123 = vsel %vm1049, %v64, 0
    %v1126 = vsel %vm1049, %v65, 0
    %v1129 = vsel %vm1049, %v66, 0
    %v1132 = vsel %vm1049, %v67, 0
    %v1135 = vsel %vm1049, %v68, 0
    %v1138 = vsel %vm1049, %v69, 0
    %v1141 = vsel %vm1049, %v70, 0
    %v1144 = vsel %vm1049, %v71, 0
    %v1147 = vsel %vm1049, %v72, 0
    %v1150 = vsel %vm1049, %v73, 0
    %v1153 = vsel %vm1049, %v74, 0
    %v1156 = vsel %vm1049, %v75, 0
    %v1159 = vsel %vm1049, %v76, 0
    %v1162 = vsel %vm1049, %v77, 0
    %v1165 = vsel %vm1049, %v78, 0
    %v1168 = vsel %vm1049, %v79, 0
    %v1171 = vsel %vm1049, %v80, 0
    %v1174 = vsel %vm1049, %v81, 0
    %v1177 = vsel %vm1049, %v82, 0
    %v1180 = vsel %vm1049, %v83, 0
    %v1183 = vsel %vm1049, %v84, 0
    %v1186 = vsel %vm1049, %v85, 0
    %v1189 = vsel %vm1049, %v86, 0
    %v1192 = vsel %vm1049, %v87, 0
    %v1195 = vsel %vm1049, %v88, 0
    %v1198 = vsel %vm1049, %v89, 0
    %v1201 = vsel %vm1049, %v90, 0
    %v1204 = vsel %vm1049, %v91, 0
    %v1207 = vsel %vm1049, %v92, 0
    %v1210 = vsel %vm1049, %v93, 0
    %v1213 = vsel %vm1049, %v94, 0
    %v1216 = vsel %vm1049, %v95, 0
    %v1219 = vsel %vm1049, %v96, 0
    %v1222 = vsel %vm1049, %v97, 0
    %v1225 = vsel %vm1049, %v98, 0
    %v1228 = vsel %vm1049, %v99, 0
    %v1231 = vsel %vm1049, %v100, 0
    %v1234 = vsel %vm1049, %v101, 0
    %v1237 = vsel %vm1049, %v102, 0
    %v1240 = vsel %vm1049, %v103, 0
    %vm1242 = vcmask 1041408
    %v1244 = vsel %vm1242, %v1046, 0
    %v1247 = vsel %vm1242, %v1048, 0
    %1249 = vmatpush.msra.mxu0 0.0
    %1250 = vmatpush.msra.mxu0 0.0
    %1251 = vmatpush.msra.mxu0 0.0
    %1252 = vmatpush.msra.mxu0 0.0
    %1253 = vmatpush.msra.mxu0 0.0
    %1254 = vmatpush.msra.mxu0 0.0
    %1255 = vmatpush.msra.mxu0 0.0
    %1256 = vmatpush.msra.mxu0 0.0
    %1257 = vmatpush.msra.mxu0 0.0
    %1258 = vmatpush.msra.mxu0 0.0
    %1259 = vmatpush.msra.mxu0 0.0
    %1260 = vmatpush.msra.mxu0 0.0
    %1261 = vmatpush.msra.mxu0 0.0
    %1262 = vmatpush.msra.mxu0 0.0
    %1263 = vmatpush.msra.mxu0 0.0
    %1264 = vmatpush.msra.mxu0 %v1244
    %1265 = vmatmul.f32.gmra.mxu0 %v1051
    %v1266 = vpop.f32.mrf.mxu0
    %v1267 = vadd.f32 0.0, %v1266
    %1268 = vmatmul.f32.gmra.mxu0 %v1054
    %v1269 = vpop.f32.mrf.mxu0
    %v1270 = vadd.f32 0.0, %v1269
    %1271 = vmatmul.f32.gmra.mxu0 %v1057
    %v1272 = vpop.f32.mrf.mxu0
    %v1273 = vadd.f32 0.0, %v1272
    %1274 = vmatmul.f32.gmra.mxu0 %v1060
    %v1275 = vpop.f32.mrf.mxu0
    %v1276 = vadd.f32 0.0, %v1275
    %1277 = vmatmul.f32.gmra.mxu0 %v1063
    %v1278 = vpop.f32.mrf.mxu0
    %v1279 = vadd.f32 0.0, %v1278
    %1280 = vmatmul.f32.gmra.mxu0 %v1066
    %v1281 = vpop.f32.mrf.mxu0
    %v1282 = vadd.f32 0.0, %v1281
    %1283 = vmatmul.f32.gmra.mxu0 %v1069
    %v1284 = vpop.f32.mrf.mxu0
    %v1285 = vadd.f32 0.0, %v1284
    %1286 = vmatmul.f32.gmra.mxu0 %v1072
    %v1287 = vpop.f32.mrf.mxu0
    %v1288 = vadd.f32 0.0, %v1287
    %1289 = vmatmul.f32.gmra.mxu0 %v1075
    %v1290 = vpop.f32.mrf.mxu0
    %v1291 = vadd.f32 0.0, %v1290
    %1292 = vmatmul.f32.gmra.mxu0 %v1078
    %v1293 = vpop.f32.mrf.mxu0
    %v1294 = vadd.f32 0.0, %v1293
    %1295 = vmatmul.f32.gmra.mxu0 %v1081
    %v1296 = vpop.f32.mrf.mxu0
    %v1297 = vadd.f32 0.0, %v1296
    %1298 = vmatmul.f32.gmra.mxu0 %v1084
    %v1299 = vpop.f32.mrf.mxu0
    %v1300 = vadd.f32 0.0, %v1299
    %1301 = vmatmul.f32.gmra.mxu0 %v1087
    %v1302 = vpop.f32.mrf.mxu0
    %v1303 = vadd.f32 0.0, %v1302
    %1304 = vmatmul.f32.gmra.mxu0 %v1090
    %v1305 = vpop.f32.mrf.mxu0
    %v1306 = vadd.f32 0.0, %v1305
    %1307 = vmatmul.f32.gmra.mxu0 %v1093
    %v1308 = vpop.f32.mrf.mxu0
    %v1309 = vadd.f32 0.0, %v1308
    %1310 = vmatmul.f32.gmra.mxu0 %v1096
    %v1311 = vpop.f32.mrf.mxu0
    %v1312 = vadd.f32 0.0, %v1311
    %1313 = vmatmul.f32.gmra.mxu0 %v1099
    %v1314 = vpop.f32.mrf.mxu0
    %v1315 = vadd.f32 0.0, %v1314
    %1316 = vmatmul.f32.gmra.mxu0 %v1102
    %v1317 = vpop.f32.mrf.mxu0
    %v1318 = vadd.f32 0.0, %v1317
    %1319 = vmatmul.f32.gmra.mxu0 %v1105
    %v1320 = vpop.f32.mrf.mxu0
    %v1321 = vadd.f32 0.0, %v1320
    %1322 = vmatmul.f32.gmra.mxu0 %v1108
    %v1323 = vpop.f32.mrf.mxu0
    %v1324 = vadd.f32 0.0, %v1323
    %1325 = vmatmul.f32.gmra.mxu0 %v1111
    %v1326 = vpop.f32.mrf.mxu0
    %v1327 = vadd.f32 0.0, %v1326
    %1328 = vmatmul.f32.gmra.mxu0 %v1114
    %v1329 = vpop.f32.mrf.mxu0
    %v1330 = vadd.f32 0.0, %v1329
    %1331 = vmatmul.f32.gmra.mxu0 %v1117
    %v1332 = vpop.f32.mrf.mxu0
    %v1333 = vadd.f32 0.0, %v1332
    %1334 = vmatmul.f32.gmra.mxu0 %v1120
    %v1335 = vpop.f32.mrf.mxu0
    %v1336 = vadd.f32 0.0, %v1335
    %1337 = vmatmul.f32.gmra.mxu0 %v1123
    %v1338 = vpop.f32.mrf.mxu0
    %v1339 = vadd.f32 0.0, %v1338
    %1340 = vmatmul.f32.gmra.mxu0 %v1126
    %v1341 = vpop.f32.mrf.mxu0
    %v1342 = vadd.f32 0.0, %v1341
    %1343 = vmatmul.f32.gmra.mxu0 %v1129
    %v1344 = vpop.f32.mrf.mxu0
    %v1345 = vadd.f32 0.0, %v1344
    %1346 = vmatmul.f32.gmra.mxu0 %v1132
    %v1347 = vpop.f32.mrf.mxu0
    %v1348 = vadd.f32 0.0, %v1347
    %1349 = vmatmul.f32.gmra.mxu0 %v1135
    %v1350 = vpop.f32.mrf.mxu0
    %v1351 = vadd.f32 0.0, %v1350
    %1352 = vmatmul.f32.gmra.mxu0 %v1138
    %v1353 = vpop.f32.mrf.mxu0
    %v1354 = vadd.f32 0.0, %v1353
    %1355 = vmatmul.f32.gmra.mxu0 %v1141
    %v1356 = vpop.f32.mrf.mxu0
    %v1357 = vadd.f32 0.0, %v1356
    %1358 = vmatmul.f32.gmra.mxu0 %v1144
    %v1359 = vpop.f32.mrf.mxu0
    %v1360 = vadd.f32 0.0, %v1359
    %1361 = vmatmul.f32.gmra.mxu0 %v1147
    %v1362 = vpop.f32.mrf.mxu0
    %v1363 = vadd.f32 0.0, %v1362
    %1364 = vmatmul.f32.gmra.mxu0 %v1150
    %v1365 = vpop.f32.mrf.mxu0
    %v1366 = vadd.f32 0.0, %v1365
    %1367 = vmatmul.f32.gmra.mxu0 %v1153
    %v1368 = vpop.f32.mrf.mxu0
    %v1369 = vadd.f32 0.0, %v1368
    %1370 = vmatmul.f32.gmra.mxu0 %v1156
    %v1371 = vpop.f32.mrf.mxu0
    %v1372 = vadd.f32 0.0, %v1371
    %1373 = vmatmul.f32.gmra.mxu0 %v1159
    %v1374 = vpop.f32.mrf.mxu0
    %v1375 = vadd.f32 0.0, %v1374
    %1376 = vmatmul.f32.gmra.mxu0 %v1162
    %v1377 = vpop.f32.mrf.mxu0
    %v1378 = vadd.f32 0.0, %v1377
    %1379 = vmatmul.f32.gmra.mxu0 %v1165
    %v1380 = vpop.f32.mrf.mxu0
    %v1381 = vadd.f32 0.0, %v1380
    %1382 = vmatmul.f32.gmra.mxu0 %v1168
    %v1383 = vpop.f32.mrf.mxu0
    %v1384 = vadd.f32 0.0, %v1383
    %1385 = vmatmul.f32.gmra.mxu0 %v1171
    %v1386 = vpop.f32.mrf.mxu0
    %v1387 = vadd.f32 0.0, %v1386
    %1388 = vmatmul.f32.gmra.mxu0 %v1174
    %v1389 = vpop.f32.mrf.mxu0
    %v1390 = vadd.f32 0.0, %v1389
    %1391 = vmatmul.f32.gmra.mxu0 %v1177
    %v1392 = vpop.f32.mrf.mxu0
    %v1393 = vadd.f32 0.0, %v1392
    %1394 = vmatmul.f32.gmra.mxu0 %v1180
    %v1395 = vpop.f32.mrf.mxu0
    %v1396 = vadd.f32 0.0, %v1395
    %1397 = vmatmul.f32.gmra.mxu0 %v1183
    %v1398 = vpop.f32.mrf.mxu0
    %v1399 = vadd.f32 0.0, %v1398
    %1400 = vmatmul.f32.gmra.mxu0 %v1186
    %v1401 = vpop.f32.mrf.mxu0
    %v1402 = vadd.f32 0.0, %v1401
    %1403 = vmatmul.f32.gmra.mxu0 %v1189
    %v1404 = vpop.f32.mrf.mxu0
    %v1405 = vadd.f32 0.0, %v1404
    %1406 = vmatmul.f32.gmra.mxu0 %v1192
    %v1407 = vpop.f32.mrf.mxu0
    %v1408 = vadd.f32 0.0, %v1407
    %1409 = vmatmul.f32.gmra.mxu0 %v1195
    %v1410 = vpop.f32.mrf.mxu0
    %v1411 = vadd.f32 0.0, %v1410
    %1412 = vmatmul.f32.gmra.mxu0 %v1198
    %v1413 = vpop.f32.mrf.mxu0
    %v1414 = vadd.f32 0.0, %v1413
    %1415 = vmatmul.f32.gmra.mxu0 %v1201
    %v1416 = vpop.f32.mrf.mxu0
    %v1417 = vadd.f32 0.0, %v1416
    %1418 = vmatmul.f32.gmra.mxu0 %v1204
    %v1419 = vpop.f32.mrf.mxu0
    %v1420 = vadd.f32 0.0, %v1419
    %1421 = vmatmul.f32.gmra.mxu0 %v1207
    %v1422 = vpop.f32.mrf.mxu0
    %v1423 = vadd.f32 0.0, %v1422
    %1424 = vmatmul.f32.gmra.mxu0 %v1210
    %v1425 = vpop.f32.mrf.mxu0
    %v1426 = vadd.f32 0.0, %v1425
    %1427 = vmatmul.f32.gmra.mxu0 %v1213
    %v1428 = vpop.f32.mrf.mxu0
    %v1429 = vadd.f32 0.0, %v1428
    %1430 = vmatmul.f32.gmra.mxu0 %v1216
    %v1431 = vpop.f32.mrf.mxu0
    %v1432 = vadd.f32 0.0, %v1431
    %1433 = vmatmul.f32.gmra.mxu0 %v1219
    %v1434 = vpop.f32.mrf.mxu0
    %v1435 = vadd.f32 0.0, %v1434
    %1436 = vmatmul.f32.gmra.mxu0 %v1222
    %v1437 = vpop.f32.mrf.mxu0
    %v1438 = vadd.f32 0.0, %v1437
    %1439 = vmatmul.f32.gmra.mxu0 %v1225
    %v1440 = vpop.f32.mrf.mxu0
    %v1441 = vadd.f32 0.0, %v1440
    %1442 = vmatmul.f32.gmra.mxu0 %v1228
    %v1443 = vpop.f32.mrf.mxu0
    %v1444 = vadd.f32 0.0, %v1443
    %1445 = vmatmul.f32.gmra.mxu0 %v1231
    %v1446 = vpop.f32.mrf.mxu0
    %v1447 = vadd.f32 0.0, %v1446
    %1448 = vmatmul.f32.gmra.mxu0 %v1234
    %v1449 = vpop.f32.mrf.mxu0
    %v1450 = vadd.f32 0.0, %v1449
    %1451 = vmatmul.f32.gmra.mxu0 %v1237
    %v1452 = vpop.f32.mrf.mxu0
    %v1453 = vadd.f32 0.0, %v1452
    %1454 = vmatmul.f32.gmra.mxu0 %v1240
    %v1455 = vpop.f32.mrf.mxu0
    %v1456 = vadd.f32 0.0, %v1455
    %1457 = vdwg.mxu0
    %1458 = vmatpush.msra.mxu0 0.0
    %1459 = vmatpush.msra.mxu0 0.0
    %1460 = vmatpush.msra.mxu0 0.0
    %1461 = vmatpush.msra.mxu0 0.0
    %1462 = vmatpush.msra.mxu0 0.0
    %1463 = vmatpush.msra.mxu0 0.0
    %1464 = vmatpush.msra.mxu0 0.0
    %1465 = vmatpush.msra.mxu0 0.0
    %1466 = vmatpush.msra.mxu0 0.0
    %1467 = vmatpush.msra.mxu0 0.0
    %1468 = vmatpush.msra.mxu0 0.0
    %1469 = vmatpush.msra.mxu0 0.0
    %1470 = vmatpush.msra.mxu0 0.0
    %1471 = vmatpush.msra.mxu0 0.0
    %1472 = vmatpush.msra.mxu0 0.0
    %1473 = vmatpush.msra.mxu0 %v1247
    %1474 = vmatmul.f32.gmra.mxu0 %v1051
    %v1475 = vpop.f32.mrf.mxu0
    %v1476 = vadd.f32 0.0, %v1475
    %1477 = vmatmul.f32.gmra.mxu0 %v1054
    %v1478 = vpop.f32.mrf.mxu0
    %v1479 = vadd.f32 0.0, %v1478
    %1480 = vmatmul.f32.gmra.mxu0 %v1057
    %v1481 = vpop.f32.mrf.mxu0
    %v1482 = vadd.f32 0.0, %v1481
    %1483 = vmatmul.f32.gmra.mxu0 %v1060
    %v1484 = vpop.f32.mrf.mxu0
    %v1485 = vadd.f32 0.0, %v1484
    %1486 = vmatmul.f32.gmra.mxu0 %v1063
    %v1487 = vpop.f32.mrf.mxu0
    %v1488 = vadd.f32 0.0, %v1487
    %1489 = vmatmul.f32.gmra.mxu0 %v1066
    %v1490 = vpop.f32.mrf.mxu0
    %v1491 = vadd.f32 0.0, %v1490
    %1492 = vmatmul.f32.gmra.mxu0 %v1069
    %v1493 = vpop.f32.mrf.mxu0
    %v1494 = vadd.f32 0.0, %v1493
    %1495 = vmatmul.f32.gmra.mxu0 %v1072
    %v1496 = vpop.f32.mrf.mxu0
    %v1497 = vadd.f32 0.0, %v1496
    %1498 = vmatmul.f32.gmra.mxu0 %v1075
    %v1499 = vpop.f32.mrf.mxu0
    %v1500 = vadd.f32 0.0, %v1499
    %1501 = vmatmul.f32.gmra.mxu0 %v1078
    %v1502 = vpop.f32.mrf.mxu0
    %v1503 = vadd.f32 0.0, %v1502
    %1504 = vmatmul.f32.gmra.mxu0 %v1081
    %v1505 = vpop.f32.mrf.mxu0
    %v1506 = vadd.f32 0.0, %v1505
    %1507 = vmatmul.f32.gmra.mxu0 %v1084
    %v1508 = vpop.f32.mrf.mxu0
    %v1509 = vadd.f32 0.0, %v1508
    %1510 = vmatmul.f32.gmra.mxu0 %v1087
    %v1511 = vpop.f32.mrf.mxu0
    %v1512 = vadd.f32 0.0, %v1511
    %1513 = vmatmul.f32.gmra.mxu0 %v1090
    %v1514 = vpop.f32.mrf.mxu0
    %v1515 = vadd.f32 0.0, %v1514
    %1516 = vmatmul.f32.gmra.mxu0 %v1093
    %v1517 = vpop.f32.mrf.mxu0
    %v1518 = vadd.f32 0.0, %v1517
    %1519 = vmatmul.f32.gmra.mxu0 %v1096
    %v1520 = vpop.f32.mrf.mxu0
    %v1521 = vadd.f32 0.0, %v1520
    %1522 = vmatmul.f32.gmra.mxu0 %v1099
    %v1523 = vpop.f32.mrf.mxu0
    %v1524 = vadd.f32 0.0, %v1523
    %1525 = vmatmul.f32.gmra.mxu0 %v1102
    %v1526 = vpop.f32.mrf.mxu0
    %v1527 = vadd.f32 0.0, %v1526
    %1528 = vmatmul.f32.gmra.mxu0 %v1105
    %v1529 = vpop.f32.mrf.mxu0
    %v1530 = vadd.f32 0.0, %v1529
    %1531 = vmatmul.f32.gmra.mxu0 %v1108
    %v1532 = vpop.f32.mrf.mxu0
    %v1533 = vadd.f32 0.0, %v1532
    %1534 = vmatmul.f32.gmra.mxu0 %v1111
    %v1535 = vpop.f32.mrf.mxu0
    %v1536 = vadd.f32 0.0, %v1535
    %1537 = vmatmul.f32.gmra.mxu0 %v1114
    %v1538 = vpop.f32.mrf.mxu0
    %v1539 = vadd.f32 0.0, %v1538
    %1540 = vmatmul.f32.gmra.mxu0 %v1117
    %v1541 = vpop.f32.mrf.mxu0
    %v1542 = vadd.f32 0.0, %v1541
    %1543 = vmatmul.f32.gmra.mxu0 %v1120
    %v1544 = vpop.f32.mrf.mxu0
    %v1545 = vadd.f32 0.0, %v1544
    %1546 = vmatmul.f32.gmra.mxu0 %v1123
    %v1547 = vpop.f32.mrf.mxu0
    %v1548 = vadd.f32 0.0, %v1547
    %1549 = vmatmul.f32.gmra.mxu0 %v1126
    %v1550 = vpop.f32.mrf.mxu0
    %v1551 = vadd.f32 0.0, %v1550
    %1552 = vmatmul.f32.gmra.mxu0 %v1129
    %v1553 = vpop.f32.mrf.mxu0
    %v1554 = vadd.f32 0.0, %v1553
    %1555 = vmatmul.f32.gmra.mxu0 %v1132
    %v1556 = vpop.f32.mrf.mxu0
    %v1557 = vadd.f32 0.0, %v1556
    %1558 = vmatmul.f32.gmra.mxu0 %v1135
    %v1559 = vpop.f32.mrf.mxu0
    %v1560 = vadd.f32 0.0, %v1559
    %1561 = vmatmul.f32.gmra.mxu0 %v1138
    %v1562 = vpop.f32.mrf.mxu0
    %v1563 = vadd.f32 0.0, %v1562
    %1564 = vmatmul.f32.gmra.mxu0 %v1141
    %v1565 = vpop.f32.mrf.mxu0
    %v1566 = vadd.f32 0.0, %v1565
    %1567 = vmatmul.f32.gmra.mxu0 %v1144
    %v1568 = vpop.f32.mrf.mxu0
    %v1569 = vadd.f32 0.0, %v1568
    %1570 = vmatmul.f32.gmra.mxu0 %v1147
    %v1571 = vpop.f32.mrf.mxu0
    %v1572 = vadd.f32 0.0, %v1571
    %1573 = vmatmul.f32.gmra.mxu0 %v1150
    %v1574 = vpop.f32.mrf.mxu0
    %v1575 = vadd.f32 0.0, %v1574
    %1576 = vmatmul.f32.gmra.mxu0 %v1153
    %v1577 = vpop.f32.mrf.mxu0
    %v1578 = vadd.f32 0.0, %v1577
    %1579 = vmatmul.f32.gmra.mxu0 %v1156
    %v1580 = vpop.f32.mrf.mxu0
    %v1581 = vadd.f32 0.0, %v1580
    %1582 = vmatmul.f32.gmra.mxu0 %v1159
    %v1583 = vpop.f32.mrf.mxu0
    %v1584 = vadd.f32 0.0, %v1583
    %1585 = vmatmul.f32.gmra.mxu0 %v1162
    %v1586 = vpop.f32.mrf.mxu0
    %v1587 = vadd.f32 0.0, %v1586
    %1588 = vmatmul.f32.gmra.mxu0 %v1165
    %v1589 = vpop.f32.mrf.mxu0
    %v1590 = vadd.f32 0.0, %v1589
    %1591 = vmatmul.f32.gmra.mxu0 %v1168
    %v1592 = vpop.f32.mrf.mxu0
    %v1593 = vadd.f32 0.0, %v1592
    %1594 = vmatmul.f32.gmra.mxu0 %v1171
    %v1595 = vpop.f32.mrf.mxu0
    %v1596 = vadd.f32 0.0, %v1595
    %1597 = vmatmul.f32.gmra.mxu0 %v1174
    %v1598 = vpop.f32.mrf.mxu0
    %v1599 = vadd.f32 0.0, %v1598
    %1600 = vmatmul.f32.gmra.mxu0 %v1177
    %v1601 = vpop.f32.mrf.mxu0
    %v1602 = vadd.f32 0.0, %v1601
    %1603 = vmatmul.f32.gmra.mxu0 %v1180
    %v1604 = vpop.f32.mrf.mxu0
    %v1605 = vadd.f32 0.0, %v1604
    %1606 = vmatmul.f32.gmra.mxu0 %v1183
    %v1607 = vpop.f32.mrf.mxu0
    %v1608 = vadd.f32 0.0, %v1607
    %1609 = vmatmul.f32.gmra.mxu0 %v1186
    %v1610 = vpop.f32.mrf.mxu0
    %v1611 = vadd.f32 0.0, %v1610
    %1612 = vmatmul.f32.gmra.mxu0 %v1189
    %v1613 = vpop.f32.mrf.mxu0
    %v1614 = vadd.f32 0.0, %v1613
    %1615 = vmatmul.f32.gmra.mxu0 %v1192
    %v1616 = vpop.f32.mrf.mxu0
    %v1617 = vadd.f32 0.0, %v1616
    %1618 = vmatmul.f32.gmra.mxu0 %v1195
    %v1619 = vpop.f32.mrf.mxu0
    %v1620 = vadd.f32 0.0, %v1619
    %1621 = vmatmul.f32.gmra.mxu0 %v1198
    %v1622 = vpop.f32.mrf.mxu0
    %v1623 = vadd.f32 0.0, %v1622
    %1624 = vmatmul.f32.gmra.mxu0 %v1201
    %v1625 = vpop.f32.mrf.mxu0
    %v1626 = vadd.f32 0.0, %v1625
    %1627 = vmatmul.f32.gmra.mxu0 %v1204
    %v1628 = vpop.f32.mrf.mxu0
    %v1629 = vadd.f32 0.0, %v1628
    %1630 = vmatmul.f32.gmra.mxu0 %v1207
    %v1631 = vpop.f32.mrf.mxu0
    %v1632 = vadd.f32 0.0, %v1631
    %1633 = vmatmul.f32.gmra.mxu0 %v1210
    %v1634 = vpop.f32.mrf.mxu0
    %v1635 = vadd.f32 0.0, %v1634
    %1636 = vmatmul.f32.gmra.mxu0 %v1213
    %v1637 = vpop.f32.mrf.mxu0
    %v1638 = vadd.f32 0.0, %v1637
    %1639 = vmatmul.f32.gmra.mxu0 %v1216
    %v1640 = vpop.f32.mrf.mxu0
    %v1641 = vadd.f32 0.0, %v1640
    %1642 = vmatmul.f32.gmra.mxu0 %v1219
    %v1643 = vpop.f32.mrf.mxu0
    %v1644 = vadd.f32 0.0, %v1643
    %1645 = vmatmul.f32.gmra.mxu0 %v1222
    %v1646 = vpop.f32.mrf.mxu0
    %v1647 = vadd.f32 0.0, %v1646
    %1648 = vmatmul.f32.gmra.mxu0 %v1225
    %v1649 = vpop.f32.mrf.mxu0
    %v1650 = vadd.f32 0.0, %v1649
    %1651 = vmatmul.f32.gmra.mxu0 %v1228
    %v1652 = vpop.f32.mrf.mxu0
    %v1653 = vadd.f32 0.0, %v1652
    %1654 = vmatmul.f32.gmra.mxu0 %v1231
    %v1655 = vpop.f32.mrf.mxu0
    %v1656 = vadd.f32 0.0, %v1655
    %1657 = vmatmul.f32.gmra.mxu0 %v1234
    %v1658 = vpop.f32.mrf.mxu0
    %v1659 = vadd.f32 0.0, %v1658
    %1660 = vmatmul.f32.gmra.mxu0 %v1237
    %v1661 = vpop.f32.mrf.mxu0
    %v1662 = vadd.f32 0.0, %v1661
    %1663 = vmatmul.f32.gmra.mxu0 %v1240
    %v1664 = vpop.f32.mrf.mxu0
    %v1665 = vadd.f32 0.0, %v1664
    %1666 = vdwg.mxu0
    %v1667 = vmul.f32 %v389, %v1267
    %v1668 = vmul.f32 %v392, %v1270
    %v1669 = vmul.f32 %v395, %v1273
    %v1670 = vmul.f32 %v398, %v1276
    %v1671 = vmul.f32 %v401, %v1279
    %v1672 = vmul.f32 %v404, %v1282
    %v1673 = vmul.f32 %v407, %v1285
    %v1674 = vmul.f32 %v410, %v1288
    %v1675 = vmul.f32 %v413, %v1291
    %v1676 = vmul.f32 %v416, %v1294
    %v1677 = vmul.f32 %v419, %v1297
    %v1678 = vmul.f32 %v422, %v1300
    %v1679 = vmul.f32 %v425, %v1303
    %v1680 = vmul.f32 %v428, %v1306
    %v1681 = vmul.f32 %v431, %v1309
    %v1682 = vmul.f32 %v434, %v1312
    %v1683 = vmul.f32 %v437, %v1315
    %v1684 = vmul.f32 %v440, %v1318
    %v1685 = vmul.f32 %v443, %v1321
    %v1686 = vmul.f32 %v446, %v1324
    %v1687 = vmul.f32 %v449, %v1327
    %v1688 = vmul.f32 %v452, %v1330
    %v1689 = vmul.f32 %v455, %v1333
    %v1690 = vmul.f32 %v458, %v1336
    %v1691 = vmul.f32 %v461, %v1339
    %v1692 = vmul.f32 %v464, %v1342
    %v1693 = vmul.f32 %v467, %v1345
    %v1694 = vmul.f32 %v470, %v1348
    %v1695 = vmul.f32 %v473, %v1351
    %v1696 = vmul.f32 %v476, %v1354
    %v1697 = vmul.f32 %v479, %v1357
    %v1698 = vmul.f32 %v482, %v1360
    %v1699 = vmul.f32 %v485, %v1363
    %v1700 = vmul.f32 %v488, %v1366
    %v1701 = vmul.f32 %v491, %v1369
    %v1702 = vmul.f32 %v494, %v1372
    %v1703 = vmul.f32 %v497, %v1375
    %v1704 = vmul.f32 %v500, %v1378
    %v1705 = vmul.f32 %v503, %v1381
    %v1706 = vmul.f32 %v506, %v1384
    %v1707 = vmul.f32 %v509, %v1387
    %v1708 = vmul.f32 %v512, %v1390
    %v1709 = vmul.f32 %v515, %v1393
    %v1710 = vmul.f32 %v518, %v1396
    %v1711 = vmul.f32 %v521, %v1399
    %v1712 = vmul.f32 %v524, %v1402
    %v1713 = vmul.f32 %v527, %v1405
    %v1714 = vmul.f32 %v530, %v1408
    %v1715 = vmul.f32 %v533, %v1411
    %v1716 = vmul.f32 %v536, %v1414
    %v1717 = vmul.f32 %v539, %v1417
    %v1718 = vmul.f32 %v542, %v1420
    %v1719 = vmul.f32 %v545, %v1423
    %v1720 = vmul.f32 %v548, %v1426
    %v1721 = vmul.f32 %v551, %v1429
    %v1722 = vmul.f32 %v554, %v1432
    %v1723 = vmul.f32 %v557, %v1435
    %v1724 = vmul.f32 %v560, %v1438
    %v1725 = vmul.f32 %v563, %v1441
    %v1726 = vmul.f32 %v566, %v1444
    %v1727 = vmul.f32 %v569, %v1447
    %v1728 = vmul.f32 %v572, %v1450
    %v1729 = vmul.f32 %v575, %v1453
    %v1730 = vmul.f32 %v578, %v1456
    %v1731 = vadd.f32 %v1667, %v1476
    %v1732 = vadd.f32 %v1668, %v1479
    %v1733 = vadd.f32 %v1669, %v1482
    %v1734 = vadd.f32 %v1670, %v1485
    %v1735 = vadd.f32 %v1671, %v1488
    %v1736 = vadd.f32 %v1672, %v1491
    %v1737 = vadd.f32 %v1673, %v1494
    %v1738 = vadd.f32 %v1674, %v1497
    %v1739 = vadd.f32 %v1675, %v1500
    %v1740 = vadd.f32 %v1676, %v1503
    %v1741 = vadd.f32 %v1677, %v1506
    %v1742 = vadd.f32 %v1678, %v1509
    %v1743 = vadd.f32 %v1679, %v1512
    %v1744 = vadd.f32 %v1680, %v1515
    %v1745 = vadd.f32 %v1681, %v1518
    %v1746 = vadd.f32 %v1682, %v1521
    %v1747 = vadd.f32 %v1683, %v1524
    %v1748 = vadd.f32 %v1684, %v1527
    %v1749 = vadd.f32 %v1685, %v1530
    %v1750 = vadd.f32 %v1686, %v1533
    %v1751 = vadd.f32 %v1687, %v1536
    %v1752 = vadd.f32 %v1688, %v1539
    %v1753 = vadd.f32 %v1689, %v1542
    %v1754 = vadd.f32 %v1690, %v1545
    %v1755 = vadd.f32 %v1691, %v1548
    %v1756 = vadd.f32 %v1692, %v1551
    %v1757 = vadd.f32 %v1693, %v1554
    %v1758 = vadd.f32 %v1694, %v1557
    %v1759 = vadd.f32 %v1695, %v1560
    %v1760 = vadd.f32 %v1696, %v1563
    %v1761 = vadd.f32 %v1697, %v1566
    %v1762 = vadd.f32 %v1698, %v1569
    %v1763 = vadd.f32 %v1699, %v1572
    %v1764 = vadd.f32 %v1700, %v1575
    %v1765 = vadd.f32 %v1701, %v1578
    %v1766 = vadd.f32 %v1702, %v1581
    %v1767 = vadd.f32 %v1703, %v1584
    %v1768 = vadd.f32 %v1704, %v1587
    %v1769 = vadd.f32 %v1705, %v1590
    %v1770 = vadd.f32 %v1706, %v1593
    %v1771 = vadd.f32 %v1707, %v1596
    %v1772 = vadd.f32 %v1708, %v1599
    %v1773 = vadd.f32 %v1709, %v1602
    %v1774 = vadd.f32 %v1710, %v1605
    %v1775 = vadd.f32 %v1711, %v1608
    %v1776 = vadd.f32 %v1712, %v1611
    %v1777 = vadd.f32 %v1713, %v1614
    %v1778 = vadd.f32 %v1714, %v1617
    %v1779 = vadd.f32 %v1715, %v1620
    %v1780 = vadd.f32 %v1716, %v1623
    %v1781 = vadd.f32 %v1717, %v1626
    %v1782 = vadd.f32 %v1718, %v1629
    %v1783 = vadd.f32 %v1719, %v1632
    %v1784 = vadd.f32 %v1720, %v1635
    %v1785 = vadd.f32 %v1721, %v1638
    %v1786 = vadd.f32 %v1722, %v1641
    %v1787 = vadd.f32 %v1723, %v1644
    %v1788 = vadd.f32 %v1724, %v1647
    %v1789 = vadd.f32 %v1725, %v1650
    %v1790 = vadd.f32 %v1726, %v1653
    %v1791 = vadd.f32 %v1727, %v1656
    %v1792 = vadd.f32 %v1728, %v1659
    %v1793 = vadd.f32 %v1729, %v1662
    %v1794 = vadd.f32 %v1730, %v1665
    %v1795 = vmax.f32 %v1731, 0.0
    %v1796 = vmax.f32 %v1732, 0.0
    %v1797 = vmax.f32 %v1733, 0.0
    %v1798 = vmax.f32 %v1734, 0.0
    %v1799 = vmax.f32 %v1735, 0.0
    %v1800 = vmax.f32 %v1736, 0.0
    %v1801 = vmax.f32 %v1737, 0.0
    %v1802 = vmax.f32 %v1738, 0.0
    %v1803 = vmax.f32 %v1739, 0.0
    %v1804 = vmax.f32 %v1740, 0.0
    %v1805 = vmax.f32 %v1741, 0.0
    %v1806 = vmax.f32 %v1742, 0.0
    %v1807 = vmax.f32 %v1743, 0.0
    %v1808 = vmax.f32 %v1744, 0.0
    %v1809 = vmax.f32 %v1745, 0.0
    %v1810 = vmax.f32 %v1746, 0.0
    %v1811 = vmax.f32 %v1747, 0.0
    %v1812 = vmax.f32 %v1748, 0.0
    %v1813 = vmax.f32 %v1749, 0.0
    %v1814 = vmax.f32 %v1750, 0.0
    %v1815 = vmax.f32 %v1751, 0.0
    %v1816 = vmax.f32 %v1752, 0.0
    %v1817 = vmax.f32 %v1753, 0.0
    %v1818 = vmax.f32 %v1754, 0.0
    %v1819 = vmax.f32 %v1755, 0.0
    %v1820 = vmax.f32 %v1756, 0.0
    %v1821 = vmax.f32 %v1757, 0.0
    %v1822 = vmax.f32 %v1758, 0.0
    %v1823 = vmax.f32 %v1759, 0.0
    %v1824 = vmax.f32 %v1760, 0.0
    %v1825 = vmax.f32 %v1761, 0.0
    %v1826 = vmax.f32 %v1762, 0.0
    %v1827 = vmax.f32 %v1763, 0.0
    %v1828 = vmax.f32 %v1764, 0.0
    %v1829 = vmax.f32 %v1765, 0.0
    %v1830 = vmax.f32 %v1766, 0.0
    %v1831 = vmax.f32 %v1767, 0.0
    %v1832 = vmax.f32 %v1768, 0.0
    %v1833 = vmax.f32 %v1769, 0.0
    %v1834 = vmax.f32 %v1770, 0.0
    %v1835 = vmax.f32 %v1771, 0.0
    %v1836 = vmax.f32 %v1772, 0.0
    %v1837 = vmax.f32 %v1773, 0.0
    %v1838 = vmax.f32 %v1774, 0.0
    %v1839 = vmax.f32 %v1775, 0.0
    %v1840 = vmax.f32 %v1776, 0.0
    %v1841 = vmax.f32 %v1777, 0.0
    %v1842 = vmax.f32 %v1778, 0.0
    %v1843 = vmax.f32 %v1779, 0.0
    %v1844 = vmax.f32 %v1780, 0.0
    %v1845 = vmax.f32 %v1781, 0.0
    %v1846 = vmax.f32 %v1782, 0.0
    %v1847 = vmax.f32 %v1783, 0.0
    %v1848 = vmax.f32 %v1784, 0.0
    %v1849 = vmax.f32 %v1785, 0.0
    %v1850 = vmax.f32 %v1786, 0.0
    %v1851 = vmax.f32 %v1787, 0.0
    %v1852 = vmax.f32 %v1788, 0.0
    %v1853 = vmax.f32 %v1789, 0.0
    %v1854 = vmax.f32 %v1790, 0.0
    %v1855 = vmax.f32 %v1791, 0.0
    %v1856 = vmax.f32 %v1792, 0.0
    %v1857 = vmax.f32 %v1793, 0.0
    %v1858 = vmax.f32 %v1794, 0.0
    %1859 = vst [vmem:[#allocation1] ss:$4 sm:$0xff] %v39
    %v1860 = vld.sshfl [vmem:[#allocation1] sm:$0xff pattern:$0x73625140]
    %v1861 = vld.sshfl [vmem:[#allocation1 + $0x8] sm:$0xff pattern:$0x73625140]
    %v1862 = vld.sshfl [vmem:[#allocation1 + $0x10] sm:$0xff pattern:$0x73625140]
    %v1863 = vld.sshfl [vmem:[#allocation1 + $0x18] sm:$0xff pattern:$0x73625140]
    %1868 = vmatpush.msra.mxu0 %v643
    %1869 = vmatpush.msra.mxu0 %v640
    %1870 = vmatpush.msra.mxu0 %v637
    %1871 = vmatpush.msra.mxu0 %v634
    %1872 = vmatpush.msra.mxu0 %v631
    %1873 = vmatpush.msra.mxu0 %v628
    %1874 = vmatpush.msra.mxu0 %v625
    %1875 = vmatpush.msra.mxu0 %v622
    %1876 = vmatpush.msra.mxu0 %v619
    %1877 = vmatpush.msra.mxu0 %v616
    %1878 = vmatpush.msra.mxu0 %v613
    %1879 = vmatpush.msra.mxu0 %v610
    %1880 = vmatpush.msra.mxu0 %v607
    %1881 = vmatpush.msra.mxu0 %v604
    %1882 = vmatpush.msra.mxu0 %v601
    %1883 = vmatpush.msra.mxu0 %v598
    %1884 = vmatmul.f32.gmra.mxu0 %v1860
    %v1885 = vpop.f32.mrf.mxu0
    %v1886 = vadd.f32 0.0, %v1885
    %1887 = vdwg.mxu0
    %1888 = vmatpush.msra.mxu0 %v691
    %1889 = vmatpush.msra.mxu0 %v688
    %1890 = vmatpush.msra.mxu0 %v685
    %1891 = vmatpush.msra.mxu0 %v682
    %1892 = vmatpush.msra.mxu0 %v679
    %1893 = vmatpush.msra.mxu0 %v676
    %1894 = vmatpush.msra.mxu0 %v673
    %1895 = vmatpush.msra.mxu0 %v670
    %1896 = vmatpush.msra.mxu0 %v667
    %1897 = vmatpush.msra.mxu0 %v664
    %1898 = vmatpush.msra.mxu0 %v661
    %1899 = vmatpush.msra.mxu0 %v658
    %1900 = vmatpush.msra.mxu0 %v655
    %1901 = vmatpush.msra.mxu0 %v652
    %1902 = vmatpush.msra.mxu0 %v649
    %1903 = vmatpush.msra.mxu0 %v646
    %1904 = vmatmul.f32.gmra.mxu0 %v1861
    %v1905 = vpop.f32.mrf.mxu0
    %v1906 = vadd.f32 %v1886, %v1905
    %1907 = vdwg.mxu0
    %1908 = vmatpush.msra.mxu0 %v739
    %1909 = vmatpush.msra.mxu0 %v736
    %1910 = vmatpush.msra.mxu0 %v733
    %1911 = vmatpush.msra.mxu0 %v730
    %1912 = vmatpush.msra.mxu0 %v727
    %1913 = vmatpush.msra.mxu0 %v724
    %1914 = vmatpush.msra.mxu0 %v721
    %1915 = vmatpush.msra.mxu0 %v718
    %1916 = vmatpush.msra.mxu0 %v715
    %1917 = vmatpush.msra.mxu0 %v712
    %1918 = vmatpush.msra.mxu0 %v709
    %1919 = vmatpush.msra.mxu0 %v706
    %1920 = vmatpush.msra.mxu0 %v703
    %1921 = vmatpush.msra.mxu0 %v700
    %1922 = vmatpush.msra.mxu0 %v697
    %1923 = vmatpush.msra.mxu0 %v694
    %1924 = vmatmul.f32.gmra.mxu0 %v1862
    %v1925 = vpop.f32.mrf.mxu0
    %v1926 = vadd.f32 %v1906, %v1925
    %1927 = vdwg.mxu0
    %1928 = vmatpush.msra.mxu0 %v787
    %1929 = vmatpush.msra.mxu0 %v784
    %1930 = vmatpush.msra.mxu0 %v781
    %1931 = vmatpush.msra.mxu0 %v778
    %1932 = vmatpush.msra.mxu0 %v775
    %1933 = vmatpush.msra.mxu0 %v772
    %1934 = vmatpush.msra.mxu0 %v769
    %1935 = vmatpush.msra.mxu0 %v766
    %1936 = vmatpush.msra.mxu0 %v763
    %1937 = vmatpush.msra.mxu0 %v760
    %1938 = vmatpush.msra.mxu0 %v757
    %1939 = vmatpush.msra.mxu0 %v754
    %1940 = vmatpush.msra.mxu0 %v751
    %1941 = vmatpush.msra.mxu0 %v748
    %1942 = vmatpush.msra.mxu0 %v745
    %1943 = vmatpush.msra.mxu0 %v742
    %1944 = vmatmul.f32.gmra.mxu0 %v1863
    %v1945 = vpop.f32.mrf.mxu0
    %v1946 = vadd.f32 %v1926, %v1945
    %1947 = vdwg.mxu0
    %v1948 = vmul.f32 %v598, %v598
    %v1949 = vmul.f32 %v601, %v601
    %v1950 = vmul.f32 %v604, %v604
    %v1951 = vmul.f32 %v607, %v607
    %v1952 = vmul.f32 %v610, %v610
    %v1953 = vmul.f32 %v613, %v613
    %v1954 = vmul.f32 %v616, %v616
    %v1955 = vmul.f32 %v619, %v619
    %v1956 = vmul.f32 %v622, %v622
    %v1957 = vmul.f32 %v625, %v625
    %v1958 = vmul.f32 %v628, %v628
    %v1959 = vmul.f32 %v631, %v631
    %v1960 = vmul.f32 %v634, %v634
    %v1961 = vmul.f32 %v637, %v637
    %v1962 = vmul.f32 %v640, %v640
    %v1963 = vmul.f32 %v643, %v643
    %v1964 = vmul.f32 %v646, %v646
    %v1965 = vmul.f32 %v649, %v649
    %v1966 = vmul.f32 %v652, %v652
    %v1967 = vmul.f32 %v655, %v655
    %v1968 = vmul.f32 %v658, %v658
    %v1969 = vmul.f32 %v661, %v661
    %v1970 = vmul.f32 %v664, %v664
    %v1971 = vmul.f32 %v667, %v667
    %v1972 = vmul.f32 %v670, %v670
    %v1973 = vmul.f32 %v673, %v673
    %v1974 = vmul.f32 %v676, %v676
    %v1975 = vmul.f32 %v679, %v679
    %v1976 = vmul.f32 %v682, %v682
    %v1977 = vmul.f32 %v685, %v685
    %v1978 = vmul.f32 %v688, %v688
    %v1979 = vmul.f32 %v691, %v691
    %v1980 = vmul.f32 %v694, %v694
    %v1981 = vmul.f32 %v697, %v697
    %v1982 = vmul.f32 %v700, %v700
    %v1983 = vmul.f32 %v703, %v703
    %v1984 = vmul.f32 %v706, %v706
    %v1985 = vmul.f32 %v709, %v709
    %v1986 = vmul.f32 %v712, %v712
    %v1987 = vmul.f32 %v715, %v715
    %v1988 = vmul.f32 %v718, %v718
    %v1989 = vmul.f32 %v721, %v721
    %v1990 = vmul.f32 %v724, %v724
    %v1991 = vmul.f32 %v727, %v727
    %v1992 = vmul.f32 %v730, %v730
    %v1993 = vmul.f32 %v733, %v733
    %v1994 = vmul.f32 %v736, %v736
    %v1995 = vmul.f32 %v739, %v739
    %v1996 = vmul.f32 %v742, %v742
    %v1997 = vmul.f32 %v745, %v745
    %v1998 = vmul.f32 %v748, %v748
    %v1999 = vmul.f32 %v751, %v751
    %v2000 = vmul.f32 %v754, %v754
    %v2001 = vmul.f32 %v757, %v757
    %v2002 = vmul.f32 %v760, %v760
    %v2003 = vmul.f32 %v763, %v763
    %v2004 = vmul.f32 %v766, %v766
    %v2005 = vmul.f32 %v769, %v769
    %v2006 = vmul.f32 %v772, %v772
    %v2007 = vmul.f32 %v775, %v775
    %v2008 = vmul.f32 %v778, %v778
    %v2009 = vmul.f32 %v781, %v781
    %v2010 = vmul.f32 %v784, %v784
    %v2011 = vmul.f32 %v787, %v787
    %2012 = vst [vmem:[#allocation1] ss:$4 sm:$0xff] %v39
    %v2013 = vld.sshfl [vmem:[#allocation1] sm:$0xff pattern:$0x73625140]
    %v2014 = vld.sshfl [vmem:[#allocation1 + $0x8] sm:$0xff pattern:$0x73625140]
    %v2015 = vld.sshfl [vmem:[#allocation1 + $0x10] sm:$0xff pattern:$0x73625140]
    %v2016 = vld.sshfl [vmem:[#allocation1 + $0x18] sm:$0xff pattern:$0x73625140]
    %2021 = vmatpush.msra.mxu0 %v1963
    %2022 = vmatpush.msra.mxu0 %v1962
    %2023 = vmatpush.msra.mxu0 %v1961
    %2024 = vmatpush.msra.mxu0 %v1960
    %2025 = vmatpush.msra.mxu0 %v1959
    %2026 = vmatpush.msra.mxu0 %v1958
    %2027 = vmatpush.msra.mxu0 %v1957
    %2028 = vmatpush.msra.mxu0 %v1956
    %2029 = vmatpush.msra.mxu0 %v1955
    %2030 = vmatpush.msra.mxu0 %v1954
    %2031 = vmatpush.msra.mxu0 %v1953
    %2032 = vmatpush.msra.mxu0 %v1952
    %2033 = vmatpush.msra.mxu0 %v1951
    %2034 = vmatpush.msra.mxu0 %v1950
    %2035 = vmatpush.msra.mxu0 %v1949
    %2036 = vmatpush.msra.mxu0 %v1948
    %2037 = vmatmul.f32.gmra.mxu0 %v2013
    %v2038 = vpop.f32.mrf.mxu0
    %v2039 = vadd.f32 0.0, %v2038
    %2040 = vdwg.mxu0
    %2041 = vmatpush.msra.mxu0 %v1979
    %2042 = vmatpush.msra.mxu0 %v1978
    %2043 = vmatpush.msra.mxu0 %v1977
    %2044 = vmatpush.msra.mxu0 %v1976
    %2045 = vmatpush.msra.mxu0 %v1975
    %2046 = vmatpush.msra.mxu0 %v1974
    %2047 = vmatpush.msra.mxu0 %v1973
    %2048 = vmatpush.msra.mxu0 %v1972
    %2049 = vmatpush.msra.mxu0 %v1971
    %2050 = vmatpush.msra.mxu0 %v1970
    %2051 = vmatpush.msra.mxu0 %v1969
    %2052 = vmatpush.msra.mxu0 %v1968
    %2053 = vmatpush.msra.mxu0 %v1967
    %2054 = vmatpush.msra.mxu0 %v1966
    %2055 = vmatpush.msra.mxu0 %v1965
    %2056 = vmatpush.msra.mxu0 %v1964
    %2057 = vmatmul.f32.gmra.mxu0 %v2014
    %v2058 = vpop.f32.mrf.mxu0
    %v2059 = vadd.f32 %v2039, %v2058
    %2060 = vdwg.mxu0
    %2061 = vmatpush.msra.mxu0 %v1995
    %2062 = vmatpush.msra.mxu0 %v1994
    %2063 = vmatpush.msra.mxu0 %v1993
    %2064 = vmatpush.msra.mxu0 %v1992
    %2065 = vmatpush.msra.mxu0 %v1991
    %2066 = vmatpush.msra.mxu0 %v1990
    %2067 = vmatpush.msra.mxu0 %v1989
    %2068 = vmatpush.msra.mxu0 %v1988
    %2069 = vmatpush.msra.mxu0 %v1987
    %2070 = vmatpush.msra.mxu0 %v1986
    %2071 = vmatpush.msra.mxu0 %v1985
    %2072 = vmatpush.msra.mxu0 %v1984
    %2073 = vmatpush.msra.mxu0 %v1983
    %2074 = vmatpush.msra.mxu0 %v1982
    %2075 = vmatpush.msra.mxu0 %v1981
    %2076 = vmatpush.msra.mxu0 %v1980
    %2077 = vmatmul.f32.gmra.mxu0 %v2015
    %v2078 = vpop.f32.mrf.mxu0
    %v2079 = vadd.f32 %v2059, %v2078
    %2080 = vdwg.mxu0
    %2081 = vmatpush.msra.mxu0 %v2011
    %2082 = vmatpush.msra.mxu0 %v2010
    %2083 = vmatpush.msra.mxu0 %v2009
    %2084 = vmatpush.msra.mxu0 %v2008
    %2085 = vmatpush.msra.mxu0 %v2007
    %2086 = vmatpush.msra.mxu0 %v2006
    %2087 = vmatpush.msra.mxu0 %v2005
    %2088 = vmatpush.msra.mxu0 %v2004
    %2089 = vmatpush.msra.mxu0 %v2003
    %2090 = vmatpush.msra.mxu0 %v2002
    %2091 = vmatpush.msra.mxu0 %v2001
    %2092 = vmatpush.msra.mxu0 %v2000
    %2093 = vmatpush.msra.mxu0 %v1999
    %2094 = vmatpush.msra.mxu0 %v1998
    %2095 = vmatpush.msra.mxu0 %v1997
    %2096 = vmatpush.msra.mxu0 %v1996
    %2097 = vmatmul.f32.gmra.mxu0 %v2016
    %v2098 = vpop.f32.mrf.mxu0
    %v2099 = vadd.f32 %v2079, %v2098
    %2100 = vdwg.mxu0
    %v2101 = vmul.f32 %v1946, 0.00390625
    %v2102 = vmul.f32 %v2099, 0.00390625
    %v2103 = vmul.f32 %v2101, %v2101
    %v2104 = vsub.f32 %v2102, %v2103
    %v2105 = vadd.f32 %v2104, 1e-05
    %v2106 = vrsqrt.pop %v2105
    %v2107 = vmul.f32 %v2106, %v2105
    %v2108 = vmul.f32 %v2107, %v2106
    %v2109 = vmul.f32 0.5, %v2108
    %v2110 = vsub.f32 1.5, %v2109
    %v2111 = vmul.f32 %v2106, %v2110
    %vm2112 = vweird.f32 %v2105
    %vm2113 = vweird.f32 %v2106
    %vm2114 = vmor %vm2112, %vm2113
    %v2115 = vsel %vm2114, %v2106, %v2111
    %v2116 = vsub.f32 0.0, %v2101
    %v2117 = vmul.f32 %v2116, %v2115
    %v2119 = vsel %vm1242, %v2115, 0
    %v2122 = vsel %vm1242, %v2117, 0
    %2124 = vmatpush.msra.mxu0 0.0
    %2125 = vmatpush.msra.mxu0 0.0
    %2126 = vmatpush.msra.mxu0 0.0
    %2127 = vmatpush.msra.mxu0 0.0
    %2128 = vmatpush.msra.mxu0 0.0
    %2129 = vmatpush.msra.mxu0 0.0
    %2130 = vmatpush.msra.mxu0 0.0
    %2131 = vmatpush.msra.mxu0 0.0
    %2132 = vmatpush.msra.mxu0 0.0
    %2133 = vmatpush.msra.mxu0 0.0
    %2134 = vmatpush.msra.mxu0 0.0
    %2135 = vmatpush.msra.mxu0 0.0
    %2136 = vmatpush.msra.mxu0 0.0
    %2137 = vmatpush.msra.mxu0 0.0
    %2138 = vmatpush.msra.mxu0 0.0
    %2139 = vmatpush.msra.mxu0 %v2119
    %2140 = vmatmul.f32.gmra.mxu0 %v1051
    %v2141 = vpop.f32.mrf.mxu0
    %v2142 = vadd.f32 0.0, %v2141
    %2143 = vmatmul.f32.gmra.mxu0 %v1054
    %v2144 = vpop.f32.mrf.mxu0
    %v2145 = vadd.f32 0.0, %v2144
    %2146 = vmatmul.f32.gmra.mxu0 %v1057
    %v2147 = vpop.f32.mrf.mxu0
    %v2148 = vadd.f32 0.0, %v2147
    %2149 = vmatmul.f32.gmra.mxu0 %v1060
    %v2150 = vpop.f32.mrf.mxu0
    %v2151 = vadd.f32 0.0, %v2150
    %2152 = vmatmul.f32.gmra.mxu0 %v1063
    %v2153 = vpop.f32.mrf.mxu0
    %v2154 = vadd.f32 0.0, %v2153
    %2155 = vmatmul.f32.gmra.mxu0 %v1066
    %v2156 = vpop.f32.mrf.mxu0
    %v2157 = vadd.f32 0.0, %v2156
    %2158 = vmatmul.f32.gmra.mxu0 %v1069
    %v2159 = vpop.f32.mrf.mxu0
    %v2160 = vadd.f32 0.0, %v2159
    %2161 = vmatmul.f32.gmra.mxu0 %v1072
    %v2162 = vpop.f32.mrf.mxu0
    %v2163 = vadd.f32 0.0, %v2162
    %2164 = vmatmul.f32.gmra.mxu0 %v1075
    %v2165 = vpop.f32.mrf.mxu0
    %v2166 = vadd.f32 0.0, %v2165
    %2167 = vmatmul.f32.gmra.mxu0 %v1078
    %v2168 = vpop.f32.mrf.mxu0
    %v2169 = vadd.f32 0.0, %v2168
    %2170 = vmatmul.f32.gmra.mxu0 %v1081
    %v2171 = vpop.f32.mrf.mxu0
    %v2172 = vadd.f32 0.0, %v2171
    %2173 = vmatmul.f32.gmra.mxu0 %v1084
    %v2174 = vpop.f32.mrf.mxu0
    %v2175 = vadd.f32 0.0, %v2174
    %2176 = vmatmul.f32.gmra.mxu0 %v1087
    %v2177 = vpop.f32.mrf.mxu0
    %v2178 = vadd.f32 0.0, %v2177
    %2179 = vmatmul.f32.gmra.mxu0 %v1090
    %v2180 = vpop.f32.mrf.mxu0
    %v2181 = vadd.f32 0.0, %v2180
    %2182 = vmatmul.f32.gmra.mxu0 %v1093
    %v2183 = vpop.f32.mrf.mxu0
    %v2184 = vadd.f32 0.0, %v2183
    %2185 = vmatmul.f32.gmra.mxu0 %v1096
    %v2186 = vpop.f32.mrf.mxu0
    %v2187 = vadd.f32 0.0, %v2186
    %2188 = vmatmul.f32.gmra.mxu0 %v1099
    %v2189 = vpop.f32.mrf.mxu0
    %v2190 = vadd.f32 0.0, %v2189
    %2191 = vmatmul.f32.gmra.mxu0 %v1102
    %v2192 = vpop.f32.mrf.mxu0
    %v2193 = vadd.f32 0.0, %v2192
    %2194 = vmatmul.f32.gmra.mxu0 %v1105
    %v2195 = vpop.f32.mrf.mxu0
    %v2196 = vadd.f32 0.0, %v2195
    %2197 = vmatmul.f32.gmra.mxu0 %v1108
    %v2198 = vpop.f32.mrf.mxu0
    %v2199 = vadd.f32 0.0, %v2198
    %2200 = vmatmul.f32.gmra.mxu0 %v1111
    %v2201 = vpop.f32.mrf.mxu0
    %v2202 = vadd.f32 0.0, %v2201
    %2203 = vmatmul.f32.gmra.mxu0 %v1114
    %v2204 = vpop.f32.mrf.mxu0
    %v2205 = vadd.f32 0.0, %v2204
    %2206 = vmatmul.f32.gmra.mxu0 %v1117
    %v2207 = vpop.f32.mrf.mxu0
    %v2208 = vadd.f32 0.0, %v2207
    %2209 = vmatmul.f32.gmra.mxu0 %v1120
    %v2210 = vpop.f32.mrf.mxu0
    %v2211 = vadd.f32 0.0, %v2210
    %2212 = vmatmul.f32.gmra.mxu0 %v1123
    %v2213 = vpop.f32.mrf.mxu0
    %v2214 = vadd.f32 0.0, %v2213
    %2215 = vmatmul.f32.gmra.mxu0 %v1126
    %v2216 = vpop.f32.mrf.mxu0
    %v2217 = vadd.f32 0.0, %v2216
    %2218 = vmatmul.f32.gmra.mxu0 %v1129
    %v2219 = vpop.f32.mrf.mxu0
    %v2220 = vadd.f32 0.0, %v2219
    %2221 = vmatmul.f32.gmra.mxu0 %v1132
    %v2222 = vpop.f32.mrf.mxu0
    %v2223 = vadd.f32 0.0, %v2222
    %2224 = vmatmul.f32.gmra.mxu0 %v1135
    %v2225 = vpop.f32.mrf.mxu0
    %v2226 = vadd.f32 0.0, %v2225
    %2227 = vmatmul.f32.gmra.mxu0 %v1138
    %v2228 = vpop.f32.mrf.mxu0
    %v2229 = vadd.f32 0.0, %v2228
    %2230 = vmatmul.f32.gmra.mxu0 %v1141
    %v2231 = vpop.f32.mrf.mxu0
    %v2232 = vadd.f32 0.0, %v2231
    %2233 = vmatmul.f32.gmra.mxu0 %v1144
    %v2234 = vpop.f32.mrf.mxu0
    %v2235 = vadd.f32 0.0, %v2234
    %2236 = vmatmul.f32.gmra.mxu0 %v1147
    %v2237 = vpop.f32.mrf.mxu0
    %v2238 = vadd.f32 0.0, %v2237
    %2239 = vmatmul.f32.gmra.mxu0 %v1150
    %v2240 = vpop.f32.mrf.mxu0
    %v2241 = vadd.f32 0.0, %v2240
    %2242 = vmatmul.f32.gmra.mxu0 %v1153
    %v2243 = vpop.f32.mrf.mxu0
    %v2244 = vadd.f32 0.0, %v2243
    %2245 = vmatmul.f32.gmra.mxu0 %v1156
    %v2246 = vpop.f32.mrf.mxu0
    %v2247 = vadd.f32 0.0, %v2246
    %2248 = vmatmul.f32.gmra.mxu0 %v1159
    %v2249 = vpop.f32.mrf.mxu0
    %v2250 = vadd.f32 0.0, %v2249
    %2251 = vmatmul.f32.gmra.mxu0 %v1162
    %v2252 = vpop.f32.mrf.mxu0
    %v2253 = vadd.f32 0.0, %v2252
    %2254 = vmatmul.f32.gmra.mxu0 %v1165
    %v2255 = vpop.f32.mrf.mxu0
    %v2256 = vadd.f32 0.0, %v2255
    %2257 = vmatmul.f32.gmra.mxu0 %v1168
    %v2258 = vpop.f32.mrf.mxu0
    %v2259 = vadd.f32 0.0, %v2258
    %2260 = vmatmul.f32.gmra.mxu0 %v1171
    %v2261 = vpop.f32.mrf.mxu0
    %v2262 = vadd.f32 0.0, %v2261
    %2263 = vmatmul.f32.gmra.mxu0 %v1174
    %v2264 = vpop.f32.mrf.mxu0
    %v2265 = vadd.f32 0.0, %v2264
    %2266 = vmatmul.f32.gmra.mxu0 %v1177
    %v2267 = vpop.f32.mrf.mxu0
    %v2268 = vadd.f32 0.0, %v2267
    %2269 = vmatmul.f32.gmra.mxu0 %v1180
    %v2270 = vpop.f32.mrf.mxu0
    %v2271 = vadd.f32 0.0, %v2270
    %2272 = vmatmul.f32.gmra.mxu0 %v1183
    %v2273 = vpop.f32.mrf.mxu0
    %v2274 = vadd.f32 0.0, %v2273
    %2275 = vmatmul.f32.gmra.mxu0 %v1186
    %v2276 = vpop.f32.mrf.mxu0
    %v2277 = vadd.f32 0.0, %v2276
    %2278 = vmatmul.f32.gmra.mxu0 %v1189
    %v2279 = vpop.f32.mrf.mxu0
    %v2280 = vadd.f32 0.0, %v2279
    %2281 = vmatmul.f32.gmra.mxu0 %v1192
    %v2282 = vpop.f32.mrf.mxu0
    %v2283 = vadd.f32 0.0, %v2282
    %2284 = vmatmul.f32.gmra.mxu0 %v1195
    %v2285 = vpop.f32.mrf.mxu0
    %v2286 = vadd.f32 0.0, %v2285
    %2287 = vmatmul.f32.gmra.mxu0 %v1198
    %v2288 = vpop.f32.mrf.mxu0
    %v2289 = vadd.f32 0.0, %v2288
    %2290 = vmatmul.f32.gmra.mxu0 %v1201
    %v2291 = vpop.f32.mrf.mxu0
    %v2292 = vadd.f32 0.0, %v2291
    %2293 = vmatmul.f32.gmra.mxu0 %v1204
    %v2294 = vpop.f32.mrf.mxu0
    %v2295 = vadd.f32 0.0, %v2294
    %2296 = vmatmul.f32.gmra.mxu0 %v1207
    %v2297 = vpop.f32.mrf.mxu0
    %v2298 = vadd.f32 0.0, %v2297
    %2299 = vmatmul.f32.gmra.mxu0 %v1210
    %v2300 = vpop.f32.mrf.mxu0
    %v2301 = vadd.f32 0.0, %v2300
    %2302 = vmatmul.f32.gmra.mxu0 %v1213
    %v2303 = vpop.f32.mrf.mxu0
    %v2304 = vadd.f32 0.0, %v2303
    %2305 = vmatmul.f32.gmra.mxu0 %v1216
    %v2306 = vpop.f32.mrf.mxu0
    %v2307 = vadd.f32 0.0, %v2306
    %2308 = vmatmul.f32.gmra.mxu0 %v1219
    %v2309 = vpop.f32.mrf.mxu0
    %v2310 = vadd.f32 0.0, %v2309
    %2311 = vmatmul.f32.gmra.mxu0 %v1222
    %v2312 = vpop.f32.mrf.mxu0
    %v2313 = vadd.f32 0.0, %v2312
    %2314 = vmatmul.f32.gmra.mxu0 %v1225
    %v2315 = vpop.f32.mrf.mxu0
    %v2316 = vadd.f32 0.0, %v2315
    %2317 = vmatmul.f32.gmra.mxu0 %v1228
    %v2318 = vpop.f32.mrf.mxu0
    %v2319 = vadd.f32 0.0, %v2318
    %2320 = vmatmul.f32.gmra.mxu0 %v1231
    %v2321 = vpop.f32.mrf.mxu0
    %v2322 = vadd.f32 0.0, %v2321
    %2323 = vmatmul.f32.gmra.mxu0 %v1234
    %v2324 = vpop.f32.mrf.mxu0
    %v2325 = vadd.f32 0.0, %v2324
    %2326 = vmatmul.f32.gmra.mxu0 %v1237
    %v2327 = vpop.f32.mrf.mxu0
    %v2328 = vadd.f32 0.0, %v2327
    %2329 = vmatmul.f32.gmra.mxu0 %v1240
    %v2330 = vpop.f32.mrf.mxu0
    %v2331 = vadd.f32 0.0, %v2330
    %2332 = vdwg.mxu0
    %2333 = vmatpush.msra.mxu0 0.0
    %2334 = vmatpush.msra.mxu0 0.0
    %2335 = vmatpush.msra.mxu0 0.0
    %2336 = vmatpush.msra.mxu0 0.0
    %2337 = vmatpush.msra.mxu0 0.0
    %2338 = vmatpush.msra.mxu0 0.0
    %2339 = vmatpush.msra.mxu0 0.0
    %2340 = vmatpush.msra.mxu0 0.0
    %2341 = vmatpush.msra.mxu0 0.0
    %2342 = vmatpush.msra.mxu0 0.0
    %2343 = vmatpush.msra.mxu0 0.0
    %2344 = vmatpush.msra.mxu0 0.0
    %2345 = vmatpush.msra.mxu0 0.0
    %2346 = vmatpush.msra.mxu0 0.0
    %2347 = vmatpush.msra.mxu0 0.0
    %2348 = vmatpush.msra.mxu0 %v2122
    %2349 = vmatmul.f32.gmra.mxu0 %v1051
    %v2350 = vpop.f32.mrf.mxu0
    %v2351 = vadd.f32 0.0, %v2350
    %2352 = vmatmul.f32.gmra.mxu0 %v1054
    %v2353 = vpop.f32.mrf.mxu0
    %v2354 = vadd.f32 0.0, %v2353
    %2355 = vmatmul.f32.gmra.mxu0 %v1057
    %v2356 = vpop.f32.mrf.mxu0
    %v2357 = vadd.f32 0.0, %v2356
    %2358 = vmatmul.f32.gmra.mxu0 %v1060
    %v2359 = vpop.f32.mrf.mxu0
    %v2360 = vadd.f32 0.0, %v2359
    %2361 = vmatmul.f32.gmra.mxu0 %v1063
    %v2362 = vpop.f32.mrf.mxu0
    %v2363 = vadd.f32 0.0, %v2362
    %2364 = vmatmul.f32.gmra.mxu0 %v1066
    %v2365 = vpop.f32.mrf.mxu0
    %v2366 = vadd.f32 0.0, %v2365
    %2367 = vmatmul.f32.gmra.mxu0 %v1069
    %v2368 = vpop.f32.mrf.mxu0
    %v2369 = vadd.f32 0.0, %v2368
    %2370 = vmatmul.f32.gmra.mxu0 %v1072
    %v2371 = vpop.f32.mrf.mxu0
    %v2372 = vadd.f32 0.0, %v2371
    %2373 = vmatmul.f32.gmra.mxu0 %v1075
    %v2374 = vpop.f32.mrf.mxu0
    %v2375 = vadd.f32 0.0, %v2374
    %2376 = vmatmul.f32.gmra.mxu0 %v1078
    %v2377 = vpop.f32.mrf.mxu0
    %v2378 = vadd.f32 0.0, %v2377
    %2379 = vmatmul.f32.gmra.mxu0 %v1081
    %v2380 = vpop.f32.mrf.mxu0
    %v2381 = vadd.f32 0.0, %v2380
    %2382 = vmatmul.f32.gmra.mxu0 %v1084
    %v2383 = vpop.f32.mrf.mxu0
    %v2384 = vadd.f32 0.0, %v2383
    %2385 = vmatmul.f32.gmra.mxu0 %v1087
    %v2386 = vpop.f32.mrf.mxu0
    %v2387 = vadd.f32 0.0, %v2386
    %2388 = vmatmul.f32.gmra.mxu0 %v1090
    %v2389 = vpop.f32.mrf.mxu0
    %v2390 = vadd.f32 0.0, %v2389
    %2391 = vmatmul.f32.gmra.mxu0 %v1093
    %v2392 = vpop.f32.mrf.mxu0
    %v2393 = vadd.f32 0.0, %v2392
    %2394 = vmatmul.f32.gmra.mxu0 %v1096
    %v2395 = vpop.f32.mrf.mxu0
    %v2396 = vadd.f32 0.0, %v2395
    %2397 = vmatmul.f32.gmra.mxu0 %v1099
    %v2398 = vpop.f32.mrf.mxu0
    %v2399 = vadd.f32 0.0, %v2398
    %2400 = vmatmul.f32.gmra.mxu0 %v1102
    %v2401 = vpop.f32.mrf.mxu0
    %v2402 = vadd.f32 0.0, %v2401
    %2403 = vmatmul.f32.gmra.mxu0 %v1105
    %v2404 = vpop.f32.mrf.mxu0
    %v2405 = vadd.f32 0.0, %v2404
    %2406 = vmatmul.f32.gmra.mxu0 %v1108
    %v2407 = vpop.f32.mrf.mxu0
    %v2408 = vadd.f32 0.0, %v2407
    %2409 = vmatmul.f32.gmra.mxu0 %v1111
    %v2410 = vpop.f32.mrf.mxu0
    %v2411 = vadd.f32 0.0, %v2410
    %2412 = vmatmul.f32.gmra.mxu0 %v1114
    %v2413 = vpop.f32.mrf.mxu0
    %v2414 = vadd.f32 0.0, %v2413
    %2415 = vmatmul.f32.gmra.mxu0 %v1117
    %v2416 = vpop.f32.mrf.mxu0
    %v2417 = vadd.f32 0.0, %v2416
    %2418 = vmatmul.f32.gmra.mxu0 %v1120
    %v2419 = vpop.f32.mrf.mxu0
    %v2420 = vadd.f32 0.0, %v2419
    %2421 = vmatmul.f32.gmra.mxu0 %v1123
    %v2422 = vpop.f32.mrf.mxu0
    %v2423 = vadd.f32 0.0, %v2422
    %2424 = vmatmul.f32.gmra.mxu0 %v1126
    %v2425 = vpop.f32.mrf.mxu0
    %v2426 = vadd.f32 0.0, %v2425
    %2427 = vmatmul.f32.gmra.mxu0 %v1129
    %v2428 = vpop.f32.mrf.mxu0
    %v2429 = vadd.f32 0.0, %v2428
    %2430 = vmatmul.f32.gmra.mxu0 %v1132
    %v2431 = vpop.f32.mrf.mxu0
    %v2432 = vadd.f32 0.0, %v2431
    %2433 = vmatmul.f32.gmra.mxu0 %v1135
    %v2434 = vpop.f32.mrf.mxu0
    %v2435 = vadd.f32 0.0, %v2434
    %2436 = vmatmul.f32.gmra.mxu0 %v1138
    %v2437 = vpop.f32.mrf.mxu0
    %v2438 = vadd.f32 0.0, %v2437
    %2439 = vmatmul.f32.gmra.mxu0 %v1141
    %v2440 = vpop.f32.mrf.mxu0
    %v2441 = vadd.f32 0.0, %v2440
    %2442 = vmatmul.f32.gmra.mxu0 %v1144
    %v2443 = vpop.f32.mrf.mxu0
    %v2444 = vadd.f32 0.0, %v2443
    %2445 = vmatmul.f32.gmra.mxu0 %v1147
    %v2446 = vpop.f32.mrf.mxu0
    %v2447 = vadd.f32 0.0, %v2446
    %2448 = vmatmul.f32.gmra.mxu0 %v1150
    %v2449 = vpop.f32.mrf.mxu0
    %v2450 = vadd.f32 0.0, %v2449
    %2451 = vmatmul.f32.gmra.mxu0 %v1153
    %v2452 = vpop.f32.mrf.mxu0
    %v2453 = vadd.f32 0.0, %v2452
    %2454 = vmatmul.f32.gmra.mxu0 %v1156
    %v2455 = vpop.f32.mrf.mxu0
    %v2456 = vadd.f32 0.0, %v2455
    %2457 = vmatmul.f32.gmra.mxu0 %v1159
    %v2458 = vpop.f32.mrf.mxu0
    %v2459 = vadd.f32 0.0, %v2458
    %2460 = vmatmul.f32.gmra.mxu0 %v1162
    %v2461 = vpop.f32.mrf.mxu0
    %v2462 = vadd.f32 0.0, %v2461
    %2463 = vmatmul.f32.gmra.mxu0 %v1165
    %v2464 = vpop.f32.mrf.mxu0
    %v2465 = vadd.f32 0.0, %v2464
    %2466 = vmatmul.f32.gmra.mxu0 %v1168
    %v2467 = vpop.f32.mrf.mxu0
    %v2468 = vadd.f32 0.0, %v2467
    %2469 = vmatmul.f32.gmra.mxu0 %v1171
    %v2470 = vpop.f32.mrf.mxu0
    %v2471 = vadd.f32 0.0, %v2470
    %2472 = vmatmul.f32.gmra.mxu0 %v1174
    %v2473 = vpop.f32.mrf.mxu0
    %v2474 = vadd.f32 0.0, %v2473
    %2475 = vmatmul.f32.gmra.mxu0 %v1177
    %v2476 = vpop.f32.mrf.mxu0
    %v2477 = vadd.f32 0.0, %v2476
    %2478 = vmatmul.f32.gmra.mxu0 %v1180
    %v2479 = vpop.f32.mrf.mxu0
    %v2480 = vadd.f32 0.0, %v2479
    %2481 = vmatmul.f32.gmra.mxu0 %v1183
    %v2482 = vpop.f32.mrf.mxu0
    %v2483 = vadd.f32 0.0, %v2482
    %2484 = vmatmul.f32.gmra.mxu0 %v1186
    %v2485 = vpop.f32.mrf.mxu0
    %v2486 = vadd.f32 0.0, %v2485
    %2487 = vmatmul.f32.gmra.mxu0 %v1189
    %v2488 = vpop.f32.mrf.mxu0
    %v2489 = vadd.f32 0.0, %v2488
    %2490 = vmatmul.f32.gmra.mxu0 %v1192
    %v2491 = vpop.f32.mrf.mxu0
    %v2492 = vadd.f32 0.0, %v2491
    %2493 = vmatmul.f32.gmra.mxu0 %v1195
    %v2494 = vpop.f32.mrf.mxu0
    %v2495 = vadd.f32 0.0, %v2494
    %2496 = vmatmul.f32.gmra.mxu0 %v1198
    %v2497 = vpop.f32.mrf.mxu0
    %v2498 = vadd.f32 0.0, %v2497
    %2499 = vmatmul.f32.gmra.mxu0 %v1201
    %v2500 = vpop.f32.mrf.mxu0
    %v2501 = vadd.f32 0.0, %v2500
    %2502 = vmatmul.f32.gmra.mxu0 %v1204
    %v2503 = vpop.f32.mrf.mxu0
    %v2504 = vadd.f32 0.0, %v2503
    %2505 = vmatmul.f32.gmra.mxu0 %v1207
    %v2506 = vpop.f32.mrf.mxu0
    %v2507 = vadd.f32 0.0, %v2506
    %2508 = vmatmul.f32.gmra.mxu0 %v1210
    %v2509 = vpop.f32.mrf.mxu0
    %v2510 = vadd.f32 0.0, %v2509
    %2511 = vmatmul.f32.gmra.mxu0 %v1213
    %v2512 = vpop.f32.mrf.mxu0
    %v2513 = vadd.f32 0.0, %v2512
    %2514 = vmatmul.f32.gmra.mxu0 %v1216
    %v2515 = vpop.f32.mrf.mxu0
    %v2516 = vadd.f32 0.0, %v2515
    %2517 = vmatmul.f32.gmra.mxu0 %v1219
    %v2518 = vpop.f32.mrf.mxu0
    %v2519 = vadd.f32 0.0, %v2518
    %2520 = vmatmul.f32.gmra.mxu0 %v1222
    %v2521 = vpop.f32.mrf.mxu0
    %v2522 = vadd.f32 0.0, %v2521
    %2523 = vmatmul.f32.gmra.mxu0 %v1225
    %v2524 = vpop.f32.mrf.mxu0
    %v2525 = vadd.f32 0.0, %v2524
    %2526 = vmatmul.f32.gmra.mxu0 %v1228
    %v2527 = vpop.f32.mrf.mxu0
    %v2528 = vadd.f32 0.0, %v2527
    %2529 = vmatmul.f32.gmra.mxu0 %v1231
    %v2530 = vpop.f32.mrf.mxu0
    %v2531 = vadd.f32 0.0, %v2530
    %2532 = vmatmul.f32.gmra.mxu0 %v1234
    %v2533 = vpop.f32.mrf.mxu0
    %v2534 = vadd.f32 0.0, %v2533
    %2535 = vmatmul.f32.gmra.mxu0 %v1237
    %v2536 = vpop.f32.mrf.mxu0
    %v2537 = vadd.f32 0.0, %v2536
    %2538 = vmatmul.f32.gmra.mxu0 %v1240
    %v2539 = vpop.f32.mrf.mxu0
    %v2540 = vadd.f32 0.0, %v2539
    %2541 = vdwg.mxu0
    %v2542 = vmul.f32 %v598, %v2142
    %v2543 = vmul.f32 %v601, %v2145
    %v2544 = vmul.f32 %v604, %v2148
    %v2545 = vmul.f32 %v607, %v2151
    %v2546 = vmul.f32 %v610, %v2154
    %v2547 = vmul.f32 %v613, %v2157
    %v2548 = vmul.f32 %v616, %v2160
    %v2549 = vmul.f32 %v619, %v2163
    %v2550 = vmul.f32 %v622, %v2166
    %v2551 = vmul.f32 %v625, %v2169
    %v2552 = vmul.f32 %v628, %v2172
    %v2553 = vmul.f32 %v631, %v2175
    %v2554 = vmul.f32 %v634, %v2178
    %v2555 = vmul.f32 %v637, %v2181
    %v2556 = vmul.f32 %v640, %v2184
    %v2557 = vmul.f32 %v643, %v2187
    %v2558 = vmul.f32 %v646, %v2190
    %v2559 = vmul.f32 %v649, %v2193
    %v2560 = vmul.f32 %v652, %v2196
    %v2561 = vmul.f32 %v655, %v2199
    %v2562 = vmul.f32 %v658, %v2202
    %v2563 = vmul.f32 %v661, %v2205
    %v2564 = vmul.f32 %v664, %v2208
    %v2565 = vmul.f32 %v667, %v2211
    %v2566 = vmul.f32 %v670, %v2214
    %v2567 = vmul.f32 %v673, %v2217
    %v2568 = vmul.f32 %v676, %v2220
    %v2569 = vmul.f32 %v679, %v2223
    %v2570 = vmul.f32 %v682, %v2226
    %v2571 = vmul.f32 %v685, %v2229
    %v2572 = vmul.f32 %v688, %v2232
    %v2573 = vmul.f32 %v691, %v2235
    %v2574 = vmul.f32 %v694, %v2238
    %v2575 = vmul.f32 %v697, %v2241
    %v2576 = vmul.f32 %v700, %v2244
    %v2577 = vmul.f32 %v703, %v2247
    %v2578 = vmul.f32 %v706, %v2250
    %v2579 = vmul.f32 %v709, %v2253
    %v2580 = vmul.f32 %v712, %v2256
    %v2581 = vmul.f32 %v715, %v2259
    %v2582 = vmul.f32 %v718, %v2262
    %v2583 = vmul.f32 %v721, %v2265
    %v2584 = vmul.f32 %v724, %v2268
    %v2585 = vmul.f32 %v727, %v2271
    %v2586 = vmul.f32 %v730, %v2274
    %v2587 = vmul.f32 %v733, %v2277
    %v2588 = vmul.f32 %v736, %v2280
    %v2589 = vmul.f32 %v739, %v2283
    %v2590 = vmul.f32 %v742, %v2286
    %v2591 = vmul.f32 %v745, %v2289
    %v2592 = vmul.f32 %v748, %v2292
    %v2593 = vmul.f32 %v751, %v2295
    %v2594 = vmul.f32 %v754, %v2298
    %v2595 = vmul.f32 %v757, %v2301
    %v2596 = vmul.f32 %v760, %v2304
    %v2597 = vmul.f32 %v763, %v2307
    %v2598 = vmul.f32 %v766, %v2310
    %v2599 = vmul.f32 %v769, %v2313
    %v2600 = vmul.f32 %v772, %v2316
    %v2601 = vmul.f32 %v775, %v2319
    %v2602 = vmul.f32 %v778, %v2322
    %v2603 = vmul.f32 %v781, %v2325
    %v2604 = vmul.f32 %v784, %v2328
    %v2605 = vmul.f32 %v787, %v2331
    %v2606 = vadd.f32 %v2542, %v2351
    %v2607 = vadd.f32 %v2543, %v2354
    %v2608 = vadd.f32 %v2544, %v2357
    %v2609 = vadd.f32 %v2545, %v2360
    %v2610 = vadd.f32 %v2546, %v2363
    %v2611 = vadd.f32 %v2547, %v2366
    %v2612 = vadd.f32 %v2548, %v2369
    %v2613 = vadd.f32 %v2549, %v2372
    %v2614 = vadd.f32 %v2550, %v2375
    %v2615 = vadd.f32 %v2551, %v2378
    %v2616 = vadd.f32 %v2552, %v2381
    %v2617 = vadd.f32 %v2553, %v2384
    %v2618 = vadd.f32 %v2554, %v2387
    %v2619 = vadd.f32 %v2555, %v2390
    %v2620 = vadd.f32 %v2556, %v2393
    %v2621 = vadd.f32 %v2557, %v2396
    %v2622 = vadd.f32 %v2558, %v2399
    %v2623 = vadd.f32 %v2559, %v2402
    %v2624 = vadd.f32 %v2560, %v2405
    %v2625 = vadd.f32 %v2561, %v2408
    %v2626 = vadd.f32 %v2562, %v2411
    %v2627 = vadd.f32 %v2563, %v2414
    %v2628 = vadd.f32 %v2564, %v2417
    %v2629 = vadd.f32 %v2565, %v2420
    %v2630 = vadd.f32 %v2566, %v2423
    %v2631 = vadd.f32 %v2567, %v2426
    %v2632 = vadd.f32 %v2568, %v2429
    %v2633 = vadd.f32 %v2569, %v2432
    %v2634 = vadd.f32 %v2570, %v2435
    %v2635 = vadd.f32 %v2571, %v2438
    %v2636 = vadd.f32 %v2572, %v2441
    %v2637 = vadd.f32 %v2573, %v2444
    %v2638 = vadd.f32 %v2574, %v2447
    %v2639 = vadd.f32 %v2575, %v2450
    %v2640 = vadd.f32 %v2576, %v2453
    %v2641 = vadd.f32 %v2577, %v2456
    %v2642 = vadd.f32 %v2578, %v2459
    %v2643 = vadd.f32 %v2579, %v2462
    %v2644 = vadd.f32 %v2580, %v2465
    %v2645 = vadd.f32 %v2581, %v2468
    %v2646 = vadd.f32 %v2582, %v2471
    %v2647 = vadd.f32 %v2583, %v2474
    %v2648 = vadd.f32 %v2584, %v2477
    %v2649 = vadd.f32 %v2585, %v2480
    %v2650 = vadd.f32 %v2586, %v2483
    %v2651 = vadd.f32 %v2587, %v2486
    %v2652 = vadd.f32 %v2588, %v2489
    %v2653 = vadd.f32 %v2589, %v2492
    %v2654 = vadd.f32 %v2590, %v2495
    %v2655 = vadd.f32 %v2591, %v2498
    %v2656 = vadd.f32 %v2592, %v2501
    %v2657 = vadd.f32 %v2593, %v2504
    %v2658 = vadd.f32 %v2594, %v2507
    %v2659 = vadd.f32 %v2595, %v2510
    %v2660 = vadd.f32 %v2596, %v2513
    %v2661 = vadd.f32 %v2597, %v2516
    %v2662 = vadd.f32 %v2598, %v2519
    %v2663 = vadd.f32 %v2599, %v2522
    %v2664 = vadd.f32 %v2600, %v2525
    %v2665 = vadd.f32 %v2601, %v2528
    %v2666 = vadd.f32 %v2602, %v2531
    %v2667 = vadd.f32 %v2603, %v2534
    %v2668 = vadd.f32 %v2604, %v2537
    %v2669 = vadd.f32 %v2605, %v2540
    %v2670 = vlaneseq
    %v2671 = vshrl.u32 %v2670, 7
    %v2672 = vadd.s32 %v2671, 8
    %v2673 = vadd.s32 %v2671, 16
    %v2674 = vadd.s32 %v2671, 24
    %v2675 = vadd.s32 %v2671, 32
    %v2676 = vadd.s32 %v2671, 40
    %v2677 = vadd.s32 %v2671, 48
    %v2678 = vadd.s32 %v2671, 56
    %v2679 = vadd.s32 %v2671, 64
    %v2680 = vadd.s32 %v2671, 72
    %v2681 = vadd.s32 %v2671, 80
    %v2682 = vadd.s32 %v2671, 88
    %v2683 = vadd.s32 %v2671, 96
    %v2684 = vadd.s32 %v2671, 104
    %v2685 = vadd.s32 %v2671, 112
    %v2686 = vadd.s32 %v2671, 120
    %v2687 = vadd.s32 %v2671, 128
    %v2688 = vadd.s32 %v2671, 136
    %v2689 = vadd.s32 %v2671, 144
    %v2690 = vadd.s32 %v2671, 152
    %v2691 = vadd.s32 %v2671, 160
    %v2692 = vadd.s32 %v2671, 168
    %v2693 = vadd.s32 %v2671, 176
    %v2694 = vadd.s32 %v2671, 184
    %v2695 = vadd.s32 %v2671, 192
    %v2696 = vadd.s32 %v2671, 200
    %v2697 = vadd.s32 %v2671, 208
    %v2698 = vadd.s32 %v2671, 216
    %v2699 = vadd.s32 %v2671, 224
    %v2700 = vadd.s32 %v2671, 232
    %v2701 = vadd.s32 %v2671, 240
    %v2702 = vadd.s32 %v2671, 248
    %v2703 = vadd.s32 %v2671, 256
    %v2704 = vadd.s32 %v2671, 264
    %v2705 = vadd.s32 %v2671, 272
    %v2706 = vadd.s32 %v2671, 280
    %v2707 = vadd.s32 %v2671, 288
    %v2708 = vadd.s32 %v2671, 296
    %v2709 = vadd.s32 %v2671, 304
    %v2710 = vadd.s32 %v2671, 312
    %v2711 = vadd.s32 %v2671, 320
    %v2712 = vadd.s32 %v2671, 328
    %v2713 = vadd.s32 %v2671, 336
    %v2714 = vadd.s32 %v2671, 344
    %v2715 = vadd.s32 %v2671, 352
    %v2716 = vadd.s32 %v2671, 360
    %v2717 = vadd.s32 %v2671, 368
    %v2718 = vadd.s32 %v2671, 376
    %v2719 = vadd.s32 %v2671, 384
    %v2720 = vadd.s32 %v2671, 392
    %v2721 = vadd.s32 %v2671, 400
    %v2722 = vadd.s32 %v2671, 408
    %v2723 = vadd.s32 %v2671, 416
    %v2724 = vadd.s32 %v2671, 424
    %v2725 = vadd.s32 %v2671, 432
    %v2726 = vadd.s32 %v2671, 440
    %v2727 = vadd.s32 %v2671, 448
    %v2728 = vadd.s32 %v2671, 456
    %v2729 = vadd.s32 %v2671, 464
    %v2730 = vadd.s32 %v2671, 472
    %v2731 = vadd.s32 %v2671, 480
    %v2732 = vadd.s32 %v2671, 488
    %v2733 = vadd.s32 %v2671, 496
    %v2734 = vadd.s32 %v2671, 504
    %vm2735 = vcmp.lt.s32.totalorder %v2671, 0
    %v2736 = vsub.s32 0, %v2671
    %v2737 = vsel %vm2735, %v2736, %v2671
    %v2738 = vshrl.u32 %v2737, 8
    %v2739 = vand.u32 %v2737, 255
    %v2740 = vsub.s32 0, %v2739
    %v2741 = vsel %vm2735, %v2740, %v2739
    %vm2742 = vcmp.lt.s32.totalorder %v2672, 0
    %v2743 = vsub.s32 0, %v2672
    %v2744 = vsel %vm2742, %v2743, %v2672
    %v2745 = vshrl.u32 %v2744, 8
    %v2746 = vand.u32 %v2744, 255
    %v2747 = vsub.s32 0, %v2746
    %v2748 = vsel %vm2742, %v2747, %v2746
    %vm2749 = vcmp.lt.s32.totalorder %v2673, 0
    %v2750 = vsub.s32 0, %v2673
    %v2751 = vsel %vm2749, %v2750, %v2673
    %v2752 = vshrl.u32 %v2751, 8
    %v2753 = vand.u32 %v2751, 255
    %v2754 = vsub.s32 0, %v2753
    %v2755 = vsel %vm2749, %v2754, %v2753
    %vm2756 = vcmp.lt.s32.totalorder %v2674, 0
    %v2757 = vsub.s32 0, %v2674
    %v2758 = vsel %vm2756, %v2757, %v2674
    %v2759 = vshrl.u32 %v2758, 8
    %v2760 = vand.u32 %v2758, 255
    %v2761 = vsub.s32 0, %v2760
    %v2762 = vsel %vm2756, %v2761, %v2760
    %vm2763 = vcmp.lt.s32.totalorder %v2675, 0
    %v2764 = vsub.s32 0, %v2675
    %v2765 = vsel %vm2763, %v2764, %v2675
    %v2766 = vshrl.u32 %v2765, 8
    %v2767 = vand.u32 %v2765, 255
    %v2768 = vsub.s32 0, %v2767
    %v2769 = vsel %vm2763, %v2768, %v2767
    %vm2770 = vcmp.lt.s32.totalorder %v2676, 0
    %v2771 = vsub.s32 0, %v2676
    %v2772 = vsel %vm2770, %v2771, %v2676
    %v2773 = vshrl.u32 %v2772, 8
    %v2774 = vand.u32 %v2772, 255
    %v2775 = vsub.s32 0, %v2774
    %v2776 = vsel %vm2770, %v2775, %v2774
    %vm2777 = vcmp.lt.s32.totalorder %v2677, 0
    %v2778 = vsub.s32 0, %v2677
    %v2779 = vsel %vm2777, %v2778, %v2677
    %v2780 = vshrl.u32 %v2779, 8
    %v2781 = vand.u32 %v2779, 255
    %v2782 = vsub.s32 0, %v2781
    %v2783 = vsel %vm2777, %v2782, %v2781
    %vm2784 = vcmp.lt.s32.totalorder %v2678, 0
    %v2785 = vsub.s32 0, %v2678
    %v2786 = vsel %vm2784, %v2785, %v2678
    %v2787 = vshrl.u32 %v2786, 8
    %v2788 = vand.u32 %v2786, 255
    %v2789 = vsub.s32 0, %v2788
    %v2790 = vsel %vm2784, %v2789, %v2788
    %vm2791 = vcmp.lt.s32.totalorder %v2679, 0
    %v2792 = vsub.s32 0, %v2679
    %v2793 = vsel %vm2791, %v2792, %v2679
    %v2794 = vshrl.u32 %v2793, 8
    %v2795 = vand.u32 %v2793, 255
    %v2796 = vsub.s32 0, %v2795
    %v2797 = vsel %vm2791, %v2796, %v2795
    %vm2798 = vcmp.lt.s32.totalorder %v2680, 0
    %v2799 = vsub.s32 0, %v2680
    %v2800 = vsel %vm2798, %v2799, %v2680
    %v2801 = vshrl.u32 %v2800, 8
    %v2802 = vand.u32 %v2800, 255
    %v2803 = vsub.s32 0, %v2802
    %v2804 = vsel %vm2798, %v2803, %v2802
    %vm2805 = vcmp.lt.s32.totalorder %v2681, 0
    %v2806 = vsub.s32 0, %v2681
    %v2807 = vsel %vm2805, %v2806, %v2681
    %v2808 = vshrl.u32 %v2807, 8
    %v2809 = vand.u32 %v2807, 255
    %v2810 = vsub.s32 0, %v2809
    %v2811 = vsel %vm2805, %v2810, %v2809
    %vm2812 = vcmp.lt.s32.totalorder %v2682, 0
    %v2813 = vsub.s32 0, %v2682
    %v2814 = vsel %vm2812, %v2813, %v2682
    %v2815 = vshrl.u32 %v2814, 8
    %v2816 = vand.u32 %v2814, 255
    %v2817 = vsub.s32 0, %v2816
    %v2818 = vsel %vm2812, %v2817, %v2816
    %vm2819 = vcmp.lt.s32.totalorder %v2683, 0
    %v2820 = vsub.s32 0, %v2683
    %v2821 = vsel %vm2819, %v2820, %v2683
    %v2822 = vshrl.u32 %v2821, 8
    %v2823 = vand.u32 %v2821, 255
    %v2824 = vsub.s32 0, %v2823
    %v2825 = vsel %vm2819, %v2824, %v2823
    %vm2826 = vcmp.lt.s32.totalorder %v2684, 0
    %v2827 = vsub.s32 0, %v2684
    %v2828 = vsel %vm2826, %v2827, %v2684
    %v2829 = vshrl.u32 %v2828, 8
    %v2830 = vand.u32 %v2828, 255
    %v2831 = vsub.s32 0, %v2830
    %v2832 = vsel %vm2826, %v2831, %v2830
    %vm2833 = vcmp.lt.s32.totalorder %v2685, 0
    %v2834 = vsub.s32 0, %v2685
    %v2835 = vsel %vm2833, %v2834, %v2685
    %v2836 = vshrl.u32 %v2835, 8
    %v2837 = vand.u32 %v2835, 255
    %v2838 = vsub.s32 0, %v2837
    %v2839 = vsel %vm2833, %v2838, %v2837
    %vm2840 = vcmp.lt.s32.totalorder %v2686, 0
    %v2841 = vsub.s32 0, %v2686
    %v2842 = vsel %vm2840, %v2841, %v2686
    %v2843 = vshrl.u32 %v2842, 8
    %v2844 = vand.u32 %v2842, 255
    %v2845 = vsub.s32 0, %v2844
    %v2846 = vsel %vm2840, %v2845, %v2844
    %vm2847 = vcmp.lt.s32.totalorder %v2687, 0
    %v2848 = vsub.s32 0, %v2687
    %v2849 = vsel %vm2847, %v2848, %v2687
    %v2850 = vshrl.u32 %v2849, 8
    %v2851 = vand.u32 %v2849, 255
    %v2852 = vsub.s32 0, %v2851
    %v2853 = vsel %vm2847, %v2852, %v2851
    %vm2854 = vcmp.lt.s32.totalorder %v2688, 0
    %v2855 = vsub.s32 0, %v2688
    %v2856 = vsel %vm2854, %v2855, %v2688
    %v2857 = vshrl.u32 %v2856, 8
    %v2858 = vand.u32 %v2856, 255
    %v2859 = vsub.s32 0, %v2858
    %v2860 = vsel %vm2854, %v2859, %v2858
    %vm2861 = vcmp.lt.s32.totalorder %v2689, 0
    %v2862 = vsub.s32 0, %v2689
    %v2863 = vsel %vm2861, %v2862, %v2689
    %v2864 = vshrl.u32 %v2863, 8
    %v2865 = vand.u32 %v2863, 255
    %v2866 = vsub.s32 0, %v2865
    %v2867 = vsel %vm2861, %v2866, %v2865
    %vm2868 = vcmp.lt.s32.totalorder %v2690, 0
    %v2869 = vsub.s32 0, %v2690
    %v2870 = vsel %vm2868, %v2869, %v2690
    %v2871 = vshrl.u32 %v2870, 8
    %v2872 = vand.u32 %v2870, 255
    %v2873 = vsub.s32 0, %v2872
    %v2874 = vsel %vm2868, %v2873, %v2872
    %vm2875 = vcmp.lt.s32.totalorder %v2691, 0
    %v2876 = vsub.s32 0, %v2691
    %v2877 = vsel %vm2875, %v2876, %v2691
    %v2878 = vshrl.u32 %v2877, 8
    %v2879 = vand.u32 %v2877, 255
    %v2880 = vsub.s32 0, %v2879
    %v2881 = vsel %vm2875, %v2880, %v2879
    %vm2882 = vcmp.lt.s32.totalorder %v2692, 0
    %v2883 = vsub.s32 0, %v2692
    %v2884 = vsel %vm2882, %v2883, %v2692
    %v2885 = vshrl.u32 %v2884, 8
    %v2886 = vand.u32 %v2884, 255
    %v2887 = vsub.s32 0, %v2886
    %v2888 = vsel %vm2882, %v2887, %v2886
    %vm2889 = vcmp.lt.s32.totalorder %v2693, 0
    %v2890 = vsub.s32 0, %v2693
    %v2891 = vsel %vm2889, %v2890, %v2693
    %v2892 = vshrl.u32 %v2891, 8
    %v2893 = vand.u32 %v2891, 255
    %v2894 = vsub.s32 0, %v2893
    %v2895 = vsel %vm2889, %v2894, %v2893
    %vm2896 = vcmp.lt.s32.totalorder %v2694, 0
    %v2897 = vsub.s32 0, %v2694
    %v2898 = vsel %vm2896, %v2897, %v2694
    %v2899 = vshrl.u32 %v2898, 8
    %v2900 = vand.u32 %v2898, 255
    %v2901 = vsub.s32 0, %v2900
    %v2902 = vsel %vm2896, %v2901, %v2900
    %vm2903 = vcmp.lt.s32.totalorder %v2695, 0
    %v2904 = vsub.s32 0, %v2695
    %v2905 = vsel %vm2903, %v2904, %v2695
    %v2906 = vshrl.u32 %v2905, 8
    %v2907 = vand.u32 %v2905, 255
    %v2908 = vsub.s32 0, %v2907
    %v2909 = vsel %vm2903, %v2908, %v2907
    %vm2910 = vcmp.lt.s32.totalorder %v2696, 0
    %v2911 = vsub.s32 0, %v2696
    %v2912 = vsel %vm2910, %v2911, %v2696
    %v2913 = vshrl.u32 %v2912, 8
    %v2914 = vand.u32 %v2912, 255
    %v2915 = vsub.s32 0, %v2914
    %v2916 = vsel %vm2910, %v2915, %v2914
    %vm2917 = vcmp.lt.s32.totalorder %v2697, 0
    %v2918 = vsub.s32 0, %v2697
    %v2919 = vsel %vm2917, %v2918, %v2697
    %v2920 = vshrl.u32 %v2919, 8
    %v2921 = vand.u32 %v2919, 255
    %v2922 = vsub.s32 0, %v2921
    %v2923 = vsel %vm2917, %v2922, %v2921
    %vm2924 = vcmp.lt.s32.totalorder %v2698, 0
    %v2925 = vsub.s32 0, %v2698
    %v2926 = vsel %vm2924, %v2925, %v2698
    %v2927 = vshrl.u32 %v2926, 8
    %v2928 = vand.u32 %v2926, 255
    %v2929 = vsub.s32 0, %v2928
    %v2930 = vsel %vm2924, %v2929, %v2928
    %vm2931 = vcmp.lt.s32.totalorder %v2699, 0
    %v2932 = vsub.s32 0, %v2699
    %v2933 = vsel %vm2931, %v2932, %v2699
    %v2934 = vshrl.u32 %v2933, 8
    %v2935 = vand.u32 %v2933, 255
    %v2936 = vsub.s32 0, %v2935
    %v2937 = vsel %vm2931, %v2936, %v2935
    %vm2938 = vcmp.lt.s32.totalorder %v2700, 0
    %v2939 = vsub.s32 0, %v2700
    %v2940 = vsel %vm2938, %v2939, %v2700
    %v2941 = vshrl.u32 %v2940, 8
    %v2942 = vand.u32 %v2940, 255
    %v2943 = vsub.s32 0, %v2942
    %v2944 = vsel %vm2938, %v2943, %v2942
    %vm2945 = vcmp.lt.s32.totalorder %v2701, 0
    %v2946 = vsub.s32 0, %v2701
    %v2947 = vsel %vm2945, %v2946, %v2701
    %v2948 = vshrl.u32 %v2947, 8
    %v2949 = vand.u32 %v2947, 255
    %v2950 = vsub.s32 0, %v2949
    %v2951 = vsel %vm2945, %v2950, %v2949
    %vm2952 = vcmp.lt.s32.totalorder %v2702, 0
    %v2953 = vsub.s32 0, %v2702
    %v2954 = vsel %vm2952, %v2953, %v2702
    %v2955 = vshrl.u32 %v2954, 8
    %v2956 = vand.u32 %v2954, 255
    %v2957 = vsub.s32 0, %v2956
    %v2958 = vsel %vm2952, %v2957, %v2956
    %vm2959 = vcmp.lt.s32.totalorder %v2703, 0
    %v2960 = vsub.s32 0, %v2703
    %v2961 = vsel %vm2959, %v2960, %v2703
    %v2962 = vshrl.u32 %v2961, 8
    %v2963 = vand.u32 %v2961, 255
    %v2964 = vsub.s32 0, %v2963
    %v2965 = vsel %vm2959, %v2964, %v2963
    %vm2966 = vcmp.lt.s32.totalorder %v2704, 0
    %v2967 = vsub.s32 0, %v2704
    %v2968 = vsel %vm2966, %v2967, %v2704
    %v2969 = vshrl.u32 %v2968, 8
    %v2970 = vand.u32 %v2968, 255
    %v2971 = vsub.s32 0, %v2970
    %v2972 = vsel %vm2966, %v2971, %v2970
    %vm2973 = vcmp.lt.s32.totalorder %v2705, 0
    %v2974 = vsub.s32 0, %v2705
    %v2975 = vsel %vm2973, %v2974, %v2705
    %v2976 = vshrl.u32 %v2975, 8
    %v2977 = vand.u32 %v2975, 255
    %v2978 = vsub.s32 0, %v2977
    %v2979 = vsel %vm2973, %v2978, %v2977
    %vm2980 = vcmp.lt.s32.totalorder %v2706, 0
    %v2981 = vsub.s32 0, %v2706
    %v2982 = vsel %vm2980, %v2981, %v2706
    %v2983 = vshrl.u32 %v2982, 8
    %v2984 = vand.u32 %v2982, 255
    %v2985 = vsub.s32 0, %v2984
    %v2986 = vsel %vm2980, %v2985, %v2984
    %vm2987 = vcmp.lt.s32.totalorder %v2707, 0
    %v2988 = vsub.s32 0, %v2707
    %v2989 = vsel %vm2987, %v2988, %v2707
    %v2990 = vshrl.u32 %v2989, 8
    %v2991 = vand.u32 %v2989, 255
    %v2992 = vsub.s32 0, %v2991
    %v2993 = vsel %vm2987, %v2992, %v2991
    %vm2994 = vcmp.lt.s32.totalorder %v2708, 0
    %v2995 = vsub.s32 0, %v2708
    %v2996 = vsel %vm2994, %v2995, %v2708
    %v2997 = vshrl.u32 %v2996, 8
    %v2998 = vand.u32 %v2996, 255
    %v2999 = vsub.s32 0, %v2998
    %v3000 = vsel %vm2994, %v2999, %v2998
    %vm3001 = vcmp.lt.s32.totalorder %v2709, 0
    %v3002 = vsub.s32 0, %v2709
    %v3003 = vsel %vm3001, %v3002, %v2709
    %v3004 = vshrl.u32 %v3003, 8
    %v3005 = vand.u32 %v3003, 255
    %v3006 = vsub.s32 0, %v3005
    %v3007 = vsel %vm3001, %v3006, %v3005
    %vm3008 = vcmp.lt.s32.totalorder %v2710, 0
    %v3009 = vsub.s32 0, %v2710
    %v3010 = vsel %vm3008, %v3009, %v2710
    %v3011 = vshrl.u32 %v3010, 8
    %v3012 = vand.u32 %v3010, 255
    %v3013 = vsub.s32 0, %v3012
    %v3014 = vsel %vm3008, %v3013, %v3012
    %vm3015 = vcmp.lt.s32.totalorder %v2711, 0
    %v3016 = vsub.s32 0, %v2711
    %v3017 = vsel %vm3015, %v3016, %v2711
    %v3018 = vshrl.u32 %v3017, 8
    %v3019 = vand.u32 %v3017, 255
    %v3020 = vsub.s32 0, %v3019
    %v3021 = vsel %vm3015, %v3020, %v3019
    %vm3022 = vcmp.lt.s32.totalorder %v2712, 0
    %v3023 = vsub.s32 0, %v2712
    %v3024 = vsel %vm3022, %v3023, %v2712
    %v3025 = vshrl.u32 %v3024, 8
    %v3026 = vand.u32 %v3024, 255
    %v3027 = vsub.s32 0, %v3026
    %v3028 = vsel %vm3022, %v3027, %v3026
    %vm3029 = vcmp.lt.s32.totalorder %v2713, 0
    %v3030 = vsub.s32 0, %v2713
    %v3031 = vsel %vm3029, %v3030, %v2713
    %v3032 = vshrl.u32 %v3031, 8
    %v3033 = vand.u32 %v3031, 255
    %v3034 = vsub.s32 0, %v3033
    %v3035 = vsel %vm3029, %v3034, %v3033
    %vm3036 = vcmp.lt.s32.totalorder %v2714, 0
    %v3037 = vsub.s32 0, %v2714
    %v3038 = vsel %vm3036, %v3037, %v2714
    %v3039 = vshrl.u32 %v3038, 8
    %v3040 = vand.u32 %v3038, 255
    %v3041 = vsub.s32 0, %v3040
    %v3042 = vsel %vm3036, %v3041, %v3040
    %vm3043 = vcmp.lt.s32.totalorder %v2715, 0
    %v3044 = vsub.s32 0, %v2715
    %v3045 = vsel %vm3043, %v3044, %v2715
    %v3046 = vshrl.u32 %v3045, 8
    %v3047 = vand.u32 %v3045, 255
    %v3048 = vsub.s32 0, %v3047
    %v3049 = vsel %vm3043, %v3048, %v3047
    %vm3050 = vcmp.lt.s32.totalorder %v2716, 0
    %v3051 = vsub.s32 0, %v2716
    %v3052 = vsel %vm3050, %v3051, %v2716
    %v3053 = vshrl.u32 %v3052, 8
    %v3054 = vand.u32 %v3052, 255
    %v3055 = vsub.s32 0, %v3054
    %v3056 = vsel %vm3050, %v3055, %v3054
    %vm3057 = vcmp.lt.s32.totalorder %v2717, 0
    %v3058 = vsub.s32 0, %v2717
    %v3059 = vsel %vm3057, %v3058, %v2717
    %v3060 = vshrl.u32 %v3059, 8
    %v3061 = vand.u32 %v3059, 255
    %v3062 = vsub.s32 0, %v3061
    %v3063 = vsel %vm3057, %v3062, %v3061
    %vm3064 = vcmp.lt.s32.totalorder %v2718, 0
    %v3065 = vsub.s32 0, %v2718
    %v3066 = vsel %vm3064, %v3065, %v2718
    %v3067 = vshrl.u32 %v3066, 8
    %v3068 = vand.u32 %v3066, 255
    %v3069 = vsub.s32 0, %v3068
    %v3070 = vsel %vm3064, %v3069, %v3068
    %vm3071 = vcmp.lt.s32.totalorder %v2719, 0
    %v3072 = vsub.s32 0, %v2719
    %v3073 = vsel %vm3071, %v3072, %v2719
    %v3074 = vshrl.u32 %v3073, 8
    %v3075 = vand.u32 %v3073, 255
    %v3076 = vsub.s32 0, %v3075
    %v3077 = vsel %vm3071, %v3076, %v3075
    %vm3078 = vcmp.lt.s32.totalorder %v2720, 0
    %v3079 = vsub.s32 0, %v2720
    %v3080 = vsel %vm3078, %v3079, %v2720
    %v3081 = vshrl.u32 %v3080, 8
    %v3082 = vand.u32 %v3080, 255
    %v3083 = vsub.s32 0, %v3082
    %v3084 = vsel %vm3078, %v3083, %v3082
    %vm3085 = vcmp.lt.s32.totalorder %v2721, 0
    %v3086 = vsub.s32 0, %v2721
    %v3087 = vsel %vm3085, %v3086, %v2721
    %v3088 = vshrl.u32 %v3087, 8
    %v3089 = vand.u32 %v3087, 255
    %v3090 = vsub.s32 0, %v3089
    %v3091 = vsel %vm3085, %v3090, %v3089
    %vm3092 = vcmp.lt.s32.totalorder %v2722, 0
    %v3093 = vsub.s32 0, %v2722
    %v3094 = vsel %vm3092, %v3093, %v2722
    %v3095 = vshrl.u32 %v3094, 8
    %v3096 = vand.u32 %v3094, 255
    %v3097 = vsub.s32 0, %v3096
    %v3098 = vsel %vm3092, %v3097, %v3096
    %vm3099 = vcmp.lt.s32.totalorder %v2723, 0
    %v3100 = vsub.s32 0, %v2723
    %v3101 = vsel %vm3099, %v3100, %v2723
    %v3102 = vshrl.u32 %v3101, 8
    %v3103 = vand.u32 %v3101, 255
    %v3104 = vsub.s32 0, %v3103
    %v3105 = vsel %vm3099, %v3104, %v3103
    %vm3106 = vcmp.lt.s32.totalorder %v2724, 0
    %v3107 = vsub.s32 0, %v2724
    %v3108 = vsel %vm3106, %v3107, %v2724
    %v3109 = vshrl.u32 %v3108, 8
    %v3110 = vand.u32 %v3108, 255
    %v3111 = vsub.s32 0, %v3110
    %v3112 = vsel %vm3106, %v3111, %v3110
    %vm3113 = vcmp.lt.s32.totalorder %v2725, 0
    %v3114 = vsub.s32 0, %v2725
    %v3115 = vsel %vm3113, %v3114, %v2725
    %v3116 = vshrl.u32 %v3115, 8
    %v3117 = vand.u32 %v3115, 255
    %v3118 = vsub.s32 0, %v3117
    %v3119 = vsel %vm3113, %v3118, %v3117
    %vm3120 = vcmp.lt.s32.totalorder %v2726, 0
    %v3121 = vsub.s32 0, %v2726
    %v3122 = vsel %vm3120, %v3121, %v2726
    %v3123 = vshrl.u32 %v3122, 8
    %v3124 = vand.u32 %v3122, 255
    %v3125 = vsub.s32 0, %v3124
    %v3126 = vsel %vm3120, %v3125, %v3124
    %vm3127 = vcmp.lt.s32.totalorder %v2727, 0
    %v3128 = vsub.s32 0, %v2727
    %v3129 = vsel %vm3127, %v3128, %v2727
    %v3130 = vshrl.u32 %v3129, 8
    %v3131 = vand.u32 %v3129, 255
    %v3132 = vsub.s32 0, %v3131
    %v3133 = vsel %vm3127, %v3132, %v3131
    %vm3134 = vcmp.lt.s32.totalorder %v2728, 0
    %v3135 = vsub.s32 0, %v2728
    %v3136 = vsel %vm3134, %v3135, %v2728
    %v3137 = vshrl.u32 %v3136, 8
    %v3138 = vand.u32 %v3136, 255
    %v3139 = vsub.s32 0, %v3138
    %v3140 = vsel %vm3134, %v3139, %v3138
    %vm3141 = vcmp.lt.s32.totalorder %v2729, 0
    %v3142 = vsub.s32 0, %v2729
    %v3143 = vsel %vm3141, %v3142, %v2729
    %v3144 = vshrl.u32 %v3143, 8
    %v3145 = vand.u32 %v3143, 255
    %v3146 = vsub.s32 0, %v3145
    %v3147 = vsel %vm3141, %v3146, %v3145
    %vm3148 = vcmp.lt.s32.totalorder %v2730, 0
    %v3149 = vsub.s32 0, %v2730
    %v3150 = vsel %vm3148, %v3149, %v2730
    %v3151 = vshrl.u32 %v3150, 8
    %v3152 = vand.u32 %v3150, 255
    %v3153 = vsub.s32 0, %v3152
    %v3154 = vsel %vm3148, %v3153, %v3152
    %vm3155 = vcmp.lt.s32.totalorder %v2731, 0
    %v3156 = vsub.s32 0, %v2731
    %v3157 = vsel %vm3155, %v3156, %v2731
    %v3158 = vshrl.u32 %v3157, 8
    %v3159 = vand.u32 %v3157, 255
    %v3160 = vsub.s32 0, %v3159
    %v3161 = vsel %vm3155, %v3160, %v3159
    %vm3162 = vcmp.lt.s32.totalorder %v2732, 0
    %v3163 = vsub.s32 0, %v2732
    %v3164 = vsel %vm3162, %v3163, %v2732
    %v3165 = vshrl.u32 %v3164, 8
    %v3166 = vand.u32 %v3164, 255
    %v3167 = vsub.s32 0, %v3166
    %v3168 = vsel %vm3162, %v3167, %v3166
    %vm3169 = vcmp.lt.s32.totalorder %v2733, 0
    %v3170 = vsub.s32 0, %v2733
    %v3171 = vsel %vm3169, %v3170, %v2733
    %v3172 = vshrl.u32 %v3171, 8
    %v3173 = vand.u32 %v3171, 255
    %v3174 = vsub.s32 0, %v3173
    %v3175 = vsel %vm3169, %v3174, %v3173
    %vm3176 = vcmp.lt.s32.totalorder %v2734, 0
    %v3177 = vsub.s32 0, %v2734
    %v3178 = vsel %vm3176, %v3177, %v2734
    %v3179 = vshrl.u32 %v3178, 8
    %v3180 = vand.u32 %v3178, 255
    %v3181 = vsub.s32 0, %v3180
    %v3182 = vsel %vm3176, %v3181, %v3180
    %vm3183 = vcmp.ne.s32.totalorder %v2741, 0
    %vm3184 = vcmp.ne.s32.totalorder %v2748, 0
    %vm3185 = vcmp.ne.s32.totalorder %v2755, 0
    %vm3186 = vcmp.ne.s32.totalorder %v2762, 0
    %vm3187 = vcmp.ne.s32.totalorder %v2769, 0
    %vm3188 = vcmp.ne.s32.totalorder %v2776, 0
    %vm3189 = vcmp.ne.s32.totalorder %v2783, 0
    %vm3190 = vcmp.ne.s32.totalorder %v2790, 0
    %vm3191 = vcmp.ne.s32.totalorder %v2797, 0
    %vm3192 = vcmp.ne.s32.totalorder %v2804, 0
    %vm3193 = vcmp.ne.s32.totalorder %v2811, 0
    %vm3194 = vcmp.ne.s32.totalorder %v2818, 0
    %vm3195 = vcmp.ne.s32.totalorder %v2825, 0
    %vm3196 = vcmp.ne.s32.totalorder %v2832, 0
    %vm3197 = vcmp.ne.s32.totalorder %v2839, 0
    %vm3198 = vcmp.ne.s32.totalorder %v2846, 0
    %vm3199 = vcmp.ne.s32.totalorder %v2853, 0
    %vm3200 = vcmp.ne.s32.totalorder %v2860, 0
    %vm3201 = vcmp.ne.s32.totalorder %v2867, 0
    %vm3202 = vcmp.ne.s32.totalorder %v2874, 0
    %vm3203 = vcmp.ne.s32.totalorder %v2881, 0
    %vm3204 = vcmp.ne.s32.totalorder %v2888, 0
    %vm3205 = vcmp.ne.s32.totalorder %v2895, 0
    %vm3206 = vcmp.ne.s32.totalorder %v2902, 0
    %vm3207 = vcmp.ne.s32.totalorder %v2909, 0
    %vm3208 = vcmp.ne.s32.totalorder %v2916, 0
    %vm3209 = vcmp.ne.s32.totalorder %v2923, 0
    %vm3210 = vcmp.ne.s32.totalorder %v2930, 0
    %vm3211 = vcmp.ne.s32.totalorder %v2937, 0
    %vm3212 = vcmp.ne.s32.totalorder %v2944, 0
    %vm3213 = vcmp.ne.s32.totalorder %v2951, 0
    %vm3214 = vcmp.ne.s32.totalorder %v2958, 0
    %vm3215 = vcmp.ne.s32.totalorder %v2965, 0
    %vm3216 = vcmp.ne.s32.totalorder %v2972, 0
    %vm3217 = vcmp.ne.s32.totalorder %v2979, 0
    %vm3218 = vcmp.ne.s32.totalorder %v2986, 0
    %vm3219 = vcmp.ne.s32.totalorder %v2993, 0
    %vm3220 = vcmp.ne.s32.totalorder %v3000, 0
    %vm3221 = vcmp.ne.s32.totalorder %v3007, 0
    %vm3222 = vcmp.ne.s32.totalorder %v3014, 0
    %vm3223 = vcmp.ne.s32.totalorder %v3021, 0
    %vm3224 = vcmp.ne.s32.totalorder %v3028, 0
    %vm3225 = vcmp.ne.s32.totalorder %v3035, 0
    %vm3226 = vcmp.ne.s32.totalorder %v3042, 0
    %vm3227 = vcmp.ne.s32.totalorder %v3049, 0
    %vm3228 = vcmp.ne.s32.totalorder %v3056, 0
    %vm3229 = vcmp.ne.s32.totalorder %v3063, 0
    %vm3230 = vcmp.ne.s32.totalorder %v3070, 0
    %vm3231 = vcmp.ne.s32.totalorder %v3077, 0
    %vm3232 = vcmp.ne.s32.totalorder %v3084, 0
    %vm3233 = vcmp.ne.s32.totalorder %v3091, 0
    %vm3234 = vcmp.ne.s32.totalorder %v3098, 0
    %vm3235 = vcmp.ne.s32.totalorder %v3105, 0
    %vm3236 = vcmp.ne.s32.totalorder %v3112, 0
    %vm3237 = vcmp.ne.s32.totalorder %v3119, 0
    %vm3238 = vcmp.ne.s32.totalorder %v3126, 0
    %vm3239 = vcmp.ne.s32.totalorder %v3133, 0
    %vm3240 = vcmp.ne.s32.totalorder %v3140, 0
    %vm3241 = vcmp.ne.s32.totalorder %v3147, 0
    %vm3242 = vcmp.ne.s32.totalorder %v3154, 0
    %vm3243 = vcmp.ne.s32.totalorder %v3161, 0
    %vm3244 = vcmp.ne.s32.totalorder %v3168, 0
    %vm3245 = vcmp.ne.s32.totalorder %v3175, 0
    %vm3246 = vcmp.ne.s32.totalorder %v3182, 0
    %vm3247 = vcmp.lt.s32.totalorder %v2741, 0
    %vm3248 = vcmp.lt.s32.totalorder %v2748, 0
    %vm3249 = vcmp.lt.s32.totalorder %v2755, 0
    %vm3250 = vcmp.lt.s32.totalorder %v2762, 0
    %vm3251 = vcmp.lt.s32.totalorder %v2769, 0
    %vm3252 = vcmp.lt.s32.totalorder %v2776, 0
    %vm3253 = vcmp.lt.s32.totalorder %v2783, 0
    %vm3254 = vcmp.lt.s32.totalorder %v2790, 0
    %vm3255 = vcmp.lt.s32.totalorder %v2797, 0
    %vm3256 = vcmp.lt.s32.totalorder %v2804, 0
    %vm3257 = vcmp.lt.s32.totalorder %v2811, 0
    %vm3258 = vcmp.lt.s32.totalorder %v2818, 0
    %vm3259 = vcmp.lt.s32.totalorder %v2825, 0
    %vm3260 = vcmp.lt.s32.totalorder %v2832, 0
    %vm3261 = vcmp.lt.s32.totalorder %v2839, 0
    %vm3262 = vcmp.lt.s32.totalorder %v2846, 0
    %vm3263 = vcmp.lt.s32.totalorder %v2853, 0
    %vm3264 = vcmp.lt.s32.totalorder %v2860, 0
    %vm3265 = vcmp.lt.s32.totalorder %v2867, 0
    %vm3266 = vcmp.lt.s32.totalorder %v2874, 0
    %vm3267 = vcmp.lt.s32.totalorder %v2881, 0
    %vm3268 = vcmp.lt.s32.totalorder %v2888, 0
    %vm3269 = vcmp.lt.s32.totalorder %v2895, 0
    %vm3270 = vcmp.lt.s32.totalorder %v2902, 0
    %vm3271 = vcmp.lt.s32.totalorder %v2909, 0
    %vm3272 = vcmp.lt.s32.totalorder %v2916, 0
    %vm3273 = vcmp.lt.s32.totalorder %v2923, 0
    %vm3274 = vcmp.lt.s32.totalorder %v2930, 0
    %vm3275 = vcmp.lt.s32.totalorder %v2937, 0
    %vm3276 = vcmp.lt.s32.totalorder %v2944, 0
    %vm3277 = vcmp.lt.s32.totalorder %v2951, 0
    %vm3278 = vcmp.lt.s32.totalorder %v2958, 0
    %vm3279 = vcmp.lt.s32.totalorder %v2965, 0
    %vm3280 = vcmp.lt.s32.totalorder %v2972, 0
    %vm3281 = vcmp.lt.s32.totalorder %v2979, 0
    %vm3282 = vcmp.lt.s32.totalorder %v2986, 0
    %vm3283 = vcmp.lt.s32.totalorder %v2993, 0
    %vm3284 = vcmp.lt.s32.totalorder %v3000, 0
    %vm3285 = vcmp.lt.s32.totalorder %v3007, 0
    %vm3286 = vcmp.lt.s32.totalorder %v3014, 0
    %vm3287 = vcmp.lt.s32.totalorder %v3021, 0
    %vm3288 = vcmp.lt.s32.totalorder %v3028, 0
    %vm3289 = vcmp.lt.s32.totalorder %v3035, 0
    %vm3290 = vcmp.lt.s32.totalorder %v3042, 0
    %vm3291 = vcmp.lt.s32.totalorder %v3049, 0
    %vm3292 = vcmp.lt.s32.totalorder %v3056, 0
    %vm3293 = vcmp.lt.s32.totalorder %v3063, 0
    %vm3294 = vcmp.lt.s32.totalorder %v3070, 0
    %vm3295 = vcmp.lt.s32.totalorder %v3077, 0
    %vm3296 = vcmp.lt.s32.totalorder %v3084, 0
    %vm3297 = vcmp.lt.s32.totalorder %v3091, 0
    %vm3298 = vcmp.lt.s32.totalorder %v3098, 0
    %vm3299 = vcmp.lt.s32.totalorder %v3105, 0
    %vm3300 = vcmp.lt.s32.totalorder %v3112, 0
    %vm3301 = vcmp.lt.s32.totalorder %v3119, 0
    %vm3302 = vcmp.lt.s32.totalorder %v3126, 0
    %vm3303 = vcmp.lt.s32.totalorder %v3133, 0
    %vm3304 = vcmp.lt.s32.totalorder %v3140, 0
    %vm3305 = vcmp.lt.s32.totalorder %v3147, 0
    %vm3306 = vcmp.lt.s32.totalorder %v3154, 0
    %vm3307 = vcmp.lt.s32.totalorder %v3161, 0
    %vm3308 = vcmp.lt.s32.totalorder %v3168, 0
    %vm3309 = vcmp.lt.s32.totalorder %v3175, 0
    %vm3310 = vcmp.lt.s32.totalorder %v3182, 0
    %vm3311 = vmand %vm3247, %vm3183
    %vm3312 = vmand %vm3248, %vm3184
    %vm3313 = vmand %vm3249, %vm3185
    %vm3314 = vmand %vm3250, %vm3186
    %vm3315 = vmand %vm3251, %vm3187
    %vm3316 = vmand %vm3252, %vm3188
    %vm3317 = vmand %vm3253, %vm3189
    %vm3318 = vmand %vm3254, %vm3190
    %vm3319 = vmand %vm3255, %vm3191
    %vm3320 = vmand %vm3256, %vm3192
    %vm3321 = vmand %vm3257, %vm3193
    %vm3322 = vmand %vm3258, %vm3194
    %vm3323 = vmand %vm3259, %vm3195
    %vm3324 = vmand %vm3260, %vm3196
    %vm3325 = vmand %vm3261, %vm3197
    %vm3326 = vmand %vm3262, %vm3198
    %vm3327 = vmand %vm3263, %vm3199
    %vm3328 = vmand %vm3264, %vm3200
    %vm3329 = vmand %vm3265, %vm3201
    %vm3330 = vmand %vm3266, %vm3202
    %vm3331 = vmand %vm3267, %vm3203
    %vm3332 = vmand %vm3268, %vm3204
    %vm3333 = vmand %vm3269, %vm3205
    %vm3334 = vmand %vm3270, %vm3206
    %vm3335 = vmand %vm3271, %vm3207
    %vm3336 = vmand %vm3272, %vm3208
    %vm3337 = vmand %vm3273, %vm3209
    %vm3338 = vmand %vm3274, %vm3210
    %vm3339 = vmand %vm3275, %vm3211
    %vm3340 = vmand %vm3276, %vm3212
    %vm3341 = vmand %vm3277, %vm3213
    %vm3342 = vmand %vm3278, %vm3214
    %vm3343 = vmand %vm3279, %vm3215
    %vm3344 = vmand %vm3280, %vm3216
    %vm3345 = vmand %vm3281, %vm3217
    %vm3346 = vmand %vm3282, %vm3218
    %vm3347 = vmand %vm3283, %vm3219
    %vm3348 = vmand %vm3284, %vm3220
    %vm3349 = vmand %vm3285, %vm3221
    %vm3350 = vmand %vm3286, %vm3222
    %vm3351 = vmand %vm3287, %vm3223
    %vm3352 = vmand %vm3288, %vm3224
    %vm3353 = vmand %vm3289, %vm3225
    %vm3354 = vmand %vm3290, %vm3226
    %vm3355 = vmand %vm3291, %vm3227
    %vm3356 = vmand %vm3292, %vm3228
    %vm3357 = vmand %vm3293, %vm3229
    %vm3358 = vmand %vm3294, %vm3230
    %vm3359 = vmand %vm3295, %vm3231
    %vm3360 = vmand %vm3296, %vm3232
    %vm3361 = vmand %vm3297, %vm3233
    %vm3362 = vmand %vm3298, %vm3234
    %vm3363 = vmand %vm3299, %vm3235
    %vm3364 = vmand %vm3300, %vm3236
    %vm3365 = vmand %vm3301, %vm3237
    %vm3366 = vmand %vm3302, %vm3238
    %vm3367 = vmand %vm3303, %vm3239
    %vm3368 = vmand %vm3304, %vm3240
    %vm3369 = vmand %vm3305, %vm3241
    %vm3370 = vmand %vm3306, %vm3242
    %vm3371 = vmand %vm3307, %vm3243
    %vm3372 = vmand %vm3308, %vm3244
    %vm3373 = vmand %vm3309, %vm3245
    %vm3374 = vmand %vm3310, %vm3246
    %v3375 = vadd.s32 %v2741, 256
    %v3376 = vadd.s32 %v2748, 256
    %v3377 = vadd.s32 %v2755, 256
    %v3378 = vadd.s32 %v2762, 256
    %v3379 = vadd.s32 %v2769, 256
    %v3380 = vadd.s32 %v2776, 256
    %v3381 = vadd.s32 %v2783, 256
    %v3382 = vadd.s32 %v2790, 256
    %v3383 = vadd.s32 %v2797, 256
    %v3384 = vadd.s32 %v2804, 256
    %v3385 = vadd.s32 %v2811, 256
    %v3386 = vadd.s32 %v2818, 256
    %v3387 = vadd.s32 %v2825, 256
    %v3388 = vadd.s32 %v2832, 256
    %v3389 = vadd.s32 %v2839, 256
    %v3390 = vadd.s32 %v2846, 256
    %v3391 = vadd.s32 %v2853, 256
    %v3392 = vadd.s32 %v2860, 256
    %v3393 = vadd.s32 %v2867, 256
    %v3394 = vadd.s32 %v2874, 256
    %v3395 = vadd.s32 %v2881, 256
    %v3396 = vadd.s32 %v2888, 256
    %v3397 = vadd.s32 %v2895, 256
    %v3398 = vadd.s32 %v2902, 256
    %v3399 = vadd.s32 %v2909, 256
    %v3400 = vadd.s32 %v2916, 256
    %v3401 = vadd.s32 %v2923, 256
    %v3402 = vadd.s32 %v2930, 256
    %v3403 = vadd.s32 %v2937, 256
    %v3404 = vadd.s32 %v2944, 256
    %v3405 = vadd.s32 %v2951, 256
    %v3406 = vadd.s32 %v2958, 256
    %v3407 = vadd.s32 %v2965, 256
    %v3408 = vadd.s32 %v2972, 256
    %v3409 = vadd.s32 %v2979, 256
    %v3410 = vadd.s32 %v2986, 256
    %v3411 = vadd.s32 %v2993, 256
    %v3412 = vadd.s32 %v3000, 256
    %v3413 = vadd.s32 %v3007, 256
    %v3414 = vadd.s32 %v3014, 256
    %v3415 = vadd.s32 %v3021, 256
    %v3416 = vadd.s32 %v3028, 256
    %v3417 = vadd.s32 %v3035, 256
    %v3418 = vadd.s32 %v3042, 256
    %v3419 = vadd.s32 %v3049, 256
    %v3420 = vadd.s32 %v3056, 256
    %v3421 = vadd.s32 %v3063, 256
    %v3422 = vadd.s32 %v3070, 256
    %v3423 = vadd.s32 %v3077, 256
    %v3424 = vadd.s32 %v3084, 256
    %v3425 = vadd.s32 %v3091, 256
    %v3426 = vadd.s32 %v3098, 256
    %v3427 = vadd.s32 %v3105, 256
    %v3428 = vadd.s32 %v3112, 256
    %v3429 = vadd.s32 %v3119, 256
    %v3430 = vadd.s32 %v3126, 256
    %v3431 = vadd.s32 %v3133, 256
    %v3432 = vadd.s32 %v3140, 256
    %v3433 = vadd.s32 %v3147, 256
    %v3434 = vadd.s32 %v3154, 256
    %v3435 = vadd.s32 %v3161, 256
    %v3436 = vadd.s32 %v3168, 256
    %v3437 = vadd.s32 %v3175, 256
    %v3438 = vadd.s32 %v3182, 256
    %v3439 = vsel %vm3311, %v3375, %v2741
    %v3440 = vsel %vm3312, %v3376, %v2748
    %v3441 = vsel %vm3313, %v3377, %v2755
    %v3442 = vsel %vm3314, %v3378, %v2762
    %v3443 = vsel %vm3315, %v3379, %v2769
    %v3444 = vsel %vm3316, %v3380, %v2776
    %v3445 = vsel %vm3317, %v3381, %v2783
    %v3446 = vsel %vm3318, %v3382, %v2790
    %v3447 = vsel %vm3319, %v3383, %v2797
    %v3448 = vsel %vm3320, %v3384, %v2804
    %v3449 = vsel %vm3321, %v3385, %v2811
    %v3450 = vsel %vm3322, %v3386, %v2818
    %v3451 = vsel %vm3323, %v3387, %v2825
    %v3452 = vsel %vm3324, %v3388, %v2832
    %v3453 = vsel %vm3325, %v3389, %v2839
    %v3454 = vsel %vm3326, %v3390, %v2846
    %v3455 = vsel %vm3327, %v3391, %v2853
    %v3456 = vsel %vm3328, %v3392, %v2860
    %v3457 = vsel %vm3329, %v3393, %v2867
    %v3458 = vsel %vm3330, %v3394, %v2874
    %v3459 = vsel %vm3331, %v3395, %v2881
    %v3460 = vsel %vm3332, %v3396, %v2888
    %v3461 = vsel %vm3333, %v3397, %v2895
    %v3462 = vsel %vm3334, %v3398, %v2902
    %v3463 = vsel %vm3335, %v3399, %v2909
    %v3464 = vsel %vm3336, %v3400, %v2916
    %v3465 = vsel %vm3337, %v3401, %v2923
    %v3466 = vsel %vm3338, %v3402, %v2930
    %v3467 = vsel %vm3339, %v3403, %v2937
    %v3468 = vsel %vm3340, %v3404, %v2944
    %v3469 = vsel %vm3341, %v3405, %v2951
    %v3470 = vsel %vm3342, %v3406, %v2958
    %v3471 = vsel %vm3343, %v3407, %v2965
    %v3472 = vsel %vm3344, %v3408, %v2972
    %v3473 = vsel %vm3345, %v3409, %v2979
    %v3474 = vsel %vm3346, %v3410, %v2986
    %v3475 = vsel %vm3347, %v3411, %v2993
    %v3476 = vsel %vm3348, %v3412, %v3000
    %v3477 = vsel %vm3349, %v3413, %v3007
    %v3478 = vsel %vm3350, %v3414, %v3014
    %v3479 = vsel %vm3351, %v3415, %v3021
    %v3480 = vsel %vm3352, %v3416, %v3028
    %v3481 = vsel %vm3353, %v3417, %v3035
    %v3482 = vsel %vm3354, %v3418, %v3042
    %v3483 = vsel %vm3355, %v3419, %v3049
    %v3484 = vsel %vm3356, %v3420, %v3056
    %v3485 = vsel %vm3357, %v3421, %v3063
    %v3486 = vsel %vm3358, %v3422, %v3070
    %v3487 = vsel %vm3359, %v3423, %v3077
    %v3488 = vsel %vm3360, %v3424, %v3084
    %v3489 = vsel %vm3361, %v3425, %v3091
    %v3490 = vsel %vm3362, %v3426, %v3098
    %v3491 = vsel %vm3363, %v3427, %v3105
    %v3492 = vsel %vm3364, %v3428, %v3112
    %v3493 = vsel %vm3365, %v3429, %v3119
    %v3494 = vsel %vm3366, %v3430, %v3126
    %v3495 = vsel %vm3367, %v3431, %v3133
    %v3496 = vsel %vm3368, %v3432, %v3140
    %v3497 = vsel %vm3369, %v3433, %v3147
    %v3498 = vsel %vm3370, %v3434, %v3154
    %v3499 = vsel %vm3371, %v3435, %v3161
    %v3500 = vsel %vm3372, %v3436, %v3168
    %v3501 = vsel %vm3373, %v3437, %v3175
    %v3502 = vsel %vm3374, %v3438, %v3182
    %vm3503 = vcmp.lt.s32.totalorder %v2671, 0
    %v3504 = vsub.s32 0, %v2671
    %v3505 = vsel %vm3503, %v3504, %v2671
    %v3506 = vshrl.u32 %v3505, 4
    %v3507 = vand.u32 %v3505, 15
    %v3508 = vsub.s32 0, %v3507
    %v3509 = vsel %vm3503, %v3508, %v3507
    %vm3510 = vcmp.lt.s32.totalorder %v2672, 0
    %v3511 = vsub.s32 0, %v2672
    %v3512 = vsel %vm3510, %v3511, %v2672
    %v3513 = vshrl.u32 %v3512, 4
    %v3514 = vand.u32 %v3512, 15
    %v3515 = vsub.s32 0, %v3514
    %v3516 = vsel %vm3510, %v3515, %v3514
    %vm3517 = vcmp.lt.s32.totalorder %v2673, 0
    %v3518 = vsub.s32 0, %v2673
    %v3519 = vsel %vm3517, %v3518, %v2673
    %v3520 = vshrl.u32 %v3519, 4
    %v3521 = vand.u32 %v3519, 15
    %v3522 = vsub.s32 0, %v3521
    %v3523 = vsel %vm3517, %v3522, %v3521
    %vm3524 = vcmp.lt.s32.totalorder %v2674, 0
    %v3525 = vsub.s32 0, %v2674
    %v3526 = vsel %vm3524, %v3525, %v2674
    %v3527 = vshrl.u32 %v3526, 4
    %v3528 = vand.u32 %v3526, 15
    %v3529 = vsub.s32 0, %v3528
    %v3530 = vsel %vm3524, %v3529, %v3528
    %vm3531 = vcmp.lt.s32.totalorder %v2675, 0
    %v3532 = vsub.s32 0, %v2675
    %v3533 = vsel %vm3531, %v3532, %v2675
    %v3534 = vshrl.u32 %v3533, 4
    %v3535 = vand.u32 %v3533, 15
    %v3536 = vsub.s32 0, %v3535
    %v3537 = vsel %vm3531, %v3536, %v3535
    %vm3538 = vcmp.lt.s32.totalorder %v2676, 0
    %v3539 = vsub.s32 0, %v2676
    %v3540 = vsel %vm3538, %v3539, %v2676
    %v3541 = vshrl.u32 %v3540, 4
    %v3542 = vand.u32 %v3540, 15
    %v3543 = vsub.s32 0, %v3542
    %v3544 = vsel %vm3538, %v3543, %v3542
    %vm3545 = vcmp.lt.s32.totalorder %v2677, 0
    %v3546 = vsub.s32 0, %v2677
    %v3547 = vsel %vm3545, %v3546, %v2677
    %v3548 = vshrl.u32 %v3547, 4
    %v3549 = vand.u32 %v3547, 15
    %v3550 = vsub.s32 0, %v3549
    %v3551 = vsel %vm3545, %v3550, %v3549
    %vm3552 = vcmp.lt.s32.totalorder %v2678, 0
    %v3553 = vsub.s32 0, %v2678
    %v3554 = vsel %vm3552, %v3553, %v2678
    %v3555 = vshrl.u32 %v3554, 4
    %v3556 = vand.u32 %v3554, 15
    %v3557 = vsub.s32 0, %v3556
    %v3558 = vsel %vm3552, %v3557, %v3556
    %vm3559 = vcmp.lt.s32.totalorder %v2679, 0
    %v3560 = vsub.s32 0, %v2679
    %v3561 = vsel %vm3559, %v3560, %v2679
    %v3562 = vshrl.u32 %v3561, 4
    %v3563 = vand.u32 %v3561, 15
    %v3564 = vsub.s32 0, %v3563
    %v3565 = vsel %vm3559, %v3564, %v3563
    %vm3566 = vcmp.lt.s32.totalorder %v2680, 0
    %v3567 = vsub.s32 0, %v2680
    %v3568 = vsel %vm3566, %v3567, %v2680
    %v3569 = vshrl.u32 %v3568, 4
    %v3570 = vand.u32 %v3568, 15
    %v3571 = vsub.s32 0, %v3570
    %v3572 = vsel %vm3566, %v3571, %v3570
    %vm3573 = vcmp.lt.s32.totalorder %v2681, 0
    %v3574 = vsub.s32 0, %v2681
    %v3575 = vsel %vm3573, %v3574, %v2681
    %v3576 = vshrl.u32 %v3575, 4
    %v3577 = vand.u32 %v3575, 15
    %v3578 = vsub.s32 0, %v3577
    %v3579 = vsel %vm3573, %v3578, %v3577
    %vm3580 = vcmp.lt.s32.totalorder %v2682, 0
    %v3581 = vsub.s32 0, %v2682
    %v3582 = vsel %vm3580, %v3581, %v2682
    %v3583 = vshrl.u32 %v3582, 4
    %v3584 = vand.u32 %v3582, 15
    %v3585 = vsub.s32 0, %v3584
    %v3586 = vsel %vm3580, %v3585, %v3584
    %vm3587 = vcmp.lt.s32.totalorder %v2683, 0
    %v3588 = vsub.s32 0, %v2683
    %v3589 = vsel %vm3587, %v3588, %v2683
    %v3590 = vshrl.u32 %v3589, 4
    %v3591 = vand.u32 %v3589, 15
    %v3592 = vsub.s32 0, %v3591
    %v3593 = vsel %vm3587, %v3592, %v3591
    %vm3594 = vcmp.lt.s32.totalorder %v2684, 0
    %v3595 = vsub.s32 0, %v2684
    %v3596 = vsel %vm3594, %v3595, %v2684
    %v3597 = vshrl.u32 %v3596, 4
    %v3598 = vand.u32 %v3596, 15
    %v3599 = vsub.s32 0, %v3598
    %v3600 = vsel %vm3594, %v3599, %v3598
    %vm3601 = vcmp.lt.s32.totalorder %v2685, 0
    %v3602 = vsub.s32 0, %v2685
    %v3603 = vsel %vm3601, %v3602, %v2685
    %v3604 = vshrl.u32 %v3603, 4
    %v3605 = vand.u32 %v3603, 15
    %v3606 = vsub.s32 0, %v3605
    %v3607 = vsel %vm3601, %v3606, %v3605
    %vm3608 = vcmp.lt.s32.totalorder %v2686, 0
    %v3609 = vsub.s32 0, %v2686
    %v3610 = vsel %vm3608, %v3609, %v2686
    %v3611 = vshrl.u32 %v3610, 4
    %v3612 = vand.u32 %v3610, 15
    %v3613 = vsub.s32 0, %v3612
    %v3614 = vsel %vm3608, %v3613, %v3612
    %vm3615 = vcmp.lt.s32.totalorder %v2687, 0
    %v3616 = vsub.s32 0, %v2687
    %v3617 = vsel %vm3615, %v3616, %v2687
    %v3618 = vshrl.u32 %v3617, 4
    %v3619 = vand.u32 %v3617, 15
    %v3620 = vsub.s32 0, %v3619
    %v3621 = vsel %vm3615, %v3620, %v3619
    %vm3622 = vcmp.lt.s32.totalorder %v2688, 0
    %v3623 = vsub.s32 0, %v2688
    %v3624 = vsel %vm3622, %v3623, %v2688
    %v3625 = vshrl.u32 %v3624, 4
    %v3626 = vand.u32 %v3624, 15
    %v3627 = vsub.s32 0, %v3626
    %v3628 = vsel %vm3622, %v3627, %v3626
    %vm3629 = vcmp.lt.s32.totalorder %v2689, 0
    %v3630 = vsub.s32 0, %v2689
    %v3631 = vsel %vm3629, %v3630, %v2689
    %v3632 = vshrl.u32 %v3631, 4
    %v3633 = vand.u32 %v3631, 15
    %v3634 = vsub.s32 0, %v3633
    %v3635 = vsel %vm3629, %v3634, %v3633
    %vm3636 = vcmp.lt.s32.totalorder %v2690, 0
    %v3637 = vsub.s32 0, %v2690
    %v3638 = vsel %vm3636, %v3637, %v2690
    %v3639 = vshrl.u32 %v3638, 4
    %v3640 = vand.u32 %v3638, 15
    %v3641 = vsub.s32 0, %v3640
    %v3642 = vsel %vm3636, %v3641, %v3640
    %vm3643 = vcmp.lt.s32.totalorder %v2691, 0
    %v3644 = vsub.s32 0, %v2691
    %v3645 = vsel %vm3643, %v3644, %v2691
    %v3646 = vshrl.u32 %v3645, 4
    %v3647 = vand.u32 %v3645, 15
    %v3648 = vsub.s32 0, %v3647
    %v3649 = vsel %vm3643, %v3648, %v3647
    %vm3650 = vcmp.lt.s32.totalorder %v2692, 0
    %v3651 = vsub.s32 0, %v2692
    %v3652 = vsel %vm3650, %v3651, %v2692
    %v3653 = vshrl.u32 %v3652, 4
    %v3654 = vand.u32 %v3652, 15
    %v3655 = vsub.s32 0, %v3654
    %v3656 = vsel %vm3650, %v3655, %v3654
    %vm3657 = vcmp.lt.s32.totalorder %v2693, 0
    %v3658 = vsub.s32 0, %v2693
    %v3659 = vsel %vm3657, %v3658, %v2693
    %v3660 = vshrl.u32 %v3659, 4
    %v3661 = vand.u32 %v3659, 15
    %v3662 = vsub.s32 0, %v3661
    %v3663 = vsel %vm3657, %v3662, %v3661
    %vm3664 = vcmp.lt.s32.totalorder %v2694, 0
    %v3665 = vsub.s32 0, %v2694
    %v3666 = vsel %vm3664, %v3665, %v2694
    %v3667 = vshrl.u32 %v3666, 4
    %v3668 = vand.u32 %v3666, 15
    %v3669 = vsub.s32 0, %v3668
    %v3670 = vsel %vm3664, %v3669, %v3668
    %vm3671 = vcmp.lt.s32.totalorder %v2695, 0
    %v3672 = vsub.s32 0, %v2695
    %v3673 = vsel %vm3671, %v3672, %v2695
    %v3674 = vshrl.u32 %v3673, 4
    %v3675 = vand.u32 %v3673, 15
    %v3676 = vsub.s32 0, %v3675
    %v3677 = vsel %vm3671, %v3676, %v3675
    %vm3678 = vcmp.lt.s32.totalorder %v2696, 0
    %v3679 = vsub.s32 0, %v2696
    %v3680 = vsel %vm3678, %v3679, %v2696
    %v3681 = vshrl.u32 %v3680, 4
    %v3682 = vand.u32 %v3680, 15
    %v3683 = vsub.s32 0, %v3682
    %v3684 = vsel %vm3678, %v3683, %v3682
    %vm3685 = vcmp.lt.s32.totalorder %v2697, 0
    %v3686 = vsub.s32 0, %v2697
    %v3687 = vsel %vm3685, %v3686, %v2697
    %v3688 = vshrl.u32 %v3687, 4
    %v3689 = vand.u32 %v3687, 15
    %v3690 = vsub.s32 0, %v3689
    %v3691 = vsel %vm3685, %v3690, %v3689
    %vm3692 = vcmp.lt.s32.totalorder %v2698, 0
    %v3693 = vsub.s32 0, %v2698
    %v3694 = vsel %vm3692, %v3693, %v2698
    %v3695 = vshrl.u32 %v3694, 4
    %v3696 = vand.u32 %v3694, 15
    %v3697 = vsub.s32 0, %v3696
    %v3698 = vsel %vm3692, %v3697, %v3696
    %vm3699 = vcmp.lt.s32.totalorder %v2699, 0
    %v3700 = vsub.s32 0, %v2699
    %v3701 = vsel %vm3699, %v3700, %v2699
    %v3702 = vshrl.u32 %v3701, 4
    %v3703 = vand.u32 %v3701, 15
    %v3704 = vsub.s32 0, %v3703
    %v3705 = vsel %vm3699, %v3704, %v3703
    %vm3706 = vcmp.lt.s32.totalorder %v2700, 0
    %v3707 = vsub.s32 0, %v2700
    %v3708 = vsel %vm3706, %v3707, %v2700
    %v3709 = vshrl.u32 %v3708, 4
    %v3710 = vand.u32 %v3708, 15
    %v3711 = vsub.s32 0, %v3710
    %v3712 = vsel %vm3706, %v3711, %v3710
    %vm3713 = vcmp.lt.s32.totalorder %v2701, 0
    %v3714 = vsub.s32 0, %v2701
    %v3715 = vsel %vm3713, %v3714, %v2701
    %v3716 = vshrl.u32 %v3715, 4
    %v3717 = vand.u32 %v3715, 15
    %v3718 = vsub.s32 0, %v3717
    %v3719 = vsel %vm3713, %v3718, %v3717
    %vm3720 = vcmp.lt.s32.totalorder %v2702, 0
    %v3721 = vsub.s32 0, %v2702
    %v3722 = vsel %vm3720, %v3721, %v2702
    %v3723 = vshrl.u32 %v3722, 4
    %v3724 = vand.u32 %v3722, 15
    %v3725 = vsub.s32 0, %v3724
    %v3726 = vsel %vm3720, %v3725, %v3724
    %vm3727 = vcmp.lt.s32.totalorder %v2703, 0
    %v3728 = vsub.s32 0, %v2703
    %v3729 = vsel %vm3727, %v3728, %v2703
    %v3730 = vshrl.u32 %v3729, 4
    %v3731 = vand.u32 %v3729, 15
    %v3732 = vsub.s32 0, %v3731
    %v3733 = vsel %vm3727, %v3732, %v3731
    %vm3734 = vcmp.lt.s32.totalorder %v2704, 0
    %v3735 = vsub.s32 0, %v2704
    %v3736 = vsel %vm3734, %v3735, %v2704
    %v3737 = vshrl.u32 %v3736, 4
    %v3738 = vand.u32 %v3736, 15
    %v3739 = vsub.s32 0, %v3738
    %v3740 = vsel %vm3734, %v3739, %v3738
    %vm3741 = vcmp.lt.s32.totalorder %v2705, 0
    %v3742 = vsub.s32 0, %v2705
    %v3743 = vsel %vm3741, %v3742, %v2705
    %v3744 = vshrl.u32 %v3743, 4
    %v3745 = vand.u32 %v3743, 15
    %v3746 = vsub.s32 0, %v3745
    %v3747 = vsel %vm3741, %v3746, %v3745
    %vm3748 = vcmp.lt.s32.totalorder %v2706, 0
    %v3749 = vsub.s32 0, %v2706
    %v3750 = vsel %vm3748, %v3749, %v2706
    %v3751 = vshrl.u32 %v3750, 4
    %v3752 = vand.u32 %v3750, 15
    %v3753 = vsub.s32 0, %v3752
    %v3754 = vsel %vm3748, %v3753, %v3752
    %vm3755 = vcmp.lt.s32.totalorder %v2707, 0
    %v3756 = vsub.s32 0, %v2707
    %v3757 = vsel %vm3755, %v3756, %v2707
    %v3758 = vshrl.u32 %v3757, 4
    %v3759 = vand.u32 %v3757, 15
    %v3760 = vsub.s32 0, %v3759
    %v3761 = vsel %vm3755, %v3760, %v3759
    %vm3762 = vcmp.lt.s32.totalorder %v2708, 0
    %v3763 = vsub.s32 0, %v2708
    %v3764 = vsel %vm3762, %v3763, %v2708
    %v3765 = vshrl.u32 %v3764, 4
    %v3766 = vand.u32 %v3764, 15
    %v3767 = vsub.s32 0, %v3766
    %v3768 = vsel %vm3762, %v3767, %v3766
    %vm3769 = vcmp.lt.s32.totalorder %v2709, 0
    %v3770 = vsub.s32 0, %v2709
    %v3771 = vsel %vm3769, %v3770, %v2709
    %v3772 = vshrl.u32 %v3771, 4
    %v3773 = vand.u32 %v3771, 15
    %v3774 = vsub.s32 0, %v3773
    %v3775 = vsel %vm3769, %v3774, %v3773
    %vm3776 = vcmp.lt.s32.totalorder %v2710, 0
    %v3777 = vsub.s32 0, %v2710
    %v3778 = vsel %vm3776, %v3777, %v2710
    %v3779 = vshrl.u32 %v3778, 4
    %v3780 = vand.u32 %v3778, 15
    %v3781 = vsub.s32 0, %v3780
    %v3782 = vsel %vm3776, %v3781, %v3780
    %vm3783 = vcmp.lt.s32.totalorder %v2711, 0
    %v3784 = vsub.s32 0, %v2711
    %v3785 = vsel %vm3783, %v3784, %v2711
    %v3786 = vshrl.u32 %v3785, 4
    %v3787 = vand.u32 %v3785, 15
    %v3788 = vsub.s32 0, %v3787
    %v3789 = vsel %vm3783, %v3788, %v3787
    %vm3790 = vcmp.lt.s32.totalorder %v2712, 0
    %v3791 = vsub.s32 0, %v2712
    %v3792 = vsel %vm3790, %v3791, %v2712
    %v3793 = vshrl.u32 %v3792, 4
    %v3794 = vand.u32 %v3792, 15
    %v3795 = vsub.s32 0, %v3794
    %v3796 = vsel %vm3790, %v3795, %v3794
    %vm3797 = vcmp.lt.s32.totalorder %v2713, 0
    %v3798 = vsub.s32 0, %v2713
    %v3799 = vsel %vm3797, %v3798, %v2713
    %v3800 = vshrl.u32 %v3799, 4
    %v3801 = vand.u32 %v3799, 15
    %v3802 = vsub.s32 0, %v3801
    %v3803 = vsel %vm3797, %v3802, %v3801
    %vm3804 = vcmp.lt.s32.totalorder %v2714, 0
    %v3805 = vsub.s32 0, %v2714
    %v3806 = vsel %vm3804, %v3805, %v2714
    %v3807 = vshrl.u32 %v3806, 4
    %v3808 = vand.u32 %v3806, 15
    %v3809 = vsub.s32 0, %v3808
    %v3810 = vsel %vm3804, %v3809, %v3808
    %vm3811 = vcmp.lt.s32.totalorder %v2715, 0
    %v3812 = vsub.s32 0, %v2715
    %v3813 = vsel %vm3811, %v3812, %v2715
    %v3814 = vshrl.u32 %v3813, 4
    %v3815 = vand.u32 %v3813, 15
    %v3816 = vsub.s32 0, %v3815
    %v3817 = vsel %vm3811, %v3816, %v3815
    %vm3818 = vcmp.lt.s32.totalorder %v2716, 0
    %v3819 = vsub.s32 0, %v2716
    %v3820 = vsel %vm3818, %v3819, %v2716
    %v3821 = vshrl.u32 %v3820, 4
    %v3822 = vand.u32 %v3820, 15
    %v3823 = vsub.s32 0, %v3822
    %v3824 = vsel %vm3818, %v3823, %v3822
    %vm3825 = vcmp.lt.s32.totalorder %v2717, 0
    %v3826 = vsub.s32 0, %v2717
    %v3827 = vsel %vm3825, %v3826, %v2717
    %v3828 = vshrl.u32 %v3827, 4
    %v3829 = vand.u32 %v3827, 15
    %v3830 = vsub.s32 0, %v3829
    %v3831 = vsel %vm3825, %v3830, %v3829
    %vm3832 = vcmp.lt.s32.totalorder %v2718, 0
    %v3833 = vsub.s32 0, %v2718
    %v3834 = vsel %vm3832, %v3833, %v2718
    %v3835 = vshrl.u32 %v3834, 4
    %v3836 = vand.u32 %v3834, 15
    %v3837 = vsub.s32 0, %v3836
    %v3838 = vsel %vm3832, %v3837, %v3836
    %vm3839 = vcmp.lt.s32.totalorder %v2719, 0
    %v3840 = vsub.s32 0, %v2719
    %v3841 = vsel %vm3839, %v3840, %v2719
    %v3842 = vshrl.u32 %v3841, 4
    %v3843 = vand.u32 %v3841, 15
    %v3844 = vsub.s32 0, %v3843
    %v3845 = vsel %vm3839, %v3844, %v3843
    %vm3846 = vcmp.lt.s32.totalorder %v2720, 0
    %v3847 = vsub.s32 0, %v2720
    %v3848 = vsel %vm3846, %v3847, %v2720
    %v3849 = vshrl.u32 %v3848, 4
    %v3850 = vand.u32 %v3848, 15
    %v3851 = vsub.s32 0, %v3850
    %v3852 = vsel %vm3846, %v3851, %v3850
    %vm3853 = vcmp.lt.s32.totalorder %v2721, 0
    %v3854 = vsub.s32 0, %v2721
    %v3855 = vsel %vm3853, %v3854, %v2721
    %v3856 = vshrl.u32 %v3855, 4
    %v3857 = vand.u32 %v3855, 15
    %v3858 = vsub.s32 0, %v3857
    %v3859 = vsel %vm3853, %v3858, %v3857
    %vm3860 = vcmp.lt.s32.totalorder %v2722, 0
    %v3861 = vsub.s32 0, %v2722
    %v3862 = vsel %vm3860, %v3861, %v2722
    %v3863 = vshrl.u32 %v3862, 4
    %v3864 = vand.u32 %v3862, 15
    %v3865 = vsub.s32 0, %v3864
    %v3866 = vsel %vm3860, %v3865, %v3864
    %vm3867 = vcmp.lt.s32.totalorder %v2723, 0
    %v3868 = vsub.s32 0, %v2723
    %v3869 = vsel %vm3867, %v3868, %v2723
    %v3870 = vshrl.u32 %v3869, 4
    %v3871 = vand.u32 %v3869, 15
    %v3872 = vsub.s32 0, %v3871
    %v3873 = vsel %vm3867, %v3872, %v3871
    %vm3874 = vcmp.lt.s32.totalorder %v2724, 0
    %v3875 = vsub.s32 0, %v2724
    %v3876 = vsel %vm3874, %v3875, %v2724
    %v3877 = vshrl.u32 %v3876, 4
    %v3878 = vand.u32 %v3876, 15
    %v3879 = vsub.s32 0, %v3878
    %v3880 = vsel %vm3874, %v3879, %v3878
    %vm3881 = vcmp.lt.s32.totalorder %v2725, 0
    %v3882 = vsub.s32 0, %v2725
    %v3883 = vsel %vm3881, %v3882, %v2725
    %v3884 = vshrl.u32 %v3883, 4
    %v3885 = vand.u32 %v3883, 15
    %v3886 = vsub.s32 0, %v3885
    %v3887 = vsel %vm3881, %v3886, %v3885
    %vm3888 = vcmp.lt.s32.totalorder %v2726, 0
    %v3889 = vsub.s32 0, %v2726
    %v3890 = vsel %vm3888, %v3889, %v2726
    %v3891 = vshrl.u32 %v3890, 4
    %v3892 = vand.u32 %v3890, 15
    %v3893 = vsub.s32 0, %v3892
    %v3894 = vsel %vm3888, %v3893, %v3892
    %vm3895 = vcmp.lt.s32.totalorder %v2727, 0
    %v3896 = vsub.s32 0, %v2727
    %v3897 = vsel %vm3895, %v3896, %v2727
    %v3898 = vshrl.u32 %v3897, 4
    %v3899 = vand.u32 %v3897, 15
    %v3900 = vsub.s32 0, %v3899
    %v3901 = vsel %vm3895, %v3900, %v3899
    %vm3902 = vcmp.lt.s32.totalorder %v2728, 0
    %v3903 = vsub.s32 0, %v2728
    %v3904 = vsel %vm3902, %v3903, %v2728
    %v3905 = vshrl.u32 %v3904, 4
    %v3906 = vand.u32 %v3904, 15
    %v3907 = vsub.s32 0, %v3906
    %v3908 = vsel %vm3902, %v3907, %v3906
    %vm3909 = vcmp.lt.s32.totalorder %v2729, 0
    %v3910 = vsub.s32 0, %v2729
    %v3911 = vsel %vm3909, %v3910, %v2729
    %v3912 = vshrl.u32 %v3911, 4
    %v3913 = vand.u32 %v3911, 15
    %v3914 = vsub.s32 0, %v3913
    %v3915 = vsel %vm3909, %v3914, %v3913
    %vm3916 = vcmp.lt.s32.totalorder %v2730, 0
    %v3917 = vsub.s32 0, %v2730
    %v3918 = vsel %vm3916, %v3917, %v2730
    %v3919 = vshrl.u32 %v3918, 4
    %v3920 = vand.u32 %v3918, 15
    %v3921 = vsub.s32 0, %v3920
    %v3922 = vsel %vm3916, %v3921, %v3920
    %vm3923 = vcmp.lt.s32.totalorder %v2731, 0
    %v3924 = vsub.s32 0, %v2731
    %v3925 = vsel %vm3923, %v3924, %v2731
    %v3926 = vshrl.u32 %v3925, 4
    %v3927 = vand.u32 %v3925, 15
    %v3928 = vsub.s32 0, %v3927
    %v3929 = vsel %vm3923, %v3928, %v3927
    %vm3930 = vcmp.lt.s32.totalorder %v2732, 0
    %v3931 = vsub.s32 0, %v2732
    %v3932 = vsel %vm3930, %v3931, %v2732
    %v3933 = vshrl.u32 %v3932, 4
    %v3934 = vand.u32 %v3932, 15
    %v3935 = vsub.s32 0, %v3934
    %v3936 = vsel %vm3930, %v3935, %v3934
    %vm3937 = vcmp.lt.s32.totalorder %v2733, 0
    %v3938 = vsub.s32 0, %v2733
    %v3939 = vsel %vm3937, %v3938, %v2733
    %v3940 = vshrl.u32 %v3939, 4
    %v3941 = vand.u32 %v3939, 15
    %v3942 = vsub.s32 0, %v3941
    %v3943 = vsel %vm3937, %v3942, %v3941
    %vm3944 = vcmp.lt.s32.totalorder %v2734, 0
    %v3945 = vsub.s32 0, %v2734
    %v3946 = vsel %vm3944, %v3945, %v2734
    %v3947 = vshrl.u32 %v3946, 4
    %v3948 = vand.u32 %v3946, 15
    %v3949 = vsub.s32 0, %v3948
    %v3950 = vsel %vm3944, %v3949, %v3948
    %vm3951 = vcmp.ne.s32.totalorder %v3509, 0
    %vm3952 = vcmp.ne.s32.totalorder %v3516, 0
    %vm3953 = vcmp.ne.s32.totalorder %v3523, 0
    %vm3954 = vcmp.ne.s32.totalorder %v3530, 0
    %vm3955 = vcmp.ne.s32.totalorder %v3537, 0
    %vm3956 = vcmp.ne.s32.totalorder %v3544, 0
    %vm3957 = vcmp.ne.s32.totalorder %v3551, 0
    %vm3958 = vcmp.ne.s32.totalorder %v3558, 0
    %vm3959 = vcmp.ne.s32.totalorder %v3565, 0
    %vm3960 = vcmp.ne.s32.totalorder %v3572, 0
    %vm3961 = vcmp.ne.s32.totalorder %v3579, 0
    %vm3962 = vcmp.ne.s32.totalorder %v3586, 0
    %vm3963 = vcmp.ne.s32.totalorder %v3593, 0
    %vm3964 = vcmp.ne.s32.totalorder %v3600, 0
    %vm3965 = vcmp.ne.s32.totalorder %v3607, 0
    %vm3966 = vcmp.ne.s32.totalorder %v3614, 0
    %vm3967 = vcmp.ne.s32.totalorder %v3621, 0
    %vm3968 = vcmp.ne.s32.totalorder %v3628, 0
    %vm3969 = vcmp.ne.s32.totalorder %v3635, 0
    %vm3970 = vcmp.ne.s32.totalorder %v3642, 0
    %vm3971 = vcmp.ne.s32.totalorder %v3649, 0
    %vm3972 = vcmp.ne.s32.totalorder %v3656, 0
    %vm3973 = vcmp.ne.s32.totalorder %v3663, 0
    %vm3974 = vcmp.ne.s32.totalorder %v3670, 0
    %vm3975 = vcmp.ne.s32.totalorder %v3677, 0
    %vm3976 = vcmp.ne.s32.totalorder %v3684, 0
    %vm3977 = vcmp.ne.s32.totalorder %v3691, 0
    %vm3978 = vcmp.ne.s32.totalorder %v3698, 0
    %vm3979 = vcmp.ne.s32.totalorder %v3705, 0
    %vm3980 = vcmp.ne.s32.totalorder %v3712, 0
    %vm3981 = vcmp.ne.s32.totalorder %v3719, 0
    %vm3982 = vcmp.ne.s32.totalorder %v3726, 0
    %vm3983 = vcmp.ne.s32.totalorder %v3733, 0
    %vm3984 = vcmp.ne.s32.totalorder %v3740, 0
    %vm3985 = vcmp.ne.s32.totalorder %v3747, 0
    %vm3986 = vcmp.ne.s32.totalorder %v3754, 0
    %vm3987 = vcmp.ne.s32.totalorder %v3761, 0
    %vm3988 = vcmp.ne.s32.totalorder %v3768, 0
    %vm3989 = vcmp.ne.s32.totalorder %v3775, 0
    %vm3990 = vcmp.ne.s32.totalorder %v3782, 0
    %vm3991 = vcmp.ne.s32.totalorder %v3789, 0
    %vm3992 = vcmp.ne.s32.totalorder %v3796, 0
    %vm3993 = vcmp.ne.s32.totalorder %v3803, 0
    %vm3994 = vcmp.ne.s32.totalorder %v3810, 0
    %vm3995 = vcmp.ne.s32.totalorder %v3817, 0
    %vm3996 = vcmp.ne.s32.totalorder %v3824, 0
    %vm3997 = vcmp.ne.s32.totalorder %v3831, 0
    %vm3998 = vcmp.ne.s32.totalorder %v3838, 0
    %vm3999 = vcmp.ne.s32.totalorder %v3845, 0
    %vm4000 = vcmp.ne.s32.totalorder %v3852, 0
    %vm4001 = vcmp.ne.s32.totalorder %v3859, 0
    %vm4002 = vcmp.ne.s32.totalorder %v3866, 0
    %vm4003 = vcmp.ne.s32.totalorder %v3873, 0
    %vm4004 = vcmp.ne.s32.totalorder %v3880, 0
    %vm4005 = vcmp.ne.s32.totalorder %v3887, 0
    %vm4006 = vcmp.ne.s32.totalorder %v3894, 0
    %vm4007 = vcmp.ne.s32.totalorder %v3901, 0
    %vm4008 = vcmp.ne.s32.totalorder %v3908, 0
    %vm4009 = vcmp.ne.s32.totalorder %v3915, 0
    %vm4010 = vcmp.ne.s32.totalorder %v3922, 0
    %vm4011 = vcmp.ne.s32.totalorder %v3929, 0
    %vm4012 = vcmp.ne.s32.totalorder %v3936, 0
    %vm4013 = vcmp.ne.s32.totalorder %v3943, 0
    %vm4014 = vcmp.ne.s32.totalorder %v3950, 0
    %vm4015 = vcmp.lt.s32.totalorder %v3509, 0
    %vm4016 = vcmp.lt.s32.totalorder %v3516, 0
    %vm4017 = vcmp.lt.s32.totalorder %v3523, 0
    %vm4018 = vcmp.lt.s32.totalorder %v3530, 0
    %vm4019 = vcmp.lt.s32.totalorder %v3537, 0
    %vm4020 = vcmp.lt.s32.totalorder %v3544, 0
    %vm4021 = vcmp.lt.s32.totalorder %v3551, 0
    %vm4022 = vcmp.lt.s32.totalorder %v3558, 0
    %vm4023 = vcmp.lt.s32.totalorder %v3565, 0
    %vm4024 = vcmp.lt.s32.totalorder %v3572, 0
    %vm4025 = vcmp.lt.s32.totalorder %v3579, 0
    %vm4026 = vcmp.lt.s32.totalorder %v3586, 0
    %vm4027 = vcmp.lt.s32.totalorder %v3593, 0
    %vm4028 = vcmp.lt.s32.totalorder %v3600, 0
    %vm4029 = vcmp.lt.s32.totalorder %v3607, 0
    %vm4030 = vcmp.lt.s32.totalorder %v3614, 0
    %vm4031 = vcmp.lt.s32.totalorder %v3621, 0
    %vm4032 = vcmp.lt.s32.totalorder %v3628, 0
    %vm4033 = vcmp.lt.s32.totalorder %v3635, 0
    %vm4034 = vcmp.lt.s32.totalorder %v3642, 0
    %vm4035 = vcmp.lt.s32.totalorder %v3649, 0
    %vm4036 = vcmp.lt.s32.totalorder %v3656, 0
    %vm4037 = vcmp.lt.s32.totalorder %v3663, 0
    %vm4038 = vcmp.lt.s32.totalorder %v3670, 0
    %vm4039 = vcmp.lt.s32.totalorder %v3677, 0
    %vm4040 = vcmp.lt.s32.totalorder %v3684, 0
    %vm4041 = vcmp.lt.s32.totalorder %v3691, 0
    %vm4042 = vcmp.lt.s32.totalorder %v3698, 0
    %vm4043 = vcmp.lt.s32.totalorder %v3705, 0
    %vm4044 = vcmp.lt.s32.totalorder %v3712, 0
    %vm4045 = vcmp.lt.s32.totalorder %v3719, 0
    %vm4046 = vcmp.lt.s32.totalorder %v3726, 0
    %vm4047 = vcmp.lt.s32.totalorder %v3733, 0
    %vm4048 = vcmp.lt.s32.totalorder %v3740, 0
    %vm4049 = vcmp.lt.s32.totalorder %v3747, 0
    %vm4050 = vcmp.lt.s32.totalorder %v3754, 0
    %vm4051 = vcmp.lt.s32.totalorder %v3761, 0
    %vm4052 = vcmp.lt.s32.totalorder %v3768, 0
    %vm4053 = vcmp.lt.s32.totalorder %v3775, 0
    %vm4054 = vcmp.lt.s32.totalorder %v3782, 0
    %vm4055 = vcmp.lt.s32.totalorder %v3789, 0
    %vm4056 = vcmp.lt.s32.totalorder %v3796, 0
    %vm4057 = vcmp.lt.s32.totalorder %v3803, 0
    %vm4058 = vcmp.lt.s32.totalorder %v3810, 0
    %vm4059 = vcmp.lt.s32.totalorder %v3817, 0
    %vm4060 = vcmp.lt.s32.totalorder %v3824, 0
    %vm4061 = vcmp.lt.s32.totalorder %v3831, 0
    %vm4062 = vcmp.lt.s32.totalorder %v3838, 0
    %vm4063 = vcmp.lt.s32.totalorder %v3845, 0
    %vm4064 = vcmp.lt.s32.totalorder %v3852, 0
    %vm4065 = vcmp.lt.s32.totalorder %v3859, 0
    %vm4066 = vcmp.lt.s32.totalorder %v3866, 0
    %vm4067 = vcmp.lt.s32.totalorder %v3873, 0
    %vm4068 = vcmp.lt.s32.totalorder %v3880, 0
    %vm4069 = vcmp.lt.s32.totalorder %v3887, 0
    %vm4070 = vcmp.lt.s32.totalorder %v3894, 0
    %vm4071 = vcmp.lt.s32.totalorder %v3901, 0
    %vm4072 = vcmp.lt.s32.totalorder %v3908, 0
    %vm4073 = vcmp.lt.s32.totalorder %v3915, 0
    %vm4074 = vcmp.lt.s32.totalorder %v3922, 0
    %vm4075 = vcmp.lt.s32.totalorder %v3929, 0
    %vm4076 = vcmp.lt.s32.totalorder %v3936, 0
    %vm4077 = vcmp.lt.s32.totalorder %v3943, 0
    %vm4078 = vcmp.lt.s32.totalorder %v3950, 0
    %vm4079 = vmand %vm4015, %vm3951
    %vm4080 = vmand %vm4016, %vm3952
    %vm4081 = vmand %vm4017, %vm3953
    %vm4082 = vmand %vm4018, %vm3954
    %vm4083 = vmand %vm4019, %vm3955
    %vm4084 = vmand %vm4020, %vm3956
    %vm4085 = vmand %vm4021, %vm3957
    %vm4086 = vmand %vm4022, %vm3958
    %vm4087 = vmand %vm4023, %vm3959
    %vm4088 = vmand %vm4024, %vm3960
    %vm4089 = vmand %vm4025, %vm3961
    %vm4090 = vmand %vm4026, %vm3962
    %vm4091 = vmand %vm4027, %vm3963
    %vm4092 = vmand %vm4028, %vm3964
    %vm4093 = vmand %vm4029, %vm3965
    %vm4094 = vmand %vm4030, %vm3966
    %vm4095 = vmand %vm4031, %vm3967
    %vm4096 = vmand %vm4032, %vm3968
    %vm4097 = vmand %vm4033, %vm3969
    %vm4098 = vmand %vm4034, %vm3970
    %vm4099 = vmand %vm4035, %vm3971
    %vm4100 = vmand %vm4036, %vm3972
    %vm4101 = vmand %vm4037, %vm3973
    %vm4102 = vmand %vm4038, %vm3974
    %vm4103 = vmand %vm4039, %vm3975
    %vm4104 = vmand %vm4040, %vm3976
    %vm4105 = vmand %vm4041, %vm3977
    %vm4106 = vmand %vm4042, %vm3978
    %vm4107 = vmand %vm4043, %vm3979
    %vm4108 = vmand %vm4044, %vm3980
    %vm4109 = vmand %vm4045, %vm3981
    %vm4110 = vmand %vm4046, %vm3982
    %vm4111 = vmand %vm4047, %vm3983
    %vm4112 = vmand %vm4048, %vm3984
    %vm4113 = vmand %vm4049, %vm3985
    %vm4114 = vmand %vm4050, %vm3986
    %vm4115 = vmand %vm4051, %vm3987
    %vm4116 = vmand %vm4052, %vm3988
    %vm4117 = vmand %vm4053, %vm3989
    %vm4118 = vmand %vm4054, %vm3990
    %vm4119 = vmand %vm4055, %vm3991
    %vm4120 = vmand %vm4056, %vm3992
    %vm4121 = vmand %vm4057, %vm3993
    %vm4122 = vmand %vm4058, %vm3994
    %vm4123 = vmand %vm4059, %vm3995
    %vm4124 = vmand %vm4060, %vm3996
    %vm4125 = vmand %vm4061, %vm3997
    %vm4126 = vmand %vm4062, %vm3998
    %vm4127 = vmand %vm4063, %vm3999
    %vm4128 = vmand %vm4064, %vm4000
    %vm4129 = vmand %vm4065, %vm4001
    %vm4130 = vmand %vm4066, %vm4002
    %vm4131 = vmand %vm4067, %vm4003
    %vm4132 = vmand %vm4068, %vm4004
    %vm4133 = vmand %vm4069, %vm4005
    %vm4134 = vmand %vm4070, %vm4006
    %vm4135 = vmand %vm4071, %vm4007
    %vm4136 = vmand %vm4072, %vm4008
    %vm4137 = vmand %vm4073, %vm4009
    %vm4138 = vmand %vm4074, %vm4010
    %vm4139 = vmand %vm4075, %vm4011
    %vm4140 = vmand %vm4076, %vm4012
    %vm4141 = vmand %vm4077, %vm4013
    %vm4142 = vmand %vm4078, %vm4014
    %v4143 = vadd.s32 %v3509, 16
    %v4144 = vadd.s32 %v3516, 16
    %v4145 = vadd.s32 %v3523, 16
    %v4146 = vadd.s32 %v3530, 16
    %v4147 = vadd.s32 %v3537, 16
    %v4148 = vadd.s32 %v3544, 16
    %v4149 = vadd.s32 %v3551, 16
    %v4150 = vadd.s32 %v3558, 16
    %v4151 = vadd.s32 %v3565, 16
    %v4152 = vadd.s32 %v3572, 16
    %v4153 = vadd.s32 %v3579, 16
    %v4154 = vadd.s32 %v3586, 16
    %v4155 = vadd.s32 %v3593, 16
    %v4156 = vadd.s32 %v3600, 16
    %v4157 = vadd.s32 %v3607, 16
    %v4158 = vadd.s32 %v3614, 16
    %v4159 = vadd.s32 %v3621, 16
    %v4160 = vadd.s32 %v3628, 16
    %v4161 = vadd.s32 %v3635, 16
    %v4162 = vadd.s32 %v3642, 16
    %v4163 = vadd.s32 %v3649, 16
    %v4164 = vadd.s32 %v3656, 16
    %v4165 = vadd.s32 %v3663, 16
    %v4166 = vadd.s32 %v3670, 16
    %v4167 = vadd.s32 %v3677, 16
    %v4168 = vadd.s32 %v3684, 16
    %v4169 = vadd.s32 %v3691, 16
    %v4170 = vadd.s32 %v3698, 16
    %v4171 = vadd.s32 %v3705, 16
    %v4172 = vadd.s32 %v3712, 16
    %v4173 = vadd.s32 %v3719, 16
    %v4174 = vadd.s32 %v3726, 16
    %v4175 = vadd.s32 %v3733, 16
    %v4176 = vadd.s32 %v3740, 16
    %v4177 = vadd.s32 %v3747, 16
    %v4178 = vadd.s32 %v3754, 16
    %v4179 = vadd.s32 %v3761, 16
    %v4180 = vadd.s32 %v3768, 16
    %v4181 = vadd.s32 %v3775, 16
    %v4182 = vadd.s32 %v3782, 16
    %v4183 = vadd.s32 %v3789, 16
    %v4184 = vadd.s32 %v3796, 16
    %v4185 = vadd.s32 %v3803, 16
    %v4186 = vadd.s32 %v3810, 16
    %v4187 = vadd.s32 %v3817, 16
    %v4188 = vadd.s32 %v3824, 16
    %v4189 = vadd.s32 %v3831, 16
    %v4190 = vadd.s32 %v3838, 16
    %v4191 = vadd.s32 %v3845, 16
    %v4192 = vadd.s32 %v3852, 16
    %v4193 = vadd.s32 %v3859, 16
    %v4194 = vadd.s32 %v3866, 16
    %v4195 = vadd.s32 %v3873, 16
    %v4196 = vadd.s32 %v3880, 16
    %v4197 = vadd.s32 %v3887, 16
    %v4198 = vadd.s32 %v3894, 16
    %v4199 = vadd.s32 %v3901, 16
    %v4200 = vadd.s32 %v3908, 16
    %v4201 = vadd.s32 %v3915, 16
    %v4202 = vadd.s32 %v3922, 16
    %v4203 = vadd.s32 %v3929, 16
    %v4204 = vadd.s32 %v3936, 16
    %v4205 = vadd.s32 %v3943, 16
    %v4206 = vadd.s32 %v3950, 16
    %v4207 = vsel %vm4079, %v4143, %v3509
    %v4208 = vsel %vm4080, %v4144, %v3516
    %v4209 = vsel %vm4081, %v4145, %v3523
    %v4210 = vsel %vm4082, %v4146, %v3530
    %v4211 = vsel %vm4083, %v4147, %v3537
    %v4212 = vsel %vm4084, %v4148, %v3544
    %v4213 = vsel %vm4085, %v4149, %v3551
    %v4214 = vsel %vm4086, %v4150, %v3558
    %v4215 = vsel %vm4087, %v4151, %v3565
    %v4216 = vsel %vm4088, %v4152, %v3572
    %v4217 = vsel %vm4089, %v4153, %v3579
    %v4218 = vsel %vm4090, %v4154, %v3586
    %v4219 = vsel %vm4091, %v4155, %v3593
    %v4220 = vsel %vm4092, %v4156, %v3600
    %v4221 = vsel %vm4093, %v4157, %v3607
    %v4222 = vsel %vm4094, %v4158, %v3614
    %v4223 = vsel %vm4095, %v4159, %v3621
    %v4224 = vsel %vm4096, %v4160, %v3628
    %v4225 = vsel %vm4097, %v4161, %v3635
    %v4226 = vsel %vm4098, %v4162, %v3642
    %v4227 = vsel %vm4099, %v4163, %v3649
    %v4228 = vsel %vm4100, %v4164, %v3656
    %v4229 = vsel %vm4101, %v4165, %v3663
    %v4230 = vsel %vm4102, %v4166, %v3670
    %v4231 = vsel %vm4103, %v4167, %v3677
    %v4232 = vsel %vm4104, %v4168, %v3684
    %v4233 = vsel %vm4105, %v4169, %v3691
    %v4234 = vsel %vm4106, %v4170, %v3698
    %v4235 = vsel %vm4107, %v4171, %v3705
    %v4236 = vsel %vm4108, %v4172, %v3712
    %v4237 = vsel %vm4109, %v4173, %v3719
    %v4238 = vsel %vm4110, %v4174, %v3726
    %v4239 = vsel %vm4111, %v4175, %v3733
    %v4240 = vsel %vm4112, %v4176, %v3740
    %v4241 = vsel %vm4113, %v4177, %v3747
    %v4242 = vsel %vm4114, %v4178, %v3754
    %v4243 = vsel %vm4115, %v4179, %v3761
    %v4244 = vsel %vm4116, %v4180, %v3768
    %v4245 = vsel %vm4117, %v4181, %v3775
    %v4246 = vsel %vm4118, %v4182, %v3782
    %v4247 = vsel %vm4119, %v4183, %v3789
    %v4248 = vsel %vm4120, %v4184, %v3796
    %v4249 = vsel %vm4121, %v4185, %v3803
    %v4250 = vsel %vm4122, %v4186, %v3810
    %v4251 = vsel %vm4123, %v4187, %v3817
    %v4252 = vsel %vm4124, %v4188, %v3824
    %v4253 = vsel %vm4125, %v4189, %v3831
    %v4254 = vsel %vm4126, %v4190, %v3838
    %v4255 = vsel %vm4127, %v4191, %v3845
    %v4256 = vsel %vm4128, %v4192, %v3852
    %v4257 = vsel %vm4129, %v4193, %v3859
    %v4258 = vsel %vm4130, %v4194, %v3866
    %v4259 = vsel %vm4131, %v4195, %v3873
    %v4260 = vsel %vm4132, %v4196, %v3880
    %v4261 = vsel %vm4133, %v4197, %v3887
    %v4262 = vsel %vm4134, %v4198, %v3894
    %v4263 = vsel %vm4135, %v4199, %v3901
    %v4264 = vsel %vm4136, %v4200, %v3908
    %v4265 = vsel %vm4137, %v4201, %v3915
    %v4266 = vsel %vm4138, %v4202, %v3922
    %v4267 = vsel %vm4139, %v4203, %v3929
    %v4268 = vsel %vm4140, %v4204, %v3936
    %v4269 = vsel %vm4141, %v4205, %v3943
    %v4270 = vsel %vm4142, %v4206, %v3950
    %vm4271 = vcmp.ge.s32.totalorder %v3439, 16
    %vm4272 = vcmp.ge.s32.totalorder %v3440, 16
    %vm4273 = vcmp.ge.s32.totalorder %v3441, 16
    %vm4274 = vcmp.ge.s32.totalorder %v3442, 16
    %vm4275 = vcmp.ge.s32.totalorder %v3443, 16
    %vm4276 = vcmp.ge.s32.totalorder %v3444, 16
    %vm4277 = vcmp.ge.s32.totalorder %v3445, 16
    %vm4278 = vcmp.ge.s32.totalorder %v3446, 16
    %vm4279 = vcmp.ge.s32.totalorder %v3447, 16
    %vm4280 = vcmp.ge.s32.totalorder %v3448, 16
    %vm4281 = vcmp.ge.s32.totalorder %v3449, 16
    %vm4282 = vcmp.ge.s32.totalorder %v3450, 16
    %vm4283 = vcmp.ge.s32.totalorder %v3451, 16
    %vm4284 = vcmp.ge.s32.totalorder %v3452, 16
    %vm4285 = vcmp.ge.s32.totalorder %v3453, 16
    %vm4286 = vcmp.ge.s32.totalorder %v3454, 16
    %vm4287 = vcmp.ge.s32.totalorder %v3455, 16
    %vm4288 = vcmp.ge.s32.totalorder %v3456, 16
    %vm4289 = vcmp.ge.s32.totalorder %v3457, 16
    %vm4290 = vcmp.ge.s32.totalorder %v3458, 16
    %vm4291 = vcmp.ge.s32.totalorder %v3459, 16
    %vm4292 = vcmp.ge.s32.totalorder %v3460, 16
    %vm4293 = vcmp.ge.s32.totalorder %v3461, 16
    %vm4294 = vcmp.ge.s32.totalorder %v3462, 16
    %vm4295 = vcmp.ge.s32.totalorder %v3463, 16
    %vm4296 = vcmp.ge.s32.totalorder %v3464, 16
    %vm4297 = vcmp.ge.s32.totalorder %v3465, 16
    %vm4298 = vcmp.ge.s32.totalorder %v3466, 16
    %vm4299 = vcmp.ge.s32.totalorder %v3467, 16
    %vm4300 = vcmp.ge.s32.totalorder %v3468, 16
    %vm4301 = vcmp.ge.s32.totalorder %v3469, 16
    %vm4302 = vcmp.ge.s32.totalorder %v3470, 16
    %vm4303 = vcmp.ge.s32.totalorder %v3471, 16
    %vm4304 = vcmp.ge.s32.totalorder %v3472, 16
    %vm4305 = vcmp.ge.s32.totalorder %v3473, 16
    %vm4306 = vcmp.ge.s32.totalorder %v3474, 16
    %vm4307 = vcmp.ge.s32.totalorder %v3475, 16
    %vm4308 = vcmp.ge.s32.totalorder %v3476, 16
    %vm4309 = vcmp.ge.s32.totalorder %v3477, 16
    %vm4310 = vcmp.ge.s32.totalorder %v3478, 16
    %vm4311 = vcmp.ge.s32.totalorder %v3479, 16
    %vm4312 = vcmp.ge.s32.totalorder %v3480, 16
    %vm4313 = vcmp.ge.s32.totalorder %v3481, 16
    %vm4314 = vcmp.ge.s32.totalorder %v3482, 16
    %vm4315 = vcmp.ge.s32.totalorder %v3483, 16
    %vm4316 = vcmp.ge.s32.totalorder %v3484, 16
    %vm4317 = vcmp.ge.s32.totalorder %v3485, 16
    %vm4318 = vcmp.ge.s32.totalorder %v3486, 16
    %vm4319 = vcmp.ge.s32.totalorder %v3487, 16
    %vm4320 = vcmp.ge.s32.totalorder %v3488, 16
    %vm4321 = vcmp.ge.s32.totalorder %v3489, 16
    %vm4322 = vcmp.ge.s32.totalorder %v3490, 16
    %vm4323 = vcmp.ge.s32.totalorder %v3491, 16
    %vm4324 = vcmp.ge.s32.totalorder %v3492, 16
    %vm4325 = vcmp.ge.s32.totalorder %v3493, 16
    %vm4326 = vcmp.ge.s32.totalorder %v3494, 16
    %vm4327 = vcmp.ge.s32.totalorder %v3495, 16
    %vm4328 = vcmp.ge.s32.totalorder %v3496, 16
    %vm4329 = vcmp.ge.s32.totalorder %v3497, 16
    %vm4330 = vcmp.ge.s32.totalorder %v3498, 16
    %vm4331 = vcmp.ge.s32.totalorder %v3499, 16
    %vm4332 = vcmp.ge.s32.totalorder %v3500, 16
    %vm4333 = vcmp.ge.s32.totalorder %v3501, 16
    %vm4334 = vcmp.ge.s32.totalorder %v3502, 16
    %v4335 = vsel %vm4271, 1, 0
    %v4336 = vsel %vm4272, 1, 0
    %v4337 = vsel %vm4273, 1, 0
    %v4338 = vsel %vm4274, 1, 0
    %v4339 = vsel %vm4275, 1, 0
    %v4340 = vsel %vm4276, 1, 0
    %v4341 = vsel %vm4277, 1, 0
    %v4342 = vsel %vm4278, 1, 0
    %v4343 = vsel %vm4279, 1, 0
    %v4344 = vsel %vm4280, 1, 0
    %v4345 = vsel %vm4281, 1, 0
    %v4346 = vsel %vm4282, 1, 0
    %v4347 = vsel %vm4283, 1, 0
    %v4348 = vsel %vm4284, 1, 0
    %v4349 = vsel %vm4285, 1, 0
    %v4350 = vsel %vm4286, 1, 0
    %v4351 = vsel %vm4287, 1, 0
    %v4352 = vsel %vm4288, 1, 0
    %v4353 = vsel %vm4289, 1, 0
    %v4354 = vsel %vm4290, 1, 0
    %v4355 = vsel %vm4291, 1, 0
    %v4356 = vsel %vm4292, 1, 0
    %v4357 = vsel %vm4293, 1, 0
    %v4358 = vsel %vm4294, 1, 0
    %v4359 = vsel %vm4295, 1, 0
    %v4360 = vsel %vm4296, 1, 0
    %v4361 = vsel %vm4297, 1, 0
    %v4362 = vsel %vm4298, 1, 0
    %v4363 = vsel %vm4299, 1, 0
    %v4364 = vsel %vm4300, 1, 0
    %v4365 = vsel %vm4301, 1, 0
    %v4366 = vsel %vm4302, 1, 0
    %v4367 = vsel %vm4303, 1, 0
    %v4368 = vsel %vm4304, 1, 0
    %v4369 = vsel %vm4305, 1, 0
    %v4370 = vsel %vm4306, 1, 0
    %v4371 = vsel %vm4307, 1, 0
    %v4372 = vsel %vm4308, 1, 0
    %v4373 = vsel %vm4309, 1, 0
    %v4374 = vsel %vm4310, 1, 0
    %v4375 = vsel %vm4311, 1, 0
    %v4376 = vsel %vm4312, 1, 0
    %v4377 = vsel %vm4313, 1, 0
    %v4378 = vsel %vm4314, 1, 0
    %v4379 = vsel %vm4315, 1, 0
    %v4380 = vsel %vm4316, 1, 0
    %v4381 = vsel %vm4317, 1, 0
    %v4382 = vsel %vm4318, 1, 0
    %v4383 = vsel %vm4319, 1, 0
    %v4384 = vsel %vm4320, 1, 0
    %v4385 = vsel %vm4321, 1, 0
    %v4386 = vsel %vm4322, 1, 0
    %v4387 = vsel %vm4323, 1, 0
    %v4388 = vsel %vm4324, 1, 0
    %v4389 = vsel %vm4325, 1, 0
    %v4390 = vsel %vm4326, 1, 0
    %v4391 = vsel %vm4327, 1, 0
    %v4392 = vsel %vm4328, 1, 0
    %v4393 = vsel %vm4329, 1, 0
    %v4394 = vsel %vm4330, 1, 0
    %v4395 = vsel %vm4331, 1, 0
    %v4396 = vsel %vm4332, 1, 0
    %v4397 = vsel %vm4333, 1, 0
    %v4398 = vsel %vm4334, 1, 0
    %v4399 = vcvt.s32.f32 %v4335
    %v4400 = vcvt.s32.f32 %v4336
    %v4401 = vcvt.s32.f32 %v4337
    %v4402 = vcvt.s32.f32 %v4338
    %v4403 = vcvt.s32.f32 %v4339
    %v4404 = vcvt.s32.f32 %v4340
    %v4405 = vcvt.s32.f32 %v4341
    %v4406 = vcvt.s32.f32 %v4342
    %v4407 = vcvt.s32.f32 %v4343
    %v4408 = vcvt.s32.f32 %v4344
    %v4409 = vcvt.s32.f32 %v4345
    %v4410 = vcvt.s32.f32 %v4346
    %v4411 = vcvt.s32.f32 %v4347
    %v4412 = vcvt.s32.f32 %v4348
    %v4413 = vcvt.s32.f32 %v4349
    %v4414 = vcvt.s32.f32 %v4350
    %v4415 = vcvt.s32.f32 %v4351
    %v4416 = vcvt.s32.f32 %v4352
    %v4417 = vcvt.s32.f32 %v4353
    %v4418 = vcvt.s32.f32 %v4354
    %v4419 = vcvt.s32.f32 %v4355
    %v4420 = vcvt.s32.f32 %v4356
    %v4421 = vcvt.s32.f32 %v4357
    %v4422 = vcvt.s32.f32 %v4358
    %v4423 = vcvt.s32.f32 %v4359
    %v4424 = vcvt.s32.f32 %v4360
    %v4425 = vcvt.s32.f32 %v4361
    %v4426 = vcvt.s32.f32 %v4362
    %v4427 = vcvt.s32.f32 %v4363
    %v4428 = vcvt.s32.f32 %v4364
    %v4429 = vcvt.s32.f32 %v4365
    %v4430 = vcvt.s32.f32 %v4366
    %v4431 = vcvt.s32.f32 %v4367
    %v4432 = vcvt.s32.f32 %v4368
    %v4433 = vcvt.s32.f32 %v4369
    %v4434 = vcvt.s32.f32 %v4370
    %v4435 = vcvt.s32.f32 %v4371
    %v4436 = vcvt.s32.f32 %v4372
    %v4437 = vcvt.s32.f32 %v4373
    %v4438 = vcvt.s32.f32 %v4374
    %v4439 = vcvt.s32.f32 %v4375
    %v4440 = vcvt.s32.f32 %v4376
    %v4441 = vcvt.s32.f32 %v4377
    %v4442 = vcvt.s32.f32 %v4378
    %v4443 = vcvt.s32.f32 %v4379
    %v4444 = vcvt.s32.f32 %v4380
    %v4445 = vcvt.s32.f32 %v4381
    %v4446 = vcvt.s32.f32 %v4382
    %v4447 = vcvt.s32.f32 %v4383
    %v4448 = vcvt.s32.f32 %v4384
    %v4449 = vcvt.s32.f32 %v4385
    %v4450 = vcvt.s32.f32 %v4386
    %v4451 = vcvt.s32.f32 %v4387
    %v4452 = vcvt.s32.f32 %v4388
    %v4453 = vcvt.s32.f32 %v4389
    %v4454 = vcvt.s32.f32 %v4390
    %v4455 = vcvt.s32.f32 %v4391
    %v4456 = vcvt.s32.f32 %v4392
    %v4457 = vcvt.s32.f32 %v4393
    %v4458 = vcvt.s32.f32 %v4394
    %v4459 = vcvt.s32.f32 %v4395
    %v4460 = vcvt.s32.f32 %v4396
    %v4461 = vcvt.s32.f32 %v4397
    %v4462 = vcvt.s32.f32 %v4398
    %vm4463 = vcmp.lt.s32.totalorder %v3439, 240
    %vm4464 = vcmp.lt.s32.totalorder %v3440, 240
    %vm4465 = vcmp.lt.s32.totalorder %v3441, 240
    %vm4466 = vcmp.lt.s32.totalorder %v3442, 240
    %vm4467 = vcmp.lt.s32.totalorder %v3443, 240
    %vm4468 = vcmp.lt.s32.totalorder %v3444, 240
    %vm4469 = vcmp.lt.s32.totalorder %v3445, 240
    %vm4470 = vcmp.lt.s32.totalorder %v3446, 240
    %vm4471 = vcmp.lt.s32.totalorder %v3447, 240
    %vm4472 = vcmp.lt.s32.totalorder %v3448, 240
    %vm4473 = vcmp.lt.s32.totalorder %v3449, 240
    %vm4474 = vcmp.lt.s32.totalorder %v3450, 240
    %vm4475 = vcmp.lt.s32.totalorder %v3451, 240
    %vm4476 = vcmp.lt.s32.totalorder %v3452, 240
    %vm4477 = vcmp.lt.s32.totalorder %v3453, 240
    %vm4478 = vcmp.lt.s32.totalorder %v3454, 240
    %vm4479 = vcmp.lt.s32.totalorder %v3455, 240
    %vm4480 = vcmp.lt.s32.totalorder %v3456, 240
    %vm4481 = vcmp.lt.s32.totalorder %v3457, 240
    %vm4482 = vcmp.lt.s32.totalorder %v3458, 240
    %vm4483 = vcmp.lt.s32.totalorder %v3459, 240
    %vm4484 = vcmp.lt.s32.totalorder %v3460, 240
    %vm4485 = vcmp.lt.s32.totalorder %v3461, 240
    %vm4486 = vcmp.lt.s32.totalorder %v3462, 240
    %vm4487 = vcmp.lt.s32.totalorder %v3463, 240
    %vm4488 = vcmp.lt.s32.totalorder %v3464, 240
    %vm4489 = vcmp.lt.s32.totalorder %v3465, 240
    %vm4490 = vcmp.lt.s32.totalorder %v3466, 240
    %vm4491 = vcmp.lt.s32.totalorder %v3467, 240
    %vm4492 = vcmp.lt.s32.totalorder %v3468, 240
    %vm4493 = vcmp.lt.s32.totalorder %v3469, 240
    %vm4494 = vcmp.lt.s32.totalorder %v3470, 240
    %vm4495 = vcmp.lt.s32.totalorder %v3471, 240
    %vm4496 = vcmp.lt.s32.totalorder %v3472, 240
    %vm4497 = vcmp.lt.s32.totalorder %v3473, 240
    %vm4498 = vcmp.lt.s32.totalorder %v3474, 240
    %vm4499 = vcmp.lt.s32.totalorder %v3475, 240
    %vm4500 = vcmp.lt.s32.totalorder %v3476, 240
    %vm4501 = vcmp.lt.s32.totalorder %v3477, 240
    %vm4502 = vcmp.lt.s32.totalorder %v3478, 240
    %vm4503 = vcmp.lt.s32.totalorder %v3479, 240
    %vm4504 = vcmp.lt.s32.totalorder %v3480, 240
    %vm4505 = vcmp.lt.s32.totalorder %v3481, 240
    %vm4506 = vcmp.lt.s32.totalorder %v3482, 240
    %vm4507 = vcmp.lt.s32.totalorder %v3483, 240
    %vm4508 = vcmp.lt.s32.totalorder %v3484, 240
    %vm4509 = vcmp.lt.s32.totalorder %v3485, 240
    %vm4510 = vcmp.lt.s32.totalorder %v3486, 240
    %vm4511 = vcmp.lt.s32.totalorder %v3487, 240
    %vm4512 = vcmp.lt.s32.totalorder %v3488, 240
    %vm4513 = vcmp.lt.s32.totalorder %v3489, 240
    %vm4514 = vcmp.lt.s32.totalorder %v3490, 240
    %vm4515 = vcmp.lt.s32.totalorder %v3491, 240
    %vm4516 = vcmp.lt.s32.totalorder %v3492, 240
    %vm4517 = vcmp.lt.s32.totalorder %v3493, 240
    %vm4518 = vcmp.lt.s32.totalorder %v3494, 240
    %vm4519 = vcmp.lt.s32.totalorder %v3495, 240
    %vm4520 = vcmp.lt.s32.totalorder %v3496, 240
    %vm4521 = vcmp.lt.s32.totalorder %v3497, 240
    %vm4522 = vcmp.lt.s32.totalorder %v3498, 240
    %vm4523 = vcmp.lt.s32.totalorder %v3499, 240
    %vm4524 = vcmp.lt.s32.totalorder %v3500, 240
    %vm4525 = vcmp.lt.s32.totalorder %v3501, 240
    %vm4526 = vcmp.lt.s32.totalorder %v3502, 240
    %v4527 = vsel %vm4463, 1, 0
    %v4528 = vsel %vm4464, 1, 0
    %v4529 = vsel %vm4465, 1, 0
    %v4530 = vsel %vm4466, 1, 0
    %v4531 = vsel %vm4467, 1, 0
    %v4532 = vsel %vm4468, 1, 0
    %v4533 = vsel %vm4469, 1, 0
    %v4534 = vsel %vm4470, 1, 0
    %v4535 = vsel %vm4471, 1, 0
    %v4536 = vsel %vm4472, 1, 0
    %v4537 = vsel %vm4473, 1, 0
    %v4538 = vsel %vm4474, 1, 0
    %v4539 = vsel %vm4475, 1, 0
    %v4540 = vsel %vm4476, 1, 0
    %v4541 = vsel %vm4477, 1, 0
    %v4542 = vsel %vm4478, 1, 0
    %v4543 = vsel %vm4479, 1, 0
    %v4544 = vsel %vm4480, 1, 0
    %v4545 = vsel %vm4481, 1, 0
    %v4546 = vsel %vm4482, 1, 0
    %v4547 = vsel %vm4483, 1, 0
    %v4548 = vsel %vm4484, 1, 0
    %v4549 = vsel %vm4485, 1, 0
    %v4550 = vsel %vm4486, 1, 0
    %v4551 = vsel %vm4487, 1, 0
    %v4552 = vsel %vm4488, 1, 0
    %v4553 = vsel %vm4489, 1, 0
    %v4554 = vsel %vm4490, 1, 0
    %v4555 = vsel %vm4491, 1, 0
    %v4556 = vsel %vm4492, 1, 0
    %v4557 = vsel %vm4493, 1, 0
    %v4558 = vsel %vm4494, 1, 0
    %v4559 = vsel %vm4495, 1, 0
    %v4560 = vsel %vm4496, 1, 0
    %v4561 = vsel %vm4497, 1, 0
    %v4562 = vsel %vm4498, 1, 0
    %v4563 = vsel %vm4499, 1, 0
    %v4564 = vsel %vm4500, 1, 0
    %v4565 = vsel %vm4501, 1, 0
    %v4566 = vsel %vm4502, 1, 0
    %v4567 = vsel %vm4503, 1, 0
    %v4568 = vsel %vm4504, 1, 0
    %v4569 = vsel %vm4505, 1, 0
    %v4570 = vsel %vm4506, 1, 0
    %v4571 = vsel %vm4507, 1, 0
    %v4572 = vsel %vm4508, 1, 0
    %v4573 = vsel %vm4509, 1, 0
    %v4574 = vsel %vm4510, 1, 0
    %v4575 = vsel %vm4511, 1, 0
    %v4576 = vsel %vm4512, 1, 0
    %v4577 = vsel %vm4513, 1, 0
    %v4578 = vsel %vm4514, 1, 0
    %v4579 = vsel %vm4515, 1, 0
    %v4580 = vsel %vm4516, 1, 0
    %v4581 = vsel %vm4517, 1, 0
    %v4582 = vsel %vm4518, 1, 0
    %v4583 = vsel %vm4519, 1, 0
    %v4584 = vsel %vm4520, 1, 0
    %v4585 = vsel %vm4521, 1, 0
    %v4586 = vsel %vm4522, 1, 0
    %v4587 = vsel %vm4523, 1, 0
    %v4588 = vsel %vm4524, 1, 0
    %v4589 = vsel %vm4525, 1, 0
    %v4590 = vsel %vm4526, 1, 0
    %v4591 = vcvt.s32.f32 %v4527
    %v4592 = vcvt.s32.f32 %v4528
    %v4593 = vcvt.s32.f32 %v4529
    %v4594 = vcvt.s32.f32 %v4530
    %v4595 = vcvt.s32.f32 %v4531
    %v4596 = vcvt.s32.f32 %v4532
    %v4597 = vcvt.s32.f32 %v4533
    %v4598 = vcvt.s32.f32 %v4534
    %v4599 = vcvt.s32.f32 %v4535
    %v4600 = vcvt.s32.f32 %v4536
    %v4601 = vcvt.s32.f32 %v4537
    %v4602 = vcvt.s32.f32 %v4538
    %v4603 = vcvt.s32.f32 %v4539
    %v4604 = vcvt.s32.f32 %v4540
    %v4605 = vcvt.s32.f32 %v4541
    %v4606 = vcvt.s32.f32 %v4542
    %v4607 = vcvt.s32.f32 %v4543
    %v4608 = vcvt.s32.f32 %v4544
    %v4609 = vcvt.s32.f32 %v4545
    %v4610 = vcvt.s32.f32 %v4546
    %v4611 = vcvt.s32.f32 %v4547
    %v4612 = vcvt.s32.f32 %v4548
    %v4613 = vcvt.s32.f32 %v4549
    %v4614 = vcvt.s32.f32 %v4550
    %v4615 = vcvt.s32.f32 %v4551
    %v4616 = vcvt.s32.f32 %v4552
    %v4617 = vcvt.s32.f32 %v4553
    %v4618 = vcvt.s32.f32 %v4554
    %v4619 = vcvt.s32.f32 %v4555
    %v4620 = vcvt.s32.f32 %v4556
    %v4621 = vcvt.s32.f32 %v4557
    %v4622 = vcvt.s32.f32 %v4558
    %v4623 = vcvt.s32.f32 %v4559
    %v4624 = vcvt.s32.f32 %v4560
    %v4625 = vcvt.s32.f32 %v4561
    %v4626 = vcvt.s32.f32 %v4562
    %v4627 = vcvt.s32.f32 %v4563
    %v4628 = vcvt.s32.f32 %v4564
    %v4629 = vcvt.s32.f32 %v4565
    %v4630 = vcvt.s32.f32 %v4566
    %v4631 = vcvt.s32.f32 %v4567
    %v4632 = vcvt.s32.f32 %v4568
    %v4633 = vcvt.s32.f32 %v4569
    %v4634 = vcvt.s32.f32 %v4570
    %v4635 = vcvt.s32.f32 %v4571
    %v4636 = vcvt.s32.f32 %v4572
    %v4637 = vcvt.s32.f32 %v4573
    %v4638 = vcvt.s32.f32 %v4574
    %v4639 = vcvt.s32.f32 %v4575
    %v4640 = vcvt.s32.f32 %v4576
    %v4641 = vcvt.s32.f32 %v4577
    %v4642 = vcvt.s32.f32 %v4578
    %v4643 = vcvt.s32.f32 %v4579
    %v4644 = vcvt.s32.f32 %v4580
    %v4645 = vcvt.s32.f32 %v4581
    %v4646 = vcvt.s32.f32 %v4582
    %v4647 = vcvt.s32.f32 %v4583
    %v4648 = vcvt.s32.f32 %v4584
    %v4649 = vcvt.s32.f32 %v4585
    %v4650 = vcvt.s32.f32 %v4586
    %v4651 = vcvt.s32.f32 %v4587
    %v4652 = vcvt.s32.f32 %v4588
    %v4653 = vcvt.s32.f32 %v4589
    %v4654 = vcvt.s32.f32 %v4590
    %vm4655 = vcmp.ge.s32.totalorder %v4207, 1
    %vm4656 = vcmp.ge.s32.totalorder %v4208, 1
    %vm4657 = vcmp.ge.s32.totalorder %v4209, 1
    %vm4658 = vcmp.ge.s32.totalorder %v4210, 1
    %vm4659 = vcmp.ge.s32.totalorder %v4211, 1
    %vm4660 = vcmp.ge.s32.totalorder %v4212, 1
    %vm4661 = vcmp.ge.s32.totalorder %v4213, 1
    %vm4662 = vcmp.ge.s32.totalorder %v4214, 1
    %vm4663 = vcmp.ge.s32.totalorder %v4215, 1
    %vm4664 = vcmp.ge.s32.totalorder %v4216, 1
    %vm4665 = vcmp.ge.s32.totalorder %v4217, 1
    %vm4666 = vcmp.ge.s32.totalorder %v4218, 1
    %vm4667 = vcmp.ge.s32.totalorder %v4219, 1
    %vm4668 = vcmp.ge.s32.totalorder %v4220, 1
    %vm4669 = vcmp.ge.s32.totalorder %v4221, 1
    %vm4670 = vcmp.ge.s32.totalorder %v4222, 1
    %vm4671 = vcmp.ge.s32.totalorder %v4223, 1
    %vm4672 = vcmp.ge.s32.totalorder %v4224, 1
    %vm4673 = vcmp.ge.s32.totalorder %v4225, 1
    %vm4674 = vcmp.ge.s32.totalorder %v4226, 1
    %vm4675 = vcmp.ge.s32.totalorder %v4227, 1
    %vm4676 = vcmp.ge.s32.totalorder %v4228, 1
    %vm4677 = vcmp.ge.s32.totalorder %v4229, 1
    %vm4678 = vcmp.ge.s32.totalorder %v4230, 1
    %vm4679 = vcmp.ge.s32.totalorder %v4231, 1
    %vm4680 = vcmp.ge.s32.totalorder %v4232, 1
    %vm4681 = vcmp.ge.s32.totalorder %v4233, 1
    %vm4682 = vcmp.ge.s32.totalorder %v4234, 1
    %vm4683 = vcmp.ge.s32.totalorder %v4235, 1
    %vm4684 = vcmp.ge.s32.totalorder %v4236, 1
    %vm4685 = vcmp.ge.s32.totalorder %v4237, 1
    %vm4686 = vcmp.ge.s32.totalorder %v4238, 1
    %vm4687 = vcmp.ge.s32.totalorder %v4239, 1
    %vm4688 = vcmp.ge.s32.totalorder %v4240, 1
    %vm4689 = vcmp.ge.s32.totalorder %v4241, 1
    %vm4690 = vcmp.ge.s32.totalorder %v4242, 1
    %vm4691 = vcmp.ge.s32.totalorder %v4243, 1
    %vm4692 = vcmp.ge.s32.totalorder %v4244, 1
    %vm4693 = vcmp.ge.s32.totalorder %v4245, 1
    %vm4694 = vcmp.ge.s32.totalorder %v4246, 1
    %vm4695 = vcmp.ge.s32.totalorder %v4247, 1
    %vm4696 = vcmp.ge.s32.totalorder %v4248, 1
    %vm4697 = vcmp.ge.s32.totalorder %v4249, 1
    %vm4698 = vcmp.ge.s32.totalorder %v4250, 1
    %vm4699 = vcmp.ge.s32.totalorder %v4251, 1
    %vm4700 = vcmp.ge.s32.totalorder %v4252, 1
    %vm4701 = vcmp.ge.s32.totalorder %v4253, 1
    %vm4702 = vcmp.ge.s32.totalorder %v4254, 1
    %vm4703 = vcmp.ge.s32.totalorder %v4255, 1
    %vm4704 = vcmp.ge.s32.totalorder %v4256, 1
    %vm4705 = vcmp.ge.s32.totalorder %v4257, 1
    %vm4706 = vcmp.ge.s32.totalorder %v4258, 1
    %vm4707 = vcmp.ge.s32.totalorder %v4259, 1
    %vm4708 = vcmp.ge.s32.totalorder %v4260, 1
    %vm4709 = vcmp.ge.s32.totalorder %v4261, 1
    %vm4710 = vcmp.ge.s32.totalorder %v4262, 1
    %vm4711 = vcmp.ge.s32.totalorder %v4263, 1
    %vm4712 = vcmp.ge.s32.totalorder %v4264, 1
    %vm4713 = vcmp.ge.s32.totalorder %v4265, 1
    %vm4714 = vcmp.ge.s32.totalorder %v4266, 1
    %vm4715 = vcmp.ge.s32.totalorder %v4267, 1
    %vm4716 = vcmp.ge.s32.totalorder %v4268, 1
    %vm4717 = vcmp.ge.s32.totalorder %v4269, 1
    %vm4718 = vcmp.ge.s32.totalorder %v4270, 1
    %v4719 = vsel %vm4655, 1, 0
    %v4720 = vsel %vm4656, 1, 0
    %v4721 = vsel %vm4657, 1, 0
    %v4722 = vsel %vm4658, 1, 0
    %v4723 = vsel %vm4659, 1, 0
    %v4724 = vsel %vm4660, 1, 0
    %v4725 = vsel %vm4661, 1, 0
    %v4726 = vsel %vm4662, 1, 0
    %v4727 = vsel %vm4663, 1, 0
    %v4728 = vsel %vm4664, 1, 0
    %v4729 = vsel %vm4665, 1, 0
    %v4730 = vsel %vm4666, 1, 0
    %v4731 = vsel %vm4667, 1, 0
    %v4732 = vsel %vm4668, 1, 0
    %v4733 = vsel %vm4669, 1, 0
    %v4734 = vsel %vm4670, 1, 0
    %v4735 = vsel %vm4671, 1, 0
    %v4736 = vsel %vm4672, 1, 0
    %v4737 = vsel %vm4673, 1, 0
    %v4738 = vsel %vm4674, 1, 0
    %v4739 = vsel %vm4675, 1, 0
    %v4740 = vsel %vm4676, 1, 0
    %v4741 = vsel %vm4677, 1, 0
    %v4742 = vsel %vm4678, 1, 0
    %v4743 = vsel %vm4679, 1, 0
    %v4744 = vsel %vm4680, 1, 0
    %v4745 = vsel %vm4681, 1, 0
    %v4746 = vsel %vm4682, 1, 0
    %v4747 = vsel %vm4683, 1, 0
    %v4748 = vsel %vm4684, 1, 0
    %v4749 = vsel %vm4685, 1, 0
    %v4750 = vsel %vm4686, 1, 0
    %v4751 = vsel %vm4687, 1, 0
    %v4752 = vsel %vm4688, 1, 0
    %v4753 = vsel %vm4689, 1, 0
    %v4754 = vsel %vm4690, 1, 0
    %v4755 = vsel %vm4691, 1, 0
    %v4756 = vsel %vm4692, 1, 0
    %v4757 = vsel %vm4693, 1, 0
    %v4758 = vsel %vm4694, 1, 0
    %v4759 = vsel %vm4695, 1, 0
    %v4760 = vsel %vm4696, 1, 0
    %v4761 = vsel %vm4697, 1, 0
    %v4762 = vsel %vm4698, 1, 0
    %v4763 = vsel %vm4699, 1, 0
    %v4764 = vsel %vm4700, 1, 0
    %v4765 = vsel %vm4701, 1, 0
    %v4766 = vsel %vm4702, 1, 0
    %v4767 = vsel %vm4703, 1, 0
    %v4768 = vsel %vm4704, 1, 0
    %v4769 = vsel %vm4705, 1, 0
    %v4770 = vsel %vm4706, 1, 0
    %v4771 = vsel %vm4707, 1, 0
    %v4772 = vsel %vm4708, 1, 0
    %v4773 = vsel %vm4709, 1, 0
    %v4774 = vsel %vm4710, 1, 0
    %v4775 = vsel %vm4711, 1, 0
    %v4776 = vsel %vm4712, 1, 0
    %v4777 = vsel %vm4713, 1, 0
    %v4778 = vsel %vm4714, 1, 0
    %v4779 = vsel %vm4715, 1, 0
    %v4780 = vsel %vm4716, 1, 0
    %v4781 = vsel %vm4717, 1, 0
    %v4782 = vsel %vm4718, 1, 0
    %v4783 = vcvt.s32.f32 %v4719
    %v4784 = vcvt.s32.f32 %v4720
    %v4785 = vcvt.s32.f32 %v4721
    %v4786 = vcvt.s32.f32 %v4722
    %v4787 = vcvt.s32.f32 %v4723
    %v4788 = vcvt.s32.f32 %v4724
    %v4789 = vcvt.s32.f32 %v4725
    %v4790 = vcvt.s32.f32 %v4726
    %v4791 = vcvt.s32.f32 %v4727
    %v4792 = vcvt.s32.f32 %v4728
    %v4793 = vcvt.s32.f32 %v4729
    %v4794 = vcvt.s32.f32 %v4730
    %v4795 = vcvt.s32.f32 %v4731
    %v4796 = vcvt.s32.f32 %v4732
    %v4797 = vcvt.s32.f32 %v4733
    %v4798 = vcvt.s32.f32 %v4734
    %v4799 = vcvt.s32.f32 %v4735
    %v4800 = vcvt.s32.f32 %v4736
    %v4801 = vcvt.s32.f32 %v4737
    %v4802 = vcvt.s32.f32 %v4738
    %v4803 = vcvt.s32.f32 %v4739
    %v4804 = vcvt.s32.f32 %v4740
    %v4805 = vcvt.s32.f32 %v4741
    %v4806 = vcvt.s32.f32 %v4742
    %v4807 = vcvt.s32.f32 %v4743
    %v4808 = vcvt.s32.f32 %v4744
    %v4809 = vcvt.s32.f32 %v4745
    %v4810 = vcvt.s32.f32 %v4746
    %v4811 = vcvt.s32.f32 %v4747
    %v4812 = vcvt.s32.f32 %v4748
    %v4813 = vcvt.s32.f32 %v4749
    %v4814 = vcvt.s32.f32 %v4750
    %v4815 = vcvt.s32.f32 %v4751
    %v4816 = vcvt.s32.f32 %v4752
    %v4817 = vcvt.s32.f32 %v4753
    %v4818 = vcvt.s32.f32 %v4754
    %v4819 = vcvt.s32.f32 %v4755
    %v4820 = vcvt.s32.f32 %v4756
    %v4821 = vcvt.s32.f32 %v4757
    %v4822 = vcvt.s32.f32 %v4758
    %v4823 = vcvt.s32.f32 %v4759
    %v4824 = vcvt.s32.f32 %v4760
    %v4825 = vcvt.s32.f32 %v4761
    %v4826 = vcvt.s32.f32 %v4762
    %v4827 = vcvt.s32.f32 %v4763
    %v4828 = vcvt.s32.f32 %v4764
    %v4829 = vcvt.s32.f32 %v4765
    %v4830 = vcvt.s32.f32 %v4766
    %v4831 = vcvt.s32.f32 %v4767
    %v4832 = vcvt.s32.f32 %v4768
    %v4833 = vcvt.s32.f32 %v4769
    %v4834 = vcvt.s32.f32 %v4770
    %v4835 = vcvt.s32.f32 %v4771
    %v4836 = vcvt.s32.f32 %v4772
    %v4837 = vcvt.s32.f32 %v4773
    %v4838 = vcvt.s32.f32 %v4774
    %v4839 = vcvt.s32.f32 %v4775
    %v4840 = vcvt.s32.f32 %v4776
    %v4841 = vcvt.s32.f32 %v4777
    %v4842 = vcvt.s32.f32 %v4778
    %v4843 = vcvt.s32.f32 %v4779
    %v4844 = vcvt.s32.f32 %v4780
    %v4845 = vcvt.s32.f32 %v4781
    %v4846 = vcvt.s32.f32 %v4782
    %vm4847 = vcmp.lt.s32.totalorder %v4207, 15
    %vm4848 = vcmp.lt.s32.totalorder %v4208, 15
    %vm4849 = vcmp.lt.s32.totalorder %v4209, 15
    %vm4850 = vcmp.lt.s32.totalorder %v4210, 15
    %vm4851 = vcmp.lt.s32.totalorder %v4211, 15
    %vm4852 = vcmp.lt.s32.totalorder %v4212, 15
    %vm4853 = vcmp.lt.s32.totalorder %v4213, 15
    %vm4854 = vcmp.lt.s32.totalorder %v4214, 15
    %vm4855 = vcmp.lt.s32.totalorder %v4215, 15
    %vm4856 = vcmp.lt.s32.totalorder %v4216, 15
    %vm4857 = vcmp.lt.s32.totalorder %v4217, 15
    %vm4858 = vcmp.lt.s32.totalorder %v4218, 15
    %vm4859 = vcmp.lt.s32.totalorder %v4219, 15
    %vm4860 = vcmp.lt.s32.totalorder %v4220, 15
    %vm4861 = vcmp.lt.s32.totalorder %v4221, 15
    %vm4862 = vcmp.lt.s32.totalorder %v4222, 15
    %vm4863 = vcmp.lt.s32.totalorder %v4223, 15
    %vm4864 = vcmp.lt.s32.totalorder %v4224, 15
    %vm4865 = vcmp.lt.s32.totalorder %v4225, 15
    %vm4866 = vcmp.lt.s32.totalorder %v4226, 15
    %vm4867 = vcmp.lt.s32.totalorder %v4227, 15
    %vm4868 = vcmp.lt.s32.totalorder %v4228, 15
    %vm4869 = vcmp.lt.s32.totalorder %v4229, 15
    %vm4870 = vcmp.lt.s32.totalorder %v4230, 15
    %vm4871 = vcmp.lt.s32.totalorder %v4231, 15
    %vm4872 = vcmp.lt.s32.totalorder %v4232, 15
    %vm4873 = vcmp.lt.s32.totalorder %v4233, 15
    %vm4874 = vcmp.lt.s32.totalorder %v4234, 15
    %vm4875 = vcmp.lt.s32.totalorder %v4235, 15
    %vm4876 = vcmp.lt.s32.totalorder %v4236, 15
    %vm4877 = vcmp.lt.s32.totalorder %v4237, 15
    %vm4878 = vcmp.lt.s32.totalorder %v4238, 15
    %vm4879 = vcmp.lt.s32.totalorder %v4239, 15
    %vm4880 = vcmp.lt.s32.totalorder %v4240, 15
    %vm4881 = vcmp.lt.s32.totalorder %v4241, 15
    %vm4882 = vcmp.lt.s32.totalorder %v4242, 15
    %vm4883 = vcmp.lt.s32.totalorder %v4243, 15
    %vm4884 = vcmp.lt.s32.totalorder %v4244, 15
    %vm4885 = vcmp.lt.s32.totalorder %v4245, 15
    %vm4886 = vcmp.lt.s32.totalorder %v4246, 15
    %vm4887 = vcmp.lt.s32.totalorder %v4247, 15
    %vm4888 = vcmp.lt.s32.totalorder %v4248, 15
    %vm4889 = vcmp.lt.s32.totalorder %v4249, 15
    %vm4890 = vcmp.lt.s32.totalorder %v4250, 15
    %vm4891 = vcmp.lt.s32.totalorder %v4251, 15
    %vm4892 = vcmp.lt.s32.totalorder %v4252, 15
    %vm4893 = vcmp.lt.s32.totalorder %v4253, 15
    %vm4894 = vcmp.lt.s32.totalorder %v4254, 15
    %vm4895 = vcmp.lt.s32.totalorder %v4255, 15
    %vm4896 = vcmp.lt.s32.totalorder %v4256, 15
    %vm4897 = vcmp.lt.s32.totalorder %v4257, 15
    %vm4898 = vcmp.lt.s32.totalorder %v4258, 15
    %vm4899 = vcmp.lt.s32.totalorder %v4259, 15
    %vm4900 = vcmp.lt.s32.totalorder %v4260, 15
    %vm4901 = vcmp.lt.s32.totalorder %v4261, 15
    %vm4902 = vcmp.lt.s32.totalorder %v4262, 15
    %vm4903 = vcmp.lt.s32.totalorder %v4263, 15
    %vm4904 = vcmp.lt.s32.totalorder %v4264, 15
    %vm4905 = vcmp.lt.s32.totalorder %v4265, 15
    %vm4906 = vcmp.lt.s32.totalorder %v4266, 15
    %vm4907 = vcmp.lt.s32.totalorder %v4267, 15
    %vm4908 = vcmp.lt.s32.totalorder %v4268, 15
    %vm4909 = vcmp.lt.s32.totalorder %v4269, 15
    %vm4910 = vcmp.lt.s32.totalorder %v4270, 15
    %v4911 = vsel %vm4847, 1, 0
    %v4912 = vsel %vm4848, 1, 0
    %v4913 = vsel %vm4849, 1, 0
    %v4914 = vsel %vm4850, 1, 0
    %v4915 = vsel %vm4851, 1, 0
    %v4916 = vsel %vm4852, 1, 0
    %v4917 = vsel %vm4853, 1, 0
    %v4918 = vsel %vm4854, 1, 0
    %v4919 = vsel %vm4855, 1, 0
    %v4920 = vsel %vm4856, 1, 0
    %v4921 = vsel %vm4857, 1, 0
    %v4922 = vsel %vm4858, 1, 0
    %v4923 = vsel %vm4859, 1, 0
    %v4924 = vsel %vm4860, 1, 0
    %v4925 = vsel %vm4861, 1, 0
    %v4926 = vsel %vm4862, 1, 0
    %v4927 = vsel %vm4863, 1, 0
    %v4928 = vsel %vm4864, 1, 0
    %v4929 = vsel %vm4865, 1, 0
    %v4930 = vsel %vm4866, 1, 0
    %v4931 = vsel %vm4867, 1, 0
    %v4932 = vsel %vm4868, 1, 0
    %v4933 = vsel %vm4869, 1, 0
    %v4934 = vsel %vm4870, 1, 0
    %v4935 = vsel %vm4871, 1, 0
    %v4936 = vsel %vm4872, 1, 0
    %v4937 = vsel %vm4873, 1, 0
    %v4938 = vsel %vm4874, 1, 0
    %v4939 = vsel %vm4875, 1, 0
    %v4940 = vsel %vm4876, 1, 0
    %v4941 = vsel %vm4877, 1, 0
    %v4942 = vsel %vm4878, 1, 0
    %v4943 = vsel %vm4879, 1, 0
    %v4944 = vsel %vm4880, 1, 0
    %v4945 = vsel %vm4881, 1, 0
    %v4946 = vsel %vm4882, 1, 0
    %v4947 = vsel %vm4883, 1, 0
    %v4948 = vsel %vm4884, 1, 0
    %v4949 = vsel %vm4885, 1, 0
    %v4950 = vsel %vm4886, 1, 0
    %v4951 = vsel %vm4887, 1, 0
    %v4952 = vsel %vm4888, 1, 0
    %v4953 = vsel %vm4889, 1, 0
    %v4954 = vsel %vm4890, 1, 0
    %v4955 = vsel %vm4891, 1, 0
    %v4956 = vsel %vm4892, 1, 0
    %v4957 = vsel %vm4893, 1, 0
    %v4958 = vsel %vm4894, 1, 0
    %v4959 = vsel %vm4895, 1, 0
    %v4960 = vsel %vm4896, 1, 0
    %v4961 = vsel %vm4897, 1, 0
    %v4962 = vsel %vm4898, 1, 0
    %v4963 = vsel %vm4899, 1, 0
    %v4964 = vsel %vm4900, 1, 0
    %v4965 = vsel %vm4901, 1, 0
    %v4966 = vsel %vm4902, 1, 0
    %v4967 = vsel %vm4903, 1, 0
    %v4968 = vsel %vm4904, 1, 0
    %v4969 = vsel %vm4905, 1, 0
    %v4970 = vsel %vm4906, 1, 0
    %v4971 = vsel %vm4907, 1, 0
    %v4972 = vsel %vm4908, 1, 0
    %v4973 = vsel %vm4909, 1, 0
    %v4974 = vsel %vm4910, 1, 0
    %v4975 = vcvt.s32.f32 %v4911
    %v4976 = vcvt.s32.f32 %v4912
    %v4977 = vcvt.s32.f32 %v4913
    %v4978 = vcvt.s32.f32 %v4914
    %v4979 = vcvt.s32.f32 %v4915
    %v4980 = vcvt.s32.f32 %v4916
    %v4981 = vcvt.s32.f32 %v4917
    %v4982 = vcvt.s32.f32 %v4918
    %v4983 = vcvt.s32.f32 %v4919
    %v4984 = vcvt.s32.f32 %v4920
    %v4985 = vcvt.s32.f32 %v4921
    %v4986 = vcvt.s32.f32 %v4922
    %v4987 = vcvt.s32.f32 %v4923
    %v4988 = vcvt.s32.f32 %v4924
    %v4989 = vcvt.s32.f32 %v4925
    %v4990 = vcvt.s32.f32 %v4926
    %v4991 = vcvt.s32.f32 %v4927
    %v4992 = vcvt.s32.f32 %v4928
    %v4993 = vcvt.s32.f32 %v4929
    %v4994 = vcvt.s32.f32 %v4930
    %v4995 = vcvt.s32.f32 %v4931
    %v4996 = vcvt.s32.f32 %v4932
    %v4997 = vcvt.s32.f32 %v4933
    %v4998 = vcvt.s32.f32 %v4934
    %v4999 = vcvt.s32.f32 %v4935
    %v5000 = vcvt.s32.f32 %v4936
    %v5001 = vcvt.s32.f32 %v4937
    %v5002 = vcvt.s32.f32 %v4938
    %v5003 = vcvt.s32.f32 %v4939
    %v5004 = vcvt.s32.f32 %v4940
    %v5005 = vcvt.s32.f32 %v4941
    %v5006 = vcvt.s32.f32 %v4942
    %v5007 = vcvt.s32.f32 %v4943
    %v5008 = vcvt.s32.f32 %v4944
    %v5009 = vcvt.s32.f32 %v4945
    %v5010 = vcvt.s32.f32 %v4946
    %v5011 = vcvt.s32.f32 %v4947
    %v5012 = vcvt.s32.f32 %v4948
    %v5013 = vcvt.s32.f32 %v4949
    %v5014 = vcvt.s32.f32 %v4950
    %v5015 = vcvt.s32.f32 %v4951
    %v5016 = vcvt.s32.f32 %v4952
    %v5017 = vcvt.s32.f32 %v4953
    %v5018 = vcvt.s32.f32 %v4954
    %v5019 = vcvt.s32.f32 %v4955
    %v5020 = vcvt.s32.f32 %v4956
    %v5021 = vcvt.s32.f32 %v4957
    %v5022 = vcvt.s32.f32 %v4958
    %v5023 = vcvt.s32.f32 %v4959
    %v5024 = vcvt.s32.f32 %v4960
    %v5025 = vcvt.s32.f32 %v4961
    %v5026 = vcvt.s32.f32 %v4962
    %v5027 = vcvt.s32.f32 %v4963
    %v5028 = vcvt.s32.f32 %v4964
    %v5029 = vcvt.s32.f32 %v4965
    %v5030 = vcvt.s32.f32 %v4966
    %v5031 = vcvt.s32.f32 %v4967
    %v5032 = vcvt.s32.f32 %v4968
    %v5033 = vcvt.s32.f32 %v4969
    %v5034 = vcvt.s32.f32 %v4970
    %v5035 = vcvt.s32.f32 %v4971
    %v5036 = vcvt.s32.f32 %v4972
    %v5037 = vcvt.s32.f32 %v4973
    %v5038 = vcvt.s32.f32 %v4974
    %v5039 = vrot.slane %v1795, 7
    %v5040 = vrot.slane %v1796, 7
    %v5041 = vrot.slane %v1797, 7
    %v5042 = vrot.slane %v1798, 7
    %v5043 = vrot.slane %v1799, 7
    %v5044 = vrot.slane %v1800, 7
    %v5045 = vrot.slane %v1801, 7
    %v5046 = vrot.slane %v1802, 7
    %v5047 = vrot.slane %v1803, 7
    %v5048 = vrot.slane %v1804, 7
    %v5049 = vrot.slane %v1805, 7
    %v5050 = vrot.slane %v1806, 7
    %v5051 = vrot.slane %v1807, 7
    %v5052 = vrot.slane %v1808, 7
    %v5053 = vrot.slane %v1809, 7
    %v5054 = vrot.slane %v1810, 7
    %v5055 = vrot.slane %v1811, 7
    %v5056 = vrot.slane %v1812, 7
    %v5057 = vrot.slane %v1813, 7
    %v5058 = vrot.slane %v1814, 7
    %v5059 = vrot.slane %v1815, 7
    %v5060 = vrot.slane %v1816, 7
    %v5061 = vrot.slane %v1817, 7
    %v5062 = vrot.slane %v1818, 7
    %v5063 = vrot.slane %v1819, 7
    %v5064 = vrot.slane %v1820, 7
    %v5065 = vrot.slane %v1821, 7
    %v5066 = vrot.slane %v1822, 7
    %v5067 = vrot.slane %v1823, 7
    %v5068 = vrot.slane %v1824, 7
    %v5069 = vrot.slane %v1825, 7
    %v5070 = vrot.slane %v1826, 7
    %v5071 = vrot.slane %v1827, 7
    %v5072 = vrot.slane %v1828, 7
    %v5073 = vrot.slane %v1829, 7
    %v5074 = vrot.slane %v1830, 7
    %v5075 = vrot.slane %v1831, 7
    %v5076 = vrot.slane %v1832, 7
    %v5077 = vrot.slane %v1833, 7
    %v5078 = vrot.slane %v1834, 7
    %v5079 = vrot.slane %v1835, 7
    %v5080 = vrot.slane %v1836, 7
    %v5081 = vrot.slane %v1837, 7
    %v5082 = vrot.slane %v1838, 7
    %v5083 = vrot.slane %v1839, 7
    %v5084 = vrot.slane %v1840, 7
    %v5085 = vrot.slane %v1841, 7
    %v5086 = vrot.slane %v1842, 7
    %v5087 = vrot.slane %v1843, 7
    %v5088 = vrot.slane %v1844, 7
    %v5089 = vrot.slane %v1845, 7
    %v5090 = vrot.slane %v1846, 7
    %v5091 = vrot.slane %v1847, 7
    %v5092 = vrot.slane %v1848, 7
    %v5093 = vrot.slane %v1849, 7
    %v5094 = vrot.slane %v1850, 7
    %v5095 = vrot.slane %v1851, 7
    %v5096 = vrot.slane %v1852, 7
    %v5097 = vrot.slane %v1853, 7
    %v5098 = vrot.slane %v1854, 7
    %v5099 = vrot.slane %v1855, 7
    %v5100 = vrot.slane %v1856, 7
    %v5101 = vrot.slane %v1857, 7
    %v5102 = vrot.slane %v1858, 7
    %vm5103 = vcmp.lt.s32.totalorder %v2671, 1
    %v5104 = vsel %vm5103, %v5101, %v5102
    %v5105 = vsel %vm5103, %v5100, %v5101
    %v5106 = vsel %vm5103, %v5099, %v5100
    %v5107 = vsel %vm5103, %v5098, %v5099
    %v5108 = vsel %vm5103, %v5097, %v5098
    %v5109 = vsel %vm5103, %v5096, %v5097
    %v5110 = vsel %vm5103, %v5095, %v5096
    %v5111 = vsel %vm5103, %v5094, %v5095
    %v5112 = vsel %vm5103, %v5093, %v5094
    %v5113 = vsel %vm5103, %v5092, %v5093
    %v5114 = vsel %vm5103, %v5091, %v5092
    %v5115 = vsel %vm5103, %v5090, %v5091
    %v5116 = vsel %vm5103, %v5089, %v5090
    %v5117 = vsel %vm5103, %v5088, %v5089
    %v5118 = vsel %vm5103, %v5087, %v5088
    %v5119 = vsel %vm5103, %v5086, %v5087
    %v5120 = vsel %vm5103, %v5085, %v5086
    %v5121 = vsel %vm5103, %v5084, %v5085
    %v5122 = vsel %vm5103, %v5083, %v5084
    %v5123 = vsel %vm5103, %v5082, %v5083
    %v5124 = vsel %vm5103, %v5081, %v5082
    %v5125 = vsel %vm5103, %v5080, %v5081
    %v5126 = vsel %vm5103, %v5079, %v5080
    %v5127 = vsel %vm5103, %v5078, %v5079
    %v5128 = vsel %vm5103, %v5077, %v5078
    %v5129 = vsel %vm5103, %v5076, %v5077
    %v5130 = vsel %vm5103, %v5075, %v5076
    %v5131 = vsel %vm5103, %v5074, %v5075
    %v5132 = vsel %vm5103, %v5073, %v5074
    %v5133 = vsel %vm5103, %v5072, %v5073
    %v5134 = vsel %vm5103, %v5071, %v5072
    %v5135 = vsel %vm5103, %v5070, %v5071
    %v5136 = vsel %vm5103, %v5069, %v5070
    %v5137 = vsel %vm5103, %v5068, %v5069
    %v5138 = vsel %vm5103, %v5067, %v5068
    %v5139 = vsel %vm5103, %v5066, %v5067
    %v5140 = vsel %vm5103, %v5065, %v5066
    %v5141 = vsel %vm5103, %v5064, %v5065
    %v5142 = vsel %vm5103, %v5063, %v5064
    %v5143 = vsel %vm5103, %v5062, %v5063
    %v5144 = vsel %vm5103, %v5061, %v5062
    %v5145 = vsel %vm5103, %v5060, %v5061
    %v5146 = vsel %vm5103, %v5059, %v5060
    %v5147 = vsel %vm5103, %v5058, %v5059
    %v5148 = vsel %vm5103, %v5057, %v5058
    %v5149 = vsel %vm5103, %v5056, %v5057
    %v5150 = vsel %vm5103, %v5055, %v5056
    %v5151 = vsel %vm5103, %v5054, %v5055
    %v5152 = vsel %vm5103, %v5053, %v5054
    %v5153 = vsel %vm5103, %v5052, %v5053
    %v5154 = vsel %vm5103, %v5051, %v5052
    %v5155 = vsel %vm5103, %v5050, %v5051
    %v5156 = vsel %vm5103, %v5049, %v5050
    %v5157 = vsel %vm5103, %v5048, %v5049
    %v5158 = vsel %vm5103, %v5047, %v5048
    %v5159 = vsel %vm5103, %v5046, %v5047
    %v5160 = vsel %vm5103, %v5045, %v5046
    %v5161 = vsel %vm5103, %v5044, %v5045
    %v5162 = vsel %vm5103, %v5043, %v5044
    %v5163 = vsel %vm5103, %v5042, %v5043
    %v5164 = vsel %vm5103, %v5041, %v5042
    %v5165 = vsel %vm5103, %v5040, %v5041
    %v5166 = vsel %vm5103, %v5039, %v5040
    %v5167 = vsel %vm5103, %v5102, %v5039
    %v5168 = vmul.f32 %v5105, %v4399
    %v5169 = vmul.f32 %v5104, %v4400
    %v5170 = vmul.f32 %v5167, %v4401
    %v5171 = vmul.f32 %v5166, %v4402
    %v5172 = vmul.f32 %v5165, %v4403
    %v5173 = vmul.f32 %v5164, %v4404
    %v5174 = vmul.f32 %v5163, %v4405
    %v5175 = vmul.f32 %v5162, %v4406
    %v5176 = vmul.f32 %v5161, %v4407
    %v5177 = vmul.f32 %v5160, %v4408
    %v5178 = vmul.f32 %v5159, %v4409
    %v5179 = vmul.f32 %v5158, %v4410
    %v5180 = vmul.f32 %v5157, %v4411
    %v5181 = vmul.f32 %v5156, %v4412
    %v5182 = vmul.f32 %v5155, %v4413
    %v5183 = vmul.f32 %v5154, %v4414
    %v5184 = vmul.f32 %v5153, %v4415
    %v5185 = vmul.f32 %v5152, %v4416
    %v5186 = vmul.f32 %v5151, %v4417
    %v5187 = vmul.f32 %v5150, %v4418
    %v5188 = vmul.f32 %v5149, %v4419
    %v5189 = vmul.f32 %v5148, %v4420
    %v5190 = vmul.f32 %v5147, %v4421
    %v5191 = vmul.f32 %v5146, %v4422
    %v5192 = vmul.f32 %v5145, %v4423
    %v5193 = vmul.f32 %v5144, %v4424
    %v5194 = vmul.f32 %v5143, %v4425
    %v5195 = vmul.f32 %v5142, %v4426
    %v5196 = vmul.f32 %v5141, %v4427
    %v5197 = vmul.f32 %v5140, %v4428
    %v5198 = vmul.f32 %v5139, %v4429
    %v5199 = vmul.f32 %v5138, %v4430
    %v5200 = vmul.f32 %v5137, %v4431
    %v5201 = vmul.f32 %v5136, %v4432
    %v5202 = vmul.f32 %v5135, %v4433
    %v5203 = vmul.f32 %v5134, %v4434
    %v5204 = vmul.f32 %v5133, %v4435
    %v5205 = vmul.f32 %v5132, %v4436
    %v5206 = vmul.f32 %v5131, %v4437
    %v5207 = vmul.f32 %v5130, %v4438
    %v5208 = vmul.f32 %v5129, %v4439
    %v5209 = vmul.f32 %v5128, %v4440
    %v5210 = vmul.f32 %v5127, %v4441
    %v5211 = vmul.f32 %v5126, %v4442
    %v5212 = vmul.f32 %v5125, %v4443
    %v5213 = vmul.f32 %v5124, %v4444
    %v5214 = vmul.f32 %v5123, %v4445
    %v5215 = vmul.f32 %v5122, %v4446
    %v5216 = vmul.f32 %v5121, %v4447
    %v5217 = vmul.f32 %v5120, %v4448
    %v5218 = vmul.f32 %v5119, %v4449
    %v5219 = vmul.f32 %v5118, %v4450
    %v5220 = vmul.f32 %v5117, %v4451
    %v5221 = vmul.f32 %v5116, %v4452
    %v5222 = vmul.f32 %v5115, %v4453
    %v5223 = vmul.f32 %v5114, %v4454
    %v5224 = vmul.f32 %v5113, %v4455
    %v5225 = vmul.f32 %v5112, %v4456
    %v5226 = vmul.f32 %v5111, %v4457
    %v5227 = vmul.f32 %v5110, %v4458
    %v5228 = vmul.f32 %v5109, %v4459
    %v5229 = vmul.f32 %v5108, %v4460
    %v5230 = vmul.f32 %v5107, %v4461
    %v5231 = vmul.f32 %v5106, %v4462
    %v5232 = vmul.f32 %v5168, %v4783
    %v5233 = vmul.f32 %v5169, %v4784
    %v5234 = vmul.f32 %v5170, %v4785
    %v5235 = vmul.f32 %v5171, %v4786
    %v5236 = vmul.f32 %v5172, %v4787
    %v5237 = vmul.f32 %v5173, %v4788
    %v5238 = vmul.f32 %v5174, %v4789
    %v5239 = vmul.f32 %v5175, %v4790
    %v5240 = vmul.f32 %v5176, %v4791
    %v5241 = vmul.f32 %v5177, %v4792
    %v5242 = vmul.f32 %v5178, %v4793
    %v5243 = vmul.f32 %v5179, %v4794
    %v5244 = vmul.f32 %v5180, %v4795
    %v5245 = vmul.f32 %v5181, %v4796
    %v5246 = vmul.f32 %v5182, %v4797
    %v5247 = vmul.f32 %v5183, %v4798
    %v5248 = vmul.f32 %v5184, %v4799
    %v5249 = vmul.f32 %v5185, %v4800
    %v5250 = vmul.f32 %v5186, %v4801
    %v5251 = vmul.f32 %v5187, %v4802
    %v5252 = vmul.f32 %v5188, %v4803
    %v5253 = vmul.f32 %v5189, %v4804
    %v5254 = vmul.f32 %v5190, %v4805
    %v5255 = vmul.f32 %v5191, %v4806
    %v5256 = vmul.f32 %v5192, %v4807
    %v5257 = vmul.f32 %v5193, %v4808
    %v5258 = vmul.f32 %v5194, %v4809
    %v5259 = vmul.f32 %v5195, %v4810
    %v5260 = vmul.f32 %v5196, %v4811
    %v5261 = vmul.f32 %v5197, %v4812
    %v5262 = vmul.f32 %v5198, %v4813
    %v5263 = vmul.f32 %v5199, %v4814
    %v5264 = vmul.f32 %v5200, %v4815
    %v5265 = vmul.f32 %v5201, %v4816
    %v5266 = vmul.f32 %v5202, %v4817
    %v5267 = vmul.f32 %v5203, %v4818
    %v5268 = vmul.f32 %v5204, %v4819
    %v5269 = vmul.f32 %v5205, %v4820
    %v5270 = vmul.f32 %v5206, %v4821
    %v5271 = vmul.f32 %v5207, %v4822
    %v5272 = vmul.f32 %v5208, %v4823
    %v5273 = vmul.f32 %v5209, %v4824
    %v5274 = vmul.f32 %v5210, %v4825
    %v5275 = vmul.f32 %v5211, %v4826
    %v5276 = vmul.f32 %v5212, %v4827
    %v5277 = vmul.f32 %v5213, %v4828
    %v5278 = vmul.f32 %v5214, %v4829
    %v5279 = vmul.f32 %v5215, %v4830
    %v5280 = vmul.f32 %v5216, %v4831
    %v5281 = vmul.f32 %v5217, %v4832
    %v5282 = vmul.f32 %v5218, %v4833
    %v5283 = vmul.f32 %v5219, %v4834
    %v5284 = vmul.f32 %v5220, %v4835
    %v5285 = vmul.f32 %v5221, %v4836
    %v5286 = vmul.f32 %v5222, %v4837
    %v5287 = vmul.f32 %v5223, %v4838
    %v5288 = vmul.f32 %v5224, %v4839
    %v5289 = vmul.f32 %v5225, %v4840
    %v5290 = vmul.f32 %v5226, %v4841
    %v5291 = vmul.f32 %v5227, %v4842
    %v5292 = vmul.f32 %v5228, %v4843
    %v5293 = vmul.f32 %v5229, %v4844
    %v5294 = vmul.f32 %v5230, %v4845
    %v5295 = vmul.f32 %v5231, %v4846
    %v5296 = vmul.f32 %v1857, %v4399
    %v5297 = vmul.f32 %v1858, %v4400
    %v5298 = vmul.f32 %v1795, %v4401
    %v5299 = vmul.f32 %v1796, %v4402
    %v5300 = vmul.f32 %v1797, %v4403
    %v5301 = vmul.f32 %v1798, %v4404
    %v5302 = vmul.f32 %v1799, %v4405
    %v5303 = vmul.f32 %v1800, %v4406
    %v5304 = vmul.f32 %v1801, %v4407
    %v5305 = vmul.f32 %v1802, %v4408
    %v5306 = vmul.f32 %v1803, %v4409
    %v5307 = vmul.f32 %v1804, %v4410
    %v5308 = vmul.f32 %v1805, %v4411
    %v5309 = vmul.f32 %v1806, %v4412
    %v5310 = vmul.f32 %v1807, %v4413
    %v5311 = vmul.f32 %v1808, %v4414
    %v5312 = vmul.f32 %v1809, %v4415
    %v5313 = vmul.f32 %v1810, %v4416
    %v5314 = vmul.f32 %v1811, %v4417
    %v5315 = vmul.f32 %v1812, %v4418
    %v5316 = vmul.f32 %v1813, %v4419
    %v5317 = vmul.f32 %v1814, %v4420
    %v5318 = vmul.f32 %v1815, %v4421
    %v5319 = vmul.f32 %v1816, %v4422
    %v5320 = vmul.f32 %v1817, %v4423
    %v5321 = vmul.f32 %v1818, %v4424
    %v5322 = vmul.f32 %v1819, %v4425
    %v5323 = vmul.f32 %v1820, %v4426
    %v5324 = vmul.f32 %v1821, %v4427
    %v5325 = vmul.f32 %v1822, %v4428
    %v5326 = vmul.f32 %v1823, %v4429
    %v5327 = vmul.f32 %v1824, %v4430
    %v5328 = vmul.f32 %v1825, %v4431
    %v5329 = vmul.f32 %v1826, %v4432
    %v5330 = vmul.f32 %v1827, %v4433
    %v5331 = vmul.f32 %v1828, %v4434
    %v5332 = vmul.f32 %v1829, %v4435
    %v5333 = vmul.f32 %v1830, %v4436
    %v5334 = vmul.f32 %v1831, %v4437
    %v5335 = vmul.f32 %v1832, %v4438
    %v5336 = vmul.f32 %v1833, %v4439
    %v5337 = vmul.f32 %v1834, %v4440
    %v5338 = vmul.f32 %v1835, %v4441
    %v5339 = vmul.f32 %v1836, %v4442
    %v5340 = vmul.f32 %v1837, %v4443
    %v5341 = vmul.f32 %v1838, %v4444
    %v5342 = vmul.f32 %v1839, %v4445
    %v5343 = vmul.f32 %v1840, %v4446
    %v5344 = vmul.f32 %v1841, %v4447
    %v5345 = vmul.f32 %v1842, %v4448
    %v5346 = vmul.f32 %v1843, %v4449
    %v5347 = vmul.f32 %v1844, %v4450
    %v5348 = vmul.f32 %v1845, %v4451
    %v5349 = vmul.f32 %v1846, %v4452
    %v5350 = vmul.f32 %v1847, %v4453
    %v5351 = vmul.f32 %v1848, %v4454
    %v5352 = vmul.f32 %v1849, %v4455
    %v5353 = vmul.f32 %v1850, %v4456
    %v5354 = vmul.f32 %v1851, %v4457
    %v5355 = vmul.f32 %v1852, %v4458
    %v5356 = vmul.f32 %v1853, %v4459
    %v5357 = vmul.f32 %v1854, %v4460
    %v5358 = vmul.f32 %v1855, %v4461
    %v5359 = vmul.f32 %v1856, %v4462
    %5360 = vrot.lane.b32.xlu0 %v5296, 32
    %v5361 = vpop.permute.xlu0 %5360
    %5362 = vrot.lane.b32.xlu0 %v5297, 32
    %v5363 = vpop.permute.xlu0 %5362
    %5364 = vrot.lane.b32.xlu0 %v5298, 32
    %v5365 = vpop.permute.xlu0 %5364
    %5366 = vrot.lane.b32.xlu0 %v5299, 32
    %v5367 = vpop.permute.xlu0 %5366
    %5368 = vrot.lane.b32.xlu0 %v5300, 32
    %v5369 = vpop.permute.xlu0 %5368
    %5370 = vrot.lane.b32.xlu0 %v5301, 32
    %v5371 = vpop.permute.xlu0 %5370
    %5372 = vrot.lane.b32.xlu0 %v5302, 32
    %v5373 = vpop.permute.xlu0 %5372
    %5374 = vrot.lane.b32.xlu0 %v5303, 32
    %v5375 = vpop.permute.xlu0 %5374
    %5376 = vrot.lane.b32.xlu0 %v5304, 32
    %v5377 = vpop.permute.xlu0 %5376
    %5378 = vrot.lane.b32.xlu0 %v5305, 32
    %v5379 = vpop.permute.xlu0 %5378
    %5380 = vrot.lane.b32.xlu0 %v5306, 32
    %v5381 = vpop.permute.xlu0 %5380
    %5382 = vrot.lane.b32.xlu0 %v5307, 32
    %v5383 = vpop.permute.xlu0 %5382
    %5384 = vrot.lane.b32.xlu0 %v5308, 32
    %v5385 = vpop.permute.xlu0 %5384
    %5386 = vrot.lane.b32.xlu0 %v5309, 32
    %v5387 = vpop.permute.xlu0 %5386
    %5388 = vrot.lane.b32.xlu0 %v5310, 32
    %v5389 = vpop.permute.xlu0 %5388
    %5390 = vrot.lane.b32.xlu0 %v5311, 32
    %v5391 = vpop.permute.xlu0 %5390
    %5392 = vrot.lane.b32.xlu0 %v5312, 32
    %v5393 = vpop.permute.xlu0 %5392
    %5394 = vrot.lane.b32.xlu0 %v5313, 32
    %v5395 = vpop.permute.xlu0 %5394
    %5396 = vrot.lane.b32.xlu0 %v5314, 32
    %v5397 = vpop.permute.xlu0 %5396
    %5398 = vrot.lane.b32.xlu0 %v5315, 32
    %v5399 = vpop.permute.xlu0 %5398
    %5400 = vrot.lane.b32.xlu0 %v5316, 32
    %v5401 = vpop.permute.xlu0 %5400
    %5402 = vrot.lane.b32.xlu0 %v5317, 32
    %v5403 = vpop.permute.xlu0 %5402
    %5404 = vrot.lane.b32.xlu0 %v5318, 32
    %v5405 = vpop.permute.xlu0 %5404
    %5406 = vrot.lane.b32.xlu0 %v5319, 32
    %v5407 = vpop.permute.xlu0 %5406
    %5408 = vrot.lane.b32.xlu0 %v5320, 32
    %v5409 = vpop.permute.xlu0 %5408
    %5410 = vrot.lane.b32.xlu0 %v5321, 32
    %v5411 = vpop.permute.xlu0 %5410
    %5412 = vrot.lane.b32.xlu0 %v5322, 32
    %v5413 = vpop.permute.xlu0 %5412
    %5414 = vrot.lane.b32.xlu0 %v5323, 32
    %v5415 = vpop.permute.xlu0 %5414
    %5416 = vrot.lane.b32.xlu0 %v5324, 32
    %v5417 = vpop.permute.xlu0 %5416
    %5418 = vrot.lane.b32.xlu0 %v5325, 32
    %v5419 = vpop.permute.xlu0 %5418
    %5420 = vrot.lane.b32.xlu0 %v5326, 32
    %v5421 = vpop.permute.xlu0 %5420
    %5422 = vrot.lane.b32.xlu0 %v5327, 32
    %v5423 = vpop.permute.xlu0 %5422
    %5424 = vrot.lane.b32.xlu0 %v5328, 32
    %v5425 = vpop.permute.xlu0 %5424
    %5426 = vrot.lane.b32.xlu0 %v5329, 32
    %v5427 = vpop.permute.xlu0 %5426
    %5428 = vrot.lane.b32.xlu0 %v5330, 32
    %v5429 = vpop.permute.xlu0 %5428
    %5430 = vrot.lane.b32.xlu0 %v5331, 32
    %v5431 = vpop.permute.xlu0 %5430
    %5432 = vrot.lane.b32.xlu0 %v5332, 32
    %v5433 = vpop.permute.xlu0 %5432
    %5434 = vrot.lane.b32.xlu0 %v5333, 32
    %v5435 = vpop.permute.xlu0 %5434
    %5436 = vrot.lane.b32.xlu0 %v5334, 32
    %v5437 = vpop.permute.xlu0 %5436
    %5438 = vrot.lane.b32.xlu0 %v5335, 32
    %v5439 = vpop.permute.xlu0 %5438
    %5440 = vrot.lane.b32.xlu0 %v5336, 32
    %v5441 = vpop.permute.xlu0 %5440
    %5442 = vrot.lane.b32.xlu0 %v5337, 32
    %v5443 = vpop.permute.xlu0 %5442
    %5444 = vrot.lane.b32.xlu0 %v5338, 32
    %v5445 = vpop.permute.xlu0 %5444
    %5446 = vrot.lane.b32.xlu0 %v5339, 32
    %v5447 = vpop.permute.xlu0 %5446
    %5448 = vrot.lane.b32.xlu0 %v5340, 32
    %v5449 = vpop.permute.xlu0 %5448
    %5450 = vrot.lane.b32.xlu0 %v5341, 32
    %v5451 = vpop.permute.xlu0 %5450
    %5452 = vrot.lane.b32.xlu0 %v5342, 32
    %v5453 = vpop.permute.xlu0 %5452
    %5454 = vrot.lane.b32.xlu0 %v5343, 32
    %v5455 = vpop.permute.xlu0 %5454
    %5456 = vrot.lane.b32.xlu0 %v5344, 32
    %v5457 = vpop.permute.xlu0 %5456
    %5458 = vrot.lane.b32.xlu0 %v5345, 32
    %v5459 = vpop.permute.xlu0 %5458
    %5460 = vrot.lane.b32.xlu0 %v5346, 32
    %v5461 = vpop.permute.xlu0 %5460
    %5462 = vrot.lane.b32.xlu0 %v5347, 32
    %v5463 = vpop.permute.xlu0 %5462
    %5464 = vrot.lane.b32.xlu0 %v5348, 32
    %v5465 = vpop.permute.xlu0 %5464
    %5466 = vrot.lane.b32.xlu0 %v5349, 32
    %v5467 = vpop.permute.xlu0 %5466
    %5468 = vrot.lane.b32.xlu0 %v5350, 32
    %v5469 = vpop.permute.xlu0 %5468
    %5470 = vrot.lane.b32.xlu0 %v5351, 32
    %v5471 = vpop.permute.xlu0 %5470
    %5472 = vrot.lane.b32.xlu0 %v5352, 32
    %v5473 = vpop.permute.xlu0 %5472
    %5474 = vrot.lane.b32.xlu0 %v5353, 32
    %v5475 = vpop.permute.xlu0 %5474
    %5476 = vrot.lane.b32.xlu0 %v5354, 32
    %v5477 = vpop.permute.xlu0 %5476
    %5478 = vrot.lane.b32.xlu0 %v5355, 32
    %v5479 = vpop.permute.xlu0 %5478
    %5480 = vrot.lane.b32.xlu0 %v5356, 32
    %v5481 = vpop.permute.xlu0 %5480
    %5482 = vrot.lane.b32.xlu0 %v5357, 32
    %v5483 = vpop.permute.xlu0 %5482
    %5484 = vrot.lane.b32.xlu0 %v5358, 32
    %v5485 = vpop.permute.xlu0 %5484
    %5486 = vrot.lane.b32.xlu0 %v5359, 32
    %v5487 = vpop.permute.xlu0 %5486
    %v5488 = vadd.f32 %v5232, %v5361
    %v5489 = vadd.f32 %v5233, %v5363
    %v5490 = vadd.f32 %v5234, %v5365
    %v5491 = vadd.f32 %v5235, %v5367
    %v5492 = vadd.f32 %v5236, %v5369
    %v5493 = vadd.f32 %v5237, %v5371
    %v5494 = vadd.f32 %v5238, %v5373
    %v5495 = vadd.f32 %v5239, %v5375
    %v5496 = vadd.f32 %v5240, %v5377
    %v5497 = vadd.f32 %v5241, %v5379
    %v5498 = vadd.f32 %v5242, %v5381
    %v5499 = vadd.f32 %v5243, %v5383
    %v5500 = vadd.f32 %v5244, %v5385
    %v5501 = vadd.f32 %v5245, %v5387
    %v5502 = vadd.f32 %v5246, %v5389
    %v5503 = vadd.f32 %v5247, %v5391
    %v5504 = vadd.f32 %v5248, %v5393
    %v5505 = vadd.f32 %v5249, %v5395
    %v5506 = vadd.f32 %v5250, %v5397
    %v5507 = vadd.f32 %v5251, %v5399
    %v5508 = vadd.f32 %v5252, %v5401
    %v5509 = vadd.f32 %v5253, %v5403
    %v5510 = vadd.f32 %v5254, %v5405
    %v5511 = vadd.f32 %v5255, %v5407
    %v5512 = vadd.f32 %v5256, %v5409
    %v5513 = vadd.f32 %v5257, %v5411
    %v5514 = vadd.f32 %v5258, %v5413
    %v5515 = vadd.f32 %v5259, %v5415
    %v5516 = vadd.f32 %v5260, %v5417
    %v5517 = vadd.f32 %v5261, %v5419
    %v5518 = vadd.f32 %v5262, %v5421
    %v5519 = vadd.f32 %v5263, %v5423
    %v5520 = vadd.f32 %v5264, %v5425
    %v5521 = vadd.f32 %v5265, %v5427
    %v5522 = vadd.f32 %v5266, %v5429
    %v5523 = vadd.f32 %v5267, %v5431
    %v5524 = vadd.f32 %v5268, %v5433
    %v5525 = vadd.f32 %v5269, %v5435
    %v5526 = vadd.f32 %v5270, %v5437
    %v5527 = vadd.f32 %v5271, %v5439
    %v5528 = vadd.f32 %v5272, %v5441
    %v5529 = vadd.f32 %v5273, %v5443
    %v5530 = vadd.f32 %v5274, %v5445
    %v5531 = vadd.f32 %v5275, %v5447
    %v5532 = vadd.f32 %v5276, %v5449
    %v5533 = vadd.f32 %v5277, %v5451
    %v5534 = vadd.f32 %v5278, %v5453
    %v5535 = vadd.f32 %v5279, %v5455
    %v5536 = vadd.f32 %v5280, %v5457
    %v5537 = vadd.f32 %v5281, %v5459
    %v5538 = vadd.f32 %v5282, %v5461
    %v5539 = vadd.f32 %v5283, %v5463
    %v5540 = vadd.f32 %v5284, %v5465
    %v5541 = vadd.f32 %v5285, %v5467
    %v5542 = vadd.f32 %v5286, %v5469
    %v5543 = vadd.f32 %v5287, %v5471
    %v5544 = vadd.f32 %v5288, %v5473
    %v5545 = vadd.f32 %v5289, %v5475
    %v5546 = vadd.f32 %v5290, %v5477
    %v5547 = vadd.f32 %v5291, %v5479
    %v5548 = vadd.f32 %v5292, %v5481
    %v5549 = vadd.f32 %v5293, %v5483
    %v5550 = vadd.f32 %v5294, %v5485
    %v5551 = vadd.f32 %v5295, %v5487
    %v5552 = vrot.slane %v1795, 1
    %v5553 = vrot.slane %v1796, 1
    %v5554 = vrot.slane %v1797, 1
    %v5555 = vrot.slane %v1798, 1
    %v5556 = vrot.slane %v1799, 1
    %v5557 = vrot.slane %v1800, 1
    %v5558 = vrot.slane %v1801, 1
    %v5559 = vrot.slane %v1802, 1
    %v5560 = vrot.slane %v1803, 1
    %v5561 = vrot.slane %v1804, 1
    %v5562 = vrot.slane %v1805, 1
    %v5563 = vrot.slane %v1806, 1
    %v5564 = vrot.slane %v1807, 1
    %v5565 = vrot.slane %v1808, 1
    %v5566 = vrot.slane %v1809, 1
    %v5567 = vrot.slane %v1810, 1
    %v5568 = vrot.slane %v1811, 1
    %v5569 = vrot.slane %v1812, 1
    %v5570 = vrot.slane %v1813, 1
    %v5571 = vrot.slane %v1814, 1
    %v5572 = vrot.slane %v1815, 1
    %v5573 = vrot.slane %v1816, 1
    %v5574 = vrot.slane %v1817, 1
    %v5575 = vrot.slane %v1818, 1
    %v5576 = vrot.slane %v1819, 1
    %v5577 = vrot.slane %v1820, 1
    %v5578 = vrot.slane %v1821, 1
    %v5579 = vrot.slane %v1822, 1
    %v5580 = vrot.slane %v1823, 1
    %v5581 = vrot.slane %v1824, 1
    %v5582 = vrot.slane %v1825, 1
    %v5583 = vrot.slane %v1826, 1
    %v5584 = vrot.slane %v1827, 1
    %v5585 = vrot.slane %v1828, 1
    %v5586 = vrot.slane %v1829, 1
    %v5587 = vrot.slane %v1830, 1
    %v5588 = vrot.slane %v1831, 1
    %v5589 = vrot.slane %v1832, 1
    %v5590 = vrot.slane %v1833, 1
    %v5591 = vrot.slane %v1834, 1
    %v5592 = vrot.slane %v1835, 1
    %v5593 = vrot.slane %v1836, 1
    %v5594 = vrot.slane %v1837, 1
    %v5595 = vrot.slane %v1838, 1
    %v5596 = vrot.slane %v1839, 1
    %v5597 = vrot.slane %v1840, 1
    %v5598 = vrot.slane %v1841, 1
    %v5599 = vrot.slane %v1842, 1
    %v5600 = vrot.slane %v1843, 1
    %v5601 = vrot.slane %v1844, 1
    %v5602 = vrot.slane %v1845, 1
    %v5603 = vrot.slane %v1846, 1
    %v5604 = vrot.slane %v1847, 1
    %v5605 = vrot.slane %v1848, 1
    %v5606 = vrot.slane %v1849, 1
    %v5607 = vrot.slane %v1850, 1
    %v5608 = vrot.slane %v1851, 1
    %v5609 = vrot.slane %v1852, 1
    %v5610 = vrot.slane %v1853, 1
    %v5611 = vrot.slane %v1854, 1
    %v5612 = vrot.slane %v1855, 1
    %v5613 = vrot.slane %v1856, 1
    %v5614 = vrot.slane %v1857, 1
    %v5615 = vrot.slane %v1858, 1
    %vm5616 = vcmp.lt.s32.totalorder %v2671, 7
    %v5617 = vsel %vm5616, %v5614, %v5615
    %v5618 = vsel %vm5616, %v5613, %v5614
    %v5619 = vsel %vm5616, %v5612, %v5613
    %v5620 = vsel %vm5616, %v5611, %v5612
    %v5621 = vsel %vm5616, %v5610, %v5611
    %v5622 = vsel %vm5616, %v5609, %v5610
    %v5623 = vsel %vm5616, %v5608, %v5609
    %v5624 = vsel %vm5616, %v5607, %v5608
    %v5625 = vsel %vm5616, %v5606, %v5607
    %v5626 = vsel %vm5616, %v5605, %v5606
    %v5627 = vsel %vm5616, %v5604, %v5605
    %v5628 = vsel %vm5616, %v5603, %v5604
    %v5629 = vsel %vm5616, %v5602, %v5603
    %v5630 = vsel %vm5616, %v5601, %v5602
    %v5631 = vsel %vm5616, %v5600, %v5601
    %v5632 = vsel %vm5616, %v5599, %v5600
    %v5633 = vsel %vm5616, %v5598, %v5599
    %v5634 = vsel %vm5616, %v5597, %v5598
    %v5635 = vsel %vm5616, %v5596, %v5597
    %v5636 = vsel %vm5616, %v5595, %v5596
    %v5637 = vsel %vm5616, %v5594, %v5595
    %v5638 = vsel %vm5616, %v5593, %v5594
    %v5639 = vsel %vm5616, %v5592, %v5593
    %v5640 = vsel %vm5616, %v5591, %v5592
    %v5641 = vsel %vm5616, %v5590, %v5591
    %v5642 = vsel %vm5616, %v5589, %v5590
    %v5643 = vsel %vm5616, %v5588, %v5589
    %v5644 = vsel %vm5616, %v5587, %v5588
    %v5645 = vsel %vm5616, %v5586, %v5587
    %v5646 = vsel %vm5616, %v5585, %v5586
    %v5647 = vsel %vm5616, %v5584, %v5585
    %v5648 = vsel %vm5616, %v5583, %v5584
    %v5649 = vsel %vm5616, %v5582, %v5583
    %v5650 = vsel %vm5616, %v5581, %v5582
    %v5651 = vsel %vm5616, %v5580, %v5581
    %v5652 = vsel %vm5616, %v5579, %v5580
    %v5653 = vsel %vm5616, %v5578, %v5579
    %v5654 = vsel %vm5616, %v5577, %v5578
    %v5655 = vsel %vm5616, %v5576, %v5577
    %v5656 = vsel %vm5616, %v5575, %v5576
    %v5657 = vsel %vm5616, %v5574, %v5575
    %v5658 = vsel %vm5616, %v5573, %v5574
    %v5659 = vsel %vm5616, %v5572, %v5573
    %v5660 = vsel %vm5616, %v5571, %v5572
    %v5661 = vsel %vm5616, %v5570, %v5571
    %v5662 = vsel %vm5616, %v5569, %v5570
    %v5663 = vsel %vm5616, %v5568, %v5569
    %v5664 = vsel %vm5616, %v5567, %v5568
    %v5665 = vsel %vm5616, %v5566, %v5567
    %v5666 = vsel %vm5616, %v5565, %v5566
    %v5667 = vsel %vm5616, %v5564, %v5565
    %v5668 = vsel %vm5616, %v5563, %v5564
    %v5669 = vsel %vm5616, %v5562, %v5563
    %v5670 = vsel %vm5616, %v5561, %v5562
    %v5671 = vsel %vm5616, %v5560, %v5561
    %v5672 = vsel %vm5616, %v5559, %v5560
    %v5673 = vsel %vm5616, %v5558, %v5559
    %v5674 = vsel %vm5616, %v5557, %v5558
    %v5675 = vsel %vm5616, %v5556, %v5557
    %v5676 = vsel %vm5616, %v5555, %v5556
    %v5677 = vsel %vm5616, %v5554, %v5555
    %v5678 = vsel %vm5616, %v5553, %v5554
    %v5679 = vsel %vm5616, %v5552, %v5553
    %v5680 = vsel %vm5616, %v5615, %v5552
    %v5681 = vmul.f32 %v5617, %v4399
    %v5682 = vmul.f32 %v5680, %v4400
    %v5683 = vmul.f32 %v5679, %v4401
    %v5684 = vmul.f32 %v5678, %v4402
    %v5685 = vmul.f32 %v5677, %v4403
    %v5686 = vmul.f32 %v5676, %v4404
    %v5687 = vmul.f32 %v5675, %v4405
    %v5688 = vmul.f32 %v5674, %v4406
    %v5689 = vmul.f32 %v5673, %v4407
    %v5690 = vmul.f32 %v5672, %v4408
    %v5691 = vmul.f32 %v5671, %v4409
    %v5692 = vmul.f32 %v5670, %v4410
    %v5693 = vmul.f32 %v5669, %v4411
    %v5694 = vmul.f32 %v5668, %v4412
    %v5695 = vmul.f32 %v5667, %v4413
    %v5696 = vmul.f32 %v5666, %v4414
    %v5697 = vmul.f32 %v5665, %v4415
    %v5698 = vmul.f32 %v5664, %v4416
    %v5699 = vmul.f32 %v5663, %v4417
    %v5700 = vmul.f32 %v5662, %v4418
    %v5701 = vmul.f32 %v5661, %v4419
    %v5702 = vmul.f32 %v5660, %v4420
    %v5703 = vmul.f32 %v5659, %v4421
    %v5704 = vmul.f32 %v5658, %v4422
    %v5705 = vmul.f32 %v5657, %v4423
    %v5706 = vmul.f32 %v5656, %v4424
    %v5707 = vmul.f32 %v5655, %v4425
    %v5708 = vmul.f32 %v5654, %v4426
    %v5709 = vmul.f32 %v5653, %v4427
    %v5710 = vmul.f32 %v5652, %v4428
    %v5711 = vmul.f32 %v5651, %v4429
    %v5712 = vmul.f32 %v5650, %v4430
    %v5713 = vmul.f32 %v5649, %v4431
    %v5714 = vmul.f32 %v5648, %v4432
    %v5715 = vmul.f32 %v5647, %v4433
    %v5716 = vmul.f32 %v5646, %v4434
    %v5717 = vmul.f32 %v5645, %v4435
    %v5718 = vmul.f32 %v5644, %v4436
    %v5719 = vmul.f32 %v5643, %v4437
    %v5720 = vmul.f32 %v5642, %v4438
    %v5721 = vmul.f32 %v5641, %v4439
    %v5722 = vmul.f32 %v5640, %v4440
    %v5723 = vmul.f32 %v5639, %v4441
    %v5724 = vmul.f32 %v5638, %v4442
    %v5725 = vmul.f32 %v5637, %v4443
    %v5726 = vmul.f32 %v5636, %v4444
    %v5727 = vmul.f32 %v5635, %v4445
    %v5728 = vmul.f32 %v5634, %v4446
    %v5729 = vmul.f32 %v5633, %v4447
    %v5730 = vmul.f32 %v5632, %v4448
    %v5731 = vmul.f32 %v5631, %v4449
    %v5732 = vmul.f32 %v5630, %v4450
    %v5733 = vmul.f32 %v5629, %v4451
    %v5734 = vmul.f32 %v5628, %v4452
    %v5735 = vmul.f32 %v5627, %v4453
    %v5736 = vmul.f32 %v5626, %v4454
    %v5737 = vmul.f32 %v5625, %v4455
    %v5738 = vmul.f32 %v5624, %v4456
    %v5739 = vmul.f32 %v5623, %v4457
    %v5740 = vmul.f32 %v5622, %v4458
    %v5741 = vmul.f32 %v5621, %v4459
    %v5742 = vmul.f32 %v5620, %v4460
    %v5743 = vmul.f32 %v5619, %v4461
    %v5744 = vmul.f32 %v5618, %v4462
    %v5745 = vmul.f32 %v5681, %v4975
    %v5746 = vmul.f32 %v5682, %v4976
    %v5747 = vmul.f32 %v5683, %v4977
    %v5748 = vmul.f32 %v5684, %v4978
    %v5749 = vmul.f32 %v5685, %v4979
    %v5750 = vmul.f32 %v5686, %v4980
    %v5751 = vmul.f32 %v5687, %v4981
    %v5752 = vmul.f32 %v5688, %v4982
    %v5753 = vmul.f32 %v5689, %v4983
    %v5754 = vmul.f32 %v5690, %v4984
    %v5755 = vmul.f32 %v5691, %v4985
    %v5756 = vmul.f32 %v5692, %v4986
    %v5757 = vmul.f32 %v5693, %v4987
    %v5758 = vmul.f32 %v5694, %v4988
    %v5759 = vmul.f32 %v5695, %v4989
    %v5760 = vmul.f32 %v5696, %v4990
    %v5761 = vmul.f32 %v5697, %v4991
    %v5762 = vmul.f32 %v5698, %v4992
    %v5763 = vmul.f32 %v5699, %v4993
    %v5764 = vmul.f32 %v5700, %v4994
    %v5765 = vmul.f32 %v5701, %v4995
    %v5766 = vmul.f32 %v5702, %v4996
    %v5767 = vmul.f32 %v5703, %v4997
    %v5768 = vmul.f32 %v5704, %v4998
    %v5769 = vmul.f32 %v5705, %v4999
    %v5770 = vmul.f32 %v5706, %v5000
    %v5771 = vmul.f32 %v5707, %v5001
    %v5772 = vmul.f32 %v5708, %v5002
    %v5773 = vmul.f32 %v5709, %v5003
    %v5774 = vmul.f32 %v5710, %v5004
    %v5775 = vmul.f32 %v5711, %v5005
    %v5776 = vmul.f32 %v5712, %v5006
    %v5777 = vmul.f32 %v5713, %v5007
    %v5778 = vmul.f32 %v5714, %v5008
    %v5779 = vmul.f32 %v5715, %v5009
    %v5780 = vmul.f32 %v5716, %v5010
    %v5781 = vmul.f32 %v5717, %v5011
    %v5782 = vmul.f32 %v5718, %v5012
    %v5783 = vmul.f32 %v5719, %v5013
    %v5784 = vmul.f32 %v5720, %v5014
    %v5785 = vmul.f32 %v5721, %v5015
    %v5786 = vmul.f32 %v5722, %v5016
    %v5787 = vmul.f32 %v5723, %v5017
    %v5788 = vmul.f32 %v5724, %v5018
    %v5789 = vmul.f32 %v5725, %v5019
    %v5790 = vmul.f32 %v5726, %v5020
    %v5791 = vmul.f32 %v5727, %v5021
    %v5792 = vmul.f32 %v5728, %v5022
    %v5793 = vmul.f32 %v5729, %v5023
    %v5794 = vmul.f32 %v5730, %v5024
    %v5795 = vmul.f32 %v5731, %v5025
    %v5796 = vmul.f32 %v5732, %v5026
    %v5797 = vmul.f32 %v5733, %v5027
    %v5798 = vmul.f32 %v5734, %v5028
    %v5799 = vmul.f32 %v5735, %v5029
    %v5800 = vmul.f32 %v5736, %v5030
    %v5801 = vmul.f32 %v5737, %v5031
    %v5802 = vmul.f32 %v5738, %v5032
    %v5803 = vmul.f32 %v5739, %v5033
    %v5804 = vmul.f32 %v5740, %v5034
    %v5805 = vmul.f32 %v5741, %v5035
    %v5806 = vmul.f32 %v5742, %v5036
    %v5807 = vmul.f32 %v5743, %v5037
    %v5808 = vmul.f32 %v5744, %v5038
    %5809 = vrot.lane.b32.xlu0 %v5745, 64
    %v5810 = vpop.permute.xlu0 %5809
    %5811 = vrot.lane.b32.xlu0 %v5746, 64
    %v5812 = vpop.permute.xlu0 %5811
    %5813 = vrot.lane.b32.xlu0 %v5747, 64
    %v5814 = vpop.permute.xlu0 %5813
    %5815 = vrot.lane.b32.xlu0 %v5748, 64
    %v5816 = vpop.permute.xlu0 %5815
    %5817 = vrot.lane.b32.xlu0 %v5749, 64
    %v5818 = vpop.permute.xlu0 %5817
    %5819 = vrot.lane.b32.xlu0 %v5750, 64
    %v5820 = vpop.permute.xlu0 %5819
    %5821 = vrot.lane.b32.xlu0 %v5751, 64
    %v5822 = vpop.permute.xlu0 %5821
    %5823 = vrot.lane.b32.xlu0 %v5752, 64
    %v5824 = vpop.permute.xlu0 %5823
    %5825 = vrot.lane.b32.xlu0 %v5753, 64
    %v5826 = vpop.permute.xlu0 %5825
    %5827 = vrot.lane.b32.xlu0 %v5754, 64
    %v5828 = vpop.permute.xlu0 %5827
    %5829 = vrot.lane.b32.xlu0 %v5755, 64
    %v5830 = vpop.permute.xlu0 %5829
    %5831 = vrot.lane.b32.xlu0 %v5756, 64
    %v5832 = vpop.permute.xlu0 %5831
    %5833 = vrot.lane.b32.xlu0 %v5757, 64
    %v5834 = vpop.permute.xlu0 %5833
    %5835 = vrot.lane.b32.xlu0 %v5758, 64
    %v5836 = vpop.permute.xlu0 %5835
    %5837 = vrot.lane.b32.xlu0 %v5759, 64
    %v5838 = vpop.permute.xlu0 %5837
    %5839 = vrot.lane.b32.xlu0 %v5760, 64
    %v5840 = vpop.permute.xlu0 %5839
    %5841 = vrot.lane.b32.xlu0 %v5761, 64
    %v5842 = vpop.permute.xlu0 %5841
    %5843 = vrot.lane.b32.xlu0 %v5762, 64
    %v5844 = vpop.permute.xlu0 %5843
    %5845 = vrot.lane.b32.xlu0 %v5763, 64
    %v5846 = vpop.permute.xlu0 %5845
    %5847 = vrot.lane.b32.xlu0 %v5764, 64
    %v5848 = vpop.permute.xlu0 %5847
    %5849 = vrot.lane.b32.xlu0 %v5765, 64
    %v5850 = vpop.permute.xlu0 %5849
    %5851 = vrot.lane.b32.xlu0 %v5766, 64
    %v5852 = vpop.permute.xlu0 %5851
    %5853 = vrot.lane.b32.xlu0 %v5767, 64
    %v5854 = vpop.permute.xlu0 %5853
    %5855 = vrot.lane.b32.xlu0 %v5768, 64
    %v5856 = vpop.permute.xlu0 %5855
    %5857 = vrot.lane.b32.xlu0 %v5769, 64
    %v5858 = vpop.permute.xlu0 %5857
    %5859 = vrot.lane.b32.xlu0 %v5770, 64
    %v5860 = vpop.permute.xlu0 %5859
    %5861 = vrot.lane.b32.xlu0 %v5771, 64
    %v5862 = vpop.permute.xlu0 %5861
    %5863 = vrot.lane.b32.xlu0 %v5772, 64
    %v5864 = vpop.permute.xlu0 %5863
    %5865 = vrot.lane.b32.xlu0 %v5773, 64
    %v5866 = vpop.permute.xlu0 %5865
    %5867 = vrot.lane.b32.xlu0 %v5774, 64
    %v5868 = vpop.permute.xlu0 %5867
    %5869 = vrot.lane.b32.xlu0 %v5775, 64
    %v5870 = vpop.permute.xlu0 %5869
    %5871 = vrot.lane.b32.xlu0 %v5776, 64
    %v5872 = vpop.permute.xlu0 %5871
    %5873 = vrot.lane.b32.xlu0 %v5777, 64
    %v5874 = vpop.permute.xlu0 %5873
    %5875 = vrot.lane.b32.xlu0 %v5778, 64
    %v5876 = vpop.permute.xlu0 %5875
    %5877 = vrot.lane.b32.xlu0 %v5779, 64
    %v5878 = vpop.permute.xlu0 %5877
    %5879 = vrot.lane.b32.xlu0 %v5780, 64
    %v5880 = vpop.permute.xlu0 %5879
    %5881 = vrot.lane.b32.xlu0 %v5781, 64
    %v5882 = vpop.permute.xlu0 %5881
    %5883 = vrot.lane.b32.xlu0 %v5782, 64
    %v5884 = vpop.permute.xlu0 %5883
    %5885 = vrot.lane.b32.xlu0 %v5783, 64
    %v5886 = vpop.permute.xlu0 %5885
    %5887 = vrot.lane.b32.xlu0 %v5784, 64
    %v5888 = vpop.permute.xlu0 %5887
    %5889 = vrot.lane.b32.xlu0 %v5785, 64
    %v5890 = vpop.permute.xlu0 %5889
    %5891 = vrot.lane.b32.xlu0 %v5786, 64
    %v5892 = vpop.permute.xlu0 %5891
    %5893 = vrot.lane.b32.xlu0 %v5787, 64
    %v5894 = vpop.permute.xlu0 %5893
    %5895 = vrot.lane.b32.xlu0 %v5788, 64
    %v5896 = vpop.permute.xlu0 %5895
    %5897 = vrot.lane.b32.xlu0 %v5789, 64
    %v5898 = vpop.permute.xlu0 %5897
    %5899 = vrot.lane.b32.xlu0 %v5790, 64
    %v5900 = vpop.permute.xlu0 %5899
    %5901 = vrot.lane.b32.xlu0 %v5791, 64
    %v5902 = vpop.permute.xlu0 %5901
    %5903 = vrot.lane.b32.xlu0 %v5792, 64
    %v5904 = vpop.permute.xlu0 %5903
    %5905 = vrot.lane.b32.xlu0 %v5793, 64
    %v5906 = vpop.permute.xlu0 %5905
    %5907 = vrot.lane.b32.xlu0 %v5794, 64
    %v5908 = vpop.permute.xlu0 %5907
    %5909 = vrot.lane.b32.xlu0 %v5795, 64
    %v5910 = vpop.permute.xlu0 %5909
    %5911 = vrot.lane.b32.xlu0 %v5796, 64
    %v5912 = vpop.permute.xlu0 %5911
    %5913 = vrot.lane.b32.xlu0 %v5797, 64
    %v5914 = vpop.permute.xlu0 %5913
    %5915 = vrot.lane.b32.xlu0 %v5798, 64
    %v5916 = vpop.permute.xlu0 %5915
    %5917 = vrot.lane.b32.xlu0 %v5799, 64
    %v5918 = vpop.permute.xlu0 %5917
    %5919 = vrot.lane.b32.xlu0 %v5800, 64
    %v5920 = vpop.permute.xlu0 %5919
    %5921 = vrot.lane.b32.xlu0 %v5801, 64
    %v5922 = vpop.permute.xlu0 %5921
    %5923 = vrot.lane.b32.xlu0 %v5802, 64
    %v5924 = vpop.permute.xlu0 %5923
    %5925 = vrot.lane.b32.xlu0 %v5803, 64
    %v5926 = vpop.permute.xlu0 %5925
    %5927 = vrot.lane.b32.xlu0 %v5804, 64
    %v5928 = vpop.permute.xlu0 %5927
    %5929 = vrot.lane.b32.xlu0 %v5805, 64
    %v5930 = vpop.permute.xlu0 %5929
    %5931 = vrot.lane.b32.xlu0 %v5806, 64
    %v5932 = vpop.permute.xlu0 %5931
    %5933 = vrot.lane.b32.xlu0 %v5807, 64
    %v5934 = vpop.permute.xlu0 %5933
    %5935 = vrot.lane.b32.xlu0 %v5808, 64
    %v5936 = vpop.permute.xlu0 %5935
    %v5937 = vadd.f32 %v5488, %v5810
    %v5938 = vadd.f32 %v5489, %v5812
    %v5939 = vadd.f32 %v5490, %v5814
    %v5940 = vadd.f32 %v5491, %v5816
    %v5941 = vadd.f32 %v5492, %v5818
    %v5942 = vadd.f32 %v5493, %v5820
    %v5943 = vadd.f32 %v5494, %v5822
    %v5944 = vadd.f32 %v5495, %v5824
    %v5945 = vadd.f32 %v5496, %v5826
    %v5946 = vadd.f32 %v5497, %v5828
    %v5947 = vadd.f32 %v5498, %v5830
    %v5948 = vadd.f32 %v5499, %v5832
    %v5949 = vadd.f32 %v5500, %v5834
    %v5950 = vadd.f32 %v5501, %v5836
    %v5951 = vadd.f32 %v5502, %v5838
    %v5952 = vadd.f32 %v5503, %v5840
    %v5953 = vadd.f32 %v5504, %v5842
    %v5954 = vadd.f32 %v5505, %v5844
    %v5955 = vadd.f32 %v5506, %v5846
    %v5956 = vadd.f32 %v5507, %v5848
    %v5957 = vadd.f32 %v5508, %v5850
    %v5958 = vadd.f32 %v5509, %v5852
    %v5959 = vadd.f32 %v5510, %v5854
    %v5960 = vadd.f32 %v5511, %v5856
    %v5961 = vadd.f32 %v5512, %v5858
    %v5962 = vadd.f32 %v5513, %v5860
    %v5963 = vadd.f32 %v5514, %v5862
    %v5964 = vadd.f32 %v5515, %v5864
    %v5965 = vadd.f32 %v5516, %v5866
    %v5966 = vadd.f32 %v5517, %v5868
    %v5967 = vadd.f32 %v5518, %v5870
    %v5968 = vadd.f32 %v5519, %v5872
    %v5969 = vadd.f32 %v5520, %v5874
    %v5970 = vadd.f32 %v5521, %v5876
    %v5971 = vadd.f32 %v5522, %v5878
    %v5972 = vadd.f32 %v5523, %v5880
    %v5973 = vadd.f32 %v5524, %v5882
    %v5974 = vadd.f32 %v5525, %v5884
    %v5975 = vadd.f32 %v5526, %v5886
    %v5976 = vadd.f32 %v5527, %v5888
    %v5977 = vadd.f32 %v5528, %v5890
    %v5978 = vadd.f32 %v5529, %v5892
    %v5979 = vadd.f32 %v5530, %v5894
    %v5980 = vadd.f32 %v5531, %v5896
    %v5981 = vadd.f32 %v5532, %v5898
    %v5982 = vadd.f32 %v5533, %v5900
    %v5983 = vadd.f32 %v5534, %v5902
    %v5984 = vadd.f32 %v5535, %v5904
    %v5985 = vadd.f32 %v5536, %v5906
    %v5986 = vadd.f32 %v5537, %v5908
    %v5987 = vadd.f32 %v5538, %v5910
    %v5988 = vadd.f32 %v5539, %v5912
    %v5989 = vadd.f32 %v5540, %v5914
    %v5990 = vadd.f32 %v5541, %v5916
    %v5991 = vadd.f32 %v5542, %v5918
    %v5992 = vadd.f32 %v5543, %v5920
    %v5993 = vadd.f32 %v5544, %v5922
    %v5994 = vadd.f32 %v5545, %v5924
    %v5995 = vadd.f32 %v5546, %v5926
    %v5996 = vadd.f32 %v5547, %v5928
    %v5997 = vadd.f32 %v5548, %v5930
    %v5998 = vadd.f32 %v5549, %v5932
    %v5999 = vadd.f32 %v5550, %v5934
    %v6000 = vadd.f32 %v5551, %v5936
    %v6001 = vmul.f32 %v5167, %v4783
    %v6002 = vmul.f32 %v5166, %v4784
    %v6003 = vmul.f32 %v5165, %v4785
    %v6004 = vmul.f32 %v5164, %v4786
    %v6005 = vmul.f32 %v5163, %v4787
    %v6006 = vmul.f32 %v5162, %v4788
    %v6007 = vmul.f32 %v5161, %v4789
    %v6008 = vmul.f32 %v5160, %v4790
    %v6009 = vmul.f32 %v5159, %v4791
    %v6010 = vmul.f32 %v5158, %v4792
    %v6011 = vmul.f32 %v5157, %v4793
    %v6012 = vmul.f32 %v5156, %v4794
    %v6013 = vmul.f32 %v5155, %v4795
    %v6014 = vmul.f32 %v5154, %v4796
    %v6015 = vmul.f32 %v5153, %v4797
    %v6016 = vmul.f32 %v5152, %v4798
    %v6017 = vmul.f32 %v5151, %v4799
    %v6018 = vmul.f32 %v5150, %v4800
    %v6019 = vmul.f32 %v5149, %v4801
    %v6020 = vmul.f32 %v5148, %v4802
    %v6021 = vmul.f32 %v5147, %v4803
    %v6022 = vmul.f32 %v5146, %v4804
    %v6023 = vmul.f32 %v5145, %v4805
    %v6024 = vmul.f32 %v5144, %v4806
    %v6025 = vmul.f32 %v5143, %v4807
    %v6026 = vmul.f32 %v5142, %v4808
    %v6027 = vmul.f32 %v5141, %v4809
    %v6028 = vmul.f32 %v5140, %v4810
    %v6029 = vmul.f32 %v5139, %v4811
    %v6030 = vmul.f32 %v5138, %v4812
    %v6031 = vmul.f32 %v5137, %v4813
    %v6032 = vmul.f32 %v5136, %v4814
    %v6033 = vmul.f32 %v5135, %v4815
    %v6034 = vmul.f32 %v5134, %v4816
    %v6035 = vmul.f32 %v5133, %v4817
    %v6036 = vmul.f32 %v5132, %v4818
    %v6037 = vmul.f32 %v5131, %v4819
    %v6038 = vmul.f32 %v5130, %v4820
    %v6039 = vmul.f32 %v5129, %v4821
    %v6040 = vmul.f32 %v5128, %v4822
    %v6041 = vmul.f32 %v5127, %v4823
    %v6042 = vmul.f32 %v5126, %v4824
    %v6043 = vmul.f32 %v5125, %v4825
    %v6044 = vmul.f32 %v5124, %v4826
    %v6045 = vmul.f32 %v5123, %v4827
    %v6046 = vmul.f32 %v5122, %v4828
    %v6047 = vmul.f32 %v5121, %v4829
    %v6048 = vmul.f32 %v5120, %v4830
    %v6049 = vmul.f32 %v5119, %v4831
    %v6050 = vmul.f32 %v5118, %v4832
    %v6051 = vmul.f32 %v5117, %v4833
    %v6052 = vmul.f32 %v5116, %v4834
    %v6053 = vmul.f32 %v5115, %v4835
    %v6054 = vmul.f32 %v5114, %v4836
    %v6055 = vmul.f32 %v5113, %v4837
    %v6056 = vmul.f32 %v5112, %v4838
    %v6057 = vmul.f32 %v5111, %v4839
    %v6058 = vmul.f32 %v5110, %v4840
    %v6059 = vmul.f32 %v5109, %v4841
    %v6060 = vmul.f32 %v5108, %v4842
    %v6061 = vmul.f32 %v5107, %v4843
    %v6062 = vmul.f32 %v5106, %v4844
    %v6063 = vmul.f32 %v5105, %v4845
    %v6064 = vmul.f32 %v5104, %v4846
    %6065 = vrot.lane.b32.xlu0 %v6001, 96
    %v6066 = vpop.permute.xlu0 %6065
    %6067 = vrot.lane.b32.xlu0 %v6002, 96
    %v6068 = vpop.permute.xlu0 %6067
    %6069 = vrot.lane.b32.xlu0 %v6003, 96
    %v6070 = vpop.permute.xlu0 %6069
    %6071 = vrot.lane.b32.xlu0 %v6004, 96
    %v6072 = vpop.permute.xlu0 %6071
    %6073 = vrot.lane.b32.xlu0 %v6005, 96
    %v6074 = vpop.permute.xlu0 %6073
    %6075 = vrot.lane.b32.xlu0 %v6006, 96
    %v6076 = vpop.permute.xlu0 %6075
    %6077 = vrot.lane.b32.xlu0 %v6007, 96
    %v6078 = vpop.permute.xlu0 %6077
    %6079 = vrot.lane.b32.xlu0 %v6008, 96
    %v6080 = vpop.permute.xlu0 %6079
    %6081 = vrot.lane.b32.xlu0 %v6009, 96
    %v6082 = vpop.permute.xlu0 %6081
    %6083 = vrot.lane.b32.xlu0 %v6010, 96
    %v6084 = vpop.permute.xlu0 %6083
    %6085 = vrot.lane.b32.xlu0 %v6011, 96
    %v6086 = vpop.permute.xlu0 %6085
    %6087 = vrot.lane.b32.xlu0 %v6012, 96
    %v6088 = vpop.permute.xlu0 %6087
    %6089 = vrot.lane.b32.xlu0 %v6013, 96
    %v6090 = vpop.permute.xlu0 %6089
    %6091 = vrot.lane.b32.xlu0 %v6014, 96
    %v6092 = vpop.permute.xlu0 %6091
    %6093 = vrot.lane.b32.xlu0 %v6015, 96
    %v6094 = vpop.permute.xlu0 %6093
    %6095 = vrot.lane.b32.xlu0 %v6016, 96
    %v6096 = vpop.permute.xlu0 %6095
    %6097 = vrot.lane.b32.xlu0 %v6017, 96
    %v6098 = vpop.permute.xlu0 %6097
    %6099 = vrot.lane.b32.xlu0 %v6018, 96
    %v6100 = vpop.permute.xlu0 %6099
    %6101 = vrot.lane.b32.xlu0 %v6019, 96
    %v6102 = vpop.permute.xlu0 %6101
    %6103 = vrot.lane.b32.xlu0 %v6020, 96
    %v6104 = vpop.permute.xlu0 %6103
    %6105 = vrot.lane.b32.xlu0 %v6021, 96
    %v6106 = vpop.permute.xlu0 %6105
    %6107 = vrot.lane.b32.xlu0 %v6022, 96
    %v6108 = vpop.permute.xlu0 %6107
    %6109 = vrot.lane.b32.xlu0 %v6023, 96
    %v6110 = vpop.permute.xlu0 %6109
    %6111 = vrot.lane.b32.xlu0 %v6024, 96
    %v6112 = vpop.permute.xlu0 %6111
    %6113 = vrot.lane.b32.xlu0 %v6025, 96
    %v6114 = vpop.permute.xlu0 %6113
    %6115 = vrot.lane.b32.xlu0 %v6026, 96
    %v6116 = vpop.permute.xlu0 %6115
    %6117 = vrot.lane.b32.xlu0 %v6027, 96
    %v6118 = vpop.permute.xlu0 %6117
    %6119 = vrot.lane.b32.xlu0 %v6028, 96
    %v6120 = vpop.permute.xlu0 %6119
    %6121 = vrot.lane.b32.xlu0 %v6029, 96
    %v6122 = vpop.permute.xlu0 %6121
    %6123 = vrot.lane.b32.xlu0 %v6030, 96
    %v6124 = vpop.permute.xlu0 %6123
    %6125 = vrot.lane.b32.xlu0 %v6031, 96
    %v6126 = vpop.permute.xlu0 %6125
    %6127 = vrot.lane.b32.xlu0 %v6032, 96
    %v6128 = vpop.permute.xlu0 %6127
    %6129 = vrot.lane.b32.xlu0 %v6033, 96
    %v6130 = vpop.permute.xlu0 %6129
    %6131 = vrot.lane.b32.xlu0 %v6034, 96
    %v6132 = vpop.permute.xlu0 %6131
    %6133 = vrot.lane.b32.xlu0 %v6035, 96
    %v6134 = vpop.permute.xlu0 %6133
    %6135 = vrot.lane.b32.xlu0 %v6036, 96
    %v6136 = vpop.permute.xlu0 %6135
    %6137 = vrot.lane.b32.xlu0 %v6037, 96
    %v6138 = vpop.permute.xlu0 %6137
    %6139 = vrot.lane.b32.xlu0 %v6038, 96
    %v6140 = vpop.permute.xlu0 %6139
    %6141 = vrot.lane.b32.xlu0 %v6039, 96
    %v6142 = vpop.permute.xlu0 %6141
    %6143 = vrot.lane.b32.xlu0 %v6040, 96
    %v6144 = vpop.permute.xlu0 %6143
    %6145 = vrot.lane.b32.xlu0 %v6041, 96
    %v6146 = vpop.permute.xlu0 %6145
    %6147 = vrot.lane.b32.xlu0 %v6042, 96
    %v6148 = vpop.permute.xlu0 %6147
    %6149 = vrot.lane.b32.xlu0 %v6043, 96
    %v6150 = vpop.permute.xlu0 %6149
    %6151 = vrot.lane.b32.xlu0 %v6044, 96
    %v6152 = vpop.permute.xlu0 %6151
    %6153 = vrot.lane.b32.xlu0 %v6045, 96
    %v6154 = vpop.permute.xlu0 %6153
    %6155 = vrot.lane.b32.xlu0 %v6046, 96
    %v6156 = vpop.permute.xlu0 %6155
    %6157 = vrot.lane.b32.xlu0 %v6047, 96
    %v6158 = vpop.permute.xlu0 %6157
    %6159 = vrot.lane.b32.xlu0 %v6048, 96
    %v6160 = vpop.permute.xlu0 %6159
    %6161 = vrot.lane.b32.xlu0 %v6049, 96
    %v6162 = vpop.permute.xlu0 %6161
    %6163 = vrot.lane.b32.xlu0 %v6050, 96
    %v6164 = vpop.permute.xlu0 %6163
    %6165 = vrot.lane.b32.xlu0 %v6051, 96
    %v6166 = vpop.permute.xlu0 %6165
    %6167 = vrot.lane.b32.xlu0 %v6052, 96
    %v6168 = vpop.permute.xlu0 %6167
    %6169 = vrot.lane.b32.xlu0 %v6053, 96
    %v6170 = vpop.permute.xlu0 %6169
    %6171 = vrot.lane.b32.xlu0 %v6054, 96
    %v6172 = vpop.permute.xlu0 %6171
    %6173 = vrot.lane.b32.xlu0 %v6055, 96
    %v6174 = vpop.permute.xlu0 %6173
    %6175 = vrot.lane.b32.xlu0 %v6056, 96
    %v6176 = vpop.permute.xlu0 %6175
    %6177 = vrot.lane.b32.xlu0 %v6057, 96
    %v6178 = vpop.permute.xlu0 %6177
    %6179 = vrot.lane.b32.xlu0 %v6058, 96
    %v6180 = vpop.permute.xlu0 %6179
    %6181 = vrot.lane.b32.xlu0 %v6059, 96
    %v6182 = vpop.permute.xlu0 %6181
    %6183 = vrot.lane.b32.xlu0 %v6060, 96
    %v6184 = vpop.permute.xlu0 %6183
    %6185 = vrot.lane.b32.xlu0 %v6061, 96
    %v6186 = vpop.permute.xlu0 %6185
    %6187 = vrot.lane.b32.xlu0 %v6062, 96
    %v6188 = vpop.permute.xlu0 %6187
    %6189 = vrot.lane.b32.xlu0 %v6063, 96
    %v6190 = vpop.permute.xlu0 %6189
    %6191 = vrot.lane.b32.xlu0 %v6064, 96
    %v6192 = vpop.permute.xlu0 %6191
    %v6193 = vadd.f32 %v5937, %v6066
    %v6194 = vadd.f32 %v5938, %v6068
    %v6195 = vadd.f32 %v5939, %v6070
    %v6196 = vadd.f32 %v5940, %v6072
    %v6197 = vadd.f32 %v5941, %v6074
    %v6198 = vadd.f32 %v5942, %v6076
    %v6199 = vadd.f32 %v5943, %v6078
    %v6200 = vadd.f32 %v5944, %v6080
    %v6201 = vadd.f32 %v5945, %v6082
    %v6202 = vadd.f32 %v5946, %v6084
    %v6203 = vadd.f32 %v5947, %v6086
    %v6204 = vadd.f32 %v5948, %v6088
    %v6205 = vadd.f32 %v5949, %v6090
    %v6206 = vadd.f32 %v5950, %v6092
    %v6207 = vadd.f32 %v5951, %v6094
    %v6208 = vadd.f32 %v5952, %v6096
    %v6209 = vadd.f32 %v5953, %v6098
    %v6210 = vadd.f32 %v5954, %v6100
    %v6211 = vadd.f32 %v5955, %v6102
    %v6212 = vadd.f32 %v5956, %v6104
    %v6213 = vadd.f32 %v5957, %v6106
    %v6214 = vadd.f32 %v5958, %v6108
    %v6215 = vadd.f32 %v5959, %v6110
    %v6216 = vadd.f32 %v5960, %v6112
    %v6217 = vadd.f32 %v5961, %v6114
    %v6218 = vadd.f32 %v5962, %v6116
    %v6219 = vadd.f32 %v5963, %v6118
    %v6220 = vadd.f32 %v5964, %v6120
    %v6221 = vadd.f32 %v5965, %v6122
    %v6222 = vadd.f32 %v5966, %v6124
    %v6223 = vadd.f32 %v5967, %v6126
    %v6224 = vadd.f32 %v5968, %v6128
    %v6225 = vadd.f32 %v5969, %v6130
    %v6226 = vadd.f32 %v5970, %v6132
    %v6227 = vadd.f32 %v5971, %v6134
    %v6228 = vadd.f32 %v5972, %v6136
    %v6229 = vadd.f32 %v5973, %v6138
    %v6230 = vadd.f32 %v5974, %v6140
    %v6231 = vadd.f32 %v5975, %v6142
    %v6232 = vadd.f32 %v5976, %v6144
    %v6233 = vadd.f32 %v5977, %v6146
    %v6234 = vadd.f32 %v5978, %v6148
    %v6235 = vadd.f32 %v5979, %v6150
    %v6236 = vadd.f32 %v5980, %v6152
    %v6237 = vadd.f32 %v5981, %v6154
    %v6238 = vadd.f32 %v5982, %v6156
    %v6239 = vadd.f32 %v5983, %v6158
    %v6240 = vadd.f32 %v5984, %v6160
    %v6241 = vadd.f32 %v5985, %v6162
    %v6242 = vadd.f32 %v5986, %v6164
    %v6243 = vadd.f32 %v5987, %v6166
    %v6244 = vadd.f32 %v5988, %v6168
    %v6245 = vadd.f32 %v5989, %v6170
    %v6246 = vadd.f32 %v5990, %v6172
    %v6247 = vadd.f32 %v5991, %v6174
    %v6248 = vadd.f32 %v5992, %v6176
    %v6249 = vadd.f32 %v5993, %v6178
    %v6250 = vadd.f32 %v5994, %v6180
    %v6251 = vadd.f32 %v5995, %v6182
    %v6252 = vadd.f32 %v5996, %v6184
    %v6253 = vadd.f32 %v5997, %v6186
    %v6254 = vadd.f32 %v5998, %v6188
    %v6255 = vadd.f32 %v5999, %v6190
    %v6256 = vadd.f32 %v6000, %v6192
    %v6257 = vmul.f32 %v5679, %v4975
    %v6258 = vmul.f32 %v5678, %v4976
    %v6259 = vmul.f32 %v5677, %v4977
    %v6260 = vmul.f32 %v5676, %v4978
    %v6261 = vmul.f32 %v5675, %v4979
    %v6262 = vmul.f32 %v5674, %v4980
    %v6263 = vmul.f32 %v5673, %v4981
    %v6264 = vmul.f32 %v5672, %v4982
    %v6265 = vmul.f32 %v5671, %v4983
    %v6266 = vmul.f32 %v5670, %v4984
    %v6267 = vmul.f32 %v5669, %v4985
    %v6268 = vmul.f32 %v5668, %v4986
    %v6269 = vmul.f32 %v5667, %v4987
    %v6270 = vmul.f32 %v5666, %v4988
    %v6271 = vmul.f32 %v5665, %v4989
    %v6272 = vmul.f32 %v5664, %v4990
    %v6273 = vmul.f32 %v5663, %v4991
    %v6274 = vmul.f32 %v5662, %v4992
    %v6275 = vmul.f32 %v5661, %v4993
    %v6276 = vmul.f32 %v5660, %v4994
    %v6277 = vmul.f32 %v5659, %v4995
    %v6278 = vmul.f32 %v5658, %v4996
    %v6279 = vmul.f32 %v5657, %v4997
    %v6280 = vmul.f32 %v5656, %v4998
    %v6281 = vmul.f32 %v5655, %v4999
    %v6282 = vmul.f32 %v5654, %v5000
    %v6283 = vmul.f32 %v5653, %v5001
    %v6284 = vmul.f32 %v5652, %v5002
    %v6285 = vmul.f32 %v5651, %v5003
    %v6286 = vmul.f32 %v5650, %v5004
    %v6287 = vmul.f32 %v5649, %v5005
    %v6288 = vmul.f32 %v5648, %v5006
    %v6289 = vmul.f32 %v5647, %v5007
    %v6290 = vmul.f32 %v5646, %v5008
    %v6291 = vmul.f32 %v5645, %v5009
    %v6292 = vmul.f32 %v5644, %v5010
    %v6293 = vmul.f32 %v5643, %v5011
    %v6294 = vmul.f32 %v5642, %v5012
    %v6295 = vmul.f32 %v5641, %v5013
    %v6296 = vmul.f32 %v5640, %v5014
    %v6297 = vmul.f32 %v5639, %v5015
    %v6298 = vmul.f32 %v5638, %v5016
    %v6299 = vmul.f32 %v5637, %v5017
    %v6300 = vmul.f32 %v5636, %v5018
    %v6301 = vmul.f32 %v5635, %v5019
    %v6302 = vmul.f32 %v5634, %v5020
    %v6303 = vmul.f32 %v5633, %v5021
    %v6304 = vmul.f32 %v5632, %v5022
    %v6305 = vmul.f32 %v5631, %v5023
    %v6306 = vmul.f32 %v5630, %v5024
    %v6307 = vmul.f32 %v5629, %v5025
    %v6308 = vmul.f32 %v5628, %v5026
    %v6309 = vmul.f32 %v5627, %v5027
    %v6310 = vmul.f32 %v5626, %v5028
    %v6311 = vmul.f32 %v5625, %v5029
    %v6312 = vmul.f32 %v5624, %v5030
    %v6313 = vmul.f32 %v5623, %v5031
    %v6314 = vmul.f32 %v5622, %v5032
    %v6315 = vmul.f32 %v5621, %v5033
    %v6316 = vmul.f32 %v5620, %v5034
    %v6317 = vmul.f32 %v5619, %v5035
    %v6318 = vmul.f32 %v5618, %v5036
    %v6319 = vmul.f32 %v5617, %v5037
    %v6320 = vmul.f32 %v5680, %v5038
    %6321 = vrot.lane.b32.xlu0 %v6257, 32
    %v6322 = vpop.permute.xlu0 %6321
    %6323 = vrot.lane.b32.xlu0 %v6258, 32
    %v6324 = vpop.permute.xlu0 %6323
    %6325 = vrot.lane.b32.xlu0 %v6259, 32
    %v6326 = vpop.permute.xlu0 %6325
    %6327 = vrot.lane.b32.xlu0 %v6260, 32
    %v6328 = vpop.permute.xlu0 %6327
    %6329 = vrot.lane.b32.xlu0 %v6261, 32
    %v6330 = vpop.permute.xlu0 %6329
    %6331 = vrot.lane.b32.xlu0 %v6262, 32
    %v6332 = vpop.permute.xlu0 %6331
    %6333 = vrot.lane.b32.xlu0 %v6263, 32
    %v6334 = vpop.permute.xlu0 %6333
    %6335 = vrot.lane.b32.xlu0 %v6264, 32
    %v6336 = vpop.permute.xlu0 %6335
    %6337 = vrot.lane.b32.xlu0 %v6265, 32
    %v6338 = vpop.permute.xlu0 %6337
    %6339 = vrot.lane.b32.xlu0 %v6266, 32
    %v6340 = vpop.permute.xlu0 %6339
    %6341 = vrot.lane.b32.xlu0 %v6267, 32
    %v6342 = vpop.permute.xlu0 %6341
    %6343 = vrot.lane.b32.xlu0 %v6268, 32
    %v6344 = vpop.permute.xlu0 %6343
    %6345 = vrot.lane.b32.xlu0 %v6269, 32
    %v6346 = vpop.permute.xlu0 %6345
    %6347 = vrot.lane.b32.xlu0 %v6270, 32
    %v6348 = vpop.permute.xlu0 %6347
    %6349 = vrot.lane.b32.xlu0 %v6271, 32
    %v6350 = vpop.permute.xlu0 %6349
    %6351 = vrot.lane.b32.xlu0 %v6272, 32
    %v6352 = vpop.permute.xlu0 %6351
    %6353 = vrot.lane.b32.xlu0 %v6273, 32
    %v6354 = vpop.permute.xlu0 %6353
    %6355 = vrot.lane.b32.xlu0 %v6274, 32
    %v6356 = vpop.permute.xlu0 %6355
    %6357 = vrot.lane.b32.xlu0 %v6275, 32
    %v6358 = vpop.permute.xlu0 %6357
    %6359 = vrot.lane.b32.xlu0 %v6276, 32
    %v6360 = vpop.permute.xlu0 %6359
    %6361 = vrot.lane.b32.xlu0 %v6277, 32
    %v6362 = vpop.permute.xlu0 %6361
    %6363 = vrot.lane.b32.xlu0 %v6278, 32
    %v6364 = vpop.permute.xlu0 %6363
    %6365 = vrot.lane.b32.xlu0 %v6279, 32
    %v6366 = vpop.permute.xlu0 %6365
    %6367 = vrot.lane.b32.xlu0 %v6280, 32
    %v6368 = vpop.permute.xlu0 %6367
    %6369 = vrot.lane.b32.xlu0 %v6281, 32
    %v6370 = vpop.permute.xlu0 %6369
    %6371 = vrot.lane.b32.xlu0 %v6282, 32
    %v6372 = vpop.permute.xlu0 %6371
    %6373 = vrot.lane.b32.xlu0 %v6283, 32
    %v6374 = vpop.permute.xlu0 %6373
    %6375 = vrot.lane.b32.xlu0 %v6284, 32
    %v6376 = vpop.permute.xlu0 %6375
    %6377 = vrot.lane.b32.xlu0 %v6285, 32
    %v6378 = vpop.permute.xlu0 %6377
    %6379 = vrot.lane.b32.xlu0 %v6286, 32
    %v6380 = vpop.permute.xlu0 %6379
    %6381 = vrot.lane.b32.xlu0 %v6287, 32
    %v6382 = vpop.permute.xlu0 %6381
    %6383 = vrot.lane.b32.xlu0 %v6288, 32
    %v6384 = vpop.permute.xlu0 %6383
    %6385 = vrot.lane.b32.xlu0 %v6289, 32
    %v6386 = vpop.permute.xlu0 %6385
    %6387 = vrot.lane.b32.xlu0 %v6290, 32
    %v6388 = vpop.permute.xlu0 %6387
    %6389 = vrot.lane.b32.xlu0 %v6291, 32
    %v6390 = vpop.permute.xlu0 %6389
    %6391 = vrot.lane.b32.xlu0 %v6292, 32
    %v6392 = vpop.permute.xlu0 %6391
    %6393 = vrot.lane.b32.xlu0 %v6293, 32
    %v6394 = vpop.permute.xlu0 %6393
    %6395 = vrot.lane.b32.xlu0 %v6294, 32
    %v6396 = vpop.permute.xlu0 %6395
    %6397 = vrot.lane.b32.xlu0 %v6295, 32
    %v6398 = vpop.permute.xlu0 %6397
    %6399 = vrot.lane.b32.xlu0 %v6296, 32
    %v6400 = vpop.permute.xlu0 %6399
    %6401 = vrot.lane.b32.xlu0 %v6297, 32
    %v6402 = vpop.permute.xlu0 %6401
    %6403 = vrot.lane.b32.xlu0 %v6298, 32
    %v6404 = vpop.permute.xlu0 %6403
    %6405 = vrot.lane.b32.xlu0 %v6299, 32
    %v6406 = vpop.permute.xlu0 %6405
    %6407 = vrot.lane.b32.xlu0 %v6300, 32
    %v6408 = vpop.permute.xlu0 %6407
    %6409 = vrot.lane.b32.xlu0 %v6301, 32
    %v6410 = vpop.permute.xlu0 %6409
    %6411 = vrot.lane.b32.xlu0 %v6302, 32
    %v6412 = vpop.permute.xlu0 %6411
    %6413 = vrot.lane.b32.xlu0 %v6303, 32
    %v6414 = vpop.permute.xlu0 %6413
    %6415 = vrot.lane.b32.xlu0 %v6304, 32
    %v6416 = vpop.permute.xlu0 %6415
    %6417 = vrot.lane.b32.xlu0 %v6305, 32
    %v6418 = vpop.permute.xlu0 %6417
    %6419 = vrot.lane.b32.xlu0 %v6306, 32
    %v6420 = vpop.permute.xlu0 %6419
    %6421 = vrot.lane.b32.xlu0 %v6307, 32
    %v6422 = vpop.permute.xlu0 %6421
    %6423 = vrot.lane.b32.xlu0 %v6308, 32
    %v6424 = vpop.permute.xlu0 %6423
    %6425 = vrot.lane.b32.xlu0 %v6309, 32
    %v6426 = vpop.permute.xlu0 %6425
    %6427 = vrot.lane.b32.xlu0 %v6310, 32
    %v6428 = vpop.permute.xlu0 %6427
    %6429 = vrot.lane.b32.xlu0 %v6311, 32
    %v6430 = vpop.permute.xlu0 %6429
    %6431 = vrot.lane.b32.xlu0 %v6312, 32
    %v6432 = vpop.permute.xlu0 %6431
    %6433 = vrot.lane.b32.xlu0 %v6313, 32
    %v6434 = vpop.permute.xlu0 %6433
    %6435 = vrot.lane.b32.xlu0 %v6314, 32
    %v6436 = vpop.permute.xlu0 %6435
    %6437 = vrot.lane.b32.xlu0 %v6315, 32
    %v6438 = vpop.permute.xlu0 %6437
    %6439 = vrot.lane.b32.xlu0 %v6316, 32
    %v6440 = vpop.permute.xlu0 %6439
    %6441 = vrot.lane.b32.xlu0 %v6317, 32
    %v6442 = vpop.permute.xlu0 %6441
    %6443 = vrot.lane.b32.xlu0 %v6318, 32
    %v6444 = vpop.permute.xlu0 %6443
    %6445 = vrot.lane.b32.xlu0 %v6319, 32
    %v6446 = vpop.permute.xlu0 %6445
    %6447 = vrot.lane.b32.xlu0 %v6320, 32
    %v6448 = vpop.permute.xlu0 %6447
    %v6449 = vadd.f32 %v1795, %v6322
    %v6450 = vadd.f32 %v1796, %v6324
    %v6451 = vadd.f32 %v1797, %v6326
    %v6452 = vadd.f32 %v1798, %v6328
    %v6453 = vadd.f32 %v1799, %v6330
    %v6454 = vadd.f32 %v1800, %v6332
    %v6455 = vadd.f32 %v1801, %v6334
    %v6456 = vadd.f32 %v1802, %v6336
    %v6457 = vadd.f32 %v1803, %v6338
    %v6458 = vadd.f32 %v1804, %v6340
    %v6459 = vadd.f32 %v1805, %v6342
    %v6460 = vadd.f32 %v1806, %v6344
    %v6461 = vadd.f32 %v1807, %v6346
    %v6462 = vadd.f32 %v1808, %v6348
    %v6463 = vadd.f32 %v1809, %v6350
    %v6464 = vadd.f32 %v1810, %v6352
    %v6465 = vadd.f32 %v1811, %v6354
    %v6466 = vadd.f32 %v1812, %v6356
    %v6467 = vadd.f32 %v1813, %v6358
    %v6468 = vadd.f32 %v1814, %v6360
    %v6469 = vadd.f32 %v1815, %v6362
    %v6470 = vadd.f32 %v1816, %v6364
    %v6471 = vadd.f32 %v1817, %v6366
    %v6472 = vadd.f32 %v1818, %v6368
    %v6473 = vadd.f32 %v1819, %v6370
    %v6474 = vadd.f32 %v1820, %v6372
    %v6475 = vadd.f32 %v1821, %v6374
    %v6476 = vadd.f32 %v1822, %v6376
    %v6477 = vadd.f32 %v1823, %v6378
    %v6478 = vadd.f32 %v1824, %v6380
    %v6479 = vadd.f32 %v1825, %v6382
    %v6480 = vadd.f32 %v1826, %v6384
    %v6481 = vadd.f32 %v1827, %v6386
    %v6482 = vadd.f32 %v1828, %v6388
    %v6483 = vadd.f32 %v1829, %v6390
    %v6484 = vadd.f32 %v1830, %v6392
    %v6485 = vadd.f32 %v1831, %v6394
    %v6486 = vadd.f32 %v1832, %v6396
    %v6487 = vadd.f32 %v1833, %v6398
    %v6488 = vadd.f32 %v1834, %v6400
    %v6489 = vadd.f32 %v1835, %v6402
    %v6490 = vadd.f32 %v1836, %v6404
    %v6491 = vadd.f32 %v1837, %v6406
    %v6492 = vadd.f32 %v1838, %v6408
    %v6493 = vadd.f32 %v1839, %v6410
    %v6494 = vadd.f32 %v1840, %v6412
    %v6495 = vadd.f32 %v1841, %v6414
    %v6496 = vadd.f32 %v1842, %v6416
    %v6497 = vadd.f32 %v1843, %v6418
    %v6498 = vadd.f32 %v1844, %v6420
    %v6499 = vadd.f32 %v1845, %v6422
    %v6500 = vadd.f32 %v1846, %v6424
    %v6501 = vadd.f32 %v1847, %v6426
    %v6502 = vadd.f32 %v1848, %v6428
    %v6503 = vadd.f32 %v1849, %v6430
    %v6504 = vadd.f32 %v1850, %v6432
    %v6505 = vadd.f32 %v1851, %v6434
    %v6506 = vadd.f32 %v1852, %v6436
    %v6507 = vadd.f32 %v1853, %v6438
    %v6508 = vadd.f32 %v1854, %v6440
    %v6509 = vadd.f32 %v1855, %v6442
    %v6510 = vadd.f32 %v1856, %v6444
    %v6511 = vadd.f32 %v1857, %v6446
    %v6512 = vadd.f32 %v1858, %v6448
    %v6513 = vmul.f32 %v5165, %v4591
    %v6514 = vmul.f32 %v5164, %v4592
    %v6515 = vmul.f32 %v5163, %v4593
    %v6516 = vmul.f32 %v5162, %v4594
    %v6517 = vmul.f32 %v5161, %v4595
    %v6518 = vmul.f32 %v5160, %v4596
    %v6519 = vmul.f32 %v5159, %v4597
    %v6520 = vmul.f32 %v5158, %v4598
    %v6521 = vmul.f32 %v5157, %v4599
    %v6522 = vmul.f32 %v5156, %v4600
    %v6523 = vmul.f32 %v5155, %v4601
    %v6524 = vmul.f32 %v5154, %v4602
    %v6525 = vmul.f32 %v5153, %v4603
    %v6526 = vmul.f32 %v5152, %v4604
    %v6527 = vmul.f32 %v5151, %v4605
    %v6528 = vmul.f32 %v5150, %v4606
    %v6529 = vmul.f32 %v5149, %v4607
    %v6530 = vmul.f32 %v5148, %v4608
    %v6531 = vmul.f32 %v5147, %v4609
    %v6532 = vmul.f32 %v5146, %v4610
    %v6533 = vmul.f32 %v5145, %v4611
    %v6534 = vmul.f32 %v5144, %v4612
    %v6535 = vmul.f32 %v5143, %v4613
    %v6536 = vmul.f32 %v5142, %v4614
    %v6537 = vmul.f32 %v5141, %v4615
    %v6538 = vmul.f32 %v5140, %v4616
    %v6539 = vmul.f32 %v5139, %v4617
    %v6540 = vmul.f32 %v5138, %v4618
    %v6541 = vmul.f32 %v5137, %v4619
    %v6542 = vmul.f32 %v5136, %v4620
    %v6543 = vmul.f32 %v5135, %v4621
    %v6544 = vmul.f32 %v5134, %v4622
    %v6545 = vmul.f32 %v5133, %v4623
    %v6546 = vmul.f32 %v5132, %v4624
    %v6547 = vmul.f32 %v5131, %v4625
    %v6548 = vmul.f32 %v5130, %v4626
    %v6549 = vmul.f32 %v5129, %v4627
    %v6550 = vmul.f32 %v5128, %v4628
    %v6551 = vmul.f32 %v5127, %v4629
    %v6552 = vmul.f32 %v5126, %v4630
    %v6553 = vmul.f32 %v5125, %v4631
    %v6554 = vmul.f32 %v5124, %v4632
    %v6555 = vmul.f32 %v5123, %v4633
    %v6556 = vmul.f32 %v5122, %v4634
    %v6557 = vmul.f32 %v5121, %v4635
    %v6558 = vmul.f32 %v5120, %v4636
    %v6559 = vmul.f32 %v5119, %v4637
    %v6560 = vmul.f32 %v5118, %v4638
    %v6561 = vmul.f32 %v5117, %v4639
    %v6562 = vmul.f32 %v5116, %v4640
    %v6563 = vmul.f32 %v5115, %v4641
    %v6564 = vmul.f32 %v5114, %v4642
    %v6565 = vmul.f32 %v5113, %v4643
    %v6566 = vmul.f32 %v5112, %v4644
    %v6567 = vmul.f32 %v5111, %v4645
    %v6568 = vmul.f32 %v5110, %v4646
    %v6569 = vmul.f32 %v5109, %v4647
    %v6570 = vmul.f32 %v5108, %v4648
    %v6571 = vmul.f32 %v5107, %v4649
    %v6572 = vmul.f32 %v5106, %v4650
    %v6573 = vmul.f32 %v5105, %v4651
    %v6574 = vmul.f32 %v5104, %v4652
    %v6575 = vmul.f32 %v5167, %v4653
    %v6576 = vmul.f32 %v5166, %v4654
    %v6577 = vmul.f32 %v6513, %v4783
    %v6578 = vmul.f32 %v6514, %v4784
    %v6579 = vmul.f32 %v6515, %v4785
    %v6580 = vmul.f32 %v6516, %v4786
    %v6581 = vmul.f32 %v6517, %v4787
    %v6582 = vmul.f32 %v6518, %v4788
    %v6583 = vmul.f32 %v6519, %v4789
    %v6584 = vmul.f32 %v6520, %v4790
    %v6585 = vmul.f32 %v6521, %v4791
    %v6586 = vmul.f32 %v6522, %v4792
    %v6587 = vmul.f32 %v6523, %v4793
    %v6588 = vmul.f32 %v6524, %v4794
    %v6589 = vmul.f32 %v6525, %v4795
    %v6590 = vmul.f32 %v6526, %v4796
    %v6591 = vmul.f32 %v6527, %v4797
    %v6592 = vmul.f32 %v6528, %v4798
    %v6593 = vmul.f32 %v6529, %v4799
    %v6594 = vmul.f32 %v6530, %v4800
    %v6595 = vmul.f32 %v6531, %v4801
    %v6596 = vmul.f32 %v6532, %v4802
    %v6597 = vmul.f32 %v6533, %v4803
    %v6598 = vmul.f32 %v6534, %v4804
    %v6599 = vmul.f32 %v6535, %v4805
    %v6600 = vmul.f32 %v6536, %v4806
    %v6601 = vmul.f32 %v6537, %v4807
    %v6602 = vmul.f32 %v6538, %v4808
    %v6603 = vmul.f32 %v6539, %v4809
    %v6604 = vmul.f32 %v6540, %v4810
    %v6605 = vmul.f32 %v6541, %v4811
    %v6606 = vmul.f32 %v6542, %v4812
    %v6607 = vmul.f32 %v6543, %v4813
    %v6608 = vmul.f32 %v6544, %v4814
    %v6609 = vmul.f32 %v6545, %v4815
    %v6610 = vmul.f32 %v6546, %v4816
    %v6611 = vmul.f32 %v6547, %v4817
    %v6612 = vmul.f32 %v6548, %v4818
    %v6613 = vmul.f32 %v6549, %v4819
    %v6614 = vmul.f32 %v6550, %v4820
    %v6615 = vmul.f32 %v6551, %v4821
    %v6616 = vmul.f32 %v6552, %v4822
    %v6617 = vmul.f32 %v6553, %v4823
    %v6618 = vmul.f32 %v6554, %v4824
    %v6619 = vmul.f32 %v6555, %v4825
    %v6620 = vmul.f32 %v6556, %v4826
    %v6621 = vmul.f32 %v6557, %v4827
    %v6622 = vmul.f32 %v6558, %v4828
    %v6623 = vmul.f32 %v6559, %v4829
    %v6624 = vmul.f32 %v6560, %v4830
    %v6625 = vmul.f32 %v6561, %v4831
    %v6626 = vmul.f32 %v6562, %v4832
    %v6627 = vmul.f32 %v6563, %v4833
    %v6628 = vmul.f32 %v6564, %v4834
    %v6629 = vmul.f32 %v6565, %v4835
    %v6630 = vmul.f32 %v6566, %v4836
    %v6631 = vmul.f32 %v6567, %v4837
    %v6632 = vmul.f32 %v6568, %v4838
    %v6633 = vmul.f32 %v6569, %v4839
    %v6634 = vmul.f32 %v6570, %v4840
    %v6635 = vmul.f32 %v6571, %v4841
    %v6636 = vmul.f32 %v6572, %v4842
    %v6637 = vmul.f32 %v6573, %v4843
    %v6638 = vmul.f32 %v6574, %v4844
    %v6639 = vmul.f32 %v6575, %v4845
    %v6640 = vmul.f32 %v6576, %v4846
    %6641 = vrot.lane.b32.xlu0 %v6577, 64
    %v6642 = vpop.permute.xlu0 %6641
    %6643 = vrot.lane.b32.xlu0 %v6578, 64
    %v6644 = vpop.permute.xlu0 %6643
    %6645 = vrot.lane.b32.xlu0 %v6579, 64
    %v6646 = vpop.permute.xlu0 %6645
    %6647 = vrot.lane.b32.xlu0 %v6580, 64
    %v6648 = vpop.permute.xlu0 %6647
    %6649 = vrot.lane.b32.xlu0 %v6581, 64
    %v6650 = vpop.permute.xlu0 %6649
    %6651 = vrot.lane.b32.xlu0 %v6582, 64
    %v6652 = vpop.permute.xlu0 %6651
    %6653 = vrot.lane.b32.xlu0 %v6583, 64
    %v6654 = vpop.permute.xlu0 %6653
    %6655 = vrot.lane.b32.xlu0 %v6584, 64
    %v6656 = vpop.permute.xlu0 %6655
    %6657 = vrot.lane.b32.xlu0 %v6585, 64
    %v6658 = vpop.permute.xlu0 %6657
    %6659 = vrot.lane.b32.xlu0 %v6586, 64
    %v6660 = vpop.permute.xlu0 %6659
    %6661 = vrot.lane.b32.xlu0 %v6587, 64
    %v6662 = vpop.permute.xlu0 %6661
    %6663 = vrot.lane.b32.xlu0 %v6588, 64
    %v6664 = vpop.permute.xlu0 %6663
    %6665 = vrot.lane.b32.xlu0 %v6589, 64
    %v6666 = vpop.permute.xlu0 %6665
    %6667 = vrot.lane.b32.xlu0 %v6590, 64
    %v6668 = vpop.permute.xlu0 %6667
    %6669 = vrot.lane.b32.xlu0 %v6591, 64
    %v6670 = vpop.permute.xlu0 %6669
    %6671 = vrot.lane.b32.xlu0 %v6592, 64
    %v6672 = vpop.permute.xlu0 %6671
    %6673 = vrot.lane.b32.xlu0 %v6593, 64
    %v6674 = vpop.permute.xlu0 %6673
    %6675 = vrot.lane.b32.xlu0 %v6594, 64
    %v6676 = vpop.permute.xlu0 %6675
    %6677 = vrot.lane.b32.xlu0 %v6595, 64
    %v6678 = vpop.permute.xlu0 %6677
    %6679 = vrot.lane.b32.xlu0 %v6596, 64
    %v6680 = vpop.permute.xlu0 %6679
    %6681 = vrot.lane.b32.xlu0 %v6597, 64
    %v6682 = vpop.permute.xlu0 %6681
    %6683 = vrot.lane.b32.xlu0 %v6598, 64
    %v6684 = vpop.permute.xlu0 %6683
    %6685 = vrot.lane.b32.xlu0 %v6599, 64
    %v6686 = vpop.permute.xlu0 %6685
    %6687 = vrot.lane.b32.xlu0 %v6600, 64
    %v6688 = vpop.permute.xlu0 %6687
    %6689 = vrot.lane.b32.xlu0 %v6601, 64
    %v6690 = vpop.permute.xlu0 %6689
    %6691 = vrot.lane.b32.xlu0 %v6602, 64
    %v6692 = vpop.permute.xlu0 %6691
    %6693 = vrot.lane.b32.xlu0 %v6603, 64
    %v6694 = vpop.permute.xlu0 %6693
    %6695 = vrot.lane.b32.xlu0 %v6604, 64
    %v6696 = vpop.permute.xlu0 %6695
    %6697 = vrot.lane.b32.xlu0 %v6605, 64
    %v6698 = vpop.permute.xlu0 %6697
    %6699 = vrot.lane.b32.xlu0 %v6606, 64
    %v6700 = vpop.permute.xlu0 %6699
    %6701 = vrot.lane.b32.xlu0 %v6607, 64
    %v6702 = vpop.permute.xlu0 %6701
    %6703 = vrot.lane.b32.xlu0 %v6608, 64
    %v6704 = vpop.permute.xlu0 %6703
    %6705 = vrot.lane.b32.xlu0 %v6609, 64
    %v6706 = vpop.permute.xlu0 %6705
    %6707 = vrot.lane.b32.xlu0 %v6610, 64
    %v6708 = vpop.permute.xlu0 %6707
    %6709 = vrot.lane.b32.xlu0 %v6611, 64
    %v6710 = vpop.permute.xlu0 %6709
    %6711 = vrot.lane.b32.xlu0 %v6612, 64
    %v6712 = vpop.permute.xlu0 %6711
    %6713 = vrot.lane.b32.xlu0 %v6613, 64
    %v6714 = vpop.permute.xlu0 %6713
    %6715 = vrot.lane.b32.xlu0 %v6614, 64
    %v6716 = vpop.permute.xlu0 %6715
    %6717 = vrot.lane.b32.xlu0 %v6615, 64
    %v6718 = vpop.permute.xlu0 %6717
    %6719 = vrot.lane.b32.xlu0 %v6616, 64
    %v6720 = vpop.permute.xlu0 %6719
    %6721 = vrot.lane.b32.xlu0 %v6617, 64
    %v6722 = vpop.permute.xlu0 %6721
    %6723 = vrot.lane.b32.xlu0 %v6618, 64
    %v6724 = vpop.permute.xlu0 %6723
    %6725 = vrot.lane.b32.xlu0 %v6619, 64
    %v6726 = vpop.permute.xlu0 %6725
    %6727 = vrot.lane.b32.xlu0 %v6620, 64
    %v6728 = vpop.permute.xlu0 %6727
    %6729 = vrot.lane.b32.xlu0 %v6621, 64
    %v6730 = vpop.permute.xlu0 %6729
    %6731 = vrot.lane.b32.xlu0 %v6622, 64
    %v6732 = vpop.permute.xlu0 %6731
    %6733 = vrot.lane.b32.xlu0 %v6623, 64
    %v6734 = vpop.permute.xlu0 %6733
    %6735 = vrot.lane.b32.xlu0 %v6624, 64
    %v6736 = vpop.permute.xlu0 %6735
    %6737 = vrot.lane.b32.xlu0 %v6625, 64
    %v6738 = vpop.permute.xlu0 %6737
    %6739 = vrot.lane.b32.xlu0 %v6626, 64
    %v6740 = vpop.permute.xlu0 %6739
    %6741 = vrot.lane.b32.xlu0 %v6627, 64
    %v6742 = vpop.permute.xlu0 %6741
    %6743 = vrot.lane.b32.xlu0 %v6628, 64
    %v6744 = vpop.permute.xlu0 %6743
    %6745 = vrot.lane.b32.xlu0 %v6629, 64
    %v6746 = vpop.permute.xlu0 %6745
    %6747 = vrot.lane.b32.xlu0 %v6630, 64
    %v6748 = vpop.permute.xlu0 %6747
    %6749 = vrot.lane.b32.xlu0 %v6631, 64
    %v6750 = vpop.permute.xlu0 %6749
    %6751 = vrot.lane.b32.xlu0 %v6632, 64
    %v6752 = vpop.permute.xlu0 %6751
    %6753 = vrot.lane.b32.xlu0 %v6633, 64
    %v6754 = vpop.permute.xlu0 %6753
    %6755 = vrot.lane.b32.xlu0 %v6634, 64
    %v6756 = vpop.permute.xlu0 %6755
    %6757 = vrot.lane.b32.xlu0 %v6635, 64
    %v6758 = vpop.permute.xlu0 %6757
    %6759 = vrot.lane.b32.xlu0 %v6636, 64
    %v6760 = vpop.permute.xlu0 %6759
    %6761 = vrot.lane.b32.xlu0 %v6637, 64
    %v6762 = vpop.permute.xlu0 %6761
    %6763 = vrot.lane.b32.xlu0 %v6638, 64
    %v6764 = vpop.permute.xlu0 %6763
    %6765 = vrot.lane.b32.xlu0 %v6639, 64
    %v6766 = vpop.permute.xlu0 %6765
    %6767 = vrot.lane.b32.xlu0 %v6640, 64
    %v6768 = vpop.permute.xlu0 %6767
    %v6769 = vadd.f32 %v6449, %v6642
    %v6770 = vadd.f32 %v6450, %v6644
    %v6771 = vadd.f32 %v6451, %v6646
    %v6772 = vadd.f32 %v6452, %v6648
    %v6773 = vadd.f32 %v6453, %v6650
    %v6774 = vadd.f32 %v6454, %v6652
    %v6775 = vadd.f32 %v6455, %v6654
    %v6776 = vadd.f32 %v6456, %v6656
    %v6777 = vadd.f32 %v6457, %v6658
    %v6778 = vadd.f32 %v6458, %v6660
    %v6779 = vadd.f32 %v6459, %v6662
    %v6780 = vadd.f32 %v6460, %v6664
    %v6781 = vadd.f32 %v6461, %v6666
    %v6782 = vadd.f32 %v6462, %v6668
    %v6783 = vadd.f32 %v6463, %v6670
    %v6784 = vadd.f32 %v6464, %v6672
    %v6785 = vadd.f32 %v6465, %v6674
    %v6786 = vadd.f32 %v6466, %v6676
    %v6787 = vadd.f32 %v6467, %v6678
    %v6788 = vadd.f32 %v6468, %v6680
    %v6789 = vadd.f32 %v6469, %v6682
    %v6790 = vadd.f32 %v6470, %v6684
    %v6791 = vadd.f32 %v6471, %v6686
    %v6792 = vadd.f32 %v6472, %v6688
    %v6793 = vadd.f32 %v6473, %v6690
    %v6794 = vadd.f32 %v6474, %v6692
    %v6795 = vadd.f32 %v6475, %v6694
    %v6796 = vadd.f32 %v6476, %v6696
    %v6797 = vadd.f32 %v6477, %v6698
    %v6798 = vadd.f32 %v6478, %v6700
    %v6799 = vadd.f32 %v6479, %v6702
    %v6800 = vadd.f32 %v6480, %v6704
    %v6801 = vadd.f32 %v6481, %v6706
    %v6802 = vadd.f32 %v6482, %v6708
    %v6803 = vadd.f32 %v6483, %v6710
    %v6804 = vadd.f32 %v6484, %v6712
    %v6805 = vadd.f32 %v6485, %v6714
    %v6806 = vadd.f32 %v6486, %v6716
    %v6807 = vadd.f32 %v6487, %v6718
    %v6808 = vadd.f32 %v6488, %v6720
    %v6809 = vadd.f32 %v6489, %v6722
    %v6810 = vadd.f32 %v6490, %v6724
    %v6811 = vadd.f32 %v6491, %v6726
    %v6812 = vadd.f32 %v6492, %v6728
    %v6813 = vadd.f32 %v6493, %v6730
    %v6814 = vadd.f32 %v6494, %v6732
    %v6815 = vadd.f32 %v6495, %v6734
    %v6816 = vadd.f32 %v6496, %v6736
    %v6817 = vadd.f32 %v6497, %v6738
    %v6818 = vadd.f32 %v6498, %v6740
    %v6819 = vadd.f32 %v6499, %v6742
    %v6820 = vadd.f32 %v6500, %v6744
    %v6821 = vadd.f32 %v6501, %v6746
    %v6822 = vadd.f32 %v6502, %v6748
    %v6823 = vadd.f32 %v6503, %v6750
    %v6824 = vadd.f32 %v6504, %v6752
    %v6825 = vadd.f32 %v6505, %v6754
    %v6826 = vadd.f32 %v6506, %v6756
    %v6827 = vadd.f32 %v6507, %v6758
    %v6828 = vadd.f32 %v6508, %v6760
    %v6829 = vadd.f32 %v6509, %v6762
    %v6830 = vadd.f32 %v6510, %v6764
    %v6831 = vadd.f32 %v6511, %v6766
    %v6832 = vadd.f32 %v6512, %v6768
    %v6833 = vmul.f32 %v1797, %v4591
    %v6834 = vmul.f32 %v1798, %v4592
    %v6835 = vmul.f32 %v1799, %v4593
    %v6836 = vmul.f32 %v1800, %v4594
    %v6837 = vmul.f32 %v1801, %v4595
    %v6838 = vmul.f32 %v1802, %v4596
    %v6839 = vmul.f32 %v1803, %v4597
    %v6840 = vmul.f32 %v1804, %v4598
    %v6841 = vmul.f32 %v1805, %v4599
    %v6842 = vmul.f32 %v1806, %v4600
    %v6843 = vmul.f32 %v1807, %v4601
    %v6844 = vmul.f32 %v1808, %v4602
    %v6845 = vmul.f32 %v1809, %v4603
    %v6846 = vmul.f32 %v1810, %v4604
    %v6847 = vmul.f32 %v1811, %v4605
    %v6848 = vmul.f32 %v1812, %v4606
    %v6849 = vmul.f32 %v1813, %v4607
    %v6850 = vmul.f32 %v1814, %v4608
    %v6851 = vmul.f32 %v1815, %v4609
    %v6852 = vmul.f32 %v1816, %v4610
    %v6853 = vmul.f32 %v1817, %v4611
    %v6854 = vmul.f32 %v1818, %v4612
    %v6855 = vmul.f32 %v1819, %v4613
    %v6856 = vmul.f32 %v1820, %v4614
    %v6857 = vmul.f32 %v1821, %v4615
    %v6858 = vmul.f32 %v1822, %v4616
    %v6859 = vmul.f32 %v1823, %v4617
    %v6860 = vmul.f32 %v1824, %v4618
    %v6861 = vmul.f32 %v1825, %v4619
    %v6862 = vmul.f32 %v1826, %v4620
    %v6863 = vmul.f32 %v1827, %v4621
    %v6864 = vmul.f32 %v1828, %v4622
    %v6865 = vmul.f32 %v1829, %v4623
    %v6866 = vmul.f32 %v1830, %v4624
    %v6867 = vmul.f32 %v1831, %v4625
    %v6868 = vmul.f32 %v1832, %v4626
    %v6869 = vmul.f32 %v1833, %v4627
    %v6870 = vmul.f32 %v1834, %v4628
    %v6871 = vmul.f32 %v1835, %v4629
    %v6872 = vmul.f32 %v1836, %v4630
    %v6873 = vmul.f32 %v1837, %v4631
    %v6874 = vmul.f32 %v1838, %v4632
    %v6875 = vmul.f32 %v1839, %v4633
    %v6876 = vmul.f32 %v1840, %v4634
    %v6877 = vmul.f32 %v1841, %v4635
    %v6878 = vmul.f32 %v1842, %v4636
    %v6879 = vmul.f32 %v1843, %v4637
    %v6880 = vmul.f32 %v1844, %v4638
    %v6881 = vmul.f32 %v1845, %v4639
    %v6882 = vmul.f32 %v1846, %v4640
    %v6883 = vmul.f32 %v1847, %v4641
    %v6884 = vmul.f32 %v1848, %v4642
    %v6885 = vmul.f32 %v1849, %v4643
    %v6886 = vmul.f32 %v1850, %v4644
    %v6887 = vmul.f32 %v1851, %v4645
    %v6888 = vmul.f32 %v1852, %v4646
    %v6889 = vmul.f32 %v1853, %v4647
    %v6890 = vmul.f32 %v1854, %v4648
    %v6891 = vmul.f32 %v1855, %v4649
    %v6892 = vmul.f32 %v1856, %v4650
    %v6893 = vmul.f32 %v1857, %v4651
    %v6894 = vmul.f32 %v1858, %v4652
    %v6895 = vmul.f32 %v1795, %v4653
    %v6896 = vmul.f32 %v1796, %v4654
    %6897 = vrot.lane.b32.xlu0 %v6833, 96
    %v6898 = vpop.permute.xlu0 %6897
    %6899 = vrot.lane.b32.xlu0 %v6834, 96
    %v6900 = vpop.permute.xlu0 %6899
    %6901 = vrot.lane.b32.xlu0 %v6835, 96
    %v6902 = vpop.permute.xlu0 %6901
    %6903 = vrot.lane.b32.xlu0 %v6836, 96
    %v6904 = vpop.permute.xlu0 %6903
    %6905 = vrot.lane.b32.xlu0 %v6837, 96
    %v6906 = vpop.permute.xlu0 %6905
    %6907 = vrot.lane.b32.xlu0 %v6838, 96
    %v6908 = vpop.permute.xlu0 %6907
    %6909 = vrot.lane.b32.xlu0 %v6839, 96
    %v6910 = vpop.permute.xlu0 %6909
    %6911 = vrot.lane.b32.xlu0 %v6840, 96
    %v6912 = vpop.permute.xlu0 %6911
    %6913 = vrot.lane.b32.xlu0 %v6841, 96
    %v6914 = vpop.permute.xlu0 %6913
    %6915 = vrot.lane.b32.xlu0 %v6842, 96
    %v6916 = vpop.permute.xlu0 %6915
    %6917 = vrot.lane.b32.xlu0 %v6843, 96
    %v6918 = vpop.permute.xlu0 %6917
    %6919 = vrot.lane.b32.xlu0 %v6844, 96
    %v6920 = vpop.permute.xlu0 %6919
    %6921 = vrot.lane.b32.xlu0 %v6845, 96
    %v6922 = vpop.permute.xlu0 %6921
    %6923 = vrot.lane.b32.xlu0 %v6846, 96
    %v6924 = vpop.permute.xlu0 %6923
    %6925 = vrot.lane.b32.xlu0 %v6847, 96
    %v6926 = vpop.permute.xlu0 %6925
    %6927 = vrot.lane.b32.xlu0 %v6848, 96
    %v6928 = vpop.permute.xlu0 %6927
    %6929 = vrot.lane.b32.xlu0 %v6849, 96
    %v6930 = vpop.permute.xlu0 %6929
    %6931 = vrot.lane.b32.xlu0 %v6850, 96
    %v6932 = vpop.permute.xlu0 %6931
    %6933 = vrot.lane.b32.xlu0 %v6851, 96
    %v6934 = vpop.permute.xlu0 %6933
    %6935 = vrot.lane.b32.xlu0 %v6852, 96
    %v6936 = vpop.permute.xlu0 %6935
    %6937 = vrot.lane.b32.xlu0 %v6853, 96
    %v6938 = vpop.permute.xlu0 %6937
    %6939 = vrot.lane.b32.xlu0 %v6854, 96
    %v6940 = vpop.permute.xlu0 %6939
    %6941 = vrot.lane.b32.xlu0 %v6855, 96
    %v6942 = vpop.permute.xlu0 %6941
    %6943 = vrot.lane.b32.xlu0 %v6856, 96
    %v6944 = vpop.permute.xlu0 %6943
    %6945 = vrot.lane.b32.xlu0 %v6857, 96
    %v6946 = vpop.permute.xlu0 %6945
    %6947 = vrot.lane.b32.xlu0 %v6858, 96
    %v6948 = vpop.permute.xlu0 %6947
    %6949 = vrot.lane.b32.xlu0 %v6859, 96
    %v6950 = vpop.permute.xlu0 %6949
    %6951 = vrot.lane.b32.xlu0 %v6860, 96
    %v6952 = vpop.permute.xlu0 %6951
    %6953 = vrot.lane.b32.xlu0 %v6861, 96
    %v6954 = vpop.permute.xlu0 %6953
    %6955 = vrot.lane.b32.xlu0 %v6862, 96
    %v6956 = vpop.permute.xlu0 %6955
    %6957 = vrot.lane.b32.xlu0 %v6863, 96
    %v6958 = vpop.permute.xlu0 %6957
    %6959 = vrot.lane.b32.xlu0 %v6864, 96
    %v6960 = vpop.permute.xlu0 %6959
    %6961 = vrot.lane.b32.xlu0 %v6865, 96
    %v6962 = vpop.permute.xlu0 %6961
    %6963 = vrot.lane.b32.xlu0 %v6866, 96
    %v6964 = vpop.permute.xlu0 %6963
    %6965 = vrot.lane.b32.xlu0 %v6867, 96
    %v6966 = vpop.permute.xlu0 %6965
    %6967 = vrot.lane.b32.xlu0 %v6868, 96
    %v6968 = vpop.permute.xlu0 %6967
    %6969 = vrot.lane.b32.xlu0 %v6869, 96
    %v6970 = vpop.permute.xlu0 %6969
    %6971 = vrot.lane.b32.xlu0 %v6870, 96
    %v6972 = vpop.permute.xlu0 %6971
    %6973 = vrot.lane.b32.xlu0 %v6871, 96
    %v6974 = vpop.permute.xlu0 %6973
    %6975 = vrot.lane.b32.xlu0 %v6872, 96
    %v6976 = vpop.permute.xlu0 %6975
    %6977 = vrot.lane.b32.xlu0 %v6873, 96
    %v6978 = vpop.permute.xlu0 %6977
    %6979 = vrot.lane.b32.xlu0 %v6874, 96
    %v6980 = vpop.permute.xlu0 %6979
    %6981 = vrot.lane.b32.xlu0 %v6875, 96
    %v6982 = vpop.permute.xlu0 %6981
    %6983 = vrot.lane.b32.xlu0 %v6876, 96
    %v6984 = vpop.permute.xlu0 %6983
    %6985 = vrot.lane.b32.xlu0 %v6877, 96
    %v6986 = vpop.permute.xlu0 %6985
    %6987 = vrot.lane.b32.xlu0 %v6878, 96
    %v6988 = vpop.permute.xlu0 %6987
    %6989 = vrot.lane.b32.xlu0 %v6879, 96
    %v6990 = vpop.permute.xlu0 %6989
    %6991 = vrot.lane.b32.xlu0 %v6880, 96
    %v6992 = vpop.permute.xlu0 %6991
    %6993 = vrot.lane.b32.xlu0 %v6881, 96
    %v6994 = vpop.permute.xlu0 %6993
    %6995 = vrot.lane.b32.xlu0 %v6882, 96
    %v6996 = vpop.permute.xlu0 %6995
    %6997 = vrot.lane.b32.xlu0 %v6883, 96
    %v6998 = vpop.permute.xlu0 %6997
    %6999 = vrot.lane.b32.xlu0 %v6884, 96
    %v7000 = vpop.permute.xlu0 %6999
    %7001 = vrot.lane.b32.xlu0 %v6885, 96
    %v7002 = vpop.permute.xlu0 %7001
    %7003 = vrot.lane.b32.xlu0 %v6886, 96
    %v7004 = vpop.permute.xlu0 %7003
    %7005 = vrot.lane.b32.xlu0 %v6887, 96
    %v7006 = vpop.permute.xlu0 %7005
    %7007 = vrot.lane.b32.xlu0 %v6888, 96
    %v7008 = vpop.permute.xlu0 %7007
    %7009 = vrot.lane.b32.xlu0 %v6889, 96
    %v7010 = vpop.permute.xlu0 %7009
    %7011 = vrot.lane.b32.xlu0 %v6890, 96
    %v7012 = vpop.permute.xlu0 %7011
    %7013 = vrot.lane.b32.xlu0 %v6891, 96
    %v7014 = vpop.permute.xlu0 %7013
    %7015 = vrot.lane.b32.xlu0 %v6892, 96
    %v7016 = vpop.permute.xlu0 %7015
    %7017 = vrot.lane.b32.xlu0 %v6893, 96
    %v7018 = vpop.permute.xlu0 %7017
    %7019 = vrot.lane.b32.xlu0 %v6894, 96
    %v7020 = vpop.permute.xlu0 %7019
    %7021 = vrot.lane.b32.xlu0 %v6895, 96
    %v7022 = vpop.permute.xlu0 %7021
    %7023 = vrot.lane.b32.xlu0 %v6896, 96
    %v7024 = vpop.permute.xlu0 %7023
    %v7025 = vadd.f32 %v6769, %v6898
    %v7026 = vadd.f32 %v6770, %v6900
    %v7027 = vadd.f32 %v6771, %v6902
    %v7028 = vadd.f32 %v6772, %v6904
    %v7029 = vadd.f32 %v6773, %v6906
    %v7030 = vadd.f32 %v6774, %v6908
    %v7031 = vadd.f32 %v6775, %v6910
    %v7032 = vadd.f32 %v6776, %v6912
    %v7033 = vadd.f32 %v6777, %v6914
    %v7034 = vadd.f32 %v6778, %v6916
    %v7035 = vadd.f32 %v6779, %v6918
    %v7036 = vadd.f32 %v6780, %v6920
    %v7037 = vadd.f32 %v6781, %v6922
    %v7038 = vadd.f32 %v6782, %v6924
    %v7039 = vadd.f32 %v6783, %v6926
    %v7040 = vadd.f32 %v6784, %v6928
    %v7041 = vadd.f32 %v6785, %v6930
    %v7042 = vadd.f32 %v6786, %v6932
    %v7043 = vadd.f32 %v6787, %v6934
    %v7044 = vadd.f32 %v6788, %v6936
    %v7045 = vadd.f32 %v6789, %v6938
    %v7046 = vadd.f32 %v6790, %v6940
    %v7047 = vadd.f32 %v6791, %v6942
    %v7048 = vadd.f32 %v6792, %v6944
    %v7049 = vadd.f32 %v6793, %v6946
    %v7050 = vadd.f32 %v6794, %v6948
    %v7051 = vadd.f32 %v6795, %v6950
    %v7052 = vadd.f32 %v6796, %v6952
    %v7053 = vadd.f32 %v6797, %v6954
    %v7054 = vadd.f32 %v6798, %v6956
    %v7055 = vadd.f32 %v6799, %v6958
    %v7056 = vadd.f32 %v6800, %v6960
    %v7057 = vadd.f32 %v6801, %v6962
    %v7058 = vadd.f32 %v6802, %v6964
    %v7059 = vadd.f32 %v6803, %v6966
    %v7060 = vadd.f32 %v6804, %v6968
    %v7061 = vadd.f32 %v6805, %v6970
    %v7062 = vadd.f32 %v6806, %v6972
    %v7063 = vadd.f32 %v6807, %v6974
    %v7064 = vadd.f32 %v6808, %v6976
    %v7065 = vadd.f32 %v6809, %v6978
    %v7066 = vadd.f32 %v6810, %v6980
    %v7067 = vadd.f32 %v6811, %v6982
    %v7068 = vadd.f32 %v6812, %v6984
    %v7069 = vadd.f32 %v6813, %v6986
    %v7070 = vadd.f32 %v6814, %v6988
    %v7071 = vadd.f32 %v6815, %v6990
    %v7072 = vadd.f32 %v6816, %v6992
    %v7073 = vadd.f32 %v6817, %v6994
    %v7074 = vadd.f32 %v6818, %v6996
    %v7075 = vadd.f32 %v6819, %v6998
    %v7076 = vadd.f32 %v6820, %v7000
    %v7077 = vadd.f32 %v6821, %v7002
    %v7078 = vadd.f32 %v6822, %v7004
    %v7079 = vadd.f32 %v6823, %v7006
    %v7080 = vadd.f32 %v6824, %v7008
    %v7081 = vadd.f32 %v6825, %v7010
    %v7082 = vadd.f32 %v6826, %v7012
    %v7083 = vadd.f32 %v6827, %v7014
    %v7084 = vadd.f32 %v6828, %v7016
    %v7085 = vadd.f32 %v6829, %v7018
    %v7086 = vadd.f32 %v6830, %v7020
    %v7087 = vadd.f32 %v6831, %v7022
    %v7088 = vadd.f32 %v6832, %v7024
    %v7089 = vmul.f32 %v5677, %v4591
    %v7090 = vmul.f32 %v5676, %v4592
    %v7091 = vmul.f32 %v5675, %v4593
    %v7092 = vmul.f32 %v5674, %v4594
    %v7093 = vmul.f32 %v5673, %v4595
    %v7094 = vmul.f32 %v5672, %v4596
    %v7095 = vmul.f32 %v5671, %v4597
    %v7096 = vmul.f32 %v5670, %v4598
    %v7097 = vmul.f32 %v5669, %v4599
    %v7098 = vmul.f32 %v5668, %v4600
    %v7099 = vmul.f32 %v5667, %v4601
    %v7100 = vmul.f32 %v5666, %v4602
    %v7101 = vmul.f32 %v5665, %v4603
    %v7102 = vmul.f32 %v5664, %v4604
    %v7103 = vmul.f32 %v5663, %v4605
    %v7104 = vmul.f32 %v5662, %v4606
    %v7105 = vmul.f32 %v5661, %v4607
    %v7106 = vmul.f32 %v5660, %v4608
    %v7107 = vmul.f32 %v5659, %v4609
    %v7108 = vmul.f32 %v5658, %v4610
    %v7109 = vmul.f32 %v5657, %v4611
    %v7110 = vmul.f32 %v5656, %v4612
    %v7111 = vmul.f32 %v5655, %v4613
    %v7112 = vmul.f32 %v5654, %v4614
    %v7113 = vmul.f32 %v5653, %v4615
    %v7114 = vmul.f32 %v5652, %v4616
    %v7115 = vmul.f32 %v5651, %v4617
    %v7116 = vmul.f32 %v5650, %v4618
    %v7117 = vmul.f32 %v5649, %v4619
    %v7118 = vmul.f32 %v5648, %v4620
    %v7119 = vmul.f32 %v5647, %v4621
    %v7120 = vmul.f32 %v5646, %v4622
    %v7121 = vmul.f32 %v5645, %v4623
    %v7122 = vmul.f32 %v5644, %v4624
    %v7123 = vmul.f32 %v5643, %v4625
    %v7124 = vmul.f32 %v5642, %v4626
    %v7125 = vmul.f32 %v5641, %v4627
    %v7126 = vmul.f32 %v5640, %v4628
    %v7127 = vmul.f32 %v5639, %v4629
    %v7128 = vmul.f32 %v5638, %v4630
    %v7129 = vmul.f32 %v5637, %v4631
    %v7130 = vmul.f32 %v5636, %v4632
    %v7131 = vmul.f32 %v5635, %v4633
    %v7132 = vmul.f32 %v5634, %v4634
    %v7133 = vmul.f32 %v5633, %v4635
    %v7134 = vmul.f32 %v5632, %v4636
    %v7135 = vmul.f32 %v5631, %v4637
    %v7136 = vmul.f32 %v5630, %v4638
    %v7137 = vmul.f32 %v5629, %v4639
    %v7138 = vmul.f32 %v5628, %v4640
    %v7139 = vmul.f32 %v5627, %v4641
    %v7140 = vmul.f32 %v5626, %v4642
    %v7141 = vmul.f32 %v5625, %v4643
    %v7142 = vmul.f32 %v5624, %v4644
    %v7143 = vmul.f32 %v5623, %v4645
    %v7144 = vmul.f32 %v5622, %v4646
    %v7145 = vmul.f32 %v5621, %v4647
    %v7146 = vmul.f32 %v5620, %v4648
    %v7147 = vmul.f32 %v5619, %v4649
    %v7148 = vmul.f32 %v5618, %v4650
    %v7149 = vmul.f32 %v5617, %v4651
    %v7150 = vmul.f32 %v5680, %v4652
    %v7151 = vmul.f32 %v5679, %v4653
    %v7152 = vmul.f32 %v5678, %v4654
    %v7153 = vmul.f32 %v7089, %v4975
    %v7154 = vmul.f32 %v7090, %v4976
    %v7155 = vmul.f32 %v7091, %v4977
    %v7156 = vmul.f32 %v7092, %v4978
    %v7157 = vmul.f32 %v7093, %v4979
    %v7158 = vmul.f32 %v7094, %v4980
    %v7159 = vmul.f32 %v7095, %v4981
    %v7160 = vmul.f32 %v7096, %v4982
    %v7161 = vmul.f32 %v7097, %v4983
    %v7162 = vmul.f32 %v7098, %v4984
    %v7163 = vmul.f32 %v7099, %v4985
    %v7164 = vmul.f32 %v7100, %v4986
    %v7165 = vmul.f32 %v7101, %v4987
    %v7166 = vmul.f32 %v7102, %v4988
    %v7167 = vmul.f32 %v7103, %v4989
    %v7168 = vmul.f32 %v7104, %v4990
    %v7169 = vmul.f32 %v7105, %v4991
    %v7170 = vmul.f32 %v7106, %v4992
    %v7171 = vmul.f32 %v7107, %v4993
    %v7172 = vmul.f32 %v7108, %v4994
    %v7173 = vmul.f32 %v7109, %v4995
    %v7174 = vmul.f32 %v7110, %v4996
    %v7175 = vmul.f32 %v7111, %v4997
    %v7176 = vmul.f32 %v7112, %v4998
    %v7177 = vmul.f32 %v7113, %v4999
    %v7178 = vmul.f32 %v7114, %v5000
    %v7179 = vmul.f32 %v7115, %v5001
    %v7180 = vmul.f32 %v7116, %v5002
    %v7181 = vmul.f32 %v7117, %v5003
    %v7182 = vmul.f32 %v7118, %v5004
    %v7183 = vmul.f32 %v7119, %v5005
    %v7184 = vmul.f32 %v7120, %v5006
    %v7185 = vmul.f32 %v7121, %v5007
    %v7186 = vmul.f32 %v7122, %v5008
    %v7187 = vmul.f32 %v7123, %v5009
    %v7188 = vmul.f32 %v7124, %v5010
    %v7189 = vmul.f32 %v7125, %v5011
    %v7190 = vmul.f32 %v7126, %v5012
    %v7191 = vmul.f32 %v7127, %v5013
    %v7192 = vmul.f32 %v7128, %v5014
    %v7193 = vmul.f32 %v7129, %v5015
    %v7194 = vmul.f32 %v7130, %v5016
    %v7195 = vmul.f32 %v7131, %v5017
    %v7196 = vmul.f32 %v7132, %v5018
    %v7197 = vmul.f32 %v7133, %v5019
    %v7198 = vmul.f32 %v7134, %v5020
    %v7199 = vmul.f32 %v7135, %v5021
    %v7200 = vmul.f32 %v7136, %v5022
    %v7201 = vmul.f32 %v7137, %v5023
    %v7202 = vmul.f32 %v7138, %v5024
    %v7203 = vmul.f32 %v7139, %v5025
    %v7204 = vmul.f32 %v7140, %v5026
    %v7205 = vmul.f32 %v7141, %v5027
    %v7206 = vmul.f32 %v7142, %v5028
    %v7207 = vmul.f32 %v7143, %v5029
    %v7208 = vmul.f32 %v7144, %v5030
    %v7209 = vmul.f32 %v7145, %v5031
    %v7210 = vmul.f32 %v7146, %v5032
    %v7211 = vmul.f32 %v7147, %v5033
    %v7212 = vmul.f32 %v7148, %v5034
    %v7213 = vmul.f32 %v7149, %v5035
    %v7214 = vmul.f32 %v7150, %v5036
    %v7215 = vmul.f32 %v7151, %v5037
    %v7216 = vmul.f32 %v7152, %v5038
    %v7217 = vld [vmem:[%s4] sm:$0xff]
    %v7218 = vld [vmem:[%s4 + $0x8] sm:$0xff]
    %v7219 = vld [vmem:[%s4 + $0x10] sm:$0xff]
    %v7220 = vld [vmem:[%s4 + $0x18] sm:$0xff]
    %v7221 = vld [vmem:[%s4 + $0x20] sm:$0xff]
    %v7222 = vld [vmem:[%s4 + $0x28] sm:$0xff]
    %v7223 = vld [vmem:[%s4 + $0x30] sm:$0xff]
    %v7224 = vld [vmem:[%s4 + $0x38] sm:$0xff]
    %v7225 = vld [vmem:[%s4 + $0x40] sm:$0xff]
    %v7226 = vld [vmem:[%s4 + $0x48] sm:$0xff]
    %v7227 = vld [vmem:[%s4 + $0x50] sm:$0xff]
    %v7228 = vld [vmem:[%s4 + $0x58] sm:$0xff]
    %v7229 = vld [vmem:[%s4 + $0x60] sm:$0xff]
    %v7230 = vld [vmem:[%s4 + $0x68] sm:$0xff]
    %v7231 = vld [vmem:[%s4 + $0x70] sm:$0xff]
    %v7232 = vld [vmem:[%s4 + $0x78] sm:$0xff]
    %v7233 = vld [vmem:[%s4 + $0x80] sm:$0xff]
    %v7234 = vld [vmem:[%s4 + $0x88] sm:$0xff]
    %v7235 = vld [vmem:[%s4 + $0x90] sm:$0xff]
    %v7236 = vld [vmem:[%s4 + $0x98] sm:$0xff]
    %v7237 = vld [vmem:[%s4 + $0xa0] sm:$0xff]
    %v7238 = vld [vmem:[%s4 + $0xa8] sm:$0xff]
    %v7239 = vld [vmem:[%s4 + $0xb0] sm:$0xff]
    %v7240 = vld [vmem:[%s4 + $0xb8] sm:$0xff]
    %v7241 = vld [vmem:[%s4 + $0xc0] sm:$0xff]
    %v7242 = vld [vmem:[%s4 + $0xc8] sm:$0xff]
    %v7243 = vld [vmem:[%s4 + $0xd0] sm:$0xff]
    %v7244 = vld [vmem:[%s4 + $0xd8] sm:$0xff]
    %v7245 = vld [vmem:[%s4 + $0xe0] sm:$0xff]
    %v7246 = vld [vmem:[%s4 + $0xe8] sm:$0xff]
    %v7247 = vld [vmem:[%s4 + $0xf0] sm:$0xff]
    %v7248 = vld [vmem:[%s4 + $0xf8] sm:$0xff]
    %7249 = vmatpush.msra.mxu0 %v7248
    %7250 = vmatpush.msra.mxu0 %v7247
    %7251 = vmatpush.msra.mxu0 %v7246
    %7252 = vmatpush.msra.mxu0 %v7245
    %7253 = vmatpush.msra.mxu0 %v7244
    %7254 = vmatpush.msra.mxu0 %v7243
    %7255 = vmatpush.msra.mxu0 %v7242
    %7256 = vmatpush.msra.mxu0 %v7241
    %7257 = vmatpush.msra.mxu0 %v7240
    %7258 = vmatpush.msra.mxu0 %v7239
    %7259 = vmatpush.msra.mxu0 %v7238
    %7260 = vmatpush.msra.mxu0 %v7237
    %7261 = vmatpush.msra.mxu0 %v7236
    %7262 = vmatpush.msra.mxu0 %v7235
    %7263 = vmatpush.msra.mxu0 %v7234
    %7264 = vmatpush.msra.mxu0 %v7233
    %7265 = vmatmul.f32.gmra.mxu0 %v7025
    %v7266 = vpop.f32.mrf.mxu0
    %v7267 = vadd.f32 0.0, %v7266
    %7268 = vmatmul.f32.gmra.mxu0 %v7026
    %v7269 = vpop.f32.mrf.mxu0
    %v7270 = vadd.f32 0.0, %v7269
    %7271 = vmatmul.f32.gmra.mxu0 %v7027
    %v7272 = vpop.f32.mrf.mxu0
    %v7273 = vadd.f32 0.0, %v7272
    %7274 = vmatmul.f32.gmra.mxu0 %v7028
    %v7275 = vpop.f32.mrf.mxu0
    %v7276 = vadd.f32 0.0, %v7275
    %7277 = vmatmul.f32.gmra.mxu0 %v7029
    %v7278 = vpop.f32.mrf.mxu0
    %v7279 = vadd.f32 0.0, %v7278
    %7280 = vmatmul.f32.gmra.mxu0 %v7030
    %v7281 = vpop.f32.mrf.mxu0
    %v7282 = vadd.f32 0.0, %v7281
    %7283 = vmatmul.f32.gmra.mxu0 %v7031
    %v7284 = vpop.f32.mrf.mxu0
    %v7285 = vadd.f32 0.0, %v7284
    %7286 = vmatmul.f32.gmra.mxu0 %v7032
    %v7287 = vpop.f32.mrf.mxu0
    %v7288 = vadd.f32 0.0, %v7287
    %7289 = vmatmul.f32.gmra.mxu0 %v7033
    %v7290 = vpop.f32.mrf.mxu0
    %v7291 = vadd.f32 0.0, %v7290
    %7292 = vmatmul.f32.gmra.mxu0 %v7034
    %v7293 = vpop.f32.mrf.mxu0
    %v7294 = vadd.f32 0.0, %v7293
    %7295 = vmatmul.f32.gmra.mxu0 %v7035
    %v7296 = vpop.f32.mrf.mxu0
    %v7297 = vadd.f32 0.0, %v7296
    %7298 = vmatmul.f32.gmra.mxu0 %v7036
    %v7299 = vpop.f32.mrf.mxu0
    %v7300 = vadd.f32 0.0, %v7299
    %7301 = vmatmul.f32.gmra.mxu0 %v7037
    %v7302 = vpop.f32.mrf.mxu0
    %v7303 = vadd.f32 0.0, %v7302
    %7304 = vmatmul.f32.gmra.mxu0 %v7038
    %v7305 = vpop.f32.mrf.mxu0
    %v7306 = vadd.f32 0.0, %v7305
    %7307 = vmatmul.f32.gmra.mxu0 %v7039
    %v7308 = vpop.f32.mrf.mxu0
    %v7309 = vadd.f32 0.0, %v7308
    %7310 = vmatmul.f32.gmra.mxu0 %v7040
    %v7311 = vpop.f32.mrf.mxu0
    %v7312 = vadd.f32 0.0, %v7311
    %7313 = vmatmul.f32.gmra.mxu0 %v7041
    %v7314 = vpop.f32.mrf.mxu0
    %v7315 = vadd.f32 0.0, %v7314
    %7316 = vmatmul.f32.gmra.mxu0 %v7042
    %v7317 = vpop.f32.mrf.mxu0
    %v7318 = vadd.f32 0.0, %v7317
    %7319 = vmatmul.f32.gmra.mxu0 %v7043
    %v7320 = vpop.f32.mrf.mxu0
    %v7321 = vadd.f32 0.0, %v7320
    %7322 = vmatmul.f32.gmra.mxu0 %v7044
    %v7323 = vpop.f32.mrf.mxu0
    %v7324 = vadd.f32 0.0, %v7323
    %7325 = vmatmul.f32.gmra.mxu0 %v7045
    %v7326 = vpop.f32.mrf.mxu0
    %v7327 = vadd.f32 0.0, %v7326
    %7328 = vmatmul.f32.gmra.mxu0 %v7046
    %v7329 = vpop.f32.mrf.mxu0
    %v7330 = vadd.f32 0.0, %v7329
    %7331 = vmatmul.f32.gmra.mxu0 %v7047
    %v7332 = vpop.f32.mrf.mxu0
    %v7333 = vadd.f32 0.0, %v7332
    %7334 = vmatmul.f32.gmra.mxu0 %v7048
    %v7335 = vpop.f32.mrf.mxu0
    %v7336 = vadd.f32 0.0, %v7335
    %7337 = vmatmul.f32.gmra.mxu0 %v7049
    %v7338 = vpop.f32.mrf.mxu0
    %v7339 = vadd.f32 0.0, %v7338
    %7340 = vmatmul.f32.gmra.mxu0 %v7050
    %v7341 = vpop.f32.mrf.mxu0
    %v7342 = vadd.f32 0.0, %v7341
    %7343 = vmatmul.f32.gmra.mxu0 %v7051
    %v7344 = vpop.f32.mrf.mxu0
    %v7345 = vadd.f32 0.0, %v7344
    %7346 = vmatmul.f32.gmra.mxu0 %v7052
    %v7347 = vpop.f32.mrf.mxu0
    %v7348 = vadd.f32 0.0, %v7347
    %7349 = vmatmul.f32.gmra.mxu0 %v7053
    %v7350 = vpop.f32.mrf.mxu0
    %v7351 = vadd.f32 0.0, %v7350
    %7352 = vmatmul.f32.gmra.mxu0 %v7054
    %v7353 = vpop.f32.mrf.mxu0
    %v7354 = vadd.f32 0.0, %v7353
    %7355 = vmatmul.f32.gmra.mxu0 %v7055
    %v7356 = vpop.f32.mrf.mxu0
    %v7357 = vadd.f32 0.0, %v7356
    %7358 = vmatmul.f32.gmra.mxu0 %v7056
    %v7359 = vpop.f32.mrf.mxu0
    %v7360 = vadd.f32 0.0, %v7359
    %7361 = vmatmul.f32.gmra.mxu0 %v7057
    %v7362 = vpop.f32.mrf.mxu0
    %v7363 = vadd.f32 0.0, %v7362
    %7364 = vmatmul.f32.gmra.mxu0 %v7058
    %v7365 = vpop.f32.mrf.mxu0
    %v7366 = vadd.f32 0.0, %v7365
    %7367 = vmatmul.f32.gmra.mxu0 %v7059
    %v7368 = vpop.f32.mrf.mxu0
    %v7369 = vadd.f32 0.0, %v7368
    %7370 = vmatmul.f32.gmra.mxu0 %v7060
    %v7371 = vpop.f32.mrf.mxu0
    %v7372 = vadd.f32 0.0, %v7371
    %7373 = vmatmul.f32.gmra.mxu0 %v7061
    %v7374 = vpop.f32.mrf.mxu0
    %v7375 = vadd.f32 0.0, %v7374
    %7376 = vmatmul.f32.gmra.mxu0 %v7062
    %v7377 = vpop.f32.mrf.mxu0
    %v7378 = vadd.f32 0.0, %v7377
    %7379 = vmatmul.f32.gmra.mxu0 %v7063
    %v7380 = vpop.f32.mrf.mxu0
    %v7381 = vadd.f32 0.0, %v7380
    %7382 = vmatmul.f32.gmra.mxu0 %v7064
    %v7383 = vpop.f32.mrf.mxu0
    %v7384 = vadd.f32 0.0, %v7383
    %7385 = vmatmul.f32.gmra.mxu0 %v7065
    %v7386 = vpop.f32.mrf.mxu0
    %v7387 = vadd.f32 0.0, %v7386
    %7388 = vmatmul.f32.gmra.mxu0 %v7066
    %v7389 = vpop.f32.mrf.mxu0
    %v7390 = vadd.f32 0.0, %v7389
    %7391 = vmatmul.f32.gmra.mxu0 %v7067
    %v7392 = vpop.f32.mrf.mxu0
    %v7393 = vadd.f32 0.0, %v7392
    %7394 = vmatmul.f32.gmra.mxu0 %v7068
    %v7395 = vpop.f32.mrf.mxu0
    %v7396 = vadd.f32 0.0, %v7395
    %7397 = vmatmul.f32.gmra.mxu0 %v7069
    %v7398 = vpop.f32.mrf.mxu0
    %v7399 = vadd.f32 0.0, %v7398
    %7400 = vmatmul.f32.gmra.mxu0 %v7070
    %v7401 = vpop.f32.mrf.mxu0
    %v7402 = vadd.f32 0.0, %v7401
    %7403 = vmatmul.f32.gmra.mxu0 %v7071
    %v7404 = vpop.f32.mrf.mxu0
    %v7405 = vadd.f32 0.0, %v7404
    %7406 = vmatmul.f32.gmra.mxu0 %v7072
    %v7407 = vpop.f32.mrf.mxu0
    %v7408 = vadd.f32 0.0, %v7407
    %7409 = vmatmul.f32.gmra.mxu0 %v7073
    %v7410 = vpop.f32.mrf.mxu0
    %v7411 = vadd.f32 0.0, %v7410
    %7412 = vmatmul.f32.gmra.mxu0 %v7074
    %v7413 = vpop.f32.mrf.mxu0
    %v7414 = vadd.f32 0.0, %v7413
    %7415 = vmatmul.f32.gmra.mxu0 %v7075
    %v7416 = vpop.f32.mrf.mxu0
    %v7417 = vadd.f32 0.0, %v7416
    %7418 = vmatmul.f32.gmra.mxu0 %v7076
    %v7419 = vpop.f32.mrf.mxu0
    %v7420 = vadd.f32 0.0, %v7419
    %7421 = vmatmul.f32.gmra.mxu0 %v7077
    %v7422 = vpop.f32.mrf.mxu0
    %v7423 = vadd.f32 0.0, %v7422
    %7424 = vmatmul.f32.gmra.mxu0 %v7078
    %v7425 = vpop.f32.mrf.mxu0
    %v7426 = vadd.f32 0.0, %v7425
    %7427 = vmatmul.f32.gmra.mxu0 %v7079
    %v7428 = vpop.f32.mrf.mxu0
    %v7429 = vadd.f32 0.0, %v7428
    %7430 = vmatmul.f32.gmra.mxu0 %v7080
    %v7431 = vpop.f32.mrf.mxu0
    %v7432 = vadd.f32 0.0, %v7431
    %7433 = vmatmul.f32.gmra.mxu0 %v7081
    %v7434 = vpop.f32.mrf.mxu0
    %v7435 = vadd.f32 0.0, %v7434
    %7436 = vmatmul.f32.gmra.mxu0 %v7082
    %v7437 = vpop.f32.mrf.mxu0
    %v7438 = vadd.f32 0.0, %v7437
    %7439 = vmatmul.f32.gmra.mxu0 %v7083
    %v7440 = vpop.f32.mrf.mxu0
    %v7441 = vadd.f32 0.0, %v7440
    %7442 = vmatmul.f32.gmra.mxu0 %v7084
    %v7443 = vpop.f32.mrf.mxu0
    %v7444 = vadd.f32 0.0, %v7443
    %7445 = vmatmul.f32.gmra.mxu0 %v7085
    %v7446 = vpop.f32.mrf.mxu0
    %v7447 = vadd.f32 0.0, %v7446
    %7448 = vmatmul.f32.gmra.mxu0 %v7086
    %v7449 = vpop.f32.mrf.mxu0
    %v7450 = vadd.f32 0.0, %v7449
    %7451 = vmatmul.f32.gmra.mxu0 %v7087
    %v7452 = vpop.f32.mrf.mxu0
    %v7453 = vadd.f32 0.0, %v7452
    %7454 = vmatmul.f32.gmra.mxu0 %v7088
    %v7455 = vpop.f32.mrf.mxu0
    %v7456 = vadd.f32 0.0, %v7455
    %7457 = vdwg.mxu0
    %7458 = vmatpush.msra.mxu0 %v7232
    %7459 = vmatpush.msra.mxu0 %v7231
    %7460 = vmatpush.msra.mxu0 %v7230
    %7461 = vmatpush.msra.mxu0 %v7229
    %7462 = vmatpush.msra.mxu0 %v7228
    %7463 = vmatpush.msra.mxu0 %v7227
    %7464 = vmatpush.msra.mxu0 %v7226
    %7465 = vmatpush.msra.mxu0 %v7225
    %7466 = vmatpush.msra.mxu0 %v7224
    %7467 = vmatpush.msra.mxu0 %v7223
    %7468 = vmatpush.msra.mxu0 %v7222
    %7469 = vmatpush.msra.mxu0 %v7221
    %7470 = vmatpush.msra.mxu0 %v7220
    %7471 = vmatpush.msra.mxu0 %v7219
    %7472 = vmatpush.msra.mxu0 %v7218
    %7473 = vmatpush.msra.mxu0 %v7217
    %7474 = vmatmul.f32.gmra.mxu0 %v6193
    %v7475 = vpop.f32.mrf.mxu0
    %v7476 = vadd.f32 %v7267, %v7475
    %7477 = vmatmul.f32.gmra.mxu0 %v6194
    %v7478 = vpop.f32.mrf.mxu0
    %v7479 = vadd.f32 %v7270, %v7478
    %7480 = vmatmul.f32.gmra.mxu0 %v6195
    %v7481 = vpop.f32.mrf.mxu0
    %v7482 = vadd.f32 %v7273, %v7481
    %7483 = vmatmul.f32.gmra.mxu0 %v6196
    %v7484 = vpop.f32.mrf.mxu0
    %v7485 = vadd.f32 %v7276, %v7484
    %7486 = vmatmul.f32.gmra.mxu0 %v6197
    %v7487 = vpop.f32.mrf.mxu0
    %v7488 = vadd.f32 %v7279, %v7487
    %7489 = vmatmul.f32.gmra.mxu0 %v6198
    %v7490 = vpop.f32.mrf.mxu0
    %v7491 = vadd.f32 %v7282, %v7490
    %7492 = vmatmul.f32.gmra.mxu0 %v6199
    %v7493 = vpop.f32.mrf.mxu0
    %v7494 = vadd.f32 %v7285, %v7493
    %7495 = vmatmul.f32.gmra.mxu0 %v6200
    %v7496 = vpop.f32.mrf.mxu0
    %v7497 = vadd.f32 %v7288, %v7496
    %7498 = vmatmul.f32.gmra.mxu0 %v6201
    %v7499 = vpop.f32.mrf.mxu0
    %v7500 = vadd.f32 %v7291, %v7499
    %7501 = vmatmul.f32.gmra.mxu0 %v6202
    %v7502 = vpop.f32.mrf.mxu0
    %v7503 = vadd.f32 %v7294, %v7502
    %7504 = vmatmul.f32.gmra.mxu0 %v6203
    %v7505 = vpop.f32.mrf.mxu0
    %v7506 = vadd.f32 %v7297, %v7505
    %7507 = vmatmul.f32.gmra.mxu0 %v6204
    %v7508 = vpop.f32.mrf.mxu0
    %v7509 = vadd.f32 %v7300, %v7508
    %7510 = vmatmul.f32.gmra.mxu0 %v6205
    %v7511 = vpop.f32.mrf.mxu0
    %v7512 = vadd.f32 %v7303, %v7511
    %7513 = vmatmul.f32.gmra.mxu0 %v6206
    %v7514 = vpop.f32.mrf.mxu0
    %v7515 = vadd.f32 %v7306, %v7514
    %7516 = vmatmul.f32.gmra.mxu0 %v6207
    %v7517 = vpop.f32.mrf.mxu0
    %v7518 = vadd.f32 %v7309, %v7517
    %7519 = vmatmul.f32.gmra.mxu0 %v6208
    %v7520 = vpop.f32.mrf.mxu0
    %v7521 = vadd.f32 %v7312, %v7520
    %7522 = vmatmul.f32.gmra.mxu0 %v6209
    %v7523 = vpop.f32.mrf.mxu0
    %v7524 = vadd.f32 %v7315, %v7523
    %7525 = vmatmul.f32.gmra.mxu0 %v6210
    %v7526 = vpop.f32.mrf.mxu0
    %v7527 = vadd.f32 %v7318, %v7526
    %7528 = vmatmul.f32.gmra.mxu0 %v6211
    %v7529 = vpop.f32.mrf.mxu0
    %v7530 = vadd.f32 %v7321, %v7529
    %7531 = vmatmul.f32.gmra.mxu0 %v6212
    %v7532 = vpop.f32.mrf.mxu0
    %v7533 = vadd.f32 %v7324, %v7532
    %7534 = vmatmul.f32.gmra.mxu0 %v6213
    %v7535 = vpop.f32.mrf.mxu0
    %v7536 = vadd.f32 %v7327, %v7535
    %7537 = vmatmul.f32.gmra.mxu0 %v6214
    %v7538 = vpop.f32.mrf.mxu0
    %v7539 = vadd.f32 %v7330, %v7538
    %7540 = vmatmul.f32.gmra.mxu0 %v6215
    %v7541 = vpop.f32.mrf.mxu0
    %v7542 = vadd.f32 %v7333, %v7541
    %7543 = vmatmul.f32.gmra.mxu0 %v6216
    %v7544 = vpop.f32.mrf.mxu0
    %v7545 = vadd.f32 %v7336, %v7544
    %7546 = vmatmul.f32.gmra.mxu0 %v6217
    %v7547 = vpop.f32.mrf.mxu0
    %v7548 = vadd.f32 %v7339, %v7547
    %7549 = vmatmul.f32.gmra.mxu0 %v6218
    %v7550 = vpop.f32.mrf.mxu0
    %v7551 = vadd.f32 %v7342, %v7550
    %7552 = vmatmul.f32.gmra.mxu0 %v6219
    %v7553 = vpop.f32.mrf.mxu0
    %v7554 = vadd.f32 %v7345, %v7553
    %7555 = vmatmul.f32.gmra.mxu0 %v6220
    %v7556 = vpop.f32.mrf.mxu0
    %v7557 = vadd.f32 %v7348, %v7556
    %7558 = vmatmul.f32.gmra.mxu0 %v6221
    %v7559 = vpop.f32.mrf.mxu0
    %v7560 = vadd.f32 %v7351, %v7559
    %7561 = vmatmul.f32.gmra.mxu0 %v6222
    %v7562 = vpop.f32.mrf.mxu0
    %v7563 = vadd.f32 %v7354, %v7562
    %7564 = vmatmul.f32.gmra.mxu0 %v6223
    %v7565 = vpop.f32.mrf.mxu0
    %v7566 = vadd.f32 %v7357, %v7565
    %7567 = vmatmul.f32.gmra.mxu0 %v6224
    %v7568 = vpop.f32.mrf.mxu0
    %v7569 = vadd.f32 %v7360, %v7568
    %7570 = vmatmul.f32.gmra.mxu0 %v6225
    %v7571 = vpop.f32.mrf.mxu0
    %v7572 = vadd.f32 %v7363, %v7571
    %7573 = vmatmul.f32.gmra.mxu0 %v6226
    %v7574 = vpop.f32.mrf.mxu0
    %v7575 = vadd.f32 %v7366, %v7574
    %7576 = vmatmul.f32.gmra.mxu0 %v6227
    %v7577 = vpop.f32.mrf.mxu0
    %v7578 = vadd.f32 %v7369, %v7577
    %7579 = vmatmul.f32.gmra.mxu0 %v6228
    %v7580 = vpop.f32.mrf.mxu0
    %v7581 = vadd.f32 %v7372, %v7580
    %7582 = vmatmul.f32.gmra.mxu0 %v6229
    %v7583 = vpop.f32.mrf.mxu0
    %v7584 = vadd.f32 %v7375, %v7583
    %7585 = vmatmul.f32.gmra.mxu0 %v6230
    %v7586 = vpop.f32.mrf.mxu0
    %v7587 = vadd.f32 %v7378, %v7586
    %7588 = vmatmul.f32.gmra.mxu0 %v6231
    %v7589 = vpop.f32.mrf.mxu0
    %v7590 = vadd.f32 %v7381, %v7589
    %7591 = vmatmul.f32.gmra.mxu0 %v6232
    %v7592 = vpop.f32.mrf.mxu0
    %v7593 = vadd.f32 %v7384, %v7592
    %7594 = vmatmul.f32.gmra.mxu0 %v6233
    %v7595 = vpop.f32.mrf.mxu0
    %v7596 = vadd.f32 %v7387, %v7595
    %7597 = vmatmul.f32.gmra.mxu0 %v6234
    %v7598 = vpop.f32.mrf.mxu0
    %v7599 = vadd.f32 %v7390, %v7598
    %7600 = vmatmul.f32.gmra.mxu0 %v6235
    %v7601 = vpop.f32.mrf.mxu0
    %v7602 = vadd.f32 %v7393, %v7601
    %7603 = vmatmul.f32.gmra.mxu0 %v6236
    %v7604 = vpop.f32.mrf.mxu0
    %v7605 = vadd.f32 %v7396, %v7604
    %7606 = vmatmul.f32.gmra.mxu0 %v6237
    %v7607 = vpop.f32.mrf.mxu0
    %v7608 = vadd.f32 %v7399, %v7607
    %7609 = vmatmul.f32.gmra.mxu0 %v6238
    %v7610 = vpop.f32.mrf.mxu0
    %v7611 = vadd.f32 %v7402, %v7610
    %7612 = vmatmul.f32.gmra.mxu0 %v6239
    %v7613 = vpop.f32.mrf.mxu0
    %v7614 = vadd.f32 %v7405, %v7613
    %7615 = vmatmul.f32.gmra.mxu0 %v6240
    %v7616 = vpop.f32.mrf.mxu0
    %v7617 = vadd.f32 %v7408, %v7616
    %7618 = vmatmul.f32.gmra.mxu0 %v6241
    %v7619 = vpop.f32.mrf.mxu0
    %v7620 = vadd.f32 %v7411, %v7619
    %7621 = vmatmul.f32.gmra.mxu0 %v6242
    %v7622 = vpop.f32.mrf.mxu0
    %v7623 = vadd.f32 %v7414, %v7622
    %7624 = vmatmul.f32.gmra.mxu0 %v6243
    %v7625 = vpop.f32.mrf.mxu0
    %v7626 = vadd.f32 %v7417, %v7625
    %7627 = vmatmul.f32.gmra.mxu0 %v6244
    %v7628 = vpop.f32.mrf.mxu0
    %v7629 = vadd.f32 %v7420, %v7628
    %7630 = vmatmul.f32.gmra.mxu0 %v6245
    %v7631 = vpop.f32.mrf.mxu0
    %v7632 = vadd.f32 %v7423, %v7631
    %7633 = vmatmul.f32.gmra.mxu0 %v6246
    %v7634 = vpop.f32.mrf.mxu0
    %v7635 = vadd.f32 %v7426, %v7634
    %7636 = vmatmul.f32.gmra.mxu0 %v6247
    %v7637 = vpop.f32.mrf.mxu0
    %v7638 = vadd.f32 %v7429, %v7637
    %7639 = vmatmul.f32.gmra.mxu0 %v6248
    %v7640 = vpop.f32.mrf.mxu0
    %v7641 = vadd.f32 %v7432, %v7640
    %7642 = vmatmul.f32.gmra.mxu0 %v6249
    %v7643 = vpop.f32.mrf.mxu0
    %v7644 = vadd.f32 %v7435, %v7643
    %7645 = vmatmul.f32.gmra.mxu0 %v6250
    %v7646 = vpop.f32.mrf.mxu0
    %v7647 = vadd.f32 %v7438, %v7646
    %7648 = vmatmul.f32.gmra.mxu0 %v6251
    %v7649 = vpop.f32.mrf.mxu0
    %v7650 = vadd.f32 %v7441, %v7649
    %7651 = vmatmul.f32.gmra.mxu0 %v6252
    %v7652 = vpop.f32.mrf.mxu0
    %v7653 = vadd.f32 %v7444, %v7652
    %7654 = vmatmul.f32.gmra.mxu0 %v6253
    %v7655 = vpop.f32.mrf.mxu0
    %v7656 = vadd.f32 %v7447, %v7655
    %7657 = vmatmul.f32.gmra.mxu0 %v6254
    %v7658 = vpop.f32.mrf.mxu0
    %v7659 = vadd.f32 %v7450, %v7658
    %7660 = vmatmul.f32.gmra.mxu0 %v6255
    %v7661 = vpop.f32.mrf.mxu0
    %v7662 = vadd.f32 %v7453, %v7661
    %7663 = vmatmul.f32.gmra.mxu0 %v6256
    %v7664 = vpop.f32.mrf.mxu0
    %v7665 = vadd.f32 %v7456, %v7664
    %7666 = vdwg.mxu0
    %v7667 = vld [vmem:[%s4 + $0x100] sm:$0xff]
    %v7668 = vld [vmem:[%s4 + $0x108] sm:$0xff]
    %v7669 = vld [vmem:[%s4 + $0x110] sm:$0xff]
    %v7670 = vld [vmem:[%s4 + $0x118] sm:$0xff]
    %v7671 = vld [vmem:[%s4 + $0x120] sm:$0xff]
    %v7672 = vld [vmem:[%s4 + $0x128] sm:$0xff]
    %v7673 = vld [vmem:[%s4 + $0x130] sm:$0xff]
    %v7674 = vld [vmem:[%s4 + $0x138] sm:$0xff]
    %v7675 = vld [vmem:[%s4 + $0x140] sm:$0xff]
    %v7676 = vld [vmem:[%s4 + $0x148] sm:$0xff]
    %v7677 = vld [vmem:[%s4 + $0x150] sm:$0xff]
    %v7678 = vld [vmem:[%s4 + $0x158] sm:$0xff]
    %v7679 = vld [vmem:[%s4 + $0x160] sm:$0xff]
    %v7680 = vld [vmem:[%s4 + $0x168] sm:$0xff]
    %v7681 = vld [vmem:[%s4 + $0x170] sm:$0xff]
    %v7682 = vld [vmem:[%s4 + $0x178] sm:$0xff]
    %7683 = vmatpush.msra.mxu0 %v7682
    %7684 = vmatpush.msra.mxu0 %v7681
    %7685 = vmatpush.msra.mxu0 %v7680
    %7686 = vmatpush.msra.mxu0 %v7679
    %7687 = vmatpush.msra.mxu0 %v7678
    %7688 = vmatpush.msra.mxu0 %v7677
    %7689 = vmatpush.msra.mxu0 %v7676
    %7690 = vmatpush.msra.mxu0 %v7675
    %7691 = vmatpush.msra.mxu0 %v7674
    %7692 = vmatpush.msra.mxu0 %v7673
    %7693 = vmatpush.msra.mxu0 %v7672
    %7694 = vmatpush.msra.mxu0 %v7671
    %7695 = vmatpush.msra.mxu0 %v7670
    %7696 = vmatpush.msra.mxu0 %v7669
    %7697 = vmatpush.msra.mxu0 %v7668
    %7698 = vmatpush.msra.mxu0 %v7667
    %7699 = vmatmul.f32.gmra.mxu0 %v7153
    %v7700 = vpop.f32.mrf.mxu0
    %v7701 = vadd.f32 0.0, %v7700
    %7702 = vmatmul.f32.gmra.mxu0 %v7154
    %v7703 = vpop.f32.mrf.mxu0
    %v7704 = vadd.f32 0.0, %v7703
    %7705 = vmatmul.f32.gmra.mxu0 %v7155
    %v7706 = vpop.f32.mrf.mxu0
    %v7707 = vadd.f32 0.0, %v7706
    %7708 = vmatmul.f32.gmra.mxu0 %v7156
    %v7709 = vpop.f32.mrf.mxu0
    %v7710 = vadd.f32 0.0, %v7709
    %7711 = vmatmul.f32.gmra.mxu0 %v7157
    %v7712 = vpop.f32.mrf.mxu0
    %v7713 = vadd.f32 0.0, %v7712
    %7714 = vmatmul.f32.gmra.mxu0 %v7158
    %v7715 = vpop.f32.mrf.mxu0
    %v7716 = vadd.f32 0.0, %v7715
    %7717 = vmatmul.f32.gmra.mxu0 %v7159
    %v7718 = vpop.f32.mrf.mxu0
    %v7719 = vadd.f32 0.0, %v7718
    %7720 = vmatmul.f32.gmra.mxu0 %v7160
    %v7721 = vpop.f32.mrf.mxu0
    %v7722 = vadd.f32 0.0, %v7721
    %7723 = vmatmul.f32.gmra.mxu0 %v7161
    %v7724 = vpop.f32.mrf.mxu0
    %v7725 = vadd.f32 0.0, %v7724
    %7726 = vmatmul.f32.gmra.mxu0 %v7162
    %v7727 = vpop.f32.mrf.mxu0
    %v7728 = vadd.f32 0.0, %v7727
    %7729 = vmatmul.f32.gmra.mxu0 %v7163
    %v7730 = vpop.f32.mrf.mxu0
    %v7731 = vadd.f32 0.0, %v7730
    %7732 = vmatmul.f32.gmra.mxu0 %v7164
    %v7733 = vpop.f32.mrf.mxu0
    %v7734 = vadd.f32 0.0, %v7733
    %7735 = vmatmul.f32.gmra.mxu0 %v7165
    %v7736 = vpop.f32.mrf.mxu0
    %v7737 = vadd.f32 0.0, %v7736
    %7738 = vmatmul.f32.gmra.mxu0 %v7166
    %v7739 = vpop.f32.mrf.mxu0
    %v7740 = vadd.f32 0.0, %v7739
    %7741 = vmatmul.f32.gmra.mxu0 %v7167
    %v7742 = vpop.f32.mrf.mxu0
    %v7743 = vadd.f32 0.0, %v7742
    %7744 = vmatmul.f32.gmra.mxu0 %v7168
    %v7745 = vpop.f32.mrf.mxu0
    %v7746 = vadd.f32 0.0, %v7745
    %7747 = vmatmul.f32.gmra.mxu0 %v7169
    %v7748 = vpop.f32.mrf.mxu0
    %v7749 = vadd.f32 0.0, %v7748
    %7750 = vmatmul.f32.gmra.mxu0 %v7170
    %v7751 = vpop.f32.mrf.mxu0
    %v7752 = vadd.f32 0.0, %v7751
    %7753 = vmatmul.f32.gmra.mxu0 %v7171
    %v7754 = vpop.f32.mrf.mxu0
    %v7755 = vadd.f32 0.0, %v7754
    %7756 = vmatmul.f32.gmra.mxu0 %v7172
    %v7757 = vpop.f32.mrf.mxu0
    %v7758 = vadd.f32 0.0, %v7757
    %7759 = vmatmul.f32.gmra.mxu0 %v7173
    %v7760 = vpop.f32.mrf.mxu0
    %v7761 = vadd.f32 0.0, %v7760
    %7762 = vmatmul.f32.gmra.mxu0 %v7174
    %v7763 = vpop.f32.mrf.mxu0
    %v7764 = vadd.f32 0.0, %v7763
    %7765 = vmatmul.f32.gmra.mxu0 %v7175
    %v7766 = vpop.f32.mrf.mxu0
    %v7767 = vadd.f32 0.0, %v7766
    %7768 = vmatmul.f32.gmra.mxu0 %v7176
    %v7769 = vpop.f32.mrf.mxu0
    %v7770 = vadd.f32 0.0, %v7769
    %7771 = vmatmul.f32.gmra.mxu0 %v7177
    %v7772 = vpop.f32.mrf.mxu0
    %v7773 = vadd.f32 0.0, %v7772
    %7774 = vmatmul.f32.gmra.mxu0 %v7178
    %v7775 = vpop.f32.mrf.mxu0
    %v7776 = vadd.f32 0.0, %v7775
    %7777 = vmatmul.f32.gmra.mxu0 %v7179
    %v7778 = vpop.f32.mrf.mxu0
    %v7779 = vadd.f32 0.0, %v7778
    %7780 = vmatmul.f32.gmra.mxu0 %v7180
    %v7781 = vpop.f32.mrf.mxu0
    %v7782 = vadd.f32 0.0, %v7781
    %7783 = vmatmul.f32.gmra.mxu0 %v7181
    %v7784 = vpop.f32.mrf.mxu0
    %v7785 = vadd.f32 0.0, %v7784
    %7786 = vmatmul.f32.gmra.mxu0 %v7182
    %v7787 = vpop.f32.mrf.mxu0
    %v7788 = vadd.f32 0.0, %v7787
    %7789 = vmatmul.f32.gmra.mxu0 %v7183
    %v7790 = vpop.f32.mrf.mxu0
    %v7791 = vadd.f32 0.0, %v7790
    %7792 = vmatmul.f32.gmra.mxu0 %v7184
    %v7793 = vpop.f32.mrf.mxu0
    %v7794 = vadd.f32 0.0, %v7793
    %7795 = vmatmul.f32.gmra.mxu0 %v7185
    %v7796 = vpop.f32.mrf.mxu0
    %v7797 = vadd.f32 0.0, %v7796
    %7798 = vmatmul.f32.gmra.mxu0 %v7186
    %v7799 = vpop.f32.mrf.mxu0
    %v7800 = vadd.f32 0.0, %v7799
    %7801 = vmatmul.f32.gmra.mxu0 %v7187
    %v7802 = vpop.f32.mrf.mxu0
    %v7803 = vadd.f32 0.0, %v7802
    %7804 = vmatmul.f32.gmra.mxu0 %v7188
    %v7805 = vpop.f32.mrf.mxu0
    %v7806 = vadd.f32 0.0, %v7805
    %7807 = vmatmul.f32.gmra.mxu0 %v7189
    %v7808 = vpop.f32.mrf.mxu0
    %v7809 = vadd.f32 0.0, %v7808
    %7810 = vmatmul.f32.gmra.mxu0 %v7190
    %v7811 = vpop.f32.mrf.mxu0
    %v7812 = vadd.f32 0.0, %v7811
    %7813 = vmatmul.f32.gmra.mxu0 %v7191
    %v7814 = vpop.f32.mrf.mxu0
    %v7815 = vadd.f32 0.0, %v7814
    %7816 = vmatmul.f32.gmra.mxu0 %v7192
    %v7817 = vpop.f32.mrf.mxu0
    %v7818 = vadd.f32 0.0, %v7817
    %7819 = vmatmul.f32.gmra.mxu0 %v7193
    %v7820 = vpop.f32.mrf.mxu0
    %v7821 = vadd.f32 0.0, %v7820
    %7822 = vmatmul.f32.gmra.mxu0 %v7194
    %v7823 = vpop.f32.mrf.mxu0
    %v7824 = vadd.f32 0.0, %v7823
    %7825 = vmatmul.f32.gmra.mxu0 %v7195
    %v7826 = vpop.f32.mrf.mxu0
    %v7827 = vadd.f32 0.0, %v7826
    %7828 = vmatmul.f32.gmra.mxu0 %v7196
    %v7829 = vpop.f32.mrf.mxu0
    %v7830 = vadd.f32 0.0, %v7829
    %7831 = vmatmul.f32.gmra.mxu0 %v7197
    %v7832 = vpop.f32.mrf.mxu0
    %v7833 = vadd.f32 0.0, %v7832
    %7834 = vmatmul.f32.gmra.mxu0 %v7198
    %v7835 = vpop.f32.mrf.mxu0
    %v7836 = vadd.f32 0.0, %v7835
    %7837 = vmatmul.f32.gmra.mxu0 %v7199
    %v7838 = vpop.f32.mrf.mxu0
    %v7839 = vadd.f32 0.0, %v7838
    %7840 = vmatmul.f32.gmra.mxu0 %v7200
    %v7841 = vpop.f32.mrf.mxu0
    %v7842 = vadd.f32 0.0, %v7841
    %7843 = vmatmul.f32.gmra.mxu0 %v7201
    %v7844 = vpop.f32.mrf.mxu0
    %v7845 = vadd.f32 0.0, %v7844
    %7846 = vmatmul.f32.gmra.mxu0 %v7202
    %v7847 = vpop.f32.mrf.mxu0
    %v7848 = vadd.f32 0.0, %v7847
    %7849 = vmatmul.f32.gmra.mxu0 %v7203
    %v7850 = vpop.f32.mrf.mxu0
    %v7851 = vadd.f32 0.0, %v7850
    %7852 = vmatmul.f32.gmra.mxu0 %v7204
    %v7853 = vpop.f32.mrf.mxu0
    %v7854 = vadd.f32 0.0, %v7853
    %7855 = vmatmul.f32.gmra.mxu0 %v7205
    %v7856 = vpop.f32.mrf.mxu0
    %v7857 = vadd.f32 0.0, %v7856
    %7858 = vmatmul.f32.gmra.mxu0 %v7206
    %v7859 = vpop.f32.mrf.mxu0
    %v7860 = vadd.f32 0.0, %v7859
    %7861 = vmatmul.f32.gmra.mxu0 %v7207
    %v7862 = vpop.f32.mrf.mxu0
    %v7863 = vadd.f32 0.0, %v7862
    %7864 = vmatmul.f32.gmra.mxu0 %v7208
    %v7865 = vpop.f32.mrf.mxu0
    %v7866 = vadd.f32 0.0, %v7865
    %7867 = vmatmul.f32.gmra.mxu0 %v7209
    %v7868 = vpop.f32.mrf.mxu0
    %v7869 = vadd.f32 0.0, %v7868
    %7870 = vmatmul.f32.gmra.mxu0 %v7210
    %v7871 = vpop.f32.mrf.mxu0
    %v7872 = vadd.f32 0.0, %v7871
    %7873 = vmatmul.f32.gmra.mxu0 %v7211
    %v7874 = vpop.f32.mrf.mxu0
    %v7875 = vadd.f32 0.0, %v7874
    %7876 = vmatmul.f32.gmra.mxu0 %v7212
    %v7877 = vpop.f32.mrf.mxu0
    %v7878 = vadd.f32 0.0, %v7877
    %7879 = vmatmul.f32.gmra.mxu0 %v7213
    %v7880 = vpop.f32.mrf.mxu0
    %v7881 = vadd.f32 0.0, %v7880
    %7882 = vmatmul.f32.gmra.mxu0 %v7214
    %v7883 = vpop.f32.mrf.mxu0
    %v7884 = vadd.f32 0.0, %v7883
    %7885 = vmatmul.f32.gmra.mxu0 %v7215
    %v7886 = vpop.f32.mrf.mxu0
    %v7887 = vadd.f32 0.0, %v7886
    %7888 = vmatmul.f32.gmra.mxu0 %v7216
    %v7889 = vpop.f32.mrf.mxu0
    %v7890 = vadd.f32 0.0, %v7889
    %7891 = vdwg.mxu0
    %v7892 = vadd.f32 %v7476, %v7701
    %v7893 = vadd.f32 %v7479, %v7704
    %v7894 = vadd.f32 %v7482, %v7707
    %v7895 = vadd.f32 %v7485, %v7710
    %v7896 = vadd.f32 %v7488, %v7713
    %v7897 = vadd.f32 %v7491, %v7716
    %v7898 = vadd.f32 %v7494, %v7719
    %v7899 = vadd.f32 %v7497, %v7722
    %v7900 = vadd.f32 %v7500, %v7725
    %v7901 = vadd.f32 %v7503, %v7728
    %v7902 = vadd.f32 %v7506, %v7731
    %v7903 = vadd.f32 %v7509, %v7734
    %v7904 = vadd.f32 %v7512, %v7737
    %v7905 = vadd.f32 %v7515, %v7740
    %v7906 = vadd.f32 %v7518, %v7743
    %v7907 = vadd.f32 %v7521, %v7746
    %v7908 = vadd.f32 %v7524, %v7749
    %v7909 = vadd.f32 %v7527, %v7752
    %v7910 = vadd.f32 %v7530, %v7755
    %v7911 = vadd.f32 %v7533, %v7758
    %v7912 = vadd.f32 %v7536, %v7761
    %v7913 = vadd.f32 %v7539, %v7764
    %v7914 = vadd.f32 %v7542, %v7767
    %v7915 = vadd.f32 %v7545, %v7770
    %v7916 = vadd.f32 %v7548, %v7773
    %v7917 = vadd.f32 %v7551, %v7776
    %v7918 = vadd.f32 %v7554, %v7779
    %v7919 = vadd.f32 %v7557, %v7782
    %v7920 = vadd.f32 %v7560, %v7785
    %v7921 = vadd.f32 %v7563, %v7788
    %v7922 = vadd.f32 %v7566, %v7791
    %v7923 = vadd.f32 %v7569, %v7794
    %v7924 = vadd.f32 %v7572, %v7797
    %v7925 = vadd.f32 %v7575, %v7800
    %v7926 = vadd.f32 %v7578, %v7803
    %v7927 = vadd.f32 %v7581, %v7806
    %v7928 = vadd.f32 %v7584, %v7809
    %v7929 = vadd.f32 %v7587, %v7812
    %v7930 = vadd.f32 %v7590, %v7815
    %v7931 = vadd.f32 %v7593, %v7818
    %v7932 = vadd.f32 %v7596, %v7821
    %v7933 = vadd.f32 %v7599, %v7824
    %v7934 = vadd.f32 %v7602, %v7827
    %v7935 = vadd.f32 %v7605, %v7830
    %v7936 = vadd.f32 %v7608, %v7833
    %v7937 = vadd.f32 %v7611, %v7836
    %v7938 = vadd.f32 %v7614, %v7839
    %v7939 = vadd.f32 %v7617, %v7842
    %v7940 = vadd.f32 %v7620, %v7845
    %v7941 = vadd.f32 %v7623, %v7848
    %v7942 = vadd.f32 %v7626, %v7851
    %v7943 = vadd.f32 %v7629, %v7854
    %v7944 = vadd.f32 %v7632, %v7857
    %v7945 = vadd.f32 %v7635, %v7860
    %v7946 = vadd.f32 %v7638, %v7863
    %v7947 = vadd.f32 %v7641, %v7866
    %v7948 = vadd.f32 %v7644, %v7869
    %v7949 = vadd.f32 %v7647, %v7872
    %v7950 = vadd.f32 %v7650, %v7875
    %v7951 = vadd.f32 %v7653, %v7878
    %v7952 = vadd.f32 %v7656, %v7881
    %v7953 = vadd.f32 %v7659, %v7884
    %v7954 = vadd.f32 %v7662, %v7887
    %v7955 = vadd.f32 %v7665, %v7890
    %7956 = vst [vmem:[#allocation1] ss:$4 sm:$0xff] %v39
    %v7957 = vld.sshfl [vmem:[#allocation1] sm:$0xff pattern:$0x73625140]
    %v7958 = vld.sshfl [vmem:[#allocation1 + $0x8] sm:$0xff pattern:$0x73625140]
    %v7959 = vld.sshfl [vmem:[#allocation1 + $0x10] sm:$0xff pattern:$0x73625140]
    %v7960 = vld.sshfl [vmem:[#allocation1 + $0x18] sm:$0xff pattern:$0x73625140]
    %7965 = vmatpush.msra.mxu0 %v7907
    %7966 = vmatpush.msra.mxu0 %v7906
    %7967 = vmatpush.msra.mxu0 %v7905
    %7968 = vmatpush.msra.mxu0 %v7904
    %7969 = vmatpush.msra.mxu0 %v7903
    %7970 = vmatpush.msra.mxu0 %v7902
    %7971 = vmatpush.msra.mxu0 %v7901
    %7972 = vmatpush.msra.mxu0 %v7900
    %7973 = vmatpush.msra.mxu0 %v7899
    %7974 = vmatpush.msra.mxu0 %v7898
    %7975 = vmatpush.msra.mxu0 %v7897
    %7976 = vmatpush.msra.mxu0 %v7896
    %7977 = vmatpush.msra.mxu0 %v7895
    %7978 = vmatpush.msra.mxu0 %v7894
    %7979 = vmatpush.msra.mxu0 %v7893
    %7980 = vmatpush.msra.mxu0 %v7892
    %7981 = vmatmul.f32.gmra.mxu0 %v7957
    %v7982 = vpop.f32.mrf.mxu0
    %v7983 = vadd.f32 0.0, %v7982
    %7984 = vdwg.mxu0
    %7985 = vmatpush.msra.mxu0 %v7923
    %7986 = vmatpush.msra.mxu0 %v7922
    %7987 = vmatpush.msra.mxu0 %v7921
    %7988 = vmatpush.msra.mxu0 %v7920
    %7989 = vmatpush.msra.mxu0 %v7919
    %7990 = vmatpush.msra.mxu0 %v7918
    %7991 = vmatpush.msra.mxu0 %v7917
    %7992 = vmatpush.msra.mxu0 %v7916
    %7993 = vmatpush.msra.mxu0 %v7915
    %7994 = vmatpush.msra.mxu0 %v7914
    %7995 = vmatpush.msra.mxu0 %v7913
    %7996 = vmatpush.msra.mxu0 %v7912
    %7997 = vmatpush.msra.mxu0 %v7911
    %7998 = vmatpush.msra.mxu0 %v7910
    %7999 = vmatpush.msra.mxu0 %v7909
    %8000 = vmatpush.msra.mxu0 %v7908
    %8001 = vmatmul.f32.gmra.mxu0 %v7958
    %v8002 = vpop.f32.mrf.mxu0
    %v8003 = vadd.f32 %v7983, %v8002
    %8004 = vdwg.mxu0
    %8005 = vmatpush.msra.mxu0 %v7939
    %8006 = vmatpush.msra.mxu0 %v7938
    %8007 = vmatpush.msra.mxu0 %v7937
    %8008 = vmatpush.msra.mxu0 %v7936
    %8009 = vmatpush.msra.mxu0 %v7935
    %8010 = vmatpush.msra.mxu0 %v7934
    %8011 = vmatpush.msra.mxu0 %v7933
    %8012 = vmatpush.msra.mxu0 %v7932
    %8013 = vmatpush.msra.mxu0 %v7931
    %8014 = vmatpush.msra.mxu0 %v7930
    %8015 = vmatpush.msra.mxu0 %v7929
    %8016 = vmatpush.msra.mxu0 %v7928
    %8017 = vmatpush.msra.mxu0 %v7927
    %8018 = vmatpush.msra.mxu0 %v7926
    %8019 = vmatpush.msra.mxu0 %v7925
    %8020 = vmatpush.msra.mxu0 %v7924
    %8021 = vmatmul.f32.gmra.mxu0 %v7959
    %v8022 = vpop.f32.mrf.mxu0
    %v8023 = vadd.f32 %v8003, %v8022
    %8024 = vdwg.mxu0
    %8025 = vmatpush.msra.mxu0 %v7955
    %8026 = vmatpush.msra.mxu0 %v7954
    %8027 = vmatpush.msra.mxu0 %v7953
    %8028 = vmatpush.msra.mxu0 %v7952
    %8029 = vmatpush.msra.mxu0 %v7951
    %8030 = vmatpush.msra.mxu0 %v7950
    %8031 = vmatpush.msra.mxu0 %v7949
    %8032 = vmatpush.msra.mxu0 %v7948
    %8033 = vmatpush.msra.mxu0 %v7947
    %8034 = vmatpush.msra.mxu0 %v7946
    %8035 = vmatpush.msra.mxu0 %v7945
    %8036 = vmatpush.msra.mxu0 %v7944
    %8037 = vmatpush.msra.mxu0 %v7943
    %8038 = vmatpush.msra.mxu0 %v7942
    %8039 = vmatpush.msra.mxu0 %v7941
    %8040 = vmatpush.msra.mxu0 %v7940
    %8041 = vmatmul.f32.gmra.mxu0 %v7960
    %v8042 = vpop.f32.mrf.mxu0
    %v8043 = vadd.f32 %v8023, %v8042
    %8044 = vdwg.mxu0
    %v8045 = vmul.f32 %v7892, %v7892
    %v8046 = vmul.f32 %v7893, %v7893
    %v8047 = vmul.f32 %v7894, %v7894
    %v8048 = vmul.f32 %v7895, %v7895
    %v8049 = vmul.f32 %v7896, %v7896
    %v8050 = vmul.f32 %v7897, %v7897
    %v8051 = vmul.f32 %v7898, %v7898
    %v8052 = vmul.f32 %v7899, %v7899
    %v8053 = vmul.f32 %v7900, %v7900
    %v8054 = vmul.f32 %v7901, %v7901
    %v8055 = vmul.f32 %v7902, %v7902
    %v8056 = vmul.f32 %v7903, %v7903
    %v8057 = vmul.f32 %v7904, %v7904
    %v8058 = vmul.f32 %v7905, %v7905
    %v8059 = vmul.f32 %v7906, %v7906
    %v8060 = vmul.f32 %v7907, %v7907
    %v8061 = vmul.f32 %v7908, %v7908
    %v8062 = vmul.f32 %v7909, %v7909
    %v8063 = vmul.f32 %v7910, %v7910
    %v8064 = vmul.f32 %v7911, %v7911
    %v8065 = vmul.f32 %v7912, %v7912
    %v8066 = vmul.f32 %v7913, %v7913
    %v8067 = vmul.f32 %v7914, %v7914
    %v8068 = vmul.f32 %v7915, %v7915
    %v8069 = vmul.f32 %v7916, %v7916
    %v8070 = vmul.f32 %v7917, %v7917
    %v8071 = vmul.f32 %v7918, %v7918
    %v8072 = vmul.f32 %v7919, %v7919
    %v8073 = vmul.f32 %v7920, %v7920
    %v8074 = vmul.f32 %v7921, %v7921
    %v8075 = vmul.f32 %v7922, %v7922
    %v8076 = vmul.f32 %v7923, %v7923
    %v8077 = vmul.f32 %v7924, %v7924
    %v8078 = vmul.f32 %v7925, %v7925
    %v8079 = vmul.f32 %v7926, %v7926
    %v8080 = vmul.f32 %v7927, %v7927
    %v8081 = vmul.f32 %v7928, %v7928
    %v8082 = vmul.f32 %v7929, %v7929
    %v8083 = vmul.f32 %v7930, %v7930
    %v8084 = vmul.f32 %v7931, %v7931
    %v8085 = vmul.f32 %v7932, %v7932
    %v8086 = vmul.f32 %v7933, %v7933
    %v8087 = vmul.f32 %v7934, %v7934
    %v8088 = vmul.f32 %v7935, %v7935
    %v8089 = vmul.f32 %v7936, %v7936
    %v8090 = vmul.f32 %v7937, %v7937
    %v8091 = vmul.f32 %v7938, %v7938
    %v8092 = vmul.f32 %v7939, %v7939
    %v8093 = vmul.f32 %v7940, %v7940
    %v8094 = vmul.f32 %v7941, %v7941
    %v8095 = vmul.f32 %v7942, %v7942
    %v8096 = vmul.f32 %v7943, %v7943
    %v8097 = vmul.f32 %v7944, %v7944
    %v8098 = vmul.f32 %v7945, %v7945
    %v8099 = vmul.f32 %v7946, %v7946
    %v8100 = vmul.f32 %v7947, %v7947
    %v8101 = vmul.f32 %v7948, %v7948
    %v8102 = vmul.f32 %v7949, %v7949
    %v8103 = vmul.f32 %v7950, %v7950
    %v8104 = vmul.f32 %v7951, %v7951
    %v8105 = vmul.f32 %v7952, %v7952
    %v8106 = vmul.f32 %v7953, %v7953
    %v8107 = vmul.f32 %v7954, %v7954
    %v8108 = vmul.f32 %v7955, %v7955
    %8109 = vst [vmem:[#allocation1] ss:$4 sm:$0xff] %v39
    %v8110 = vld.sshfl [vmem:[#allocation1] sm:$0xff pattern:$0x73625140]
    %v8111 = vld.sshfl [vmem:[#allocation1 + $0x8] sm:$0xff pattern:$0x73625140]
    %v8112 = vld.sshfl [vmem:[#allocation1 + $0x10] sm:$0xff pattern:$0x73625140]
    %v8113 = vld.sshfl [vmem:[#allocation1 + $0x18] sm:$0xff pattern:$0x73625140]
    %8118 = vmatpush.msra.mxu0 %v8060
    %8119 = vmatpush.msra.mxu0 %v8059
    %8120 = vmatpush.msra.mxu0 %v8058
    %8121 = vmatpush.msra.mxu0 %v8057
    %8122 = vmatpush.msra.mxu0 %v8056
    %8123 = vmatpush.msra.mxu0 %v8055
    %8124 = vmatpush.msra.mxu0 %v8054
    %8125 = vmatpush.msra.mxu0 %v8053
    %8126 = vmatpush.msra.mxu0 %v8052
    %8127 = vmatpush.msra.mxu0 %v8051
    %8128 = vmatpush.msra.mxu0 %v8050
    %8129 = vmatpush.msra.mxu0 %v8049
    %8130 = vmatpush.msra.mxu0 %v8048
    %8131 = vmatpush.msra.mxu0 %v8047
    %8132 = vmatpush.msra.mxu0 %v8046
    %8133 = vmatpush.msra.mxu0 %v8045
    %8134 = vmatmul.f32.gmra.mxu0 %v8110
    %v8135 = vpop.f32.mrf.mxu0
    %v8136 = vadd.f32 0.0, %v8135
    %8137 = vdwg.mxu0
    %8138 = vmatpush.msra.mxu0 %v8076
    %8139 = vmatpush.msra.mxu0 %v8075
    %8140 = vmatpush.msra.mxu0 %v8074
    %8141 = vmatpush.msra.mxu0 %v8073
    %8142 = vmatpush.msra.mxu0 %v8072
    %8143 = vmatpush.msra.mxu0 %v8071
    %8144 = vmatpush.msra.mxu0 %v8070
    %8145 = vmatpush.msra.mxu0 %v8069
    %8146 = vmatpush.msra.mxu0 %v8068
    %8147 = vmatpush.msra.mxu0 %v8067
    %8148 = vmatpush.msra.mxu0 %v8066
    %8149 = vmatpush.msra.mxu0 %v8065
    %8150 = vmatpush.msra.mxu0 %v8064
    %8151 = vmatpush.msra.mxu0 %v8063
    %8152 = vmatpush.msra.mxu0 %v8062
    %8153 = vmatpush.msra.mxu0 %v8061
    %8154 = vmatmul.f32.gmra.mxu0 %v8111
    %v8155 = vpop.f32.mrf.mxu0
    %v8156 = vadd.f32 %v8136, %v8155
    %8157 = vdwg.mxu0
    %8158 = vmatpush.msra.mxu0 %v8092
    %8159 = vmatpush.msra.mxu0 %v8091
    %8160 = vmatpush.msra.mxu0 %v8090
    %8161 = vmatpush.msra.mxu0 %v8089
    %8162 = vmatpush.msra.mxu0 %v8088
    %8163 = vmatpush.msra.mxu0 %v8087
    %8164 = vmatpush.msra.mxu0 %v8086
    %8165 = vmatpush.msra.mxu0 %v8085
    %8166 = vmatpush.msra.mxu0 %v8084
    %8167 = vmatpush.msra.mxu0 %v8083
    %8168 = vmatpush.msra.mxu0 %v8082
    %8169 = vmatpush.msra.mxu0 %v8081
    %8170 = vmatpush.msra.mxu0 %v8080
    %8171 = vmatpush.msra.mxu0 %v8079
    %8172 = vmatpush.msra.mxu0 %v8078
    %8173 = vmatpush.msra.mxu0 %v8077
    %8174 = vmatmul.f32.gmra.mxu0 %v8112
    %v8175 = vpop.f32.mrf.mxu0
    %v8176 = vadd.f32 %v8156, %v8175
    %8177 = vdwg.mxu0
    %8178 = vmatpush.msra.mxu0 %v8108
    %8179 = vmatpush.msra.mxu0 %v8107
    %8180 = vmatpush.msra.mxu0 %v8106
    %8181 = vmatpush.msra.mxu0 %v8105
    %8182 = vmatpush.msra.mxu0 %v8104
    %8183 = vmatpush.msra.mxu0 %v8103
    %8184 = vmatpush.msra.mxu0 %v8102
    %8185 = vmatpush.msra.mxu0 %v8101
    %8186 = vmatpush.msra.mxu0 %v8100
    %8187 = vmatpush.msra.mxu0 %v8099
    %8188 = vmatpush.msra.mxu0 %v8098
    %8189 = vmatpush.msra.mxu0 %v8097
    %8190 = vmatpush.msra.mxu0 %v8096
    %8191 = vmatpush.msra.mxu0 %v8095
    %8192 = vmatpush.msra.mxu0 %v8094
    %8193 = vmatpush.msra.mxu0 %v8093
    %8194 = vmatmul.f32.gmra.mxu0 %v8113
    %v8195 = vpop.f32.mrf.mxu0
    %v8196 = vadd.f32 %v8176, %v8195
    %8197 = vdwg.mxu0
    %v8198 = vmul.f32 %v8043, 0.00390625
    %v8199 = vmul.f32 %v8196, 0.00390625
    %v8200 = vmul.f32 %v8198, %v8198
    %v8201 = vsub.f32 %v8199, %v8200
    %v8202 = vadd.f32 %v8201, 1e-05
    %v8203 = vrsqrt.pop %v8202
    %v8204 = vmul.f32 %v8203, %v8202
    %v8205 = vmul.f32 %v8204, %v8203
    %v8206 = vmul.f32 0.5, %v8205
    %v8207 = vsub.f32 1.5, %v8206
    %v8208 = vmul.f32 %v8203, %v8207
    %vm8209 = vweird.f32 %v8202
    %vm8210 = vweird.f32 %v8203
    %vm8211 = vmor %vm8209, %vm8210
    %v8212 = vsel %vm8211, %v8203, %v8208
    %v8213 = vsub.f32 0.0, %v8198
    %v8214 = vmul.f32 %v8213, %v8212
    %v8216 = vsel %vm1242, %v8212, 0
    %v8219 = vsel %vm1242, %v8214, 0
    %8221 = vmatpush.msra.mxu0 0.0
    %8222 = vmatpush.msra.mxu0 0.0
    %8223 = vmatpush.msra.mxu0 0.0
    %8224 = vmatpush.msra.mxu0 0.0
    %8225 = vmatpush.msra.mxu0 0.0
    %8226 = vmatpush.msra.mxu0 0.0
    %8227 = vmatpush.msra.mxu0 0.0
    %8228 = vmatpush.msra.mxu0 0.0
    %8229 = vmatpush.msra.mxu0 0.0
    %8230 = vmatpush.msra.mxu0 0.0
    %8231 = vmatpush.msra.mxu0 0.0
    %8232 = vmatpush.msra.mxu0 0.0
    %8233 = vmatpush.msra.mxu0 0.0
    %8234 = vmatpush.msra.mxu0 0.0
    %8235 = vmatpush.msra.mxu0 0.0
    %8236 = vmatpush.msra.mxu0 %v8216
    %8237 = vmatmul.f32.gmra.mxu0 %v1051
    %v8238 = vpop.f32.mrf.mxu0
    %v8239 = vadd.f32 0.0, %v8238
    %8240 = vmatmul.f32.gmra.mxu0 %v1054
    %v8241 = vpop.f32.mrf.mxu0
    %v8242 = vadd.f32 0.0, %v8241
    %8243 = vmatmul.f32.gmra.mxu0 %v1057
    %v8244 = vpop.f32.mrf.mxu0
    %v8245 = vadd.f32 0.0, %v8244
    %8246 = vmatmul.f32.gmra.mxu0 %v1060
    %v8247 = vpop.f32.mrf.mxu0
    %v8248 = vadd.f32 0.0, %v8247
    %8249 = vmatmul.f32.gmra.mxu0 %v1063
    %v8250 = vpop.f32.mrf.mxu0
    %v8251 = vadd.f32 0.0, %v8250
    %8252 = vmatmul.f32.gmra.mxu0 %v1066
    %v8253 = vpop.f32.mrf.mxu0
    %v8254 = vadd.f32 0.0, %v8253
    %8255 = vmatmul.f32.gmra.mxu0 %v1069
    %v8256 = vpop.f32.mrf.mxu0
    %v8257 = vadd.f32 0.0, %v8256
    %8258 = vmatmul.f32.gmra.mxu0 %v1072
    %v8259 = vpop.f32.mrf.mxu0
    %v8260 = vadd.f32 0.0, %v8259
    %8261 = vmatmul.f32.gmra.mxu0 %v1075
    %v8262 = vpop.f32.mrf.mxu0
    %v8263 = vadd.f32 0.0, %v8262
    %8264 = vmatmul.f32.gmra.mxu0 %v1078
    %v8265 = vpop.f32.mrf.mxu0
    %v8266 = vadd.f32 0.0, %v8265
    %8267 = vmatmul.f32.gmra.mxu0 %v1081
    %v8268 = vpop.f32.mrf.mxu0
    %v8269 = vadd.f32 0.0, %v8268
    %8270 = vmatmul.f32.gmra.mxu0 %v1084
    %v8271 = vpop.f32.mrf.mxu0
    %v8272 = vadd.f32 0.0, %v8271
    %8273 = vmatmul.f32.gmra.mxu0 %v1087
    %v8274 = vpop.f32.mrf.mxu0
    %v8275 = vadd.f32 0.0, %v8274
    %8276 = vmatmul.f32.gmra.mxu0 %v1090
    %v8277 = vpop.f32.mrf.mxu0
    %v8278 = vadd.f32 0.0, %v8277
    %8279 = vmatmul.f32.gmra.mxu0 %v1093
    %v8280 = vpop.f32.mrf.mxu0
    %v8281 = vadd.f32 0.0, %v8280
    %8282 = vmatmul.f32.gmra.mxu0 %v1096
    %v8283 = vpop.f32.mrf.mxu0
    %v8284 = vadd.f32 0.0, %v8283
    %8285 = vmatmul.f32.gmra.mxu0 %v1099
    %v8286 = vpop.f32.mrf.mxu0
    %v8287 = vadd.f32 0.0, %v8286
    %8288 = vmatmul.f32.gmra.mxu0 %v1102
    %v8289 = vpop.f32.mrf.mxu0
    %v8290 = vadd.f32 0.0, %v8289
    %8291 = vmatmul.f32.gmra.mxu0 %v1105
    %v8292 = vpop.f32.mrf.mxu0
    %v8293 = vadd.f32 0.0, %v8292
    %8294 = vmatmul.f32.gmra.mxu0 %v1108
    %v8295 = vpop.f32.mrf.mxu0
    %v8296 = vadd.f32 0.0, %v8295
    %8297 = vmatmul.f32.gmra.mxu0 %v1111
    %v8298 = vpop.f32.mrf.mxu0
    %v8299 = vadd.f32 0.0, %v8298
    %8300 = vmatmul.f32.gmra.mxu0 %v1114
    %v8301 = vpop.f32.mrf.mxu0
    %v8302 = vadd.f32 0.0, %v8301
    %8303 = vmatmul.f32.gmra.mxu0 %v1117
    %v8304 = vpop.f32.mrf.mxu0
    %v8305 = vadd.f32 0.0, %v8304
    %8306 = vmatmul.f32.gmra.mxu0 %v1120
    %v8307 = vpop.f32.mrf.mxu0
    %v8308 = vadd.f32 0.0, %v8307
    %8309 = vmatmul.f32.gmra.mxu0 %v1123
    %v8310 = vpop.f32.mrf.mxu0
    %v8311 = vadd.f32 0.0, %v8310
    %8312 = vmatmul.f32.gmra.mxu0 %v1126
    %v8313 = vpop.f32.mrf.mxu0
    %v8314 = vadd.f32 0.0, %v8313
    %8315 = vmatmul.f32.gmra.mxu0 %v1129
    %v8316 = vpop.f32.mrf.mxu0
    %v8317 = vadd.f32 0.0, %v8316
    %8318 = vmatmul.f32.gmra.mxu0 %v1132
    %v8319 = vpop.f32.mrf.mxu0
    %v8320 = vadd.f32 0.0, %v8319
    %8321 = vmatmul.f32.gmra.mxu0 %v1135
    %v8322 = vpop.f32.mrf.mxu0
    %v8323 = vadd.f32 0.0, %v8322
    %8324 = vmatmul.f32.gmra.mxu0 %v1138
    %v8325 = vpop.f32.mrf.mxu0
    %v8326 = vadd.f32 0.0, %v8325
    %8327 = vmatmul.f32.gmra.mxu0 %v1141
    %v8328 = vpop.f32.mrf.mxu0
    %v8329 = vadd.f32 0.0, %v8328
    %8330 = vmatmul.f32.gmra.mxu0 %v1144
    %v8331 = vpop.f32.mrf.mxu0
    %v8332 = vadd.f32 0.0, %v8331
    %8333 = vmatmul.f32.gmra.mxu0 %v1147
    %v8334 = vpop.f32.mrf.mxu0
    %v8335 = vadd.f32 0.0, %v8334
    %8336 = vmatmul.f32.gmra.mxu0 %v1150
    %v8337 = vpop.f32.mrf.mxu0
    %v8338 = vadd.f32 0.0, %v8337
    %8339 = vmatmul.f32.gmra.mxu0 %v1153
    %v8340 = vpop.f32.mrf.mxu0
    %v8341 = vadd.f32 0.0, %v8340
    %8342 = vmatmul.f32.gmra.mxu0 %v1156
    %v8343 = vpop.f32.mrf.mxu0
    %v8344 = vadd.f32 0.0, %v8343
    %8345 = vmatmul.f32.gmra.mxu0 %v1159
    %v8346 = vpop.f32.mrf.mxu0
    %v8347 = vadd.f32 0.0, %v8346
    %8348 = vmatmul.f32.gmra.mxu0 %v1162
    %v8349 = vpop.f32.mrf.mxu0
    %v8350 = vadd.f32 0.0, %v8349
    %8351 = vmatmul.f32.gmra.mxu0 %v1165
    %v8352 = vpop.f32.mrf.mxu0
    %v8353 = vadd.f32 0.0, %v8352
    %8354 = vmatmul.f32.gmra.mxu0 %v1168
    %v8355 = vpop.f32.mrf.mxu0
    %v8356 = vadd.f32 0.0, %v8355
    %8357 = vmatmul.f32.gmra.mxu0 %v1171
    %v8358 = vpop.f32.mrf.mxu0
    %v8359 = vadd.f32 0.0, %v8358
    %8360 = vmatmul.f32.gmra.mxu0 %v1174
    %v8361 = vpop.f32.mrf.mxu0
    %v8362 = vadd.f32 0.0, %v8361
    %8363 = vmatmul.f32.gmra.mxu0 %v1177
    %v8364 = vpop.f32.mrf.mxu0
    %v8365 = vadd.f32 0.0, %v8364
    %8366 = vmatmul.f32.gmra.mxu0 %v1180
    %v8367 = vpop.f32.mrf.mxu0
    %v8368 = vadd.f32 0.0, %v8367
    %8369 = vmatmul.f32.gmra.mxu0 %v1183
    %v8370 = vpop.f32.mrf.mxu0
    %v8371 = vadd.f32 0.0, %v8370
    %8372 = vmatmul.f32.gmra.mxu0 %v1186
    %v8373 = vpop.f32.mrf.mxu0
    %v8374 = vadd.f32 0.0, %v8373
    %8375 = vmatmul.f32.gmra.mxu0 %v1189
    %v8376 = vpop.f32.mrf.mxu0
    %v8377 = vadd.f32 0.0, %v8376
    %8378 = vmatmul.f32.gmra.mxu0 %v1192
    %v8379 = vpop.f32.mrf.mxu0
    %v8380 = vadd.f32 0.0, %v8379
    %8381 = vmatmul.f32.gmra.mxu0 %v1195
    %v8382 = vpop.f32.mrf.mxu0
    %v8383 = vadd.f32 0.0, %v8382
    %8384 = vmatmul.f32.gmra.mxu0 %v1198
    %v8385 = vpop.f32.mrf.mxu0
    %v8386 = vadd.f32 0.0, %v8385
    %8387 = vmatmul.f32.gmra.mxu0 %v1201
    %v8388 = vpop.f32.mrf.mxu0
    %v8389 = vadd.f32 0.0, %v8388
    %8390 = vmatmul.f32.gmra.mxu0 %v1204
    %v8391 = vpop.f32.mrf.mxu0
    %v8392 = vadd.f32 0.0, %v8391
    %8393 = vmatmul.f32.gmra.mxu0 %v1207
    %v8394 = vpop.f32.mrf.mxu0
    %v8395 = vadd.f32 0.0, %v8394
    %8396 = vmatmul.f32.gmra.mxu0 %v1210
    %v8397 = vpop.f32.mrf.mxu0
    %v8398 = vadd.f32 0.0, %v8397
    %8399 = vmatmul.f32.gmra.mxu0 %v1213
    %v8400 = vpop.f32.mrf.mxu0
    %v8401 = vadd.f32 0.0, %v8400
    %8402 = vmatmul.f32.gmra.mxu0 %v1216
    %v8403 = vpop.f32.mrf.mxu0
    %v8404 = vadd.f32 0.0, %v8403
    %8405 = vmatmul.f32.gmra.mxu0 %v1219
    %v8406 = vpop.f32.mrf.mxu0
    %v8407 = vadd.f32 0.0, %v8406
    %8408 = vmatmul.f32.gmra.mxu0 %v1222
    %v8409 = vpop.f32.mrf.mxu0
    %v8410 = vadd.f32 0.0, %v8409
    %8411 = vmatmul.f32.gmra.mxu0 %v1225
    %v8412 = vpop.f32.mrf.mxu0
    %v8413 = vadd.f32 0.0, %v8412
    %8414 = vmatmul.f32.gmra.mxu0 %v1228
    %v8415 = vpop.f32.mrf.mxu0
    %v8416 = vadd.f32 0.0, %v8415
    %8417 = vmatmul.f32.gmra.mxu0 %v1231
    %v8418 = vpop.f32.mrf.mxu0
    %v8419 = vadd.f32 0.0, %v8418
    %8420 = vmatmul.f32.gmra.mxu0 %v1234
    %v8421 = vpop.f32.mrf.mxu0
    %v8422 = vadd.f32 0.0, %v8421
    %8423 = vmatmul.f32.gmra.mxu0 %v1237
    %v8424 = vpop.f32.mrf.mxu0
    %v8425 = vadd.f32 0.0, %v8424
    %8426 = vmatmul.f32.gmra.mxu0 %v1240
    %v8427 = vpop.f32.mrf.mxu0
    %v8428 = vadd.f32 0.0, %v8427
    %8429 = vdwg.mxu0
    %8430 = vmatpush.msra.mxu0 0.0
    %8431 = vmatpush.msra.mxu0 0.0
    %8432 = vmatpush.msra.mxu0 0.0
    %8433 = vmatpush.msra.mxu0 0.0
    %8434 = vmatpush.msra.mxu0 0.0
    %8435 = vmatpush.msra.mxu0 0.0
    %8436 = vmatpush.msra.mxu0 0.0
    %8437 = vmatpush.msra.mxu0 0.0
    %8438 = vmatpush.msra.mxu0 0.0
    %8439 = vmatpush.msra.mxu0 0.0
    %8440 = vmatpush.msra.mxu0 0.0
    %8441 = vmatpush.msra.mxu0 0.0
    %8442 = vmatpush.msra.mxu0 0.0
    %8443 = vmatpush.msra.mxu0 0.0
    %8444 = vmatpush.msra.mxu0 0.0
    %8445 = vmatpush.msra.mxu0 %v8219
    %8446 = vmatmul.f32.gmra.mxu0 %v1051
    %v8447 = vpop.f32.mrf.mxu0
    %v8448 = vadd.f32 0.0, %v8447
    %8449 = vmatmul.f32.gmra.mxu0 %v1054
    %v8450 = vpop.f32.mrf.mxu0
    %v8451 = vadd.f32 0.0, %v8450
    %8452 = vmatmul.f32.gmra.mxu0 %v1057
    %v8453 = vpop.f32.mrf.mxu0
    %v8454 = vadd.f32 0.0, %v8453
    %8455 = vmatmul.f32.gmra.mxu0 %v1060
    %v8456 = vpop.f32.mrf.mxu0
    %v8457 = vadd.f32 0.0, %v8456
    %8458 = vmatmul.f32.gmra.mxu0 %v1063
    %v8459 = vpop.f32.mrf.mxu0
    %v8460 = vadd.f32 0.0, %v8459
    %8461 = vmatmul.f32.gmra.mxu0 %v1066
    %v8462 = vpop.f32.mrf.mxu0
    %v8463 = vadd.f32 0.0, %v8462
    %8464 = vmatmul.f32.gmra.mxu0 %v1069
    %v8465 = vpop.f32.mrf.mxu0
    %v8466 = vadd.f32 0.0, %v8465
    %8467 = vmatmul.f32.gmra.mxu0 %v1072
    %v8468 = vpop.f32.mrf.mxu0
    %v8469 = vadd.f32 0.0, %v8468
    %8470 = vmatmul.f32.gmra.mxu0 %v1075
    %v8471 = vpop.f32.mrf.mxu0
    %v8472 = vadd.f32 0.0, %v8471
    %8473 = vmatmul.f32.gmra.mxu0 %v1078
    %v8474 = vpop.f32.mrf.mxu0
    %v8475 = vadd.f32 0.0, %v8474
    %8476 = vmatmul.f32.gmra.mxu0 %v1081
    %v8477 = vpop.f32.mrf.mxu0
    %v8478 = vadd.f32 0.0, %v8477
    %8479 = vmatmul.f32.gmra.mxu0 %v1084
    %v8480 = vpop.f32.mrf.mxu0
    %v8481 = vadd.f32 0.0, %v8480
    %8482 = vmatmul.f32.gmra.mxu0 %v1087
    %v8483 = vpop.f32.mrf.mxu0
    %v8484 = vadd.f32 0.0, %v8483
    %8485 = vmatmul.f32.gmra.mxu0 %v1090
    %v8486 = vpop.f32.mrf.mxu0
    %v8487 = vadd.f32 0.0, %v8486
    %8488 = vmatmul.f32.gmra.mxu0 %v1093
    %v8489 = vpop.f32.mrf.mxu0
    %v8490 = vadd.f32 0.0, %v8489
    %8491 = vmatmul.f32.gmra.mxu0 %v1096
    %v8492 = vpop.f32.mrf.mxu0
    %v8493 = vadd.f32 0.0, %v8492
    %8494 = vmatmul.f32.gmra.mxu0 %v1099
    %v8495 = vpop.f32.mrf.mxu0
    %v8496 = vadd.f32 0.0, %v8495
    %8497 = vmatmul.f32.gmra.mxu0 %v1102
    %v8498 = vpop.f32.mrf.mxu0
    %v8499 = vadd.f32 0.0, %v8498
    %8500 = vmatmul.f32.gmra.mxu0 %v1105
    %v8501 = vpop.f32.mrf.mxu0
    %v8502 = vadd.f32 0.0, %v8501
    %8503 = vmatmul.f32.gmra.mxu0 %v1108
    %v8504 = vpop.f32.mrf.mxu0
    %v8505 = vadd.f32 0.0, %v8504
    %8506 = vmatmul.f32.gmra.mxu0 %v1111
    %v8507 = vpop.f32.mrf.mxu0
    %v8508 = vadd.f32 0.0, %v8507
    %8509 = vmatmul.f32.gmra.mxu0 %v1114
    %v8510 = vpop.f32.mrf.mxu0
    %v8511 = vadd.f32 0.0, %v8510
    %8512 = vmatmul.f32.gmra.mxu0 %v1117
    %v8513 = vpop.f32.mrf.mxu0
    %v8514 = vadd.f32 0.0, %v8513
    %8515 = vmatmul.f32.gmra.mxu0 %v1120
    %v8516 = vpop.f32.mrf.mxu0
    %v8517 = vadd.f32 0.0, %v8516
    %8518 = vmatmul.f32.gmra.mxu0 %v1123
    %v8519 = vpop.f32.mrf.mxu0
    %v8520 = vadd.f32 0.0, %v8519
    %8521 = vmatmul.f32.gmra.mxu0 %v1126
    %v8522 = vpop.f32.mrf.mxu0
    %v8523 = vadd.f32 0.0, %v8522
    %8524 = vmatmul.f32.gmra.mxu0 %v1129
    %v8525 = vpop.f32.mrf.mxu0
    %v8526 = vadd.f32 0.0, %v8525
    %8527 = vmatmul.f32.gmra.mxu0 %v1132
    %v8528 = vpop.f32.mrf.mxu0
    %v8529 = vadd.f32 0.0, %v8528
    %8530 = vmatmul.f32.gmra.mxu0 %v1135
    %v8531 = vpop.f32.mrf.mxu0
    %v8532 = vadd.f32 0.0, %v8531
    %8533 = vmatmul.f32.gmra.mxu0 %v1138
    %v8534 = vpop.f32.mrf.mxu0
    %v8535 = vadd.f32 0.0, %v8534
    %8536 = vmatmul.f32.gmra.mxu0 %v1141
    %v8537 = vpop.f32.mrf.mxu0
    %v8538 = vadd.f32 0.0, %v8537
    %8539 = vmatmul.f32.gmra.mxu0 %v1144
    %v8540 = vpop.f32.mrf.mxu0
    %v8541 = vadd.f32 0.0, %v8540
    %8542 = vmatmul.f32.gmra.mxu0 %v1147
    %v8543 = vpop.f32.mrf.mxu0
    %v8544 = vadd.f32 0.0, %v8543
    %8545 = vmatmul.f32.gmra.mxu0 %v1150
    %v8546 = vpop.f32.mrf.mxu0
    %v8547 = vadd.f32 0.0, %v8546
    %8548 = vmatmul.f32.gmra.mxu0 %v1153
    %v8549 = vpop.f32.mrf.mxu0
    %v8550 = vadd.f32 0.0, %v8549
    %8551 = vmatmul.f32.gmra.mxu0 %v1156
    %v8552 = vpop.f32.mrf.mxu0
    %v8553 = vadd.f32 0.0, %v8552
    %8554 = vmatmul.f32.gmra.mxu0 %v1159
    %v8555 = vpop.f32.mrf.mxu0
    %v8556 = vadd.f32 0.0, %v8555
    %8557 = vmatmul.f32.gmra.mxu0 %v1162
    %v8558 = vpop.f32.mrf.mxu0
    %v8559 = vadd.f32 0.0, %v8558
    %8560 = vmatmul.f32.gmra.mxu0 %v1165
    %v8561 = vpop.f32.mrf.mxu0
    %v8562 = vadd.f32 0.0, %v8561
    %8563 = vmatmul.f32.gmra.mxu0 %v1168
    %v8564 = vpop.f32.mrf.mxu0
    %v8565 = vadd.f32 0.0, %v8564
    %8566 = vmatmul.f32.gmra.mxu0 %v1171
    %v8567 = vpop.f32.mrf.mxu0
    %v8568 = vadd.f32 0.0, %v8567
    %8569 = vmatmul.f32.gmra.mxu0 %v1174
    %v8570 = vpop.f32.mrf.mxu0
    %v8571 = vadd.f32 0.0, %v8570
    %8572 = vmatmul.f32.gmra.mxu0 %v1177
    %v8573 = vpop.f32.mrf.mxu0
    %v8574 = vadd.f32 0.0, %v8573
    %8575 = vmatmul.f32.gmra.mxu0 %v1180
    %v8576 = vpop.f32.mrf.mxu0
    %v8577 = vadd.f32 0.0, %v8576
    %8578 = vmatmul.f32.gmra.mxu0 %v1183
    %v8579 = vpop.f32.mrf.mxu0
    %v8580 = vadd.f32 0.0, %v8579
    %8581 = vmatmul.f32.gmra.mxu0 %v1186
    %v8582 = vpop.f32.mrf.mxu0
    %v8583 = vadd.f32 0.0, %v8582
    %8584 = vmatmul.f32.gmra.mxu0 %v1189
    %v8585 = vpop.f32.mrf.mxu0
    %v8586 = vadd.f32 0.0, %v8585
    %8587 = vmatmul.f32.gmra.mxu0 %v1192
    %v8588 = vpop.f32.mrf.mxu0
    %v8589 = vadd.f32 0.0, %v8588
    %8590 = vmatmul.f32.gmra.mxu0 %v1195
    %v8591 = vpop.f32.mrf.mxu0
    %v8592 = vadd.f32 0.0, %v8591
    %8593 = vmatmul.f32.gmra.mxu0 %v1198
    %v8594 = vpop.f32.mrf.mxu0
    %v8595 = vadd.f32 0.0, %v8594
    %8596 = vmatmul.f32.gmra.mxu0 %v1201
    %v8597 = vpop.f32.mrf.mxu0
    %v8598 = vadd.f32 0.0, %v8597
    %8599 = vmatmul.f32.gmra.mxu0 %v1204
    %v8600 = vpop.f32.mrf.mxu0
    %v8601 = vadd.f32 0.0, %v8600
    %8602 = vmatmul.f32.gmra.mxu0 %v1207
    %v8603 = vpop.f32.mrf.mxu0
    %v8604 = vadd.f32 0.0, %v8603
    %8605 = vmatmul.f32.gmra.mxu0 %v1210
    %v8606 = vpop.f32.mrf.mxu0
    %v8607 = vadd.f32 0.0, %v8606
    %8608 = vmatmul.f32.gmra.mxu0 %v1213
    %v8609 = vpop.f32.mrf.mxu0
    %v8610 = vadd.f32 0.0, %v8609
    %8611 = vmatmul.f32.gmra.mxu0 %v1216
    %v8612 = vpop.f32.mrf.mxu0
    %v8613 = vadd.f32 0.0, %v8612
    %8614 = vmatmul.f32.gmra.mxu0 %v1219
    %v8615 = vpop.f32.mrf.mxu0
    %v8616 = vadd.f32 0.0, %v8615
    %8617 = vmatmul.f32.gmra.mxu0 %v1222
    %v8618 = vpop.f32.mrf.mxu0
    %v8619 = vadd.f32 0.0, %v8618
    %8620 = vmatmul.f32.gmra.mxu0 %v1225
    %v8621 = vpop.f32.mrf.mxu0
    %v8622 = vadd.f32 0.0, %v8621
    %8623 = vmatmul.f32.gmra.mxu0 %v1228
    %v8624 = vpop.f32.mrf.mxu0
    %v8625 = vadd.f32 0.0, %v8624
    %8626 = vmatmul.f32.gmra.mxu0 %v1231
    %v8627 = vpop.f32.mrf.mxu0
    %v8628 = vadd.f32 0.0, %v8627
    %8629 = vmatmul.f32.gmra.mxu0 %v1234
    %v8630 = vpop.f32.mrf.mxu0
    %v8631 = vadd.f32 0.0, %v8630
    %8632 = vmatmul.f32.gmra.mxu0 %v1237
    %v8633 = vpop.f32.mrf.mxu0
    %v8634 = vadd.f32 0.0, %v8633
    %8635 = vmatmul.f32.gmra.mxu0 %v1240
    %v8636 = vpop.f32.mrf.mxu0
    %v8637 = vadd.f32 0.0, %v8636
    %8638 = vdwg.mxu0
    %v8639 = vmul.f32 %v7892, %v8239
    %v8640 = vmul.f32 %v7893, %v8242
    %v8641 = vmul.f32 %v7894, %v8245
    %v8642 = vmul.f32 %v7895, %v8248
    %v8643 = vmul.f32 %v7896, %v8251
    %v8644 = vmul.f32 %v7897, %v8254
    %v8645 = vmul.f32 %v7898, %v8257
    %v8646 = vmul.f32 %v7899, %v8260
    %v8647 = vmul.f32 %v7900, %v8263
    %v8648 = vmul.f32 %v7901, %v8266
    %v8649 = vmul.f32 %v7902, %v8269
    %v8650 = vmul.f32 %v7903, %v8272
    %v8651 = vmul.f32 %v7904, %v8275
    %v8652 = vmul.f32 %v7905, %v8278
    %v8653 = vmul.f32 %v7906, %v8281
    %v8654 = vmul.f32 %v7907, %v8284
    %v8655 = vmul.f32 %v7908, %v8287
    %v8656 = vmul.f32 %v7909, %v8290
    %v8657 = vmul.f32 %v7910, %v8293
    %v8658 = vmul.f32 %v7911, %v8296
    %v8659 = vmul.f32 %v7912, %v8299
    %v8660 = vmul.f32 %v7913, %v8302
    %v8661 = vmul.f32 %v7914, %v8305
    %v8662 = vmul.f32 %v7915, %v8308
    %v8663 = vmul.f32 %v7916, %v8311
    %v8664 = vmul.f32 %v7917, %v8314
    %v8665 = vmul.f32 %v7918, %v8317
    %v8666 = vmul.f32 %v7919, %v8320
    %v8667 = vmul.f32 %v7920, %v8323
    %v8668 = vmul.f32 %v7921, %v8326
    %v8669 = vmul.f32 %v7922, %v8329
    %v8670 = vmul.f32 %v7923, %v8332
    %v8671 = vmul.f32 %v7924, %v8335
    %v8672 = vmul.f32 %v7925, %v8338
    %v8673 = vmul.f32 %v7926, %v8341
    %v8674 = vmul.f32 %v7927, %v8344
    %v8675 = vmul.f32 %v7928, %v8347
    %v8676 = vmul.f32 %v7929, %v8350
    %v8677 = vmul.f32 %v7930, %v8353
    %v8678 = vmul.f32 %v7931, %v8356
    %v8679 = vmul.f32 %v7932, %v8359
    %v8680 = vmul.f32 %v7933, %v8362
    %v8681 = vmul.f32 %v7934, %v8365
    %v8682 = vmul.f32 %v7935, %v8368
    %v8683 = vmul.f32 %v7936, %v8371
    %v8684 = vmul.f32 %v7937, %v8374
    %v8685 = vmul.f32 %v7938, %v8377
    %v8686 = vmul.f32 %v7939, %v8380
    %v8687 = vmul.f32 %v7940, %v8383
    %v8688 = vmul.f32 %v7941, %v8386
    %v8689 = vmul.f32 %v7942, %v8389
    %v8690 = vmul.f32 %v7943, %v8392
    %v8691 = vmul.f32 %v7944, %v8395
    %v8692 = vmul.f32 %v7945, %v8398
    %v8693 = vmul.f32 %v7946, %v8401
    %v8694 = vmul.f32 %v7947, %v8404
    %v8695 = vmul.f32 %v7948, %v8407
    %v8696 = vmul.f32 %v7949, %v8410
    %v8697 = vmul.f32 %v7950, %v8413
    %v8698 = vmul.f32 %v7951, %v8416
    %v8699 = vmul.f32 %v7952, %v8419
    %v8700 = vmul.f32 %v7953, %v8422
    %v8701 = vmul.f32 %v7954, %v8425
    %v8702 = vmul.f32 %v7955, %v8428
    %v8703 = vadd.f32 %v8639, %v8448
    %v8704 = vadd.f32 %v8640, %v8451
    %v8705 = vadd.f32 %v8641, %v8454
    %v8706 = vadd.f32 %v8642, %v8457
    %v8707 = vadd.f32 %v8643, %v8460
    %v8708 = vadd.f32 %v8644, %v8463
    %v8709 = vadd.f32 %v8645, %v8466
    %v8710 = vadd.f32 %v8646, %v8469
    %v8711 = vadd.f32 %v8647, %v8472
    %v8712 = vadd.f32 %v8648, %v8475
    %v8713 = vadd.f32 %v8649, %v8478
    %v8714 = vadd.f32 %v8650, %v8481
    %v8715 = vadd.f32 %v8651, %v8484
    %v8716 = vadd.f32 %v8652, %v8487
    %v8717 = vadd.f32 %v8653, %v8490
    %v8718 = vadd.f32 %v8654, %v8493
    %v8719 = vadd.f32 %v8655, %v8496
    %v8720 = vadd.f32 %v8656, %v8499
    %v8721 = vadd.f32 %v8657, %v8502
    %v8722 = vadd.f32 %v8658, %v8505
    %v8723 = vadd.f32 %v8659, %v8508
    %v8724 = vadd.f32 %v8660, %v8511
    %v8725 = vadd.f32 %v8661, %v8514
    %v8726 = vadd.f32 %v8662, %v8517
    %v8727 = vadd.f32 %v8663, %v8520
    %v8728 = vadd.f32 %v8664, %v8523
    %v8729 = vadd.f32 %v8665, %v8526
    %v8730 = vadd.f32 %v8666, %v8529
    %v8731 = vadd.f32 %v8667, %v8532
    %v8732 = vadd.f32 %v8668, %v8535
    %v8733 = vadd.f32 %v8669, %v8538
    %v8734 = vadd.f32 %v8670, %v8541
    %v8735 = vadd.f32 %v8671, %v8544
    %v8736 = vadd.f32 %v8672, %v8547
    %v8737 = vadd.f32 %v8673, %v8550
    %v8738 = vadd.f32 %v8674, %v8553
    %v8739 = vadd.f32 %v8675, %v8556
    %v8740 = vadd.f32 %v8676, %v8559
    %v8741 = vadd.f32 %v8677, %v8562
    %v8742 = vadd.f32 %v8678, %v8565
    %v8743 = vadd.f32 %v8679, %v8568
    %v8744 = vadd.f32 %v8680, %v8571
    %v8745 = vadd.f32 %v8681, %v8574
    %v8746 = vadd.f32 %v8682, %v8577
    %v8747 = vadd.f32 %v8683, %v8580
    %v8748 = vadd.f32 %v8684, %v8583
    %v8749 = vadd.f32 %v8685, %v8586
    %v8750 = vadd.f32 %v8686, %v8589
    %v8751 = vadd.f32 %v8687, %v8592
    %v8752 = vadd.f32 %v8688, %v8595
    %v8753 = vadd.f32 %v8689, %v8598
    %v8754 = vadd.f32 %v8690, %v8601
    %v8755 = vadd.f32 %v8691, %v8604
    %v8756 = vadd.f32 %v8692, %v8607
    %v8757 = vadd.f32 %v8693, %v8610
    %v8758 = vadd.f32 %v8694, %v8613
    %v8759 = vadd.f32 %v8695, %v8616
    %v8760 = vadd.f32 %v8696, %v8619
    %v8761 = vadd.f32 %v8697, %v8622
    %v8762 = vadd.f32 %v8698, %v8625
    %v8763 = vadd.f32 %v8699, %v8628
    %v8764 = vadd.f32 %v8700, %v8631
    %v8765 = vadd.f32 %v8701, %v8634
    %v8766 = vadd.f32 %v8702, %v8637
    %v8767 = vmax.f32 %v8703, 0.0
    %v8768 = vmax.f32 %v8704, 0.0
    %v8769 = vmax.f32 %v8705, 0.0
    %v8770 = vmax.f32 %v8706, 0.0
    %v8771 = vmax.f32 %v8707, 0.0
    %v8772 = vmax.f32 %v8708, 0.0
    %v8773 = vmax.f32 %v8709, 0.0
    %v8774 = vmax.f32 %v8710, 0.0
    %v8775 = vmax.f32 %v8711, 0.0
    %v8776 = vmax.f32 %v8712, 0.0
    %v8777 = vmax.f32 %v8713, 0.0
    %v8778 = vmax.f32 %v8714, 0.0
    %v8779 = vmax.f32 %v8715, 0.0
    %v8780 = vmax.f32 %v8716, 0.0
    %v8781 = vmax.f32 %v8717, 0.0
    %v8782 = vmax.f32 %v8718, 0.0
    %v8783 = vmax.f32 %v8719, 0.0
    %v8784 = vmax.f32 %v8720, 0.0
    %v8785 = vmax.f32 %v8721, 0.0
    %v8786 = vmax.f32 %v8722, 0.0
    %v8787 = vmax.f32 %v8723, 0.0
    %v8788 = vmax.f32 %v8724, 0.0
    %v8789 = vmax.f32 %v8725, 0.0
    %v8790 = vmax.f32 %v8726, 0.0
    %v8791 = vmax.f32 %v8727, 0.0
    %v8792 = vmax.f32 %v8728, 0.0
    %v8793 = vmax.f32 %v8729, 0.0
    %v8794 = vmax.f32 %v8730, 0.0
    %v8795 = vmax.f32 %v8731, 0.0
    %v8796 = vmax.f32 %v8732, 0.0
    %v8797 = vmax.f32 %v8733, 0.0
    %v8798 = vmax.f32 %v8734, 0.0
    %v8799 = vmax.f32 %v8735, 0.0
    %v8800 = vmax.f32 %v8736, 0.0
    %v8801 = vmax.f32 %v8737, 0.0
    %v8802 = vmax.f32 %v8738, 0.0
    %v8803 = vmax.f32 %v8739, 0.0
    %v8804 = vmax.f32 %v8740, 0.0
    %v8805 = vmax.f32 %v8741, 0.0
    %v8806 = vmax.f32 %v8742, 0.0
    %v8807 = vmax.f32 %v8743, 0.0
    %v8808 = vmax.f32 %v8744, 0.0
    %v8809 = vmax.f32 %v8745, 0.0
    %v8810 = vmax.f32 %v8746, 0.0
    %v8811 = vmax.f32 %v8747, 0.0
    %v8812 = vmax.f32 %v8748, 0.0
    %v8813 = vmax.f32 %v8749, 0.0
    %v8814 = vmax.f32 %v8750, 0.0
    %v8815 = vmax.f32 %v8751, 0.0
    %v8816 = vmax.f32 %v8752, 0.0
    %v8817 = vmax.f32 %v8753, 0.0
    %v8818 = vmax.f32 %v8754, 0.0
    %v8819 = vmax.f32 %v8755, 0.0
    %v8820 = vmax.f32 %v8756, 0.0
    %v8821 = vmax.f32 %v8757, 0.0
    %v8822 = vmax.f32 %v8758, 0.0
    %v8823 = vmax.f32 %v8759, 0.0
    %v8824 = vmax.f32 %v8760, 0.0
    %v8825 = vmax.f32 %v8761, 0.0
    %v8826 = vmax.f32 %v8762, 0.0
    %v8827 = vmax.f32 %v8763, 0.0
    %v8828 = vmax.f32 %v8764, 0.0
    %v8829 = vmax.f32 %v8765, 0.0
    %v8830 = vmax.f32 %v8766, 0.0
    %v8831 = vld [vmem:[%s5] sm:$0xff]
    %v8832 = vld [vmem:[%s5 + $0x8] sm:$0xff]
    %v8833 = vld [vmem:[%s5 + $0x10] sm:$0xff]
    %v8834 = vld [vmem:[%s5 + $0x18] sm:$0xff]
    %v8835 = vld [vmem:[%s5 + $0x20] sm:$0xff]
    %v8836 = vld [vmem:[%s5 + $0x28] sm:$0xff]
    %v8837 = vld [vmem:[%s5 + $0x30] sm:$0xff]
    %v8838 = vld [vmem:[%s5 + $0x38] sm:$0xff]
    %v8839 = vld [vmem:[%s5 + $0x40] sm:$0xff]
    %v8840 = vld [vmem:[%s5 + $0x48] sm:$0xff]
    %v8841 = vld [vmem:[%s5 + $0x50] sm:$0xff]
    %v8842 = vld [vmem:[%s5 + $0x58] sm:$0xff]
    %v8843 = vld [vmem:[%s5 + $0x60] sm:$0xff]
    %v8844 = vld [vmem:[%s5 + $0x68] sm:$0xff]
    %v8845 = vld [vmem:[%s5 + $0x70] sm:$0xff]
    %v8846 = vld [vmem:[%s5 + $0x78] sm:$0xff]
    %8847 = vmatpush.msra.mxu0 %v8846
    %8848 = vmatpush.msra.mxu0 %v8845
    %8849 = vmatpush.msra.mxu0 %v8844
    %8850 = vmatpush.msra.mxu0 %v8843
    %8851 = vmatpush.msra.mxu0 %v8842
    %8852 = vmatpush.msra.mxu0 %v8841
    %8853 = vmatpush.msra.mxu0 %v8840
    %8854 = vmatpush.msra.mxu0 %v8839
    %8855 = vmatpush.msra.mxu0 %v8838
    %8856 = vmatpush.msra.mxu0 %v8837
    %8857 = vmatpush.msra.mxu0 %v8836
    %8858 = vmatpush.msra.mxu0 %v8835
    %8859 = vmatpush.msra.mxu0 %v8834
    %8860 = vmatpush.msra.mxu0 %v8833
    %8861 = vmatpush.msra.mxu0 %v8832
    %8862 = vmatpush.msra.mxu0 %v8831
    %8863 = vmatmul.f32.gmra.mxu0 %v8767
    %v8864 = vpop.f32.mrf.mxu0
    %v8865 = vadd.f32 0.0, %v8864
    %8866 = vmatmul.f32.gmra.mxu0 %v8768
    %v8867 = vpop.f32.mrf.mxu0
    %v8868 = vadd.f32 0.0, %v8867
    %8869 = vmatmul.f32.gmra.mxu0 %v8769
    %v8870 = vpop.f32.mrf.mxu0
    %v8871 = vadd.f32 0.0, %v8870
    %8872 = vmatmul.f32.gmra.mxu0 %v8770
    %v8873 = vpop.f32.mrf.mxu0
    %v8874 = vadd.f32 0.0, %v8873
    %8875 = vmatmul.f32.gmra.mxu0 %v8771
    %v8876 = vpop.f32.mrf.mxu0
    %v8877 = vadd.f32 0.0, %v8876
    %8878 = vmatmul.f32.gmra.mxu0 %v8772
    %v8879 = vpop.f32.mrf.mxu0
    %v8880 = vadd.f32 0.0, %v8879
    %8881 = vmatmul.f32.gmra.mxu0 %v8773
    %v8882 = vpop.f32.mrf.mxu0
    %v8883 = vadd.f32 0.0, %v8882
    %8884 = vmatmul.f32.gmra.mxu0 %v8774
    %v8885 = vpop.f32.mrf.mxu0
    %v8886 = vadd.f32 0.0, %v8885
    %8887 = vmatmul.f32.gmra.mxu0 %v8775
    %v8888 = vpop.f32.mrf.mxu0
    %v8889 = vadd.f32 0.0, %v8888
    %8890 = vmatmul.f32.gmra.mxu0 %v8776
    %v8891 = vpop.f32.mrf.mxu0
    %v8892 = vadd.f32 0.0, %v8891
    %8893 = vmatmul.f32.gmra.mxu0 %v8777
    %v8894 = vpop.f32.mrf.mxu0
    %v8895 = vadd.f32 0.0, %v8894
    %8896 = vmatmul.f32.gmra.mxu0 %v8778
    %v8897 = vpop.f32.mrf.mxu0
    %v8898 = vadd.f32 0.0, %v8897
    %8899 = vmatmul.f32.gmra.mxu0 %v8779
    %v8900 = vpop.f32.mrf.mxu0
    %v8901 = vadd.f32 0.0, %v8900
    %8902 = vmatmul.f32.gmra.mxu0 %v8780
    %v8903 = vpop.f32.mrf.mxu0
    %v8904 = vadd.f32 0.0, %v8903
    %8905 = vmatmul.f32.gmra.mxu0 %v8781
    %v8906 = vpop.f32.mrf.mxu0
    %v8907 = vadd.f32 0.0, %v8906
    %8908 = vmatmul.f32.gmra.mxu0 %v8782
    %v8909 = vpop.f32.mrf.mxu0
    %v8910 = vadd.f32 0.0, %v8909
    %8911 = vmatmul.f32.gmra.mxu0 %v8783
    %v8912 = vpop.f32.mrf.mxu0
    %v8913 = vadd.f32 0.0, %v8912
    %8914 = vmatmul.f32.gmra.mxu0 %v8784
    %v8915 = vpop.f32.mrf.mxu0
    %v8916 = vadd.f32 0.0, %v8915
    %8917 = vmatmul.f32.gmra.mxu0 %v8785
    %v8918 = vpop.f32.mrf.mxu0
    %v8919 = vadd.f32 0.0, %v8918
    %8920 = vmatmul.f32.gmra.mxu0 %v8786
    %v8921 = vpop.f32.mrf.mxu0
    %v8922 = vadd.f32 0.0, %v8921
    %8923 = vmatmul.f32.gmra.mxu0 %v8787
    %v8924 = vpop.f32.mrf.mxu0
    %v8925 = vadd.f32 0.0, %v8924
    %8926 = vmatmul.f32.gmra.mxu0 %v8788
    %v8927 = vpop.f32.mrf.mxu0
    %v8928 = vadd.f32 0.0, %v8927
    %8929 = vmatmul.f32.gmra.mxu0 %v8789
    %v8930 = vpop.f32.mrf.mxu0
    %v8931 = vadd.f32 0.0, %v8930
    %8932 = vmatmul.f32.gmra.mxu0 %v8790
    %v8933 = vpop.f32.mrf.mxu0
    %v8934 = vadd.f32 0.0, %v8933
    %8935 = vmatmul.f32.gmra.mxu0 %v8791
    %v8936 = vpop.f32.mrf.mxu0
    %v8937 = vadd.f32 0.0, %v8936
    %8938 = vmatmul.f32.gmra.mxu0 %v8792
    %v8939 = vpop.f32.mrf.mxu0
    %v8940 = vadd.f32 0.0, %v8939
    %8941 = vmatmul.f32.gmra.mxu0 %v8793
    %v8942 = vpop.f32.mrf.mxu0
    %v8943 = vadd.f32 0.0, %v8942
    %8944 = vmatmul.f32.gmra.mxu0 %v8794
    %v8945 = vpop.f32.mrf.mxu0
    %v8946 = vadd.f32 0.0, %v8945
    %8947 = vmatmul.f32.gmra.mxu0 %v8795
    %v8948 = vpop.f32.mrf.mxu0
    %v8949 = vadd.f32 0.0, %v8948
    %8950 = vmatmul.f32.gmra.mxu0 %v8796
    %v8951 = vpop.f32.mrf.mxu0
    %v8952 = vadd.f32 0.0, %v8951
    %8953 = vmatmul.f32.gmra.mxu0 %v8797
    %v8954 = vpop.f32.mrf.mxu0
    %v8955 = vadd.f32 0.0, %v8954
    %8956 = vmatmul.f32.gmra.mxu0 %v8798
    %v8957 = vpop.f32.mrf.mxu0
    %v8958 = vadd.f32 0.0, %v8957
    %8959 = vmatmul.f32.gmra.mxu0 %v8799
    %v8960 = vpop.f32.mrf.mxu0
    %v8961 = vadd.f32 0.0, %v8960
    %8962 = vmatmul.f32.gmra.mxu0 %v8800
    %v8963 = vpop.f32.mrf.mxu0
    %v8964 = vadd.f32 0.0, %v8963
    %8965 = vmatmul.f32.gmra.mxu0 %v8801
    %v8966 = vpop.f32.mrf.mxu0
    %v8967 = vadd.f32 0.0, %v8966
    %8968 = vmatmul.f32.gmra.mxu0 %v8802
    %v8969 = vpop.f32.mrf.mxu0
    %v8970 = vadd.f32 0.0, %v8969
    %8971 = vmatmul.f32.gmra.mxu0 %v8803
    %v8972 = vpop.f32.mrf.mxu0
    %v8973 = vadd.f32 0.0, %v8972
    %8974 = vmatmul.f32.gmra.mxu0 %v8804
    %v8975 = vpop.f32.mrf.mxu0
    %v8976 = vadd.f32 0.0, %v8975
    %8977 = vmatmul.f32.gmra.mxu0 %v8805
    %v8978 = vpop.f32.mrf.mxu0
    %v8979 = vadd.f32 0.0, %v8978
    %8980 = vmatmul.f32.gmra.mxu0 %v8806
    %v8981 = vpop.f32.mrf.mxu0
    %v8982 = vadd.f32 0.0, %v8981
    %8983 = vmatmul.f32.gmra.mxu0 %v8807
    %v8984 = vpop.f32.mrf.mxu0
    %v8985 = vadd.f32 0.0, %v8984
    %8986 = vmatmul.f32.gmra.mxu0 %v8808
    %v8987 = vpop.f32.mrf.mxu0
    %v8988 = vadd.f32 0.0, %v8987
    %8989 = vmatmul.f32.gmra.mxu0 %v8809
    %v8990 = vpop.f32.mrf.mxu0
    %v8991 = vadd.f32 0.0, %v8990
    %8992 = vmatmul.f32.gmra.mxu0 %v8810
    %v8993 = vpop.f32.mrf.mxu0
    %v8994 = vadd.f32 0.0, %v8993
    %8995 = vmatmul.f32.gmra.mxu0 %v8811
    %v8996 = vpop.f32.mrf.mxu0
    %v8997 = vadd.f32 0.0, %v8996
    %8998 = vmatmul.f32.gmra.mxu0 %v8812
    %v8999 = vpop.f32.mrf.mxu0
    %v9000 = vadd.f32 0.0, %v8999
    %9001 = vmatmul.f32.gmra.mxu0 %v8813
    %v9002 = vpop.f32.mrf.mxu0
    %v9003 = vadd.f32 0.0, %v9002
    %9004 = vmatmul.f32.gmra.mxu0 %v8814
    %v9005 = vpop.f32.mrf.mxu0
    %v9006 = vadd.f32 0.0, %v9005
    %9007 = vmatmul.f32.gmra.mxu0 %v8815
    %v9008 = vpop.f32.mrf.mxu0
    %v9009 = vadd.f32 0.0, %v9008
    %9010 = vmatmul.f32.gmra.mxu0 %v8816
    %v9011 = vpop.f32.mrf.mxu0
    %v9012 = vadd.f32 0.0, %v9011
    %9013 = vmatmul.f32.gmra.mxu0 %v8817
    %v9014 = vpop.f32.mrf.mxu0
    %v9015 = vadd.f32 0.0, %v9014
    %9016 = vmatmul.f32.gmra.mxu0 %v8818
    %v9017 = vpop.f32.mrf.mxu0
    %v9018 = vadd.f32 0.0, %v9017
    %9019 = vmatmul.f32.gmra.mxu0 %v8819
    %v9020 = vpop.f32.mrf.mxu0
    %v9021 = vadd.f32 0.0, %v9020
    %9022 = vmatmul.f32.gmra.mxu0 %v8820
    %v9023 = vpop.f32.mrf.mxu0
    %v9024 = vadd.f32 0.0, %v9023
    %9025 = vmatmul.f32.gmra.mxu0 %v8821
    %v9026 = vpop.f32.mrf.mxu0
    %v9027 = vadd.f32 0.0, %v9026
    %9028 = vmatmul.f32.gmra.mxu0 %v8822
    %v9029 = vpop.f32.mrf.mxu0
    %v9030 = vadd.f32 0.0, %v9029
    %9031 = vmatmul.f32.gmra.mxu0 %v8823
    %v9032 = vpop.f32.mrf.mxu0
    %v9033 = vadd.f32 0.0, %v9032
    %9034 = vmatmul.f32.gmra.mxu0 %v8824
    %v9035 = vpop.f32.mrf.mxu0
    %v9036 = vadd.f32 0.0, %v9035
    %9037 = vmatmul.f32.gmra.mxu0 %v8825
    %v9038 = vpop.f32.mrf.mxu0
    %v9039 = vadd.f32 0.0, %v9038
    %9040 = vmatmul.f32.gmra.mxu0 %v8826
    %v9041 = vpop.f32.mrf.mxu0
    %v9042 = vadd.f32 0.0, %v9041
    %9043 = vmatmul.f32.gmra.mxu0 %v8827
    %v9044 = vpop.f32.mrf.mxu0
    %v9045 = vadd.f32 0.0, %v9044
    %9046 = vmatmul.f32.gmra.mxu0 %v8828
    %v9047 = vpop.f32.mrf.mxu0
    %v9048 = vadd.f32 0.0, %v9047
    %9049 = vmatmul.f32.gmra.mxu0 %v8829
    %v9050 = vpop.f32.mrf.mxu0
    %v9051 = vadd.f32 0.0, %v9050
    %9052 = vmatmul.f32.gmra.mxu0 %v8830
    %v9053 = vpop.f32.mrf.mxu0
    %v9054 = vadd.f32 0.0, %v9053
    %9055 = vdwg.mxu0
    %9056 = vst [vmem:[#allocation1] ss:$4 sm:$0xff] %v39
    %v9057 = vld.sshfl [vmem:[#allocation1] sm:$0xff pattern:$0x73625140]
    %v9058 = vld.sshfl [vmem:[#allocation1 + $0x8] sm:$0xff pattern:$0x73625140]
    %v9059 = vld.sshfl [vmem:[#allocation1 + $0x10] sm:$0xff pattern:$0x73625140]
    %v9060 = vld.sshfl [vmem:[#allocation1 + $0x18] sm:$0xff pattern:$0x73625140]
    %9065 = vmatpush.msra.mxu0 %v8910
    %9066 = vmatpush.msra.mxu0 %v8907
    %9067 = vmatpush.msra.mxu0 %v8904
    %9068 = vmatpush.msra.mxu0 %v8901
    %9069 = vmatpush.msra.mxu0 %v8898
    %9070 = vmatpush.msra.mxu0 %v8895
    %9071 = vmatpush.msra.mxu0 %v8892
    %9072 = vmatpush.msra.mxu0 %v8889
    %9073 = vmatpush.msra.mxu0 %v8886
    %9074 = vmatpush.msra.mxu0 %v8883
    %9075 = vmatpush.msra.mxu0 %v8880
    %9076 = vmatpush.msra.mxu0 %v8877
    %9077 = vmatpush.msra.mxu0 %v8874
    %9078 = vmatpush.msra.mxu0 %v8871
    %9079 = vmatpush.msra.mxu0 %v8868
    %9080 = vmatpush.msra.mxu0 %v8865
    %9081 = vmatmul.f32.gmra.mxu0 %v9057
    %v9082 = vpop.f32.mrf.mxu0
    %v9083 = vadd.f32 0.0, %v9082
    %9084 = vdwg.mxu0
    %9085 = vmatpush.msra.mxu0 %v8958
    %9086 = vmatpush.msra.mxu0 %v8955
    %9087 = vmatpush.msra.mxu0 %v8952
    %9088 = vmatpush.msra.mxu0 %v8949
    %9089 = vmatpush.msra.mxu0 %v8946
    %9090 = vmatpush.msra.mxu0 %v8943
    %9091 = vmatpush.msra.mxu0 %v8940
    %9092 = vmatpush.msra.mxu0 %v8937
    %9093 = vmatpush.msra.mxu0 %v8934
    %9094 = vmatpush.msra.mxu0 %v8931
    %9095 = vmatpush.msra.mxu0 %v8928
    %9096 = vmatpush.msra.mxu0 %v8925
    %9097 = vmatpush.msra.mxu0 %v8922
    %9098 = vmatpush.msra.mxu0 %v8919
    %9099 = vmatpush.msra.mxu0 %v8916
    %9100 = vmatpush.msra.mxu0 %v8913
    %9101 = vmatmul.f32.gmra.mxu0 %v9058
    %v9102 = vpop.f32.mrf.mxu0
    %v9103 = vadd.f32 %v9083, %v9102
    %9104 = vdwg.mxu0
    %9105 = vmatpush.msra.mxu0 %v9006
    %9106 = vmatpush.msra.mxu0 %v9003
    %9107 = vmatpush.msra.mxu0 %v9000
    %9108 = vmatpush.msra.mxu0 %v8997
    %9109 = vmatpush.msra.mxu0 %v8994
    %9110 = vmatpush.msra.mxu0 %v8991
    %9111 = vmatpush.msra.mxu0 %v8988
    %9112 = vmatpush.msra.mxu0 %v8985
    %9113 = vmatpush.msra.mxu0 %v8982
    %9114 = vmatpush.msra.mxu0 %v8979
    %9115 = vmatpush.msra.mxu0 %v8976
    %9116 = vmatpush.msra.mxu0 %v8973
    %9117 = vmatpush.msra.mxu0 %v8970
    %9118 = vmatpush.msra.mxu0 %v8967
    %9119 = vmatpush.msra.mxu0 %v8964
    %9120 = vmatpush.msra.mxu0 %v8961
    %9121 = vmatmul.f32.gmra.mxu0 %v9059
    %v9122 = vpop.f32.mrf.mxu0
    %v9123 = vadd.f32 %v9103, %v9122
    %9124 = vdwg.mxu0
    %9125 = vmatpush.msra.mxu0 %v9054
    %9126 = vmatpush.msra.mxu0 %v9051
    %9127 = vmatpush.msra.mxu0 %v9048
    %9128 = vmatpush.msra.mxu0 %v9045
    %9129 = vmatpush.msra.mxu0 %v9042
    %9130 = vmatpush.msra.mxu0 %v9039
    %9131 = vmatpush.msra.mxu0 %v9036
    %9132 = vmatpush.msra.mxu0 %v9033
    %9133 = vmatpush.msra.mxu0 %v9030
    %9134 = vmatpush.msra.mxu0 %v9027
    %9135 = vmatpush.msra.mxu0 %v9024
    %9136 = vmatpush.msra.mxu0 %v9021
    %9137 = vmatpush.msra.mxu0 %v9018
    %9138 = vmatpush.msra.mxu0 %v9015
    %9139 = vmatpush.msra.mxu0 %v9012
    %9140 = vmatpush.msra.mxu0 %v9009
    %9141 = vmatmul.f32.gmra.mxu0 %v9060
    %v9142 = vpop.f32.mrf.mxu0
    %v9143 = vadd.f32 %v9123, %v9142
    %9144 = vdwg.mxu0
    %v9145 = vmul.f32 %v8865, %v8865
    %v9146 = vmul.f32 %v8868, %v8868
    %v9147 = vmul.f32 %v8871, %v8871
    %v9148 = vmul.f32 %v8874, %v8874
    %v9149 = vmul.f32 %v8877, %v8877
    %v9150 = vmul.f32 %v8880, %v8880
    %v9151 = vmul.f32 %v8883, %v8883
    %v9152 = vmul.f32 %v8886, %v8886
    %v9153 = vmul.f32 %v8889, %v8889
    %v9154 = vmul.f32 %v8892, %v8892
    %v9155 = vmul.f32 %v8895, %v8895
    %v9156 = vmul.f32 %v8898, %v8898
    %v9157 = vmul.f32 %v8901, %v8901
    %v9158 = vmul.f32 %v8904, %v8904
    %v9159 = vmul.f32 %v8907, %v8907
    %v9160 = vmul.f32 %v8910, %v8910
    %v9161 = vmul.f32 %v8913, %v8913
    %v9162 = vmul.f32 %v8916, %v8916
    %v9163 = vmul.f32 %v8919, %v8919
    %v9164 = vmul.f32 %v8922, %v8922
    %v9165 = vmul.f32 %v8925, %v8925
    %v9166 = vmul.f32 %v8928, %v8928
    %v9167 = vmul.f32 %v8931, %v8931
    %v9168 = vmul.f32 %v8934, %v8934
    %v9169 = vmul.f32 %v8937, %v8937
    %v9170 = vmul.f32 %v8940, %v8940
    %v9171 = vmul.f32 %v8943, %v8943
    %v9172 = vmul.f32 %v8946, %v8946
    %v9173 = vmul.f32 %v8949, %v8949
    %v9174 = vmul.f32 %v8952, %v8952
    %v9175 = vmul.f32 %v8955, %v8955
    %v9176 = vmul.f32 %v8958, %v8958
    %v9177 = vmul.f32 %v8961, %v8961
    %v9178 = vmul.f32 %v8964, %v8964
    %v9179 = vmul.f32 %v8967, %v8967
    %v9180 = vmul.f32 %v8970, %v8970
    %v9181 = vmul.f32 %v8973, %v8973
    %v9182 = vmul.f32 %v8976, %v8976
    %v9183 = vmul.f32 %v8979, %v8979
    %v9184 = vmul.f32 %v8982, %v8982
    %v9185 = vmul.f32 %v8985, %v8985
    %v9186 = vmul.f32 %v8988, %v8988
    %v9187 = vmul.f32 %v8991, %v8991
    %v9188 = vmul.f32 %v8994, %v8994
    %v9189 = vmul.f32 %v8997, %v8997
    %v9190 = vmul.f32 %v9000, %v9000
    %v9191 = vmul.f32 %v9003, %v9003
    %v9192 = vmul.f32 %v9006, %v9006
    %v9193 = vmul.f32 %v9009, %v9009
    %v9194 = vmul.f32 %v9012, %v9012
    %v9195 = vmul.f32 %v9015, %v9015
    %v9196 = vmul.f32 %v9018, %v9018
    %v9197 = vmul.f32 %v9021, %v9021
    %v9198 = vmul.f32 %v9024, %v9024
    %v9199 = vmul.f32 %v9027, %v9027
    %v9200 = vmul.f32 %v9030, %v9030
    %v9201 = vmul.f32 %v9033, %v9033
    %v9202 = vmul.f32 %v9036, %v9036
    %v9203 = vmul.f32 %v9039, %v9039
    %v9204 = vmul.f32 %v9042, %v9042
    %v9205 = vmul.f32 %v9045, %v9045
    %v9206 = vmul.f32 %v9048, %v9048
    %v9207 = vmul.f32 %v9051, %v9051
    %v9208 = vmul.f32 %v9054, %v9054
    %9209 = vst [vmem:[#allocation1] ss:$4 sm:$0xff] %v39
    %v9210 = vld.sshfl [vmem:[#allocation1] sm:$0xff pattern:$0x73625140]
    %v9211 = vld.sshfl [vmem:[#allocation1 + $0x8] sm:$0xff pattern:$0x73625140]
    %v9212 = vld.sshfl [vmem:[#allocation1 + $0x10] sm:$0xff pattern:$0x73625140]
    %v9213 = vld.sshfl [vmem:[#allocation1 + $0x18] sm:$0xff pattern:$0x73625140]
    %9218 = vmatpush.msra.mxu0 %v9160
    %9219 = vmatpush.msra.mxu0 %v9159
    %9220 = vmatpush.msra.mxu0 %v9158
    %9221 = vmatpush.msra.mxu0 %v9157
    %9222 = vmatpush.msra.mxu0 %v9156
    %9223 = vmatpush.msra.mxu0 %v9155
    %9224 = vmatpush.msra.mxu0 %v9154
    %9225 = vmatpush.msra.mxu0 %v9153
    %9226 = vmatpush.msra.mxu0 %v9152
    %9227 = vmatpush.msra.mxu0 %v9151
    %9228 = vmatpush.msra.mxu0 %v9150
    %9229 = vmatpush.msra.mxu0 %v9149
    %9230 = vmatpush.msra.mxu0 %v9148
    %9231 = vmatpush.msra.mxu0 %v9147
    %9232 = vmatpush.msra.mxu0 %v9146
    %9233 = vmatpush.msra.mxu0 %v9145
    %9234 = vmatmul.f32.gmra.mxu0 %v9210
    %v9235 = vpop.f32.mrf.mxu0
    %v9236 = vadd.f32 0.0, %v9235
    %9237 = vdwg.mxu0
    %9238 = vmatpush.msra.mxu0 %v9176
    %9239 = vmatpush.msra.mxu0 %v9175
    %9240 = vmatpush.msra.mxu0 %v9174
    %9241 = vmatpush.msra.mxu0 %v9173
    %9242 = vmatpush.msra.mxu0 %v9172
    %9243 = vmatpush.msra.mxu0 %v9171
    %9244 = vmatpush.msra.mxu0 %v9170
    %9245 = vmatpush.msra.mxu0 %v9169
    %9246 = vmatpush.msra.mxu0 %v9168
    %9247 = vmatpush.msra.mxu0 %v9167
    %9248 = vmatpush.msra.mxu0 %v9166
    %9249 = vmatpush.msra.mxu0 %v9165
    %9250 = vmatpush.msra.mxu0 %v9164
    %9251 = vmatpush.msra.mxu0 %v9163
    %9252 = vmatpush.msra.mxu0 %v9162
    %9253 = vmatpush.msra.mxu0 %v9161
    %9254 = vmatmul.f32.gmra.mxu0 %v9211
    %v9255 = vpop.f32.mrf.mxu0
    %v9256 = vadd.f32 %v9236, %v9255
    %9257 = vdwg.mxu0
    %9258 = vmatpush.msra.mxu0 %v9192
    %9259 = vmatpush.msra.mxu0 %v9191
    %9260 = vmatpush.msra.mxu0 %v9190
    %9261 = vmatpush.msra.mxu0 %v9189
    %9262 = vmatpush.msra.mxu0 %v9188
    %9263 = vmatpush.msra.mxu0 %v9187
    %9264 = vmatpush.msra.mxu0 %v9186
    %9265 = vmatpush.msra.mxu0 %v9185
    %9266 = vmatpush.msra.mxu0 %v9184
    %9267 = vmatpush.msra.mxu0 %v9183
    %9268 = vmatpush.msra.mxu0 %v9182
    %9269 = vmatpush.msra.mxu0 %v9181
    %9270 = vmatpush.msra.mxu0 %v9180
    %9271 = vmatpush.msra.mxu0 %v9179
    %9272 = vmatpush.msra.mxu0 %v9178
    %9273 = vmatpush.msra.mxu0 %v9177
    %9274 = vmatmul.f32.gmra.mxu0 %v9212
    %v9275 = vpop.f32.mrf.mxu0
    %v9276 = vadd.f32 %v9256, %v9275
    %9277 = vdwg.mxu0
    %9278 = vmatpush.msra.mxu0 %v9208
    %9279 = vmatpush.msra.mxu0 %v9207
    %9280 = vmatpush.msra.mxu0 %v9206
    %9281 = vmatpush.msra.mxu0 %v9205
    %9282 = vmatpush.msra.mxu0 %v9204
    %9283 = vmatpush.msra.mxu0 %v9203
    %9284 = vmatpush.msra.mxu0 %v9202
    %9285 = vmatpush.msra.mxu0 %v9201
    %9286 = vmatpush.msra.mxu0 %v9200
    %9287 = vmatpush.msra.mxu0 %v9199
    %9288 = vmatpush.msra.mxu0 %v9198
    %9289 = vmatpush.msra.mxu0 %v9197
    %9290 = vmatpush.msra.mxu0 %v9196
    %9291 = vmatpush.msra.mxu0 %v9195
    %9292 = vmatpush.msra.mxu0 %v9194
    %9293 = vmatpush.msra.mxu0 %v9193
    %9294 = vmatmul.f32.gmra.mxu0 %v9213
    %v9295 = vpop.f32.mrf.mxu0
    %v9296 = vadd.f32 %v9276, %v9295
    %9297 = vdwg.mxu0
    %v9298 = vmul.f32 %v9143, 0.00390625
    %v9299 = vmul.f32 %v9296, 0.00390625
    %v9300 = vmul.f32 %v9298, %v9298
    %v9301 = vsub.f32 %v9299, %v9300
    %v9302 = vadd.f32 %v9301, 1e-05
    %v9303 = vrsqrt.pop %v9302
    %v9304 = vmul.f32 %v9303, %v9302
    %v9305 = vmul.f32 %v9304, %v9303
    %v9306 = vmul.f32 0.5, %v9305
    %v9307 = vsub.f32 1.5, %v9306
    %v9308 = vmul.f32 %v9303, %v9307
    %vm9309 = vweird.f32 %v9302
    %vm9310 = vweird.f32 %v9303
    %vm9311 = vmor %vm9309, %vm9310
    %v9312 = vsel %vm9311, %v9303, %v9308
    %v9313 = vsub.f32 0.0, %v9298
    %v9314 = vmul.f32 %v9313, %v9312
    %v9316 = vsel %vm1242, %v9312, 0
    %v9319 = vsel %vm1242, %v9314, 0
    %9321 = vmatpush.msra.mxu0 0.0
    %9322 = vmatpush.msra.mxu0 0.0
    %9323 = vmatpush.msra.mxu0 0.0
    %9324 = vmatpush.msra.mxu0 0.0
    %9325 = vmatpush.msra.mxu0 0.0
    %9326 = vmatpush.msra.mxu0 0.0
    %9327 = vmatpush.msra.mxu0 0.0
    %9328 = vmatpush.msra.mxu0 0.0
    %9329 = vmatpush.msra.mxu0 0.0
    %9330 = vmatpush.msra.mxu0 0.0
    %9331 = vmatpush.msra.mxu0 0.0
    %9332 = vmatpush.msra.mxu0 0.0
    %9333 = vmatpush.msra.mxu0 0.0
    %9334 = vmatpush.msra.mxu0 0.0
    %9335 = vmatpush.msra.mxu0 0.0
    %9336 = vmatpush.msra.mxu0 %v9316
    %9337 = vmatmul.f32.gmra.mxu0 %v1051
    %v9338 = vpop.f32.mrf.mxu0
    %v9339 = vadd.f32 0.0, %v9338
    %9340 = vmatmul.f32.gmra.mxu0 %v1054
    %v9341 = vpop.f32.mrf.mxu0
    %v9342 = vadd.f32 0.0, %v9341
    %9343 = vmatmul.f32.gmra.mxu0 %v1057
    %v9344 = vpop.f32.mrf.mxu0
    %v9345 = vadd.f32 0.0, %v9344
    %9346 = vmatmul.f32.gmra.mxu0 %v1060
    %v9347 = vpop.f32.mrf.mxu0
    %v9348 = vadd.f32 0.0, %v9347
    %9349 = vmatmul.f32.gmra.mxu0 %v1063
    %v9350 = vpop.f32.mrf.mxu0
    %v9351 = vadd.f32 0.0, %v9350
    %9352 = vmatmul.f32.gmra.mxu0 %v1066
    %v9353 = vpop.f32.mrf.mxu0
    %v9354 = vadd.f32 0.0, %v9353
    %9355 = vmatmul.f32.gmra.mxu0 %v1069
    %v9356 = vpop.f32.mrf.mxu0
    %v9357 = vadd.f32 0.0, %v9356
    %9358 = vmatmul.f32.gmra.mxu0 %v1072
    %v9359 = vpop.f32.mrf.mxu0
    %v9360 = vadd.f32 0.0, %v9359
    %9361 = vmatmul.f32.gmra.mxu0 %v1075
    %v9362 = vpop.f32.mrf.mxu0
    %v9363 = vadd.f32 0.0, %v9362
    %9364 = vmatmul.f32.gmra.mxu0 %v1078
    %v9365 = vpop.f32.mrf.mxu0
    %v9366 = vadd.f32 0.0, %v9365
    %9367 = vmatmul.f32.gmra.mxu0 %v1081
    %v9368 = vpop.f32.mrf.mxu0
    %v9369 = vadd.f32 0.0, %v9368
    %9370 = vmatmul.f32.gmra.mxu0 %v1084
    %v9371 = vpop.f32.mrf.mxu0
    %v9372 = vadd.f32 0.0, %v9371
    %9373 = vmatmul.f32.gmra.mxu0 %v1087
    %v9374 = vpop.f32.mrf.mxu0
    %v9375 = vadd.f32 0.0, %v9374
    %9376 = vmatmul.f32.gmra.mxu0 %v1090
    %v9377 = vpop.f32.mrf.mxu0
    %v9378 = vadd.f32 0.0, %v9377
    %9379 = vmatmul.f32.gmra.mxu0 %v1093
    %v9380 = vpop.f32.mrf.mxu0
    %v9381 = vadd.f32 0.0, %v9380
    %9382 = vmatmul.f32.gmra.mxu0 %v1096
    %v9383 = vpop.f32.mrf.mxu0
    %v9384 = vadd.f32 0.0, %v9383
    %9385 = vmatmul.f32.gmra.mxu0 %v1099
    %v9386 = vpop.f32.mrf.mxu0
    %v9387 = vadd.f32 0.0, %v9386
    %9388 = vmatmul.f32.gmra.mxu0 %v1102
    %v9389 = vpop.f32.mrf.mxu0
    %v9390 = vadd.f32 0.0, %v9389
    %9391 = vmatmul.f32.gmra.mxu0 %v1105
    %v9392 = vpop.f32.mrf.mxu0
    %v9393 = vadd.f32 0.0, %v9392
    %9394 = vmatmul.f32.gmra.mxu0 %v1108
    %v9395 = vpop.f32.mrf.mxu0
    %v9396 = vadd.f32 0.0, %v9395
    %9397 = vmatmul.f32.gmra.mxu0 %v1111
    %v9398 = vpop.f32.mrf.mxu0
    %v9399 = vadd.f32 0.0, %v9398
    %9400 = vmatmul.f32.gmra.mxu0 %v1114
    %v9401 = vpop.f32.mrf.mxu0
    %v9402 = vadd.f32 0.0, %v9401
    %9403 = vmatmul.f32.gmra.mxu0 %v1117
    %v9404 = vpop.f32.mrf.mxu0
    %v9405 = vadd.f32 0.0, %v9404
    %9406 = vmatmul.f32.gmra.mxu0 %v1120
    %v9407 = vpop.f32.mrf.mxu0
    %v9408 = vadd.f32 0.0, %v9407
    %9409 = vmatmul.f32.gmra.mxu0 %v1123
    %v9410 = vpop.f32.mrf.mxu0
    %v9411 = vadd.f32 0.0, %v9410
    %9412 = vmatmul.f32.gmra.mxu0 %v1126
    %v9413 = vpop.f32.mrf.mxu0
    %v9414 = vadd.f32 0.0, %v9413
    %9415 = vmatmul.f32.gmra.mxu0 %v1129
    %v9416 = vpop.f32.mrf.mxu0
    %v9417 = vadd.f32 0.0, %v9416
    %9418 = vmatmul.f32.gmra.mxu0 %v1132
    %v9419 = vpop.f32.mrf.mxu0
    %v9420 = vadd.f32 0.0, %v9419
    %9421 = vmatmul.f32.gmra.mxu0 %v1135
    %v9422 = vpop.f32.mrf.mxu0
    %v9423 = vadd.f32 0.0, %v9422
    %9424 = vmatmul.f32.gmra.mxu0 %v1138
    %v9425 = vpop.f32.mrf.mxu0
    %v9426 = vadd.f32 0.0, %v9425
    %9427 = vmatmul.f32.gmra.mxu0 %v1141
    %v9428 = vpop.f32.mrf.mxu0
    %v9429 = vadd.f32 0.0, %v9428
    %9430 = vmatmul.f32.gmra.mxu0 %v1144
    %v9431 = vpop.f32.mrf.mxu0
    %v9432 = vadd.f32 0.0, %v9431
    %9433 = vmatmul.f32.gmra.mxu0 %v1147
    %v9434 = vpop.f32.mrf.mxu0
    %v9435 = vadd.f32 0.0, %v9434
    %9436 = vmatmul.f32.gmra.mxu0 %v1150
    %v9437 = vpop.f32.mrf.mxu0
    %v9438 = vadd.f32 0.0, %v9437
    %9439 = vmatmul.f32.gmra.mxu0 %v1153
    %v9440 = vpop.f32.mrf.mxu0
    %v9441 = vadd.f32 0.0, %v9440
    %9442 = vmatmul.f32.gmra.mxu0 %v1156
    %v9443 = vpop.f32.mrf.mxu0
    %v9444 = vadd.f32 0.0, %v9443
    %9445 = vmatmul.f32.gmra.mxu0 %v1159
    %v9446 = vpop.f32.mrf.mxu0
    %v9447 = vadd.f32 0.0, %v9446
    %9448 = vmatmul.f32.gmra.mxu0 %v1162
    %v9449 = vpop.f32.mrf.mxu0
    %v9450 = vadd.f32 0.0, %v9449
    %9451 = vmatmul.f32.gmra.mxu0 %v1165
    %v9452 = vpop.f32.mrf.mxu0
    %v9453 = vadd.f32 0.0, %v9452
    %9454 = vmatmul.f32.gmra.mxu0 %v1168
    %v9455 = vpop.f32.mrf.mxu0
    %v9456 = vadd.f32 0.0, %v9455
    %9457 = vmatmul.f32.gmra.mxu0 %v1171
    %v9458 = vpop.f32.mrf.mxu0
    %v9459 = vadd.f32 0.0, %v9458
    %9460 = vmatmul.f32.gmra.mxu0 %v1174
    %v9461 = vpop.f32.mrf.mxu0
    %v9462 = vadd.f32 0.0, %v9461
    %9463 = vmatmul.f32.gmra.mxu0 %v1177
    %v9464 = vpop.f32.mrf.mxu0
    %v9465 = vadd.f32 0.0, %v9464
    %9466 = vmatmul.f32.gmra.mxu0 %v1180
    %v9467 = vpop.f32.mrf.mxu0
    %v9468 = vadd.f32 0.0, %v9467
    %9469 = vmatmul.f32.gmra.mxu0 %v1183
    %v9470 = vpop.f32.mrf.mxu0
    %v9471 = vadd.f32 0.0, %v9470
    %9472 = vmatmul.f32.gmra.mxu0 %v1186
    %v9473 = vpop.f32.mrf.mxu0
    %v9474 = vadd.f32 0.0, %v9473
    %9475 = vmatmul.f32.gmra.mxu0 %v1189
    %v9476 = vpop.f32.mrf.mxu0
    %v9477 = vadd.f32 0.0, %v9476
    %9478 = vmatmul.f32.gmra.mxu0 %v1192
    %v9479 = vpop.f32.mrf.mxu0
    %v9480 = vadd.f32 0.0, %v9479
    %9481 = vmatmul.f32.gmra.mxu0 %v1195
    %v9482 = vpop.f32.mrf.mxu0
    %v9483 = vadd.f32 0.0, %v9482
    %9484 = vmatmul.f32.gmra.mxu0 %v1198
    %v9485 = vpop.f32.mrf.mxu0
    %v9486 = vadd.f32 0.0, %v9485
    %9487 = vmatmul.f32.gmra.mxu0 %v1201
    %v9488 = vpop.f32.mrf.mxu0
    %v9489 = vadd.f32 0.0, %v9488
    %9490 = vmatmul.f32.gmra.mxu0 %v1204
    %v9491 = vpop.f32.mrf.mxu0
    %v9492 = vadd.f32 0.0, %v9491
    %9493 = vmatmul.f32.gmra.mxu0 %v1207
    %v9494 = vpop.f32.mrf.mxu0
    %v9495 = vadd.f32 0.0, %v9494
    %9496 = vmatmul.f32.gmra.mxu0 %v1210
    %v9497 = vpop.f32.mrf.mxu0
    %v9498 = vadd.f32 0.0, %v9497
    %9499 = vmatmul.f32.gmra.mxu0 %v1213
    %v9500 = vpop.f32.mrf.mxu0
    %v9501 = vadd.f32 0.0, %v9500
    %9502 = vmatmul.f32.gmra.mxu0 %v1216
    %v9503 = vpop.f32.mrf.mxu0
    %v9504 = vadd.f32 0.0, %v9503
    %9505 = vmatmul.f32.gmra.mxu0 %v1219
    %v9506 = vpop.f32.mrf.mxu0
    %v9507 = vadd.f32 0.0, %v9506
    %9508 = vmatmul.f32.gmra.mxu0 %v1222
    %v9509 = vpop.f32.mrf.mxu0
    %v9510 = vadd.f32 0.0, %v9509
    %9511 = vmatmul.f32.gmra.mxu0 %v1225
    %v9512 = vpop.f32.mrf.mxu0
    %v9513 = vadd.f32 0.0, %v9512
    %9514 = vmatmul.f32.gmra.mxu0 %v1228
    %v9515 = vpop.f32.mrf.mxu0
    %v9516 = vadd.f32 0.0, %v9515
    %9517 = vmatmul.f32.gmra.mxu0 %v1231
    %v9518 = vpop.f32.mrf.mxu0
    %v9519 = vadd.f32 0.0, %v9518
    %9520 = vmatmul.f32.gmra.mxu0 %v1234
    %v9521 = vpop.f32.mrf.mxu0
    %v9522 = vadd.f32 0.0, %v9521
    %9523 = vmatmul.f32.gmra.mxu0 %v1237
    %v9524 = vpop.f32.mrf.mxu0
    %v9525 = vadd.f32 0.0, %v9524
    %9526 = vmatmul.f32.gmra.mxu0 %v1240
    %v9527 = vpop.f32.mrf.mxu0
    %v9528 = vadd.f32 0.0, %v9527
    %9529 = vdwg.mxu0
    %9530 = vmatpush.msra.mxu0 0.0
    %9531 = vmatpush.msra.mxu0 0.0
    %9532 = vmatpush.msra.mxu0 0.0
    %9533 = vmatpush.msra.mxu0 0.0
    %9534 = vmatpush.msra.mxu0 0.0
    %9535 = vmatpush.msra.mxu0 0.0
    %9536 = vmatpush.msra.mxu0 0.0
    %9537 = vmatpush.msra.mxu0 0.0
    %9538 = vmatpush.msra.mxu0 0.0
    %9539 = vmatpush.msra.mxu0 0.0
    %9540 = vmatpush.msra.mxu0 0.0
    %9541 = vmatpush.msra.mxu0 0.0
    %9542 = vmatpush.msra.mxu0 0.0
    %9543 = vmatpush.msra.mxu0 0.0
    %9544 = vmatpush.msra.mxu0 0.0
    %9545 = vmatpush.msra.mxu0 %v9319
    %9546 = vmatmul.f32.gmra.mxu0 %v1051
    %v9547 = vpop.f32.mrf.mxu0
    %v9548 = vadd.f32 0.0, %v9547
    %9549 = vmatmul.f32.gmra.mxu0 %v1054
    %v9550 = vpop.f32.mrf.mxu0
    %v9551 = vadd.f32 0.0, %v9550
    %9552 = vmatmul.f32.gmra.mxu0 %v1057
    %v9553 = vpop.f32.mrf.mxu0
    %v9554 = vadd.f32 0.0, %v9553
    %9555 = vmatmul.f32.gmra.mxu0 %v1060
    %v9556 = vpop.f32.mrf.mxu0
    %v9557 = vadd.f32 0.0, %v9556
    %9558 = vmatmul.f32.gmra.mxu0 %v1063
    %v9559 = vpop.f32.mrf.mxu0
    %v9560 = vadd.f32 0.0, %v9559
    %9561 = vmatmul.f32.gmra.mxu0 %v1066
    %v9562 = vpop.f32.mrf.mxu0
    %v9563 = vadd.f32 0.0, %v9562
    %9564 = vmatmul.f32.gmra.mxu0 %v1069
    %v9565 = vpop.f32.mrf.mxu0
    %v9566 = vadd.f32 0.0, %v9565
    %9567 = vmatmul.f32.gmra.mxu0 %v1072
    %v9568 = vpop.f32.mrf.mxu0
    %v9569 = vadd.f32 0.0, %v9568
    %9570 = vmatmul.f32.gmra.mxu0 %v1075
    %v9571 = vpop.f32.mrf.mxu0
    %v9572 = vadd.f32 0.0, %v9571
    %9573 = vmatmul.f32.gmra.mxu0 %v1078
    %v9574 = vpop.f32.mrf.mxu0
    %v9575 = vadd.f32 0.0, %v9574
    %9576 = vmatmul.f32.gmra.mxu0 %v1081
    %v9577 = vpop.f32.mrf.mxu0
    %v9578 = vadd.f32 0.0, %v9577
    %9579 = vmatmul.f32.gmra.mxu0 %v1084
    %v9580 = vpop.f32.mrf.mxu0
    %v9581 = vadd.f32 0.0, %v9580
    %9582 = vmatmul.f32.gmra.mxu0 %v1087
    %v9583 = vpop.f32.mrf.mxu0
    %v9584 = vadd.f32 0.0, %v9583
    %9585 = vmatmul.f32.gmra.mxu0 %v1090
    %v9586 = vpop.f32.mrf.mxu0
    %v9587 = vadd.f32 0.0, %v9586
    %9588 = vmatmul.f32.gmra.mxu0 %v1093
    %v9589 = vpop.f32.mrf.mxu0
    %v9590 = vadd.f32 0.0, %v9589
    %9591 = vmatmul.f32.gmra.mxu0 %v1096
    %v9592 = vpop.f32.mrf.mxu0
    %v9593 = vadd.f32 0.0, %v9592
    %9594 = vmatmul.f32.gmra.mxu0 %v1099
    %v9595 = vpop.f32.mrf.mxu0
    %v9596 = vadd.f32 0.0, %v9595
    %9597 = vmatmul.f32.gmra.mxu0 %v1102
    %v9598 = vpop.f32.mrf.mxu0
    %v9599 = vadd.f32 0.0, %v9598
    %9600 = vmatmul.f32.gmra.mxu0 %v1105
    %v9601 = vpop.f32.mrf.mxu0
    %v9602 = vadd.f32 0.0, %v9601
    %9603 = vmatmul.f32.gmra.mxu0 %v1108
    %v9604 = vpop.f32.mrf.mxu0
    %v9605 = vadd.f32 0.0, %v9604
    %9606 = vmatmul.f32.gmra.mxu0 %v1111
    %v9607 = vpop.f32.mrf.mxu0
    %v9608 = vadd.f32 0.0, %v9607
    %9609 = vmatmul.f32.gmra.mxu0 %v1114
    %v9610 = vpop.f32.mrf.mxu0
    %v9611 = vadd.f32 0.0, %v9610
    %9612 = vmatmul.f32.gmra.mxu0 %v1117
    %v9613 = vpop.f32.mrf.mxu0
    %v9614 = vadd.f32 0.0, %v9613
    %9615 = vmatmul.f32.gmra.mxu0 %v1120
    %v9616 = vpop.f32.mrf.mxu0
    %v9617 = vadd.f32 0.0, %v9616
    %9618 = vmatmul.f32.gmra.mxu0 %v1123
    %v9619 = vpop.f32.mrf.mxu0
    %v9620 = vadd.f32 0.0, %v9619
    %9621 = vmatmul.f32.gmra.mxu0 %v1126
    %v9622 = vpop.f32.mrf.mxu0
    %v9623 = vadd.f32 0.0, %v9622
    %9624 = vmatmul.f32.gmra.mxu0 %v1129
    %v9625 = vpop.f32.mrf.mxu0
    %v9626 = vadd.f32 0.0, %v9625
    %9627 = vmatmul.f32.gmra.mxu0 %v1132
    %v9628 = vpop.f32.mrf.mxu0
    %v9629 = vadd.f32 0.0, %v9628
    %9630 = vmatmul.f32.gmra.mxu0 %v1135
    %v9631 = vpop.f32.mrf.mxu0
    %v9632 = vadd.f32 0.0, %v9631
    %9633 = vmatmul.f32.gmra.mxu0 %v1138
    %v9634 = vpop.f32.mrf.mxu0
    %v9635 = vadd.f32 0.0, %v9634
    %9636 = vmatmul.f32.gmra.mxu0 %v1141
    %v9637 = vpop.f32.mrf.mxu0
    %v9638 = vadd.f32 0.0, %v9637
    %9639 = vmatmul.f32.gmra.mxu0 %v1144
    %v9640 = vpop.f32.mrf.mxu0
    %v9641 = vadd.f32 0.0, %v9640
    %9642 = vmatmul.f32.gmra.mxu0 %v1147
    %v9643 = vpop.f32.mrf.mxu0
    %v9644 = vadd.f32 0.0, %v9643
    %9645 = vmatmul.f32.gmra.mxu0 %v1150
    %v9646 = vpop.f32.mrf.mxu0
    %v9647 = vadd.f32 0.0, %v9646
    %9648 = vmatmul.f32.gmra.mxu0 %v1153
    %v9649 = vpop.f32.mrf.mxu0
    %v9650 = vadd.f32 0.0, %v9649
    %9651 = vmatmul.f32.gmra.mxu0 %v1156
    %v9652 = vpop.f32.mrf.mxu0
    %v9653 = vadd.f32 0.0, %v9652
    %9654 = vmatmul.f32.gmra.mxu0 %v1159
    %v9655 = vpop.f32.mrf.mxu0
    %v9656 = vadd.f32 0.0, %v9655
    %9657 = vmatmul.f32.gmra.mxu0 %v1162
    %v9658 = vpop.f32.mrf.mxu0
    %v9659 = vadd.f32 0.0, %v9658
    %9660 = vmatmul.f32.gmra.mxu0 %v1165
    %v9661 = vpop.f32.mrf.mxu0
    %v9662 = vadd.f32 0.0, %v9661
    %9663 = vmatmul.f32.gmra.mxu0 %v1168
    %v9664 = vpop.f32.mrf.mxu0
    %v9665 = vadd.f32 0.0, %v9664
    %9666 = vmatmul.f32.gmra.mxu0 %v1171
    %v9667 = vpop.f32.mrf.mxu0
    %v9668 = vadd.f32 0.0, %v9667
    %9669 = vmatmul.f32.gmra.mxu0 %v1174
    %v9670 = vpop.f32.mrf.mxu0
    %v9671 = vadd.f32 0.0, %v9670
    %9672 = vmatmul.f32.gmra.mxu0 %v1177
    %v9673 = vpop.f32.mrf.mxu0
    %v9674 = vadd.f32 0.0, %v9673
    %9675 = vmatmul.f32.gmra.mxu0 %v1180
    %v9676 = vpop.f32.mrf.mxu0
    %v9677 = vadd.f32 0.0, %v9676
    %9678 = vmatmul.f32.gmra.mxu0 %v1183
    %v9679 = vpop.f32.mrf.mxu0
    %v9680 = vadd.f32 0.0, %v9679
    %9681 = vmatmul.f32.gmra.mxu0 %v1186
    %v9682 = vpop.f32.mrf.mxu0
    %v9683 = vadd.f32 0.0, %v9682
    %9684 = vmatmul.f32.gmra.mxu0 %v1189
    %v9685 = vpop.f32.mrf.mxu0
    %v9686 = vadd.f32 0.0, %v9685
    %9687 = vmatmul.f32.gmra.mxu0 %v1192
    %v9688 = vpop.f32.mrf.mxu0
    %v9689 = vadd.f32 0.0, %v9688
    %9690 = vmatmul.f32.gmra.mxu0 %v1195
    %v9691 = vpop.f32.mrf.mxu0
    %v9692 = vadd.f32 0.0, %v9691
    %9693 = vmatmul.f32.gmra.mxu0 %v1198
    %v9694 = vpop.f32.mrf.mxu0
    %v9695 = vadd.f32 0.0, %v9694
    %9696 = vmatmul.f32.gmra.mxu0 %v1201
    %v9697 = vpop.f32.mrf.mxu0
    %v9698 = vadd.f32 0.0, %v9697
    %9699 = vmatmul.f32.gmra.mxu0 %v1204
    %v9700 = vpop.f32.mrf.mxu0
    %v9701 = vadd.f32 0.0, %v9700
    %9702 = vmatmul.f32.gmra.mxu0 %v1207
    %v9703 = vpop.f32.mrf.mxu0
    %v9704 = vadd.f32 0.0, %v9703
    %9705 = vmatmul.f32.gmra.mxu0 %v1210
    %v9706 = vpop.f32.mrf.mxu0
    %v9707 = vadd.f32 0.0, %v9706
    %9708 = vmatmul.f32.gmra.mxu0 %v1213
    %v9709 = vpop.f32.mrf.mxu0
    %v9710 = vadd.f32 0.0, %v9709
    %9711 = vmatmul.f32.gmra.mxu0 %v1216
    %v9712 = vpop.f32.mrf.mxu0
    %v9713 = vadd.f32 0.0, %v9712
    %9714 = vmatmul.f32.gmra.mxu0 %v1219
    %v9715 = vpop.f32.mrf.mxu0
    %v9716 = vadd.f32 0.0, %v9715
    %9717 = vmatmul.f32.gmra.mxu0 %v1222
    %v9718 = vpop.f32.mrf.mxu0
    %v9719 = vadd.f32 0.0, %v9718
    %9720 = vmatmul.f32.gmra.mxu0 %v1225
    %v9721 = vpop.f32.mrf.mxu0
    %v9722 = vadd.f32 0.0, %v9721
    %9723 = vmatmul.f32.gmra.mxu0 %v1228
    %v9724 = vpop.f32.mrf.mxu0
    %v9725 = vadd.f32 0.0, %v9724
    %9726 = vmatmul.f32.gmra.mxu0 %v1231
    %v9727 = vpop.f32.mrf.mxu0
    %v9728 = vadd.f32 0.0, %v9727
    %9729 = vmatmul.f32.gmra.mxu0 %v1234
    %v9730 = vpop.f32.mrf.mxu0
    %v9731 = vadd.f32 0.0, %v9730
    %9732 = vmatmul.f32.gmra.mxu0 %v1237
    %v9733 = vpop.f32.mrf.mxu0
    %v9734 = vadd.f32 0.0, %v9733
    %9735 = vmatmul.f32.gmra.mxu0 %v1240
    %v9736 = vpop.f32.mrf.mxu0
    %v9737 = vadd.f32 0.0, %v9736
    %9738 = vdwg.mxu0
    %v9739 = vmul.f32 %v8865, %v9339
    %v9740 = vmul.f32 %v8868, %v9342
    %v9741 = vmul.f32 %v8871, %v9345
    %v9742 = vmul.f32 %v8874, %v9348
    %v9743 = vmul.f32 %v8877, %v9351
    %v9744 = vmul.f32 %v8880, %v9354
    %v9745 = vmul.f32 %v8883, %v9357
    %v9746 = vmul.f32 %v8886, %v9360
    %v9747 = vmul.f32 %v8889, %v9363
    %v9748 = vmul.f32 %v8892, %v9366
    %v9749 = vmul.f32 %v8895, %v9369
    %v9750 = vmul.f32 %v8898, %v9372
    %v9751 = vmul.f32 %v8901, %v9375
    %v9752 = vmul.f32 %v8904, %v9378
    %v9753 = vmul.f32 %v8907, %v9381
    %v9754 = vmul.f32 %v8910, %v9384
    %v9755 = vmul.f32 %v8913, %v9387
    %v9756 = vmul.f32 %v8916, %v9390
    %v9757 = vmul.f32 %v8919, %v9393
    %v9758 = vmul.f32 %v8922, %v9396
    %v9759 = vmul.f32 %v8925, %v9399
    %v9760 = vmul.f32 %v8928, %v9402
    %v9761 = vmul.f32 %v8931, %v9405
    %v9762 = vmul.f32 %v8934, %v9408
    %v9763 = vmul.f32 %v8937, %v9411
    %v9764 = vmul.f32 %v8940, %v9414
    %v9765 = vmul.f32 %v8943, %v9417
    %v9766 = vmul.f32 %v8946, %v9420
    %v9767 = vmul.f32 %v8949, %v9423
    %v9768 = vmul.f32 %v8952, %v9426
    %v9769 = vmul.f32 %v8955, %v9429
    %v9770 = vmul.f32 %v8958, %v9432
    %v9771 = vmul.f32 %v8961, %v9435
    %v9772 = vmul.f32 %v8964, %v9438
    %v9773 = vmul.f32 %v8967, %v9441
    %v9774 = vmul.f32 %v8970, %v9444
    %v9775 = vmul.f32 %v8973, %v9447
    %v9776 = vmul.f32 %v8976, %v9450
    %v9777 = vmul.f32 %v8979, %v9453
    %v9778 = vmul.f32 %v8982, %v9456
    %v9779 = vmul.f32 %v8985, %v9459
    %v9780 = vmul.f32 %v8988, %v9462
    %v9781 = vmul.f32 %v8991, %v9465
    %v9782 = vmul.f32 %v8994, %v9468
    %v9783 = vmul.f32 %v8997, %v9471
    %v9784 = vmul.f32 %v9000, %v9474
    %v9785 = vmul.f32 %v9003, %v9477
    %v9786 = vmul.f32 %v9006, %v9480
    %v9787 = vmul.f32 %v9009, %v9483
    %v9788 = vmul.f32 %v9012, %v9486
    %v9789 = vmul.f32 %v9015, %v9489
    %v9790 = vmul.f32 %v9018, %v9492
    %v9791 = vmul.f32 %v9021, %v9495
    %v9792 = vmul.f32 %v9024, %v9498
    %v9793 = vmul.f32 %v9027, %v9501
    %v9794 = vmul.f32 %v9030, %v9504
    %v9795 = vmul.f32 %v9033, %v9507
    %v9796 = vmul.f32 %v9036, %v9510
    %v9797 = vmul.f32 %v9039, %v9513
    %v9798 = vmul.f32 %v9042, %v9516
    %v9799 = vmul.f32 %v9045, %v9519
    %v9800 = vmul.f32 %v9048, %v9522
    %v9801 = vmul.f32 %v9051, %v9525
    %v9802 = vmul.f32 %v9054, %v9528
    %v9803 = vadd.f32 %v9739, %v9548
    %v9804 = vadd.f32 %v9740, %v9551
    %v9805 = vadd.f32 %v9741, %v9554
    %v9806 = vadd.f32 %v9742, %v9557
    %v9807 = vadd.f32 %v9743, %v9560
    %v9808 = vadd.f32 %v9744, %v9563
    %v9809 = vadd.f32 %v9745, %v9566
    %v9810 = vadd.f32 %v9746, %v9569
    %v9811 = vadd.f32 %v9747, %v9572
    %v9812 = vadd.f32 %v9748, %v9575
    %v9813 = vadd.f32 %v9749, %v9578
    %v9814 = vadd.f32 %v9750, %v9581
    %v9815 = vadd.f32 %v9751, %v9584
    %v9816 = vadd.f32 %v9752, %v9587
    %v9817 = vadd.f32 %v9753, %v9590
    %v9818 = vadd.f32 %v9754, %v9593
    %v9819 = vadd.f32 %v9755, %v9596
    %v9820 = vadd.f32 %v9756, %v9599
    %v9821 = vadd.f32 %v9757, %v9602
    %v9822 = vadd.f32 %v9758, %v9605
    %v9823 = vadd.f32 %v9759, %v9608
    %v9824 = vadd.f32 %v9760, %v9611
    %v9825 = vadd.f32 %v9761, %v9614
    %v9826 = vadd.f32 %v9762, %v9617
    %v9827 = vadd.f32 %v9763, %v9620
    %v9828 = vadd.f32 %v9764, %v9623
    %v9829 = vadd.f32 %v9765, %v9626
    %v9830 = vadd.f32 %v9766, %v9629
    %v9831 = vadd.f32 %v9767, %v9632
    %v9832 = vadd.f32 %v9768, %v9635
    %v9833 = vadd.f32 %v9769, %v9638
    %v9834 = vadd.f32 %v9770, %v9641
    %v9835 = vadd.f32 %v9771, %v9644
    %v9836 = vadd.f32 %v9772, %v9647
    %v9837 = vadd.f32 %v9773, %v9650
    %v9838 = vadd.f32 %v9774, %v9653
    %v9839 = vadd.f32 %v9775, %v9656
    %v9840 = vadd.f32 %v9776, %v9659
    %v9841 = vadd.f32 %v9777, %v9662
    %v9842 = vadd.f32 %v9778, %v9665
    %v9843 = vadd.f32 %v9779, %v9668
    %v9844 = vadd.f32 %v9780, %v9671
    %v9845 = vadd.f32 %v9781, %v9674
    %v9846 = vadd.f32 %v9782, %v9677
    %v9847 = vadd.f32 %v9783, %v9680
    %v9848 = vadd.f32 %v9784, %v9683
    %v9849 = vadd.f32 %v9785, %v9686
    %v9850 = vadd.f32 %v9786, %v9689
    %v9851 = vadd.f32 %v9787, %v9692
    %v9852 = vadd.f32 %v9788, %v9695
    %v9853 = vadd.f32 %v9789, %v9698
    %v9854 = vadd.f32 %v9790, %v9701
    %v9855 = vadd.f32 %v9791, %v9704
    %v9856 = vadd.f32 %v9792, %v9707
    %v9857 = vadd.f32 %v9793, %v9710
    %v9858 = vadd.f32 %v9794, %v9713
    %v9859 = vadd.f32 %v9795, %v9716
    %v9860 = vadd.f32 %v9796, %v9719
    %v9861 = vadd.f32 %v9797, %v9722
    %v9862 = vadd.f32 %v9798, %v9725
    %v9863 = vadd.f32 %v9799, %v9728
    %v9864 = vadd.f32 %v9800, %v9731
    %v9865 = vadd.f32 %v9801, %v9734
    %v9866 = vadd.f32 %v9802, %v9737
    %9867 = vst [vmem:[#allocation1] ss:$4 sm:$0xff] %v39
    %v9868 = vld.sshfl [vmem:[#allocation1] sm:$0xff pattern:$0x73625140]
    %v9869 = vld.sshfl [vmem:[#allocation1 + $0x8] sm:$0xff pattern:$0x73625140]
    %v9870 = vld.sshfl [vmem:[#allocation1 + $0x10] sm:$0xff pattern:$0x73625140]
    %v9871 = vld.sshfl [vmem:[#allocation1 + $0x18] sm:$0xff pattern:$0x73625140]
    %9876 = vmatpush.msra.mxu0 %v9818
    %9877 = vmatpush.msra.mxu0 %v9817
    %9878 = vmatpush.msra.mxu0 %v9816
    %9879 = vmatpush.msra.mxu0 %v9815
    %9880 = vmatpush.msra.mxu0 %v9814
    %9881 = vmatpush.msra.mxu0 %v9813
    %9882 = vmatpush.msra.mxu0 %v9812
    %9883 = vmatpush.msra.mxu0 %v9811
    %9884 = vmatpush.msra.mxu0 %v9810
    %9885 = vmatpush.msra.mxu0 %v9809
    %9886 = vmatpush.msra.mxu0 %v9808
    %9887 = vmatpush.msra.mxu0 %v9807
    %9888 = vmatpush.msra.mxu0 %v9806
    %9889 = vmatpush.msra.mxu0 %v9805
    %9890 = vmatpush.msra.mxu0 %v9804
    %9891 = vmatpush.msra.mxu0 %v9803
    %9892 = vmatmul.f32.gmra.mxu0 %v9868
    %v9893 = vpop.f32.mrf.mxu0
    %v9894 = vadd.f32 0.0, %v9893
    %9895 = vdwg.mxu0
    %9896 = vmatpush.msra.mxu0 %v9834
    %9897 = vmatpush.msra.mxu0 %v9833
    %9898 = vmatpush.msra.mxu0 %v9832
    %9899 = vmatpush.msra.mxu0 %v9831
    %9900 = vmatpush.msra.mxu0 %v9830
    %9901 = vmatpush.msra.mxu0 %v9829
    %9902 = vmatpush.msra.mxu0 %v9828
    %9903 = vmatpush.msra.mxu0 %v9827
    %9904 = vmatpush.msra.mxu0 %v9826
    %9905 = vmatpush.msra.mxu0 %v9825
    %9906 = vmatpush.msra.mxu0 %v9824
    %9907 = vmatpush.msra.mxu0 %v9823
    %9908 = vmatpush.msra.mxu0 %v9822
    %9909 = vmatpush.msra.mxu0 %v9821
    %9910 = vmatpush.msra.mxu0 %v9820
    %9911 = vmatpush.msra.mxu0 %v9819
    %9912 = vmatmul.f32.gmra.mxu0 %v9869
    %v9913 = vpop.f32.mrf.mxu0
    %v9914 = vadd.f32 %v9894, %v9913
    %9915 = vdwg.mxu0
    %9916 = vmatpush.msra.mxu0 %v9850
    %9917 = vmatpush.msra.mxu0 %v9849
    %9918 = vmatpush.msra.mxu0 %v9848
    %9919 = vmatpush.msra.mxu0 %v9847
    %9920 = vmatpush.msra.mxu0 %v9846
    %9921 = vmatpush.msra.mxu0 %v9845
    %9922 = vmatpush.msra.mxu0 %v9844
    %9923 = vmatpush.msra.mxu0 %v9843
    %9924 = vmatpush.msra.mxu0 %v9842
    %9925 = vmatpush.msra.mxu0 %v9841
    %9926 = vmatpush.msra.mxu0 %v9840
    %9927 = vmatpush.msra.mxu0 %v9839
    %9928 = vmatpush.msra.mxu0 %v9838
    %9929 = vmatpush.msra.mxu0 %v9837
    %9930 = vmatpush.msra.mxu0 %v9836
    %9931 = vmatpush.msra.mxu0 %v9835
    %9932 = vmatmul.f32.gmra.mxu0 %v9870
    %v9933 = vpop.f32.mrf.mxu0
    %v9934 = vadd.f32 %v9914, %v9933
    %9935 = vdwg.mxu0
    %9936 = vmatpush.msra.mxu0 %v9866
    %9937 = vmatpush.msra.mxu0 %v9865
    %9938 = vmatpush.msra.mxu0 %v9864
    %9939 = vmatpush.msra.mxu0 %v9863
    %9940 = vmatpush.msra.mxu0 %v9862
    %9941 = vmatpush.msra.mxu0 %v9861
    %9942 = vmatpush.msra.mxu0 %v9860
    %9943 = vmatpush.msra.mxu0 %v9859
    %9944 = vmatpush.msra.mxu0 %v9858
    %9945 = vmatpush.msra.mxu0 %v9857
    %9946 = vmatpush.msra.mxu0 %v9856
    %9947 = vmatpush.msra.mxu0 %v9855
    %9948 = vmatpush.msra.mxu0 %v9854
    %9949 = vmatpush.msra.mxu0 %v9853
    %9950 = vmatpush.msra.mxu0 %v9852
    %9951 = vmatpush.msra.mxu0 %v9851
    %9952 = vmatmul.f32.gmra.mxu0 %v9871
    %v9953 = vpop.f32.mrf.mxu0
    %v9954 = vadd.f32 %v9934, %v9953
    %9955 = vdwg.mxu0
    %v9956 = vmul.f32 %v9954, 0.00390625
    %v9957 = vld [vmem:[%s6] sm:$0xff]
    %v9958 = vld [vmem:[%s6 + $0x8] sm:$0xff]
    %v9959 = vld [vmem:[%s6 + $0x10] sm:$0xff]
    %v9960 = vld [vmem:[%s6 + $0x18] sm:$0xff]
    %v9961 = vld [vmem:[%s6 + $0x20] sm:$0xff]
    %v9962 = vld [vmem:[%s6 + $0x28] sm:$0xff]
    %v9963 = vld [vmem:[%s6 + $0x30] sm:$0xff]
    %v9964 = vld [vmem:[%s6 + $0x38] sm:$0xff]
    %v9965 = vld [vmem:[%s6 + $0x40] sm:$0xff]
    %v9966 = vld [vmem:[%s6 + $0x48] sm:$0xff]
    %v9967 = vld [vmem:[%s6 + $0x50] sm:$0xff]
    %v9968 = vld [vmem:[%s6 + $0x58] sm:$0xff]
    %v9969 = vld [vmem:[%s6 + $0x60] sm:$0xff]
    %v9970 = vld [vmem:[%s6 + $0x68] sm:$0xff]
    %v9971 = vld [vmem:[%s6 + $0x70] sm:$0xff]
    %v9972 = vld [vmem:[%s6 + $0x78] sm:$0xff]
    %v9973 = vld [vmem:[%s7] sm:$0x3]
    %9974 = vmatpush.msra.mxu0 %v9972
    %9975 = vmatpush.msra.mxu0 %v9971
    %9976 = vmatpush.msra.mxu0 %v9970
    %9977 = vmatpush.msra.mxu0 %v9969
    %9978 = vmatpush.msra.mxu0 %v9968
    %9979 = vmatpush.msra.mxu0 %v9967
    %9980 = vmatpush.msra.mxu0 %v9966
    %9981 = vmatpush.msra.mxu0 %v9965
    %9982 = vmatpush.msra.mxu0 %v9964
    %9983 = vmatpush.msra.mxu0 %v9963
    %9984 = vmatpush.msra.mxu0 %v9962
    %9985 = vmatpush.msra.mxu0 %v9961
    %9986 = vmatpush.msra.mxu0 %v9960
    %9987 = vmatpush.msra.mxu0 %v9959
    %9988 = vmatpush.msra.mxu0 %v9958
    %9989 = vmatpush.msra.mxu0 %v9957
    %9990 = vmatmul.f32.gmra.mxu0 %v9956
    %v9991 = vpop.f32.mrf.mxu0
    %v9992 = vadd.f32 %v9973, %v9991
    %9993 = vdwg.mxu0
    %v9994 = vmax.f32 %v9992, 0.0
    %v9995 = vld [vmem:[%s8] sm:$0xff]
    %v9996 = vld [vmem:[%s8 + $0x8] sm:$0xff]
    %v9997 = vld [vmem:[%s8 + $0x10] sm:$0xff]
    %v9998 = vld [vmem:[%s8 + $0x18] sm:$0xff]
    %v9999 = vld [vmem:[%s8 + $0x20] sm:$0xff]
    %v10000 = vld [vmem:[%s8 + $0x28] sm:$0xff]
    %v10001 = vld [vmem:[%s8 + $0x30] sm:$0xff]
    %v10002 = vld [vmem:[%s8 + $0x38] sm:$0xff]
    %v10003 = vld [vmem:[%s8 + $0x40] sm:$0xff]
    %v10004 = vld [vmem:[%s8 + $0x48] sm:$0xff]
    %v10005 = vld [vmem:[%s8 + $0x50] sm:$0xff]
    %v10006 = vld [vmem:[%s8 + $0x58] sm:$0xff]
    %v10007 = vld [vmem:[%s8 + $0x60] sm:$0xff]
    %v10008 = vld [vmem:[%s8 + $0x68] sm:$0xff]
    %v10009 = vld [vmem:[%s8 + $0x70] sm:$0xff]
    %v10010 = vld [vmem:[%s8 + $0x78] sm:$0xff]
    %v10011 = vld [vmem:[%s9] sm:$0x3]
    %10012 = vmatpush.msra.mxu0 %v10010
    %10013 = vmatpush.msra.mxu0 %v10009
    %10014 = vmatpush.msra.mxu0 %v10008
    %10015 = vmatpush.msra.mxu0 %v10007
    %10016 = vmatpush.msra.mxu0 %v10006
    %10017 = vmatpush.msra.mxu0 %v10005
    %10018 = vmatpush.msra.mxu0 %v10004
    %10019 = vmatpush.msra.mxu0 %v10003
    %10020 = vmatpush.msra.mxu0 %v10002
    %10021 = vmatpush.msra.mxu0 %v10001
    %10022 = vmatpush.msra.mxu0 %v10000
    %10023 = vmatpush.msra.mxu0 %v9999
    %10024 = vmatpush.msra.mxu0 %v9998
    %10025 = vmatpush.msra.mxu0 %v9997
    %10026 = vmatpush.msra.mxu0 %v9996
    %10027 = vmatpush.msra.mxu0 %v9995
    %10028 = vmatmul.f32.gmra.mxu0 %v9994
    %v10029 = vpop.f32.mrf.mxu0
    %v10030 = vadd.f32 %v10011, %v10029
    %10031 = vdwg.mxu0
    %v10032 = vxor.u32 %v10030, 2147483648
    %v10033 = vmul.f32 %v10032, 1.442695
    %v10034 = vpow.pop %v10033
    %v10035 = vadd.f32 %v10034, 1.0
    %v10036 = vrcp.pop %v10035
    %v10037 = vmul.f32 %v10035, %v10036
    %v10038 = vsub.f32 1.0, %v10037
    %v10039 = vmul.f32 %v10036, %v10038
    %v10040 = vadd.f32 %v10036, %v10039
    %vm10041 = vweird.f32 %v10035
    %vm10042 = vweird.f32 %v10036
    %vm10043 = vmor %vm10041, %vm10042
    %v10044 = vsel %vm10043, %v10036, %v10040
    %v10045 = vand.u32 2147483647, %v10035
    %vm10046 = vcmp.eq.f32.partialorder %v10045, 8.507059e+37
    %v10047 = vand.u32 %v10035, 2147483648
    %v10048 = vor.u32 1.1754944e-38, %v10047
    %v10049 = vsel %vm10046, %v10048, %v10044
    %v10050 = vmul.f32 1.0, %v10049
    %v10051 = vld [vmem:[%s10] sm:$0xff]
    %v10052 = vld [vmem:[%s10 + $0x8] sm:$0xff]
    %v10053 = vld [vmem:[%s10 + $0x10] sm:$0xff]
    %v10054 = vld [vmem:[%s10 + $0x18] sm:$0xff]
    %v10055 = vld [vmem:[%s10 + $0x20] sm:$0xff]
    %v10056 = vld [vmem:[%s10 + $0x28] sm:$0xff]
    %v10057 = vld [vmem:[%s10 + $0x30] sm:$0xff]
    %v10058 = vld [vmem:[%s10 + $0x38] sm:$0xff]
    %v10059 = vld [vmem:[%s10 + $0x40] sm:$0xff]
    %v10060 = vld [vmem:[%s10 + $0x48] sm:$0xff]
    %v10061 = vld [vmem:[%s10 + $0x50] sm:$0xff]
    %v10062 = vld [vmem:[%s10 + $0x58] sm:$0xff]
    %v10063 = vld [vmem:[%s10 + $0x60] sm:$0xff]
    %v10064 = vld [vmem:[%s10 + $0x68] sm:$0xff]
    %v10065 = vld [vmem:[%s10 + $0x70] sm:$0xff]
    %v10066 = vld [vmem:[%s10 + $0x78] sm:$0xff]
    %10067 = vmatpush.msra.mxu0 %v10066
    %10068 = vmatpush.msra.mxu0 %v10065
    %10069 = vmatpush.msra.mxu0 %v10064
    %10070 = vmatpush.msra.mxu0 %v10063
    %10071 = vmatpush.msra.mxu0 %v10062
    %10072 = vmatpush.msra.mxu0 %v10061
    %10073 = vmatpush.msra.mxu0 %v10060
    %10074 = vmatpush.msra.mxu0 %v10059
    %10075 = vmatpush.msra.mxu0 %v10058
    %10076 = vmatpush.msra.mxu0 %v10057
    %10077 = vmatpush.msra.mxu0 %v10056
    %10078 = vmatpush.msra.mxu0 %v10055
    %10079 = vmatpush.msra.mxu0 %v10054
    %10080 = vmatpush.msra.mxu0 %v10053
    %10081 = vmatpush.msra.mxu0 %v10052
    %10082 = vmatpush.msra.mxu0 %v10051
    %10083 = vmatmul.f32.gmra.mxu0 %v9803
    %v10084 = vpop.f32.mrf.mxu0
    %v10085 = vadd.f32 0.0, %v10084
    %10086 = vmatmul.f32.gmra.mxu0 %v9804
    %v10087 = vpop.f32.mrf.mxu0
    %v10088 = vadd.f32 0.0, %v10087
    %10089 = vmatmul.f32.gmra.mxu0 %v9805
    %v10090 = vpop.f32.mrf.mxu0
    %v10091 = vadd.f32 0.0, %v10090
    %10092 = vmatmul.f32.gmra.mxu0 %v9806
    %v10093 = vpop.f32.mrf.mxu0
    %v10094 = vadd.f32 0.0, %v10093
    %10095 = vmatmul.f32.gmra.mxu0 %v9807
    %v10096 = vpop.f32.mrf.mxu0
    %v10097 = vadd.f32 0.0, %v10096
    %10098 = vmatmul.f32.gmra.mxu0 %v9808
    %v10099 = vpop.f32.mrf.mxu0
    %v10100 = vadd.f32 0.0, %v10099
    %10101 = vmatmul.f32.gmra.mxu0 %v9809
    %v10102 = vpop.f32.mrf.mxu0
    %v10103 = vadd.f32 0.0, %v10102
    %10104 = vmatmul.f32.gmra.mxu0 %v9810
    %v10105 = vpop.f32.mrf.mxu0
    %v10106 = vadd.f32 0.0, %v10105
    %10107 = vmatmul.f32.gmra.mxu0 %v9811
    %v10108 = vpop.f32.mrf.mxu0
    %v10109 = vadd.f32 0.0, %v10108
    %10110 = vmatmul.f32.gmra.mxu0 %v9812
    %v10111 = vpop.f32.mrf.mxu0
    %v10112 = vadd.f32 0.0, %v10111
    %10113 = vmatmul.f32.gmra.mxu0 %v9813
    %v10114 = vpop.f32.mrf.mxu0
    %v10115 = vadd.f32 0.0, %v10114
    %10116 = vmatmul.f32.gmra.mxu0 %v9814
    %v10117 = vpop.f32.mrf.mxu0
    %v10118 = vadd.f32 0.0, %v10117
    %10119 = vmatmul.f32.gmra.mxu0 %v9815
    %v10120 = vpop.f32.mrf.mxu0
    %v10121 = vadd.f32 0.0, %v10120
    %10122 = vmatmul.f32.gmra.mxu0 %v9816
    %v10123 = vpop.f32.mrf.mxu0
    %v10124 = vadd.f32 0.0, %v10123
    %10125 = vmatmul.f32.gmra.mxu0 %v9817
    %v10126 = vpop.f32.mrf.mxu0
    %v10127 = vadd.f32 0.0, %v10126
    %10128 = vmatmul.f32.gmra.mxu0 %v9818
    %v10129 = vpop.f32.mrf.mxu0
    %v10130 = vadd.f32 0.0, %v10129
    %10131 = vmatmul.f32.gmra.mxu0 %v9819
    %v10132 = vpop.f32.mrf.mxu0
    %v10133 = vadd.f32 0.0, %v10132
    %10134 = vmatmul.f32.gmra.mxu0 %v9820
    %v10135 = vpop.f32.mrf.mxu0
    %v10136 = vadd.f32 0.0, %v10135
    %10137 = vmatmul.f32.gmra.mxu0 %v9821
    %v10138 = vpop.f32.mrf.mxu0
    %v10139 = vadd.f32 0.0, %v10138
    %10140 = vmatmul.f32.gmra.mxu0 %v9822
    %v10141 = vpop.f32.mrf.mxu0
    %v10142 = vadd.f32 0.0, %v10141
    %10143 = vmatmul.f32.gmra.mxu0 %v9823
    %v10144 = vpop.f32.mrf.mxu0
    %v10145 = vadd.f32 0.0, %v10144
    %10146 = vmatmul.f32.gmra.mxu0 %v9824
    %v10147 = vpop.f32.mrf.mxu0
    %v10148 = vadd.f32 0.0, %v10147
    %10149 = vmatmul.f32.gmra.mxu0 %v9825
    %v10150 = vpop.f32.mrf.mxu0
    %v10151 = vadd.f32 0.0, %v10150
    %10152 = vmatmul.f32.gmra.mxu0 %v9826
    %v10153 = vpop.f32.mrf.mxu0
    %v10154 = vadd.f32 0.0, %v10153
    %10155 = vmatmul.f32.gmra.mxu0 %v9827
    %v10156 = vpop.f32.mrf.mxu0
    %v10157 = vadd.f32 0.0, %v10156
    %10158 = vmatmul.f32.gmra.mxu0 %v9828
    %v10159 = vpop.f32.mrf.mxu0
    %v10160 = vadd.f32 0.0, %v10159
    %10161 = vmatmul.f32.gmra.mxu0 %v9829
    %v10162 = vpop.f32.mrf.mxu0
    %v10163 = vadd.f32 0.0, %v10162
    %10164 = vmatmul.f32.gmra.mxu0 %v9830
    %v10165 = vpop.f32.mrf.mxu0
    %v10166 = vadd.f32 0.0, %v10165
    %10167 = vmatmul.f32.gmra.mxu0 %v9831
    %v10168 = vpop.f32.mrf.mxu0
    %v10169 = vadd.f32 0.0, %v10168
    %10170 = vmatmul.f32.gmra.mxu0 %v9832
    %v10171 = vpop.f32.mrf.mxu0
    %v10172 = vadd.f32 0.0, %v10171
    %10173 = vmatmul.f32.gmra.mxu0 %v9833
    %v10174 = vpop.f32.mrf.mxu0
    %v10175 = vadd.f32 0.0, %v10174
    %10176 = vmatmul.f32.gmra.mxu0 %v9834
    %v10177 = vpop.f32.mrf.mxu0
    %v10178 = vadd.f32 0.0, %v10177
    %10179 = vmatmul.f32.gmra.mxu0 %v9835
    %v10180 = vpop.f32.mrf.mxu0
    %v10181 = vadd.f32 0.0, %v10180
    %10182 = vmatmul.f32.gmra.mxu0 %v9836
    %v10183 = vpop.f32.mrf.mxu0
    %v10184 = vadd.f32 0.0, %v10183
    %10185 = vmatmul.f32.gmra.mxu0 %v9837
    %v10186 = vpop.f32.mrf.mxu0
    %v10187 = vadd.f32 0.0, %v10186
    %10188 = vmatmul.f32.gmra.mxu0 %v9838
    %v10189 = vpop.f32.mrf.mxu0
    %v10190 = vadd.f32 0.0, %v10189
    %10191 = vmatmul.f32.gmra.mxu0 %v9839
    %v10192 = vpop.f32.mrf.mxu0
    %v10193 = vadd.f32 0.0, %v10192
    %10194 = vmatmul.f32.gmra.mxu0 %v9840
    %v10195 = vpop.f32.mrf.mxu0
    %v10196 = vadd.f32 0.0, %v10195
    %10197 = vmatmul.f32.gmra.mxu0 %v9841
    %v10198 = vpop.f32.mrf.mxu0
    %v10199 = vadd.f32 0.0, %v10198
    %10200 = vmatmul.f32.gmra.mxu0 %v9842
    %v10201 = vpop.f32.mrf.mxu0
    %v10202 = vadd.f32 0.0, %v10201
    %10203 = vmatmul.f32.gmra.mxu0 %v9843
    %v10204 = vpop.f32.mrf.mxu0
    %v10205 = vadd.f32 0.0, %v10204
    %10206 = vmatmul.f32.gmra.mxu0 %v9844
    %v10207 = vpop.f32.mrf.mxu0
    %v10208 = vadd.f32 0.0, %v10207
    %10209 = vmatmul.f32.gmra.mxu0 %v9845
    %v10210 = vpop.f32.mrf.mxu0
    %v10211 = vadd.f32 0.0, %v10210
    %10212 = vmatmul.f32.gmra.mxu0 %v9846
    %v10213 = vpop.f32.mrf.mxu0
    %v10214 = vadd.f32 0.0, %v10213
    %10215 = vmatmul.f32.gmra.mxu0 %v9847
    %v10216 = vpop.f32.mrf.mxu0
    %v10217 = vadd.f32 0.0, %v10216
    %10218 = vmatmul.f32.gmra.mxu0 %v9848
    %v10219 = vpop.f32.mrf.mxu0
    %v10220 = vadd.f32 0.0, %v10219
    %10221 = vmatmul.f32.gmra.mxu0 %v9849
    %v10222 = vpop.f32.mrf.mxu0
    %v10223 = vadd.f32 0.0, %v10222
    %10224 = vmatmul.f32.gmra.mxu0 %v9850
    %v10225 = vpop.f32.mrf.mxu0
    %v10226 = vadd.f32 0.0, %v10225
    %10227 = vmatmul.f32.gmra.mxu0 %v9851
    %v10228 = vpop.f32.mrf.mxu0
    %v10229 = vadd.f32 0.0, %v10228
    %10230 = vmatmul.f32.gmra.mxu0 %v9852
    %v10231 = vpop.f32.mrf.mxu0
    %v10232 = vadd.f32 0.0, %v10231
    %10233 = vmatmul.f32.gmra.mxu0 %v9853
    %v10234 = vpop.f32.mrf.mxu0
    %v10235 = vadd.f32 0.0, %v10234
    %10236 = vmatmul.f32.gmra.mxu0 %v9854
    %v10237 = vpop.f32.mrf.mxu0
    %v10238 = vadd.f32 0.0, %v10237
    %10239 = vmatmul.f32.gmra.mxu0 %v9855
    %v10240 = vpop.f32.mrf.mxu0
    %v10241 = vadd.f32 0.0, %v10240
    %10242 = vmatmul.f32.gmra.mxu0 %v9856
    %v10243 = vpop.f32.mrf.mxu0
    %v10244 = vadd.f32 0.0, %v10243
    %10245 = vmatmul.f32.gmra.mxu0 %v9857
    %v10246 = vpop.f32.mrf.mxu0
    %v10247 = vadd.f32 0.0, %v10246
    %10248 = vmatmul.f32.gmra.mxu0 %v9858
    %v10249 = vpop.f32.mrf.mxu0
    %v10250 = vadd.f32 0.0, %v10249
    %10251 = vmatmul.f32.gmra.mxu0 %v9859
    %v10252 = vpop.f32.mrf.mxu0
    %v10253 = vadd.f32 0.0, %v10252
    %10254 = vmatmul.f32.gmra.mxu0 %v9860
    %v10255 = vpop.f32.mrf.mxu0
    %v10256 = vadd.f32 0.0, %v10255
    %10257 = vmatmul.f32.gmra.mxu0 %v9861
    %v10258 = vpop.f32.mrf.mxu0
    %v10259 = vadd.f32 0.0, %v10258
    %10260 = vmatmul.f32.gmra.mxu0 %v9862
    %v10261 = vpop.f32.mrf.mxu0
    %v10262 = vadd.f32 0.0, %v10261
    %10263 = vmatmul.f32.gmra.mxu0 %v9863
    %v10264 = vpop.f32.mrf.mxu0
    %v10265 = vadd.f32 0.0, %v10264
    %10266 = vmatmul.f32.gmra.mxu0 %v9864
    %v10267 = vpop.f32.mrf.mxu0
    %v10268 = vadd.f32 0.0, %v10267
    %10269 = vmatmul.f32.gmra.mxu0 %v9865
    %v10270 = vpop.f32.mrf.mxu0
    %v10271 = vadd.f32 0.0, %v10270
    %10272 = vmatmul.f32.gmra.mxu0 %v9866
    %v10273 = vpop.f32.mrf.mxu0
    %v10274 = vadd.f32 0.0, %v10273
    %10275 = vdwg.mxu0
    %v10276 = vxor.u32 %v10085, 2147483648
    %v10277 = vxor.u32 %v10088, 2147483648
    %v10278 = vxor.u32 %v10091, 2147483648
    %v10279 = vxor.u32 %v10094, 2147483648
    %v10280 = vxor.u32 %v10097, 2147483648
    %v10281 = vxor.u32 %v10100, 2147483648
    %v10282 = vxor.u32 %v10103, 2147483648
    %v10283 = vxor.u32 %v10106, 2147483648
    %v10284 = vxor.u32 %v10109, 2147483648
    %v10285 = vxor.u32 %v10112, 2147483648
    %v10286 = vxor.u32 %v10115, 2147483648
    %v10287 = vxor.u32 %v10118, 2147483648
    %v10288 = vxor.u32 %v10121, 2147483648
    %v10289 = vxor.u32 %v10124, 2147483648
    %v10290 = vxor.u32 %v10127, 2147483648
    %v10291 = vxor.u32 %v10130, 2147483648
    %v10292 = vxor.u32 %v10133, 2147483648
    %v10293 = vxor.u32 %v10136, 2147483648
    %v10294 = vxor.u32 %v10139, 2147483648
    %v10295 = vxor.u32 %v10142, 2147483648
    %v10296 = vxor.u32 %v10145, 2147483648
    %v10297 = vxor.u32 %v10148, 2147483648
    %v10298 = vxor.u32 %v10151, 2147483648
    %v10299 = vxor.u32 %v10154, 2147483648
    %v10300 = vxor.u32 %v10157, 2147483648
    %v10301 = vxor.u32 %v10160, 2147483648
    %v10302 = vxor.u32 %v10163, 2147483648
    %v10303 = vxor.u32 %v10166, 2147483648
    %v10304 = vxor.u32 %v10169, 2147483648
    %v10305 = vxor.u32 %v10172, 2147483648
    %v10306 = vxor.u32 %v10175, 2147483648
    %v10307 = vxor.u32 %v10178, 2147483648
    %v10308 = vxor.u32 %v10181, 2147483648
    %v10309 = vxor.u32 %v10184, 2147483648
    %v10310 = vxor.u32 %v10187, 2147483648
    %v10311 = vxor.u32 %v10190, 2147483648
    %v10312 = vxor.u32 %v10193, 2147483648
    %v10313 = vxor.u32 %v10196, 2147483648
    %v10314 = vxor.u32 %v10199, 2147483648
    %v10315 = vxor.u32 %v10202, 2147483648
    %v10316 = vxor.u32 %v10205, 2147483648
    %v10317 = vxor.u32 %v10208, 2147483648
    %v10318 = vxor.u32 %v10211, 2147483648
    %v10319 = vxor.u32 %v10214, 2147483648
    %v10320 = vxor.u32 %v10217, 2147483648
    %v10321 = vxor.u32 %v10220, 2147483648
    %v10322 = vxor.u32 %v10223, 2147483648
    %v10323 = vxor.u32 %v10226, 2147483648
    %v10324 = vxor.u32 %v10229, 2147483648
    %v10325 = vxor.u32 %v10232, 2147483648
    %v10326 = vxor.u32 %v10235, 2147483648
    %v10327 = vxor.u32 %v10238, 2147483648
    %v10328 = vxor.u32 %v10241, 2147483648
    %v10329 = vxor.u32 %v10244, 2147483648
    %v10330 = vxor.u32 %v10247, 2147483648
    %v10331 = vxor.u32 %v10250, 2147483648
    %v10332 = vxor.u32 %v10253, 2147483648
    %v10333 = vxor.u32 %v10256, 2147483648
    %v10334 = vxor.u32 %v10259, 2147483648
    %v10335 = vxor.u32 %v10262, 2147483648
    %v10336 = vxor.u32 %v10265, 2147483648
    %v10337 = vxor.u32 %v10268, 2147483648
    %v10338 = vxor.u32 %v10271, 2147483648
    %v10339 = vxor.u32 %v10274, 2147483648
    %v10340 = vmul.f32 %v10276, 1.442695
    %v10341 = vpow.pop %v10340
    %v10342 = vmul.f32 %v10277, 1.442695
    %v10343 = vpow.pop %v10342
    %v10344 = vmul.f32 %v10278, 1.442695
    %v10345 = vpow.pop %v10344
    %v10346 = vmul.f32 %v10279, 1.442695
    %v10347 = vpow.pop %v10346
    %v10348 = vmul.f32 %v10280, 1.442695
    %v10349 = vpow.pop %v10348
    %v10350 = vmul.f32 %v10281, 1.442695
    %v10351 = vpow.pop %v10350
    %v10352 = vmul.f32 %v10282, 1.442695
    %v10353 = vpow.pop %v10352
    %v10354 = vmul.f32 %v10283, 1.442695
    %v10355 = vpow.pop %v10354
    %v10356 = vmul.f32 %v10284, 1.442695
    %v10357 = vpow.pop %v10356
    %v10358 = vmul.f32 %v10285, 1.442695
    %v10359 = vpow.pop %v10358
    %v10360 = vmul.f32 %v10286, 1.442695
    %v10361 = vpow.pop %v10360
    %v10362 = vmul.f32 %v10287, 1.442695
    %v10363 = vpow.pop %v10362
    %v10364 = vmul.f32 %v10288, 1.442695
    %v10365 = vpow.pop %v10364
    %v10366 = vmul.f32 %v10289, 1.442695
    %v10367 = vpow.pop %v10366
    %v10368 = vmul.f32 %v10290, 1.442695
    %v10369 = vpow.pop %v10368
    %v10370 = vmul.f32 %v10291, 1.442695
    %v10371 = vpow.pop %v10370
    %v10372 = vmul.f32 %v10292, 1.442695
    %v10373 = vpow.pop %v10372
    %v10374 = vmul.f32 %v10293, 1.442695
    %v10375 = vpow.pop %v10374
    %v10376 = vmul.f32 %v10294, 1.442695
    %v10377 = vpow.pop %v10376
    %v10378 = vmul.f32 %v10295, 1.442695
    %v10379 = vpow.pop %v10378
    %v10380 = vmul.f32 %v10296, 1.442695
    %v10381 = vpow.pop %v10380
    %v10382 = vmul.f32 %v10297, 1.442695
    %v10383 = vpow.pop %v10382
    %v10384 = vmul.f32 %v10298, 1.442695
    %v10385 = vpow.pop %v10384
    %v10386 = vmul.f32 %v10299, 1.442695
    %v10387 = vpow.pop %v10386
    %v10388 = vmul.f32 %v10300, 1.442695
    %v10389 = vpow.pop %v10388
    %v10390 = vmul.f32 %v10301, 1.442695
    %v10391 = vpow.pop %v10390
    %v10392 = vmul.f32 %v10302, 1.442695
    %v10393 = vpow.pop %v10392
    %v10394 = vmul.f32 %v10303, 1.442695
    %v10395 = vpow.pop %v10394
    %v10396 = vmul.f32 %v10304, 1.442695
    %v10397 = vpow.pop %v10396
    %v10398 = vmul.f32 %v10305, 1.442695
    %v10399 = vpow.pop %v10398
    %v10400 = vmul.f32 %v10306, 1.442695
    %v10401 = vpow.pop %v10400
    %v10402 = vmul.f32 %v10307, 1.442695
    %v10403 = vpow.pop %v10402
    %v10404 = vmul.f32 %v10308, 1.442695
    %v10405 = vpow.pop %v10404
    %v10406 = vmul.f32 %v10309, 1.442695
    %v10407 = vpow.pop %v10406
    %v10408 = vmul.f32 %v10310, 1.442695
    %v10409 = vpow.pop %v10408
    %v10410 = vmul.f32 %v10311, 1.442695
    %v10411 = vpow.pop %v10410
    %v10412 = vmul.f32 %v10312, 1.442695
    %v10413 = vpow.pop %v10412
    %v10414 = vmul.f32 %v10313, 1.442695
    %v10415 = vpow.pop %v10414
    %v10416 = vmul.f32 %v10314, 1.442695
    %v10417 = vpow.pop %v10416
    %v10418 = vmul.f32 %v10315, 1.442695
    %v10419 = vpow.pop %v10418
    %v10420 = vmul.f32 %v10316, 1.442695
    %v10421 = vpow.pop %v10420
    %v10422 = vmul.f32 %v10317, 1.442695
    %v10423 = vpow.pop %v10422
    %v10424 = vmul.f32 %v10318, 1.442695
    %v10425 = vpow.pop %v10424
    %v10426 = vmul.f32 %v10319, 1.442695
    %v10427 = vpow.pop %v10426
    %v10428 = vmul.f32 %v10320, 1.442695
    %v10429 = vpow.pop %v10428
    %v10430 = vmul.f32 %v10321, 1.442695
    %v10431 = vpow.pop %v10430
    %v10432 = vmul.f32 %v10322, 1.442695
    %v10433 = vpow.pop %v10432
    %v10434 = vmul.f32 %v10323, 1.442695
    %v10435 = vpow.pop %v10434
    %v10436 = vmul.f32 %v10324, 1.442695
    %v10437 = vpow.pop %v10436
    %v10438 = vmul.f32 %v10325, 1.442695
    %v10439 = vpow.pop %v10438
    %v10440 = vmul.f32 %v10326, 1.442695
    %v10441 = vpow.pop %v10440
    %v10442 = vmul.f32 %v10327, 1.442695
    %v10443 = vpow.pop %v10442
    %v10444 = vmul.f32 %v10328, 1.442695
    %v10445 = vpow.pop %v10444
    %v10446 = vmul.f32 %v10329, 1.442695
    %v10447 = vpow.pop %v10446
    %v10448 = vmul.f32 %v10330, 1.442695
    %v10449 = vpow.pop %v10448
    %v10450 = vmul.f32 %v10331, 1.442695
    %v10451 = vpow.pop %v10450
    %v10452 = vmul.f32 %v10332, 1.442695
    %v10453 = vpow.pop %v10452
    %v10454 = vmul.f32 %v10333, 1.442695
    %v10455 = vpow.pop %v10454
    %v10456 = vmul.f32 %v10334, 1.442695
    %v10457 = vpow.pop %v10456
    %v10458 = vmul.f32 %v10335, 1.442695
    %v10459 = vpow.pop %v10458
    %v10460 = vmul.f32 %v10336, 1.442695
    %v10461 = vpow.pop %v10460
    %v10462 = vmul.f32 %v10337, 1.442695
    %v10463 = vpow.pop %v10462
    %v10464 = vmul.f32 %v10338, 1.442695
    %v10465 = vpow.pop %v10464
    %v10466 = vmul.f32 %v10339, 1.442695
    %v10467 = vpow.pop %v10466
    %v10468 = vadd.f32 %v10341, 1.0
    %v10469 = vadd.f32 %v10343, 1.0
    %v10470 = vadd.f32 %v10345, 1.0
    %v10471 = vadd.f32 %v10347, 1.0
    %v10472 = vadd.f32 %v10349, 1.0
    %v10473 = vadd.f32 %v10351, 1.0
    %v10474 = vadd.f32 %v10353, 1.0
    %v10475 = vadd.f32 %v10355, 1.0
    %v10476 = vadd.f32 %v10357, 1.0
    %v10477 = vadd.f32 %v10359, 1.0
    %v10478 = vadd.f32 %v10361, 1.0
    %v10479 = vadd.f32 %v10363, 1.0
    %v10480 = vadd.f32 %v10365, 1.0
    %v10481 = vadd.f32 %v10367, 1.0
    %v10482 = vadd.f32 %v10369, 1.0
    %v10483 = vadd.f32 %v10371, 1.0
    %v10484 = vadd.f32 %v10373, 1.0
    %v10485 = vadd.f32 %v10375, 1.0
    %v10486 = vadd.f32 %v10377, 1.0
    %v10487 = vadd.f32 %v10379, 1.0
    %v10488 = vadd.f32 %v10381, 1.0
    %v10489 = vadd.f32 %v10383, 1.0
    %v10490 = vadd.f32 %v10385, 1.0
    %v10491 = vadd.f32 %v10387, 1.0
    %v10492 = vadd.f32 %v10389, 1.0
    %v10493 = vadd.f32 %v10391, 1.0
    %v10494 = vadd.f32 %v10393, 1.0
    %v10495 = vadd.f32 %v10395, 1.0
    %v10496 = vadd.f32 %v10397, 1.0
    %v10497 = vadd.f32 %v10399, 1.0
    %v10498 = vadd.f32 %v10401, 1.0
    %v10499 = vadd.f32 %v10403, 1.0
    %v10500 = vadd.f32 %v10405, 1.0
    %v10501 = vadd.f32 %v10407, 1.0
    %v10502 = vadd.f32 %v10409, 1.0
    %v10503 = vadd.f32 %v10411, 1.0
    %v10504 = vadd.f32 %v10413, 1.0
    %v10505 = vadd.f32 %v10415, 1.0
    %v10506 = vadd.f32 %v10417, 1.0
    %v10507 = vadd.f32 %v10419, 1.0
    %v10508 = vadd.f32 %v10421, 1.0
    %v10509 = vadd.f32 %v10423, 1.0
    %v10510 = vadd.f32 %v10425, 1.0
    %v10511 = vadd.f32 %v10427, 1.0
    %v10512 = vadd.f32 %v10429, 1.0
    %v10513 = vadd.f32 %v10431, 1.0
    %v10514 = vadd.f32 %v10433, 1.0
    %v10515 = vadd.f32 %v10435, 1.0
    %v10516 = vadd.f32 %v10437, 1.0
    %v10517 = vadd.f32 %v10439, 1.0
    %v10518 = vadd.f32 %v10441, 1.0
    %v10519 = vadd.f32 %v10443, 1.0
    %v10520 = vadd.f32 %v10445, 1.0
    %v10521 = vadd.f32 %v10447, 1.0
    %v10522 = vadd.f32 %v10449, 1.0
    %v10523 = vadd.f32 %v10451, 1.0
    %v10524 = vadd.f32 %v10453, 1.0
    %v10525 = vadd.f32 %v10455, 1.0
    %v10526 = vadd.f32 %v10457, 1.0
    %v10527 = vadd.f32 %v10459, 1.0
    %v10528 = vadd.f32 %v10461, 1.0
    %v10529 = vadd.f32 %v10463, 1.0
    %v10530 = vadd.f32 %v10465, 1.0
    %v10531 = vadd.f32 %v10467, 1.0
    %v10532 = vrcp.pop %v10468
    %v10533 = vmul.f32 %v10468, %v10532
    %v10534 = vsub.f32 1.0, %v10533
    %v10535 = vmul.f32 %v10532, %v10534
    %v10536 = vadd.f32 %v10532, %v10535
    %vm10537 = vweird.f32 %v10468
    %vm10538 = vweird.f32 %v10532
    %vm10539 = vmor %vm10537, %vm10538
    %v10540 = vsel %vm10539, %v10532, %v10536
    %v10541 = vand.u32 2147483647, %v10468
    %vm10542 = vcmp.eq.f32.partialorder %v10541, 8.507059e+37
    %v10543 = vand.u32 %v10468, 2147483648
    %v10544 = vor.u32 1.1754944e-38, %v10543
    %v10545 = vsel %vm10542, %v10544, %v10540
    %v10546 = vmul.f32 1.0, %v10545
    %v10547 = vrcp.pop %v10469
    %v10548 = vmul.f32 %v10469, %v10547
    %v10549 = vsub.f32 1.0, %v10548
    %v10550 = vmul.f32 %v10547, %v10549
    %v10551 = vadd.f32 %v10547, %v10550
    %vm10552 = vweird.f32 %v10469
    %vm10553 = vweird.f32 %v10547
    %vm10554 = vmor %vm10552, %vm10553
    %v10555 = vsel %vm10554, %v10547, %v10551
    %v10556 = vand.u32 2147483647, %v10469
    %vm10557 = vcmp.eq.f32.partialorder %v10556, 8.507059e+37
    %v10558 = vand.u32 %v10469, 2147483648
    %v10559 = vor.u32 1.1754944e-38, %v10558
    %v10560 = vsel %vm10557, %v10559, %v10555
    %v10561 = vmul.f32 1.0, %v10560
    %v10562 = vrcp.pop %v10470
    %v10563 = vmul.f32 %v10470, %v10562
    %v10564 = vsub.f32 1.0, %v10563
    %v10565 = vmul.f32 %v10562, %v10564
    %v10566 = vadd.f32 %v10562, %v10565
    %vm10567 = vweird.f32 %v10470
    %vm10568 = vweird.f32 %v10562
    %vm10569 = vmor %vm10567, %vm10568
    %v10570 = vsel %vm10569, %v10562, %v10566
    %v10571 = vand.u32 2147483647, %v10470
    %vm10572 = vcmp.eq.f32.partialorder %v10571, 8.507059e+37
    %v10573 = vand.u32 %v10470, 2147483648
    %v10574 = vor.u32 1.1754944e-38, %v10573
    %v10575 = vsel %vm10572, %v10574, %v10570
    %v10576 = vmul.f32 1.0, %v10575
    %v10577 = vrcp.pop %v10471
    %v10578 = vmul.f32 %v10471, %v10577
    %v10579 = vsub.f32 1.0, %v10578
    %v10580 = vmul.f32 %v10577, %v10579
    %v10581 = vadd.f32 %v10577, %v10580
    %vm10582 = vweird.f32 %v10471
    %vm10583 = vweird.f32 %v10577
    %vm10584 = vmor %vm10582, %vm10583
    %v10585 = vsel %vm10584, %v10577, %v10581
    %v10586 = vand.u32 2147483647, %v10471
    %vm10587 = vcmp.eq.f32.partialorder %v10586, 8.507059e+37
    %v10588 = vand.u32 %v10471, 2147483648
    %v10589 = vor.u32 1.1754944e-38, %v10588
    %v10590 = vsel %vm10587, %v10589, %v10585
    %v10591 = vmul.f32 1.0, %v10590
    %v10592 = vrcp.pop %v10472
    %v10593 = vmul.f32 %v10472, %v10592
    %v10594 = vsub.f32 1.0, %v10593
    %v10595 = vmul.f32 %v10592, %v10594
    %v10596 = vadd.f32 %v10592, %v10595
    %vm10597 = vweird.f32 %v10472
    %vm10598 = vweird.f32 %v10592
    %vm10599 = vmor %vm10597, %vm10598
    %v10600 = vsel %vm10599, %v10592, %v10596
    %v10601 = vand.u32 2147483647, %v10472
    %vm10602 = vcmp.eq.f32.partialorder %v10601, 8.507059e+37
    %v10603 = vand.u32 %v10472, 2147483648
    %v10604 = vor.u32 1.1754944e-38, %v10603
    %v10605 = vsel %vm10602, %v10604, %v10600
    %v10606 = vmul.f32 1.0, %v10605
    %v10607 = vrcp.pop %v10473
    %v10608 = vmul.f32 %v10473, %v10607
    %v10609 = vsub.f32 1.0, %v10608
    %v10610 = vmul.f32 %v10607, %v10609
    %v10611 = vadd.f32 %v10607, %v10610
    %vm10612 = vweird.f32 %v10473
    %vm10613 = vweird.f32 %v10607
    %vm10614 = vmor %vm10612, %vm10613
    %v10615 = vsel %vm10614, %v10607, %v10611
    %v10616 = vand.u32 2147483647, %v10473
    %vm10617 = vcmp.eq.f32.partialorder %v10616, 8.507059e+37
    %v10618 = vand.u32 %v10473, 2147483648
    %v10619 = vor.u32 1.1754944e-38, %v10618
    %v10620 = vsel %vm10617, %v10619, %v10615
    %v10621 = vmul.f32 1.0, %v10620
    %v10622 = vrcp.pop %v10474
    %v10623 = vmul.f32 %v10474, %v10622
    %v10624 = vsub.f32 1.0, %v10623
    %v10625 = vmul.f32 %v10622, %v10624
    %v10626 = vadd.f32 %v10622, %v10625
    %vm10627 = vweird.f32 %v10474
    %vm10628 = vweird.f32 %v10622
    %vm10629 = vmor %vm10627, %vm10628
    %v10630 = vsel %vm10629, %v10622, %v10626
    %v10631 = vand.u32 2147483647, %v10474
    %vm10632 = vcmp.eq.f32.partialorder %v10631, 8.507059e+37
    %v10633 = vand.u32 %v10474, 2147483648
    %v10634 = vor.u32 1.1754944e-38, %v10633
    %v10635 = vsel %vm10632, %v10634, %v10630
    %v10636 = vmul.f32 1.0, %v10635
    %v10637 = vrcp.pop %v10475
    %v10638 = vmul.f32 %v10475, %v10637
    %v10639 = vsub.f32 1.0, %v10638
    %v10640 = vmul.f32 %v10637, %v10639
    %v10641 = vadd.f32 %v10637, %v10640
    %vm10642 = vweird.f32 %v10475
    %vm10643 = vweird.f32 %v10637
    %vm10644 = vmor %vm10642, %vm10643
    %v10645 = vsel %vm10644, %v10637, %v10641
    %v10646 = vand.u32 2147483647, %v10475
    %vm10647 = vcmp.eq.f32.partialorder %v10646, 8.507059e+37
    %v10648 = vand.u32 %v10475, 2147483648
    %v10649 = vor.u32 1.1754944e-38, %v10648
    %v10650 = vsel %vm10647, %v10649, %v10645
    %v10651 = vmul.f32 1.0, %v10650
    %v10652 = vrcp.pop %v10476
    %v10653 = vmul.f32 %v10476, %v10652
    %v10654 = vsub.f32 1.0, %v10653
    %v10655 = vmul.f32 %v10652, %v10654
    %v10656 = vadd.f32 %v10652, %v10655
    %vm10657 = vweird.f32 %v10476
    %vm10658 = vweird.f32 %v10652
    %vm10659 = vmor %vm10657, %vm10658
    %v10660 = vsel %vm10659, %v10652, %v10656
    %v10661 = vand.u32 2147483647, %v10476
    %vm10662 = vcmp.eq.f32.partialorder %v10661, 8.507059e+37
    %v10663 = vand.u32 %v10476, 2147483648
    %v10664 = vor.u32 1.1754944e-38, %v10663
    %v10665 = vsel %vm10662, %v10664, %v10660
    %v10666 = vmul.f32 1.0, %v10665
    %v10667 = vrcp.pop %v10477
    %v10668 = vmul.f32 %v10477, %v10667
    %v10669 = vsub.f32 1.0, %v10668
    %v10670 = vmul.f32 %v10667, %v10669
    %v10671 = vadd.f32 %v10667, %v10670
    %vm10672 = vweird.f32 %v10477
    %vm10673 = vweird.f32 %v10667
    %vm10674 = vmor %vm10672, %vm10673
    %v10675 = vsel %vm10674, %v10667, %v10671
    %v10676 = vand.u32 2147483647, %v10477
    %vm10677 = vcmp.eq.f32.partialorder %v10676, 8.507059e+37
    %v10678 = vand.u32 %v10477, 2147483648
    %v10679 = vor.u32 1.1754944e-38, %v10678
    %v10680 = vsel %vm10677, %v10679, %v10675
    %v10681 = vmul.f32 1.0, %v10680
    %v10682 = vrcp.pop %v10478
    %v10683 = vmul.f32 %v10478, %v10682
    %v10684 = vsub.f32 1.0, %v10683
    %v10685 = vmul.f32 %v10682, %v10684
    %v10686 = vadd.f32 %v10682, %v10685
    %vm10687 = vweird.f32 %v10478
    %vm10688 = vweird.f32 %v10682
    %vm10689 = vmor %vm10687, %vm10688
    %v10690 = vsel %vm10689, %v10682, %v10686
    %v10691 = vand.u32 2147483647, %v10478
    %vm10692 = vcmp.eq.f32.partialorder %v10691, 8.507059e+37
    %v10693 = vand.u32 %v10478, 2147483648
    %v10694 = vor.u32 1.1754944e-38, %v10693
    %v10695 = vsel %vm10692, %v10694, %v10690
    %v10696 = vmul.f32 1.0, %v10695
    %v10697 = vrcp.pop %v10479
    %v10698 = vmul.f32 %v10479, %v10697
    %v10699 = vsub.f32 1.0, %v10698
    %v10700 = vmul.f32 %v10697, %v10699
    %v10701 = vadd.f32 %v10697, %v10700
    %vm10702 = vweird.f32 %v10479
    %vm10703 = vweird.f32 %v10697
    %vm10704 = vmor %vm10702, %vm10703
    %v10705 = vsel %vm10704, %v10697, %v10701
    %v10706 = vand.u32 2147483647, %v10479
    %vm10707 = vcmp.eq.f32.partialorder %v10706, 8.507059e+37
    %v10708 = vand.u32 %v10479, 2147483648
    %v10709 = vor.u32 1.1754944e-38, %v10708
    %v10710 = vsel %vm10707, %v10709, %v10705
    %v10711 = vmul.f32 1.0, %v10710
    %v10712 = vrcp.pop %v10480
    %v10713 = vmul.f32 %v10480, %v10712
    %v10714 = vsub.f32 1.0, %v10713
    %v10715 = vmul.f32 %v10712, %v10714
    %v10716 = vadd.f32 %v10712, %v10715
    %vm10717 = vweird.f32 %v10480
    %vm10718 = vweird.f32 %v10712
    %vm10719 = vmor %vm10717, %vm10718
    %v10720 = vsel %vm10719, %v10712, %v10716
    %v10721 = vand.u32 2147483647, %v10480
    %vm10722 = vcmp.eq.f32.partialorder %v10721, 8.507059e+37
    %v10723 = vand.u32 %v10480, 2147483648
    %v10724 = vor.u32 1.1754944e-38, %v10723
    %v10725 = vsel %vm10722, %v10724, %v10720
    %v10726 = vmul.f32 1.0, %v10725
    %v10727 = vrcp.pop %v10481
    %v10728 = vmul.f32 %v10481, %v10727
    %v10729 = vsub.f32 1.0, %v10728
    %v10730 = vmul.f32 %v10727, %v10729
    %v10731 = vadd.f32 %v10727, %v10730
    %vm10732 = vweird.f32 %v10481
    %vm10733 = vweird.f32 %v10727
    %vm10734 = vmor %vm10732, %vm10733
    %v10735 = vsel %vm10734, %v10727, %v10731
    %v10736 = vand.u32 2147483647, %v10481
    %vm10737 = vcmp.eq.f32.partialorder %v10736, 8.507059e+37
    %v10738 = vand.u32 %v10481, 2147483648
    %v10739 = vor.u32 1.1754944e-38, %v10738
    %v10740 = vsel %vm10737, %v10739, %v10735
    %v10741 = vmul.f32 1.0, %v10740
    %v10742 = vrcp.pop %v10482
    %v10743 = vmul.f32 %v10482, %v10742
    %v10744 = vsub.f32 1.0, %v10743
    %v10745 = vmul.f32 %v10742, %v10744
    %v10746 = vadd.f32 %v10742, %v10745
    %vm10747 = vweird.f32 %v10482
    %vm10748 = vweird.f32 %v10742
    %vm10749 = vmor %vm10747, %vm10748
    %v10750 = vsel %vm10749, %v10742, %v10746
    %v10751 = vand.u32 2147483647, %v10482
    %vm10752 = vcmp.eq.f32.partialorder %v10751, 8.507059e+37
    %v10753 = vand.u32 %v10482, 2147483648
    %v10754 = vor.u32 1.1754944e-38, %v10753
    %v10755 = vsel %vm10752, %v10754, %v10750
    %v10756 = vmul.f32 1.0, %v10755
    %v10757 = vrcp.pop %v10483
    %v10758 = vmul.f32 %v10483, %v10757
    %v10759 = vsub.f32 1.0, %v10758
    %v10760 = vmul.f32 %v10757, %v10759
    %v10761 = vadd.f32 %v10757, %v10760
    %vm10762 = vweird.f32 %v10483
    %vm10763 = vweird.f32 %v10757
    %vm10764 = vmor %vm10762, %vm10763
    %v10765 = vsel %vm10764, %v10757, %v10761
    %v10766 = vand.u32 2147483647, %v10483
    %vm10767 = vcmp.eq.f32.partialorder %v10766, 8.507059e+37
    %v10768 = vand.u32 %v10483, 2147483648
    %v10769 = vor.u32 1.1754944e-38, %v10768
    %v10770 = vsel %vm10767, %v10769, %v10765
    %v10771 = vmul.f32 1.0, %v10770
    %v10772 = vrcp.pop %v10484
    %v10773 = vmul.f32 %v10484, %v10772
    %v10774 = vsub.f32 1.0, %v10773
    %v10775 = vmul.f32 %v10772, %v10774
    %v10776 = vadd.f32 %v10772, %v10775
    %vm10777 = vweird.f32 %v10484
    %vm10778 = vweird.f32 %v10772
    %vm10779 = vmor %vm10777, %vm10778
    %v10780 = vsel %vm10779, %v10772, %v10776
    %v10781 = vand.u32 2147483647, %v10484
    %vm10782 = vcmp.eq.f32.partialorder %v10781, 8.507059e+37
    %v10783 = vand.u32 %v10484, 2147483648
    %v10784 = vor.u32 1.1754944e-38, %v10783
    %v10785 = vsel %vm10782, %v10784, %v10780
    %v10786 = vmul.f32 1.0, %v10785
    %v10787 = vrcp.pop %v10485
    %v10788 = vmul.f32 %v10485, %v10787
    %v10789 = vsub.f32 1.0, %v10788
    %v10790 = vmul.f32 %v10787, %v10789
    %v10791 = vadd.f32 %v10787, %v10790
    %vm10792 = vweird.f32 %v10485
    %vm10793 = vweird.f32 %v10787
    %vm10794 = vmor %vm10792, %vm10793
    %v10795 = vsel %vm10794, %v10787, %v10791
    %v10796 = vand.u32 2147483647, %v10485
    %vm10797 = vcmp.eq.f32.partialorder %v10796, 8.507059e+37
    %v10798 = vand.u32 %v10485, 2147483648
    %v10799 = vor.u32 1.1754944e-38, %v10798
    %v10800 = vsel %vm10797, %v10799, %v10795
    %v10801 = vmul.f32 1.0, %v10800
    %v10802 = vrcp.pop %v10486
    %v10803 = vmul.f32 %v10486, %v10802
    %v10804 = vsub.f32 1.0, %v10803
    %v10805 = vmul.f32 %v10802, %v10804
    %v10806 = vadd.f32 %v10802, %v10805
    %vm10807 = vweird.f32 %v10486
    %vm10808 = vweird.f32 %v10802
    %vm10809 = vmor %vm10807, %vm10808
    %v10810 = vsel %vm10809, %v10802, %v10806
    %v10811 = vand.u32 2147483647, %v10486
    %vm10812 = vcmp.eq.f32.partialorder %v10811, 8.507059e+37
    %v10813 = vand.u32 %v10486, 2147483648
    %v10814 = vor.u32 1.1754944e-38, %v10813
    %v10815 = vsel %vm10812, %v10814, %v10810
    %v10816 = vmul.f32 1.0, %v10815
    %v10817 = vrcp.pop %v10487
    %v10818 = vmul.f32 %v10487, %v10817
    %v10819 = vsub.f32 1.0, %v10818
    %v10820 = vmul.f32 %v10817, %v10819
    %v10821 = vadd.f32 %v10817, %v10820
    %vm10822 = vweird.f32 %v10487
    %vm10823 = vweird.f32 %v10817
    %vm10824 = vmor %vm10822, %vm10823
    %v10825 = vsel %vm10824, %v10817, %v10821
    %v10826 = vand.u32 2147483647, %v10487
    %vm10827 = vcmp.eq.f32.partialorder %v10826, 8.507059e+37
    %v10828 = vand.u32 %v10487, 2147483648
    %v10829 = vor.u32 1.1754944e-38, %v10828
    %v10830 = vsel %vm10827, %v10829, %v10825
    %v10831 = vmul.f32 1.0, %v10830
    %v10832 = vrcp.pop %v10488
    %v10833 = vmul.f32 %v10488, %v10832
    %v10834 = vsub.f32 1.0, %v10833
    %v10835 = vmul.f32 %v10832, %v10834
    %v10836 = vadd.f32 %v10832, %v10835
    %vm10837 = vweird.f32 %v10488
    %vm10838 = vweird.f32 %v10832
    %vm10839 = vmor %vm10837, %vm10838
    %v10840 = vsel %vm10839, %v10832, %v10836
    %v10841 = vand.u32 2147483647, %v10488
    %vm10842 = vcmp.eq.f32.partialorder %v10841, 8.507059e+37
    %v10843 = vand.u32 %v10488, 2147483648
    %v10844 = vor.u32 1.1754944e-38, %v10843
    %v10845 = vsel %vm10842, %v10844, %v10840
    %v10846 = vmul.f32 1.0, %v10845
    %v10847 = vrcp.pop %v10489
    %v10848 = vmul.f32 %v10489, %v10847
    %v10849 = vsub.f32 1.0, %v10848
    %v10850 = vmul.f32 %v10847, %v10849
    %v10851 = vadd.f32 %v10847, %v10850
    %vm10852 = vweird.f32 %v10489
    %vm10853 = vweird.f32 %v10847
    %vm10854 = vmor %vm10852, %vm10853
    %v10855 = vsel %vm10854, %v10847, %v10851
    %v10856 = vand.u32 2147483647, %v10489
    %vm10857 = vcmp.eq.f32.partialorder %v10856, 8.507059e+37
    %v10858 = vand.u32 %v10489, 2147483648
    %v10859 = vor.u32 1.1754944e-38, %v10858
    %v10860 = vsel %vm10857, %v10859, %v10855
    %v10861 = vmul.f32 1.0, %v10860
    %v10862 = vrcp.pop %v10490
    %v10863 = vmul.f32 %v10490, %v10862
    %v10864 = vsub.f32 1.0, %v10863
    %v10865 = vmul.f32 %v10862, %v10864
    %v10866 = vadd.f32 %v10862, %v10865
    %vm10867 = vweird.f32 %v10490
    %vm10868 = vweird.f32 %v10862
    %vm10869 = vmor %vm10867, %vm10868
    %v10870 = vsel %vm10869, %v10862, %v10866
    %v10871 = vand.u32 2147483647, %v10490
    %vm10872 = vcmp.eq.f32.partialorder %v10871, 8.507059e+37
    %v10873 = vand.u32 %v10490, 2147483648
    %v10874 = vor.u32 1.1754944e-38, %v10873
    %v10875 = vsel %vm10872, %v10874, %v10870
    %v10876 = vmul.f32 1.0, %v10875
    %v10877 = vrcp.pop %v10491
    %v10878 = vmul.f32 %v10491, %v10877
    %v10879 = vsub.f32 1.0, %v10878
    %v10880 = vmul.f32 %v10877, %v10879
    %v10881 = vadd.f32 %v10877, %v10880
    %vm10882 = vweird.f32 %v10491
    %vm10883 = vweird.f32 %v10877
    %vm10884 = vmor %vm10882, %vm10883
    %v10885 = vsel %vm10884, %v10877, %v10881
    %v10886 = vand.u32 2147483647, %v10491
    %vm10887 = vcmp.eq.f32.partialorder %v10886, 8.507059e+37
    %v10888 = vand.u32 %v10491, 2147483648
    %v10889 = vor.u32 1.1754944e-38, %v10888
    %v10890 = vsel %vm10887, %v10889, %v10885
    %v10891 = vmul.f32 1.0, %v10890
    %v10892 = vrcp.pop %v10492
    %v10893 = vmul.f32 %v10492, %v10892
    %v10894 = vsub.f32 1.0, %v10893
    %v10895 = vmul.f32 %v10892, %v10894
    %v10896 = vadd.f32 %v10892, %v10895
    %vm10897 = vweird.f32 %v10492
    %vm10898 = vweird.f32 %v10892
    %vm10899 = vmor %vm10897, %vm10898
    %v10900 = vsel %vm10899, %v10892, %v10896
    %v10901 = vand.u32 2147483647, %v10492
    %vm10902 = vcmp.eq.f32.partialorder %v10901, 8.507059e+37
    %v10903 = vand.u32 %v10492, 2147483648
    %v10904 = vor.u32 1.1754944e-38, %v10903
    %v10905 = vsel %vm10902, %v10904, %v10900
    %v10906 = vmul.f32 1.0, %v10905
    %v10907 = vrcp.pop %v10493
    %v10908 = vmul.f32 %v10493, %v10907
    %v10909 = vsub.f32 1.0, %v10908
    %v10910 = vmul.f32 %v10907, %v10909
    %v10911 = vadd.f32 %v10907, %v10910
    %vm10912 = vweird.f32 %v10493
    %vm10913 = vweird.f32 %v10907
    %vm10914 = vmor %vm10912, %vm10913
    %v10915 = vsel %vm10914, %v10907, %v10911
    %v10916 = vand.u32 2147483647, %v10493
    %vm10917 = vcmp.eq.f32.partialorder %v10916, 8.507059e+37
    %v10918 = vand.u32 %v10493, 2147483648
    %v10919 = vor.u32 1.1754944e-38, %v10918
    %v10920 = vsel %vm10917, %v10919, %v10915
    %v10921 = vmul.f32 1.0, %v10920
    %v10922 = vrcp.pop %v10494
    %v10923 = vmul.f32 %v10494, %v10922
    %v10924 = vsub.f32 1.0, %v10923
    %v10925 = vmul.f32 %v10922, %v10924
    %v10926 = vadd.f32 %v10922, %v10925
    %vm10927 = vweird.f32 %v10494
    %vm10928 = vweird.f32 %v10922
    %vm10929 = vmor %vm10927, %vm10928
    %v10930 = vsel %vm10929, %v10922, %v10926
    %v10931 = vand.u32 2147483647, %v10494
    %vm10932 = vcmp.eq.f32.partialorder %v10931, 8.507059e+37
    %v10933 = vand.u32 %v10494, 2147483648
    %v10934 = vor.u32 1.1754944e-38, %v10933
    %v10935 = vsel %vm10932, %v10934, %v10930
    %v10936 = vmul.f32 1.0, %v10935
    %v10937 = vrcp.pop %v10495
    %v10938 = vmul.f32 %v10495, %v10937
    %v10939 = vsub.f32 1.0, %v10938
    %v10940 = vmul.f32 %v10937, %v10939
    %v10941 = vadd.f32 %v10937, %v10940
    %vm10942 = vweird.f32 %v10495
    %vm10943 = vweird.f32 %v10937
    %vm10944 = vmor %vm10942, %vm10943
    %v10945 = vsel %vm10944, %v10937, %v10941
    %v10946 = vand.u32 2147483647, %v10495
    %vm10947 = vcmp.eq.f32.partialorder %v10946, 8.507059e+37
    %v10948 = vand.u32 %v10495, 2147483648
    %v10949 = vor.u32 1.1754944e-38, %v10948
    %v10950 = vsel %vm10947, %v10949, %v10945
    %v10951 = vmul.f32 1.0, %v10950
    %v10952 = vrcp.pop %v10496
    %v10953 = vmul.f32 %v10496, %v10952
    %v10954 = vsub.f32 1.0, %v10953
    %v10955 = vmul.f32 %v10952, %v10954
    %v10956 = vadd.f32 %v10952, %v10955
    %vm10957 = vweird.f32 %v10496
    %vm10958 = vweird.f32 %v10952
    %vm10959 = vmor %vm10957, %vm10958
    %v10960 = vsel %vm10959, %v10952, %v10956
    %v10961 = vand.u32 2147483647, %v10496
    %vm10962 = vcmp.eq.f32.partialorder %v10961, 8.507059e+37
    %v10963 = vand.u32 %v10496, 2147483648
    %v10964 = vor.u32 1.1754944e-38, %v10963
    %v10965 = vsel %vm10962, %v10964, %v10960
    %v10966 = vmul.f32 1.0, %v10965
    %v10967 = vrcp.pop %v10497
    %v10968 = vmul.f32 %v10497, %v10967
    %v10969 = vsub.f32 1.0, %v10968
    %v10970 = vmul.f32 %v10967, %v10969
    %v10971 = vadd.f32 %v10967, %v10970
    %vm10972 = vweird.f32 %v10497
    %vm10973 = vweird.f32 %v10967
    %vm10974 = vmor %vm10972, %vm10973
    %v10975 = vsel %vm10974, %v10967, %v10971
    %v10976 = vand.u32 2147483647, %v10497
    %vm10977 = vcmp.eq.f32.partialorder %v10976, 8.507059e+37
    %v10978 = vand.u32 %v10497, 2147483648
    %v10979 = vor.u32 1.1754944e-38, %v10978
    %v10980 = vsel %vm10977, %v10979, %v10975
    %v10981 = vmul.f32 1.0, %v10980
    %v10982 = vrcp.pop %v10498
    %v10983 = vmul.f32 %v10498, %v10982
    %v10984 = vsub.f32 1.0, %v10983
    %v10985 = vmul.f32 %v10982, %v10984
    %v10986 = vadd.f32 %v10982, %v10985
    %vm10987 = vweird.f32 %v10498
    %vm10988 = vweird.f32 %v10982
    %vm10989 = vmor %vm10987, %vm10988
    %v10990 = vsel %vm10989, %v10982, %v10986
    %v10991 = vand.u32 2147483647, %v10498
    %vm10992 = vcmp.eq.f32.partialorder %v10991, 8.507059e+37
    %v10993 = vand.u32 %v10498, 2147483648
    %v10994 = vor.u32 1.1754944e-38, %v10993
    %v10995 = vsel %vm10992, %v10994, %v10990
    %v10996 = vmul.f32 1.0, %v10995
    %v10997 = vrcp.pop %v10499
    %v10998 = vmul.f32 %v10499, %v10997
    %v10999 = vsub.f32 1.0, %v10998
    %v11000 = vmul.f32 %v10997, %v10999
    %v11001 = vadd.f32 %v10997, %v11000
    %vm11002 = vweird.f32 %v10499
    %vm11003 = vweird.f32 %v10997
    %vm11004 = vmor %vm11002, %vm11003
    %v11005 = vsel %vm11004, %v10997, %v11001
    %v11006 = vand.u32 2147483647, %v10499
    %vm11007 = vcmp.eq.f32.partialorder %v11006, 8.507059e+37
    %v11008 = vand.u32 %v10499, 2147483648
    %v11009 = vor.u32 1.1754944e-38, %v11008
    %v11010 = vsel %vm11007, %v11009, %v11005
    %v11011 = vmul.f32 1.0, %v11010
    %v11012 = vrcp.pop %v10500
    %v11013 = vmul.f32 %v10500, %v11012
    %v11014 = vsub.f32 1.0, %v11013
    %v11015 = vmul.f32 %v11012, %v11014
    %v11016 = vadd.f32 %v11012, %v11015
    %vm11017 = vweird.f32 %v10500
    %vm11018 = vweird.f32 %v11012
    %vm11019 = vmor %vm11017, %vm11018
    %v11020 = vsel %vm11019, %v11012, %v11016
    %v11021 = vand.u32 2147483647, %v10500
    %vm11022 = vcmp.eq.f32.partialorder %v11021, 8.507059e+37
    %v11023 = vand.u32 %v10500, 2147483648
    %v11024 = vor.u32 1.1754944e-38, %v11023
    %v11025 = vsel %vm11022, %v11024, %v11020
    %v11026 = vmul.f32 1.0, %v11025
    %v11027 = vrcp.pop %v10501
    %v11028 = vmul.f32 %v10501, %v11027
    %v11029 = vsub.f32 1.0, %v11028
    %v11030 = vmul.f32 %v11027, %v11029
    %v11031 = vadd.f32 %v11027, %v11030
    %vm11032 = vweird.f32 %v10501
    %vm11033 = vweird.f32 %v11027
    %vm11034 = vmor %vm11032, %vm11033
    %v11035 = vsel %vm11034, %v11027, %v11031
    %v11036 = vand.u32 2147483647, %v10501
    %vm11037 = vcmp.eq.f32.partialorder %v11036, 8.507059e+37
    %v11038 = vand.u32 %v10501, 2147483648
    %v11039 = vor.u32 1.1754944e-38, %v11038
    %v11040 = vsel %vm11037, %v11039, %v11035
    %v11041 = vmul.f32 1.0, %v11040
    %v11042 = vrcp.pop %v10502
    %v11043 = vmul.f32 %v10502, %v11042
    %v11044 = vsub.f32 1.0, %v11043
    %v11045 = vmul.f32 %v11042, %v11044
    %v11046 = vadd.f32 %v11042, %v11045
    %vm11047 = vweird.f32 %v10502
    %vm11048 = vweird.f32 %v11042
    %vm11049 = vmor %vm11047, %vm11048
    %v11050 = vsel %vm11049, %v11042, %v11046
    %v11051 = vand.u32 2147483647, %v10502
    %vm11052 = vcmp.eq.f32.partialorder %v11051, 8.507059e+37
    %v11053 = vand.u32 %v10502, 2147483648
    %v11054 = vor.u32 1.1754944e-38, %v11053
    %v11055 = vsel %vm11052, %v11054, %v11050
    %v11056 = vmul.f32 1.0, %v11055
    %v11057 = vrcp.pop %v10503
    %v11058 = vmul.f32 %v10503, %v11057
    %v11059 = vsub.f32 1.0, %v11058
    %v11060 = vmul.f32 %v11057, %v11059
    %v11061 = vadd.f32 %v11057, %v11060
    %vm11062 = vweird.f32 %v10503
    %vm11063 = vweird.f32 %v11057
    %vm11064 = vmor %vm11062, %vm11063
    %v11065 = vsel %vm11064, %v11057, %v11061
    %v11066 = vand.u32 2147483647, %v10503
    %vm11067 = vcmp.eq.f32.partialorder %v11066, 8.507059e+37
    %v11068 = vand.u32 %v10503, 2147483648
    %v11069 = vor.u32 1.1754944e-38, %v11068
    %v11070 = vsel %vm11067, %v11069, %v11065
    %v11071 = vmul.f32 1.0, %v11070
    %v11072 = vrcp.pop %v10504
    %v11073 = vmul.f32 %v10504, %v11072
    %v11074 = vsub.f32 1.0, %v11073
    %v11075 = vmul.f32 %v11072, %v11074
    %v11076 = vadd.f32 %v11072, %v11075
    %vm11077 = vweird.f32 %v10504
    %vm11078 = vweird.f32 %v11072
    %vm11079 = vmor %vm11077, %vm11078
    %v11080 = vsel %vm11079, %v11072, %v11076
    %v11081 = vand.u32 2147483647, %v10504
    %vm11082 = vcmp.eq.f32.partialorder %v11081, 8.507059e+37
    %v11083 = vand.u32 %v10504, 2147483648
    %v11084 = vor.u32 1.1754944e-38, %v11083
    %v11085 = vsel %vm11082, %v11084, %v11080
    %v11086 = vmul.f32 1.0, %v11085
    %v11087 = vrcp.pop %v10505
    %v11088 = vmul.f32 %v10505, %v11087
    %v11089 = vsub.f32 1.0, %v11088
    %v11090 = vmul.f32 %v11087, %v11089
    %v11091 = vadd.f32 %v11087, %v11090
    %vm11092 = vweird.f32 %v10505
    %vm11093 = vweird.f32 %v11087
    %vm11094 = vmor %vm11092, %vm11093
    %v11095 = vsel %vm11094, %v11087, %v11091
    %v11096 = vand.u32 2147483647, %v10505
    %vm11097 = vcmp.eq.f32.partialorder %v11096, 8.507059e+37
    %v11098 = vand.u32 %v10505, 2147483648
    %v11099 = vor.u32 1.1754944e-38, %v11098
    %v11100 = vsel %vm11097, %v11099, %v11095
    %v11101 = vmul.f32 1.0, %v11100
    %v11102 = vrcp.pop %v10506
    %v11103 = vmul.f32 %v10506, %v11102
    %v11104 = vsub.f32 1.0, %v11103
    %v11105 = vmul.f32 %v11102, %v11104
    %v11106 = vadd.f32 %v11102, %v11105
    %vm11107 = vweird.f32 %v10506
    %vm11108 = vweird.f32 %v11102
    %vm11109 = vmor %vm11107, %vm11108
    %v11110 = vsel %vm11109, %v11102, %v11106
    %v11111 = vand.u32 2147483647, %v10506
    %vm11112 = vcmp.eq.f32.partialorder %v11111, 8.507059e+37
    %v11113 = vand.u32 %v10506, 2147483648
    %v11114 = vor.u32 1.1754944e-38, %v11113
    %v11115 = vsel %vm11112, %v11114, %v11110
    %v11116 = vmul.f32 1.0, %v11115
    %v11117 = vrcp.pop %v10507
    %v11118 = vmul.f32 %v10507, %v11117
    %v11119 = vsub.f32 1.0, %v11118
    %v11120 = vmul.f32 %v11117, %v11119
    %v11121 = vadd.f32 %v11117, %v11120
    %vm11122 = vweird.f32 %v10507
    %vm11123 = vweird.f32 %v11117
    %vm11124 = vmor %vm11122, %vm11123
    %v11125 = vsel %vm11124, %v11117, %v11121
    %v11126 = vand.u32 2147483647, %v10507
    %vm11127 = vcmp.eq.f32.partialorder %v11126, 8.507059e+37
    %v11128 = vand.u32 %v10507, 2147483648
    %v11129 = vor.u32 1.1754944e-38, %v11128
    %v11130 = vsel %vm11127, %v11129, %v11125
    %v11131 = vmul.f32 1.0, %v11130
    %v11132 = vrcp.pop %v10508
    %v11133 = vmul.f32 %v10508, %v11132
    %v11134 = vsub.f32 1.0, %v11133
    %v11135 = vmul.f32 %v11132, %v11134
    %v11136 = vadd.f32 %v11132, %v11135
    %vm11137 = vweird.f32 %v10508
    %vm11138 = vweird.f32 %v11132
    %vm11139 = vmor %vm11137, %vm11138
    %v11140 = vsel %vm11139, %v11132, %v11136
    %v11141 = vand.u32 2147483647, %v10508
    %vm11142 = vcmp.eq.f32.partialorder %v11141, 8.507059e+37
    %v11143 = vand.u32 %v10508, 2147483648
    %v11144 = vor.u32 1.1754944e-38, %v11143
    %v11145 = vsel %vm11142, %v11144, %v11140
    %v11146 = vmul.f32 1.0, %v11145
    %v11147 = vrcp.pop %v10509
    %v11148 = vmul.f32 %v10509, %v11147
    %v11149 = vsub.f32 1.0, %v11148
    %v11150 = vmul.f32 %v11147, %v11149
    %v11151 = vadd.f32 %v11147, %v11150
    %vm11152 = vweird.f32 %v10509
    %vm11153 = vweird.f32 %v11147
    %vm11154 = vmor %vm11152, %vm11153
    %v11155 = vsel %vm11154, %v11147, %v11151
    %v11156 = vand.u32 2147483647, %v10509
    %vm11157 = vcmp.eq.f32.partialorder %v11156, 8.507059e+37
    %v11158 = vand.u32 %v10509, 2147483648
    %v11159 = vor.u32 1.1754944e-38, %v11158
    %v11160 = vsel %vm11157, %v11159, %v11155
    %v11161 = vmul.f32 1.0, %v11160
    %v11162 = vrcp.pop %v10510
    %v11163 = vmul.f32 %v10510, %v11162
    %v11164 = vsub.f32 1.0, %v11163
    %v11165 = vmul.f32 %v11162, %v11164
    %v11166 = vadd.f32 %v11162, %v11165
    %vm11167 = vweird.f32 %v10510
    %vm11168 = vweird.f32 %v11162
    %vm11169 = vmor %vm11167, %vm11168
    %v11170 = vsel %vm11169, %v11162, %v11166
    %v11171 = vand.u32 2147483647, %v10510
    %vm11172 = vcmp.eq.f32.partialorder %v11171, 8.507059e+37
    %v11173 = vand.u32 %v10510, 2147483648
    %v11174 = vor.u32 1.1754944e-38, %v11173
    %v11175 = vsel %vm11172, %v11174, %v11170
    %v11176 = vmul.f32 1.0, %v11175
    %v11177 = vrcp.pop %v10511
    %v11178 = vmul.f32 %v10511, %v11177
    %v11179 = vsub.f32 1.0, %v11178
    %v11180 = vmul.f32 %v11177, %v11179
    %v11181 = vadd.f32 %v11177, %v11180
    %vm11182 = vweird.f32 %v10511
    %vm11183 = vweird.f32 %v11177
    %vm11184 = vmor %vm11182, %vm11183
    %v11185 = vsel %vm11184, %v11177, %v11181
    %v11186 = vand.u32 2147483647, %v10511
    %vm11187 = vcmp.eq.f32.partialorder %v11186, 8.507059e+37
    %v11188 = vand.u32 %v10511, 2147483648
    %v11189 = vor.u32 1.1754944e-38, %v11188
    %v11190 = vsel %vm11187, %v11189, %v11185
    %v11191 = vmul.f32 1.0, %v11190
    %v11192 = vrcp.pop %v10512
    %v11193 = vmul.f32 %v10512, %v11192
    %v11194 = vsub.f32 1.0, %v11193
    %v11195 = vmul.f32 %v11192, %v11194
    %v11196 = vadd.f32 %v11192, %v11195
    %vm11197 = vweird.f32 %v10512
    %vm11198 = vweird.f32 %v11192
    %vm11199 = vmor %vm11197, %vm11198
    %v11200 = vsel %vm11199, %v11192, %v11196
    %v11201 = vand.u32 2147483647, %v10512
    %vm11202 = vcmp.eq.f32.partialorder %v11201, 8.507059e+37
    %v11203 = vand.u32 %v10512, 2147483648
    %v11204 = vor.u32 1.1754944e-38, %v11203
    %v11205 = vsel %vm11202, %v11204, %v11200
    %v11206 = vmul.f32 1.0, %v11205
    %v11207 = vrcp.pop %v10513
    %v11208 = vmul.f32 %v10513, %v11207
    %v11209 = vsub.f32 1.0, %v11208
    %v11210 = vmul.f32 %v11207, %v11209
    %v11211 = vadd.f32 %v11207, %v11210
    %vm11212 = vweird.f32 %v10513
    %vm11213 = vweird.f32 %v11207
    %vm11214 = vmor %vm11212, %vm11213
    %v11215 = vsel %vm11214, %v11207, %v11211
    %v11216 = vand.u32 2147483647, %v10513
    %vm11217 = vcmp.eq.f32.partialorder %v11216, 8.507059e+37
    %v11218 = vand.u32 %v10513, 2147483648
    %v11219 = vor.u32 1.1754944e-38, %v11218
    %v11220 = vsel %vm11217, %v11219, %v11215
    %v11221 = vmul.f32 1.0, %v11220
    %v11222 = vrcp.pop %v10514
    %v11223 = vmul.f32 %v10514, %v11222
    %v11224 = vsub.f32 1.0, %v11223
    %v11225 = vmul.f32 %v11222, %v11224
    %v11226 = vadd.f32 %v11222, %v11225
    %vm11227 = vweird.f32 %v10514
    %vm11228 = vweird.f32 %v11222
    %vm11229 = vmor %vm11227, %vm11228
    %v11230 = vsel %vm11229, %v11222, %v11226
    %v11231 = vand.u32 2147483647, %v10514
    %vm11232 = vcmp.eq.f32.partialorder %v11231, 8.507059e+37
    %v11233 = vand.u32 %v10514, 2147483648
    %v11234 = vor.u32 1.1754944e-38, %v11233
    %v11235 = vsel %vm11232, %v11234, %v11230
    %v11236 = vmul.f32 1.0, %v11235
    %v11237 = vrcp.pop %v10515
    %v11238 = vmul.f32 %v10515, %v11237
    %v11239 = vsub.f32 1.0, %v11238
    %v11240 = vmul.f32 %v11237, %v11239
    %v11241 = vadd.f32 %v11237, %v11240
    %vm11242 = vweird.f32 %v10515
    %vm11243 = vweird.f32 %v11237
    %vm11244 = vmor %vm11242, %vm11243
    %v11245 = vsel %vm11244, %v11237, %v11241
    %v11246 = vand.u32 2147483647, %v10515
    %vm11247 = vcmp.eq.f32.partialorder %v11246, 8.507059e+37
    %v11248 = vand.u32 %v10515, 2147483648
    %v11249 = vor.u32 1.1754944e-38, %v11248
    %v11250 = vsel %vm11247, %v11249, %v11245
    %v11251 = vmul.f32 1.0, %v11250
    %v11252 = vrcp.pop %v10516
    %v11253 = vmul.f32 %v10516, %v11252
    %v11254 = vsub.f32 1.0, %v11253
    %v11255 = vmul.f32 %v11252, %v11254
    %v11256 = vadd.f32 %v11252, %v11255
    %vm11257 = vweird.f32 %v10516
    %vm11258 = vweird.f32 %v11252
    %vm11259 = vmor %vm11257, %vm11258
    %v11260 = vsel %vm11259, %v11252, %v11256
    %v11261 = vand.u32 2147483647, %v10516
    %vm11262 = vcmp.eq.f32.partialorder %v11261, 8.507059e+37
    %v11263 = vand.u32 %v10516, 2147483648
    %v11264 = vor.u32 1.1754944e-38, %v11263
    %v11265 = vsel %vm11262, %v11264, %v11260
    %v11266 = vmul.f32 1.0, %v11265
    %v11267 = vrcp.pop %v10517
    %v11268 = vmul.f32 %v10517, %v11267
    %v11269 = vsub.f32 1.0, %v11268
    %v11270 = vmul.f32 %v11267, %v11269
    %v11271 = vadd.f32 %v11267, %v11270
    %vm11272 = vweird.f32 %v10517
    %vm11273 = vweird.f32 %v11267
    %vm11274 = vmor %vm11272, %vm11273
    %v11275 = vsel %vm11274, %v11267, %v11271
    %v11276 = vand.u32 2147483647, %v10517
    %vm11277 = vcmp.eq.f32.partialorder %v11276, 8.507059e+37
    %v11278 = vand.u32 %v10517, 2147483648
    %v11279 = vor.u32 1.1754944e-38, %v11278
    %v11280 = vsel %vm11277, %v11279, %v11275
    %v11281 = vmul.f32 1.0, %v11280
    %v11282 = vrcp.pop %v10518
    %v11283 = vmul.f32 %v10518, %v11282
    %v11284 = vsub.f32 1.0, %v11283
    %v11285 = vmul.f32 %v11282, %v11284
    %v11286 = vadd.f32 %v11282, %v11285
    %vm11287 = vweird.f32 %v10518
    %vm11288 = vweird.f32 %v11282
    %vm11289 = vmor %vm11287, %vm11288
    %v11290 = vsel %vm11289, %v11282, %v11286
    %v11291 = vand.u32 2147483647, %v10518
    %vm11292 = vcmp.eq.f32.partialorder %v11291, 8.507059e+37
    %v11293 = vand.u32 %v10518, 2147483648
    %v11294 = vor.u32 1.1754944e-38, %v11293
    %v11295 = vsel %vm11292, %v11294, %v11290
    %v11296 = vmul.f32 1.0, %v11295
    %v11297 = vrcp.pop %v10519
    %v11298 = vmul.f32 %v10519, %v11297
    %v11299 = vsub.f32 1.0, %v11298
    %v11300 = vmul.f32 %v11297, %v11299
    %v11301 = vadd.f32 %v11297, %v11300
    %vm11302 = vweird.f32 %v10519
    %vm11303 = vweird.f32 %v11297
    %vm11304 = vmor %vm11302, %vm11303
    %v11305 = vsel %vm11304, %v11297, %v11301
    %v11306 = vand.u32 2147483647, %v10519
    %vm11307 = vcmp.eq.f32.partialorder %v11306, 8.507059e+37
    %v11308 = vand.u32 %v10519, 2147483648
    %v11309 = vor.u32 1.1754944e-38, %v11308
    %v11310 = vsel %vm11307, %v11309, %v11305
    %v11311 = vmul.f32 1.0, %v11310
    %v11312 = vrcp.pop %v10520
    %v11313 = vmul.f32 %v10520, %v11312
    %v11314 = vsub.f32 1.0, %v11313
    %v11315 = vmul.f32 %v11312, %v11314
    %v11316 = vadd.f32 %v11312, %v11315
    %vm11317 = vweird.f32 %v10520
    %vm11318 = vweird.f32 %v11312
    %vm11319 = vmor %vm11317, %vm11318
    %v11320 = vsel %vm11319, %v11312, %v11316
    %v11321 = vand.u32 2147483647, %v10520
    %vm11322 = vcmp.eq.f32.partialorder %v11321, 8.507059e+37
    %v11323 = vand.u32 %v10520, 2147483648
    %v11324 = vor.u32 1.1754944e-38, %v11323
    %v11325 = vsel %vm11322, %v11324, %v11320
    %v11326 = vmul.f32 1.0, %v11325
    %v11327 = vrcp.pop %v10521
    %v11328 = vmul.f32 %v10521, %v11327
    %v11329 = vsub.f32 1.0, %v11328
    %v11330 = vmul.f32 %v11327, %v11329
    %v11331 = vadd.f32 %v11327, %v11330
    %vm11332 = vweird.f32 %v10521
    %vm11333 = vweird.f32 %v11327
    %vm11334 = vmor %vm11332, %vm11333
    %v11335 = vsel %vm11334, %v11327, %v11331
    %v11336 = vand.u32 2147483647, %v10521
    %vm11337 = vcmp.eq.f32.partialorder %v11336, 8.507059e+37
    %v11338 = vand.u32 %v10521, 2147483648
    %v11339 = vor.u32 1.1754944e-38, %v11338
    %v11340 = vsel %vm11337, %v11339, %v11335
    %v11341 = vmul.f32 1.0, %v11340
    %v11342 = vrcp.pop %v10522
    %v11343 = vmul.f32 %v10522, %v11342
    %v11344 = vsub.f32 1.0, %v11343
    %v11345 = vmul.f32 %v11342, %v11344
    %v11346 = vadd.f32 %v11342, %v11345
    %vm11347 = vweird.f32 %v10522
    %vm11348 = vweird.f32 %v11342
    %vm11349 = vmor %vm11347, %vm11348
    %v11350 = vsel %vm11349, %v11342, %v11346
    %v11351 = vand.u32 2147483647, %v10522
    %vm11352 = vcmp.eq.f32.partialorder %v11351, 8.507059e+37
    %v11353 = vand.u32 %v10522, 2147483648
    %v11354 = vor.u32 1.1754944e-38, %v11353
    %v11355 = vsel %vm11352, %v11354, %v11350
    %v11356 = vmul.f32 1.0, %v11355
    %v11357 = vrcp.pop %v10523
    %v11358 = vmul.f32 %v10523, %v11357
    %v11359 = vsub.f32 1.0, %v11358
    %v11360 = vmul.f32 %v11357, %v11359
    %v11361 = vadd.f32 %v11357, %v11360
    %vm11362 = vweird.f32 %v10523
    %vm11363 = vweird.f32 %v11357
    %vm11364 = vmor %vm11362, %vm11363
    %v11365 = vsel %vm11364, %v11357, %v11361
    %v11366 = vand.u32 2147483647, %v10523
    %vm11367 = vcmp.eq.f32.partialorder %v11366, 8.507059e+37
    %v11368 = vand.u32 %v10523, 2147483648
    %v11369 = vor.u32 1.1754944e-38, %v11368
    %v11370 = vsel %vm11367, %v11369, %v11365
    %v11371 = vmul.f32 1.0, %v11370
    %v11372 = vrcp.pop %v10524
    %v11373 = vmul.f32 %v10524, %v11372
    %v11374 = vsub.f32 1.0, %v11373
    %v11375 = vmul.f32 %v11372, %v11374
    %v11376 = vadd.f32 %v11372, %v11375
    %vm11377 = vweird.f32 %v10524
    %vm11378 = vweird.f32 %v11372
    %vm11379 = vmor %vm11377, %vm11378
    %v11380 = vsel %vm11379, %v11372, %v11376
    %v11381 = vand.u32 2147483647, %v10524
    %vm11382 = vcmp.eq.f32.partialorder %v11381, 8.507059e+37
    %v11383 = vand.u32 %v10524, 2147483648
    %v11384 = vor.u32 1.1754944e-38, %v11383
    %v11385 = vsel %vm11382, %v11384, %v11380
    %v11386 = vmul.f32 1.0, %v11385
    %v11387 = vrcp.pop %v10525
    %v11388 = vmul.f32 %v10525, %v11387
    %v11389 = vsub.f32 1.0, %v11388
    %v11390 = vmul.f32 %v11387, %v11389
    %v11391 = vadd.f32 %v11387, %v11390
    %vm11392 = vweird.f32 %v10525
    %vm11393 = vweird.f32 %v11387
    %vm11394 = vmor %vm11392, %vm11393
    %v11395 = vsel %vm11394, %v11387, %v11391
    %v11396 = vand.u32 2147483647, %v10525
    %vm11397 = vcmp.eq.f32.partialorder %v11396, 8.507059e+37
    %v11398 = vand.u32 %v10525, 2147483648
    %v11399 = vor.u32 1.1754944e-38, %v11398
    %v11400 = vsel %vm11397, %v11399, %v11395
    %v11401 = vmul.f32 1.0, %v11400
    %v11402 = vrcp.pop %v10526
    %v11403 = vmul.f32 %v10526, %v11402
    %v11404 = vsub.f32 1.0, %v11403
    %v11405 = vmul.f32 %v11402, %v11404
    %v11406 = vadd.f32 %v11402, %v11405
    %vm11407 = vweird.f32 %v10526
    %vm11408 = vweird.f32 %v11402
    %vm11409 = vmor %vm11407, %vm11408
    %v11410 = vsel %vm11409, %v11402, %v11406
    %v11411 = vand.u32 2147483647, %v10526
    %vm11412 = vcmp.eq.f32.partialorder %v11411, 8.507059e+37
    %v11413 = vand.u32 %v10526, 2147483648
    %v11414 = vor.u32 1.1754944e-38, %v11413
    %v11415 = vsel %vm11412, %v11414, %v11410
    %v11416 = vmul.f32 1.0, %v11415
    %v11417 = vrcp.pop %v10527
    %v11418 = vmul.f32 %v10527, %v11417
    %v11419 = vsub.f32 1.0, %v11418
    %v11420 = vmul.f32 %v11417, %v11419
    %v11421 = vadd.f32 %v11417, %v11420
    %vm11422 = vweird.f32 %v10527
    %vm11423 = vweird.f32 %v11417
    %vm11424 = vmor %vm11422, %vm11423
    %v11425 = vsel %vm11424, %v11417, %v11421
    %v11426 = vand.u32 2147483647, %v10527
    %vm11427 = vcmp.eq.f32.partialorder %v11426, 8.507059e+37
    %v11428 = vand.u32 %v10527, 2147483648
    %v11429 = vor.u32 1.1754944e-38, %v11428
    %v11430 = vsel %vm11427, %v11429, %v11425
    %v11431 = vmul.f32 1.0, %v11430
    %v11432 = vrcp.pop %v10528
    %v11433 = vmul.f32 %v10528, %v11432
    %v11434 = vsub.f32 1.0, %v11433
    %v11435 = vmul.f32 %v11432, %v11434
    %v11436 = vadd.f32 %v11432, %v11435
    %vm11437 = vweird.f32 %v10528
    %vm11438 = vweird.f32 %v11432
    %vm11439 = vmor %vm11437, %vm11438
    %v11440 = vsel %vm11439, %v11432, %v11436
    %v11441 = vand.u32 2147483647, %v10528
    %vm11442 = vcmp.eq.f32.partialorder %v11441, 8.507059e+37
    %v11443 = vand.u32 %v10528, 2147483648
    %v11444 = vor.u32 1.1754944e-38, %v11443
    %v11445 = vsel %vm11442, %v11444, %v11440
    %v11446 = vmul.f32 1.0, %v11445
    %v11447 = vrcp.pop %v10529
    %v11448 = vmul.f32 %v10529, %v11447
    %v11449 = vsub.f32 1.0, %v11448
    %v11450 = vmul.f32 %v11447, %v11449
    %v11451 = vadd.f32 %v11447, %v11450
    %vm11452 = vweird.f32 %v10529
    %vm11453 = vweird.f32 %v11447
    %vm11454 = vmor %vm11452, %vm11453
    %v11455 = vsel %vm11454, %v11447, %v11451
    %v11456 = vand.u32 2147483647, %v10529
    %vm11457 = vcmp.eq.f32.partialorder %v11456, 8.507059e+37
    %v11458 = vand.u32 %v10529, 2147483648
    %v11459 = vor.u32 1.1754944e-38, %v11458
    %v11460 = vsel %vm11457, %v11459, %v11455
    %v11461 = vmul.f32 1.0, %v11460
    %v11462 = vrcp.pop %v10530
    %v11463 = vmul.f32 %v10530, %v11462
    %v11464 = vsub.f32 1.0, %v11463
    %v11465 = vmul.f32 %v11462, %v11464
    %v11466 = vadd.f32 %v11462, %v11465
    %vm11467 = vweird.f32 %v10530
    %vm11468 = vweird.f32 %v11462
    %vm11469 = vmor %vm11467, %vm11468
    %v11470 = vsel %vm11469, %v11462, %v11466
    %v11471 = vand.u32 2147483647, %v10530
    %vm11472 = vcmp.eq.f32.partialorder %v11471, 8.507059e+37
    %v11473 = vand.u32 %v10530, 2147483648
    %v11474 = vor.u32 1.1754944e-38, %v11473
    %v11475 = vsel %vm11472, %v11474, %v11470
    %v11476 = vmul.f32 1.0, %v11475
    %v11477 = vrcp.pop %v10531
    %v11478 = vmul.f32 %v10531, %v11477
    %v11479 = vsub.f32 1.0, %v11478
    %v11480 = vmul.f32 %v11477, %v11479
    %v11481 = vadd.f32 %v11477, %v11480
    %vm11482 = vweird.f32 %v10531
    %vm11483 = vweird.f32 %v11477
    %vm11484 = vmor %vm11482, %vm11483
    %v11485 = vsel %vm11484, %v11477, %v11481
    %v11486 = vand.u32 2147483647, %v10531
    %vm11487 = vcmp.eq.f32.partialorder %v11486, 8.507059e+37
    %v11488 = vand.u32 %v10531, 2147483648
    %v11489 = vor.u32 1.1754944e-38, %v11488
    %v11490 = vsel %vm11487, %v11489, %v11485
    %v11491 = vmul.f32 1.0, %v11490
    %v11493 = vsel %vm1242, %v10050, 0
    %11495 = vmatpush.msra.mxu0 0.0
    %11496 = vmatpush.msra.mxu0 0.0
    %11497 = vmatpush.msra.mxu0 0.0
    %11498 = vmatpush.msra.mxu0 0.0
    %11499 = vmatpush.msra.mxu0 0.0
    %11500 = vmatpush.msra.mxu0 0.0
    %11501 = vmatpush.msra.mxu0 0.0
    %11502 = vmatpush.msra.mxu0 0.0
    %11503 = vmatpush.msra.mxu0 0.0
    %11504 = vmatpush.msra.mxu0 0.0
    %11505 = vmatpush.msra.mxu0 0.0
    %11506 = vmatpush.msra.mxu0 0.0
    %11507 = vmatpush.msra.mxu0 0.0
    %11508 = vmatpush.msra.mxu0 0.0
    %11509 = vmatpush.msra.mxu0 0.0
    %11510 = vmatpush.msra.mxu0 %v11493
    %11511 = vmatmul.f32.gmra.mxu0 %v1051
    %v11512 = vpop.f32.mrf.mxu0
    %v11513 = vadd.f32 %v10546, %v11512
    %11514 = vmatmul.f32.gmra.mxu0 %v1054
    %v11515 = vpop.f32.mrf.mxu0
    %v11516 = vadd.f32 %v10561, %v11515
    %11517 = vmatmul.f32.gmra.mxu0 %v1057
    %v11518 = vpop.f32.mrf.mxu0
    %v11519 = vadd.f32 %v10576, %v11518
    %11520 = vmatmul.f32.gmra.mxu0 %v1060
    %v11521 = vpop.f32.mrf.mxu0
    %v11522 = vadd.f32 %v10591, %v11521
    %11523 = vmatmul.f32.gmra.mxu0 %v1063
    %v11524 = vpop.f32.mrf.mxu0
    %v11525 = vadd.f32 %v10606, %v11524
    %11526 = vmatmul.f32.gmra.mxu0 %v1066
    %v11527 = vpop.f32.mrf.mxu0
    %v11528 = vadd.f32 %v10621, %v11527
    %11529 = vmatmul.f32.gmra.mxu0 %v1069
    %v11530 = vpop.f32.mrf.mxu0
    %v11531 = vadd.f32 %v10636, %v11530
    %11532 = vmatmul.f32.gmra.mxu0 %v1072
    %v11533 = vpop.f32.mrf.mxu0
    %v11534 = vadd.f32 %v10651, %v11533
    %11535 = vmatmul.f32.gmra.mxu0 %v1075
    %v11536 = vpop.f32.mrf.mxu0
    %v11537 = vadd.f32 %v10666, %v11536
    %11538 = vmatmul.f32.gmra.mxu0 %v1078
    %v11539 = vpop.f32.mrf.mxu0
    %v11540 = vadd.f32 %v10681, %v11539
    %11541 = vmatmul.f32.gmra.mxu0 %v1081
    %v11542 = vpop.f32.mrf.mxu0
    %v11543 = vadd.f32 %v10696, %v11542
    %11544 = vmatmul.f32.gmra.mxu0 %v1084
    %v11545 = vpop.f32.mrf.mxu0
    %v11546 = vadd.f32 %v10711, %v11545
    %11547 = vmatmul.f32.gmra.mxu0 %v1087
    %v11548 = vpop.f32.mrf.mxu0
    %v11549 = vadd.f32 %v10726, %v11548
    %11550 = vmatmul.f32.gmra.mxu0 %v1090
    %v11551 = vpop.f32.mrf.mxu0
    %v11552 = vadd.f32 %v10741, %v11551
    %11553 = vmatmul.f32.gmra.mxu0 %v1093
    %v11554 = vpop.f32.mrf.mxu0
    %v11555 = vadd.f32 %v10756, %v11554
    %11556 = vmatmul.f32.gmra.mxu0 %v1096
    %v11557 = vpop.f32.mrf.mxu0
    %v11558 = vadd.f32 %v10771, %v11557
    %11559 = vmatmul.f32.gmra.mxu0 %v1099
    %v11560 = vpop.f32.mrf.mxu0
    %v11561 = vadd.f32 %v10786, %v11560
    %11562 = vmatmul.f32.gmra.mxu0 %v1102
    %v11563 = vpop.f32.mrf.mxu0
    %v11564 = vadd.f32 %v10801, %v11563
    %11565 = vmatmul.f32.gmra.mxu0 %v1105
    %v11566 = vpop.f32.mrf.mxu0
    %v11567 = vadd.f32 %v10816, %v11566
    %11568 = vmatmul.f32.gmra.mxu0 %v1108
    %v11569 = vpop.f32.mrf.mxu0
    %v11570 = vadd.f32 %v10831, %v11569
    %11571 = vmatmul.f32.gmra.mxu0 %v1111
    %v11572 = vpop.f32.mrf.mxu0
    %v11573 = vadd.f32 %v10846, %v11572
    %11574 = vmatmul.f32.gmra.mxu0 %v1114
    %v11575 = vpop.f32.mrf.mxu0
    %v11576 = vadd.f32 %v10861, %v11575
    %11577 = vmatmul.f32.gmra.mxu0 %v1117
    %v11578 = vpop.f32.mrf.mxu0
    %v11579 = vadd.f32 %v10876, %v11578
    %11580 = vmatmul.f32.gmra.mxu0 %v1120
    %v11581 = vpop.f32.mrf.mxu0
    %v11582 = vadd.f32 %v10891, %v11581
    %11583 = vmatmul.f32.gmra.mxu0 %v1123
    %v11584 = vpop.f32.mrf.mxu0
    %v11585 = vadd.f32 %v10906, %v11584
    %11586 = vmatmul.f32.gmra.mxu0 %v1126
    %v11587 = vpop.f32.mrf.mxu0
    %v11588 = vadd.f32 %v10921, %v11587
    %11589 = vmatmul.f32.gmra.mxu0 %v1129
    %v11590 = vpop.f32.mrf.mxu0
    %v11591 = vadd.f32 %v10936, %v11590
    %11592 = vmatmul.f32.gmra.mxu0 %v1132
    %v11593 = vpop.f32.mrf.mxu0
    %v11594 = vadd.f32 %v10951, %v11593
    %11595 = vmatmul.f32.gmra.mxu0 %v1135
    %v11596 = vpop.f32.mrf.mxu0
    %v11597 = vadd.f32 %v10966, %v11596
    %11598 = vmatmul.f32.gmra.mxu0 %v1138
    %v11599 = vpop.f32.mrf.mxu0
    %v11600 = vadd.f32 %v10981, %v11599
    %11601 = vmatmul.f32.gmra.mxu0 %v1141
    %v11602 = vpop.f32.mrf.mxu0
    %v11603 = vadd.f32 %v10996, %v11602
    %11604 = vmatmul.f32.gmra.mxu0 %v1144
    %v11605 = vpop.f32.mrf.mxu0
    %v11606 = vadd.f32 %v11011, %v11605
    %11607 = vmatmul.f32.gmra.mxu0 %v1147
    %v11608 = vpop.f32.mrf.mxu0
    %v11609 = vadd.f32 %v11026, %v11608
    %11610 = vmatmul.f32.gmra.mxu0 %v1150
    %v11611 = vpop.f32.mrf.mxu0
    %v11612 = vadd.f32 %v11041, %v11611
    %11613 = vmatmul.f32.gmra.mxu0 %v1153
    %v11614 = vpop.f32.mrf.mxu0
    %v11615 = vadd.f32 %v11056, %v11614
    %11616 = vmatmul.f32.gmra.mxu0 %v1156
    %v11617 = vpop.f32.mrf.mxu0
    %v11618 = vadd.f32 %v11071, %v11617
    %11619 = vmatmul.f32.gmra.mxu0 %v1159
    %v11620 = vpop.f32.mrf.mxu0
    %v11621 = vadd.f32 %v11086, %v11620
    %11622 = vmatmul.f32.gmra.mxu0 %v1162
    %v11623 = vpop.f32.mrf.mxu0
    %v11624 = vadd.f32 %v11101, %v11623
    %11625 = vmatmul.f32.gmra.mxu0 %v1165
    %v11626 = vpop.f32.mrf.mxu0
    %v11627 = vadd.f32 %v11116, %v11626
    %11628 = vmatmul.f32.gmra.mxu0 %v1168
    %v11629 = vpop.f32.mrf.mxu0
    %v11630 = vadd.f32 %v11131, %v11629
    %11631 = vmatmul.f32.gmra.mxu0 %v1171
    %v11632 = vpop.f32.mrf.mxu0
    %v11633 = vadd.f32 %v11146, %v11632
    %11634 = vmatmul.f32.gmra.mxu0 %v1174
    %v11635 = vpop.f32.mrf.mxu0
    %v11636 = vadd.f32 %v11161, %v11635
    %11637 = vmatmul.f32.gmra.mxu0 %v1177
    %v11638 = vpop.f32.mrf.mxu0
    %v11639 = vadd.f32 %v11176, %v11638
    %11640 = vmatmul.f32.gmra.mxu0 %v1180
    %v11641 = vpop.f32.mrf.mxu0
    %v11642 = vadd.f32 %v11191, %v11641
    %11643 = vmatmul.f32.gmra.mxu0 %v1183
    %v11644 = vpop.f32.mrf.mxu0
    %v11645 = vadd.f32 %v11206, %v11644
    %11646 = vmatmul.f32.gmra.mxu0 %v1186
    %v11647 = vpop.f32.mrf.mxu0
    %v11648 = vadd.f32 %v11221, %v11647
    %11649 = vmatmul.f32.gmra.mxu0 %v1189
    %v11650 = vpop.f32.mrf.mxu0
    %v11651 = vadd.f32 %v11236, %v11650
    %11652 = vmatmul.f32.gmra.mxu0 %v1192
    %v11653 = vpop.f32.mrf.mxu0
    %v11654 = vadd.f32 %v11251, %v11653
    %11655 = vmatmul.f32.gmra.mxu0 %v1195
    %v11656 = vpop.f32.mrf.mxu0
    %v11657 = vadd.f32 %v11266, %v11656
    %11658 = vmatmul.f32.gmra.mxu0 %v1198
    %v11659 = vpop.f32.mrf.mxu0
    %v11660 = vadd.f32 %v11281, %v11659
    %11661 = vmatmul.f32.gmra.mxu0 %v1201
    %v11662 = vpop.f32.mrf.mxu0
    %v11663 = vadd.f32 %v11296, %v11662
    %11664 = vmatmul.f32.gmra.mxu0 %v1204
    %v11665 = vpop.f32.mrf.mxu0
    %v11666 = vadd.f32 %v11311, %v11665
    %11667 = vmatmul.f32.gmra.mxu0 %v1207
    %v11668 = vpop.f32.mrf.mxu0
    %v11669 = vadd.f32 %v11326, %v11668
    %11670 = vmatmul.f32.gmra.mxu0 %v1210
    %v11671 = vpop.f32.mrf.mxu0
    %v11672 = vadd.f32 %v11341, %v11671
    %11673 = vmatmul.f32.gmra.mxu0 %v1213
    %v11674 = vpop.f32.mrf.mxu0
    %v11675 = vadd.f32 %v11356, %v11674
    %11676 = vmatmul.f32.gmra.mxu0 %v1216
    %v11677 = vpop.f32.mrf.mxu0
    %v11678 = vadd.f32 %v11371, %v11677
    %11679 = vmatmul.f32.gmra.mxu0 %v1219
    %v11680 = vpop.f32.mrf.mxu0
    %v11681 = vadd.f32 %v11386, %v11680
    %11682 = vmatmul.f32.gmra.mxu0 %v1222
    %v11683 = vpop.f32.mrf.mxu0
    %v11684 = vadd.f32 %v11401, %v11683
    %11685 = vmatmul.f32.gmra.mxu0 %v1225
    %v11686 = vpop.f32.mrf.mxu0
    %v11687 = vadd.f32 %v11416, %v11686
    %11688 = vmatmul.f32.gmra.mxu0 %v1228
    %v11689 = vpop.f32.mrf.mxu0
    %v11690 = vadd.f32 %v11431, %v11689
    %11691 = vmatmul.f32.gmra.mxu0 %v1231
    %v11692 = vpop.f32.mrf.mxu0
    %v11693 = vadd.f32 %v11446, %v11692
    %11694 = vmatmul.f32.gmra.mxu0 %v1234
    %v11695 = vpop.f32.mrf.mxu0
    %v11696 = vadd.f32 %v11461, %v11695
    %11697 = vmatmul.f32.gmra.mxu0 %v1237
    %v11698 = vpop.f32.mrf.mxu0
    %v11699 = vadd.f32 %v11476, %v11698
    %11700 = vmatmul.f32.gmra.mxu0 %v1240
    %v11701 = vpop.f32.mrf.mxu0
    %v11702 = vadd.f32 %v11491, %v11701
    %11703 = vdwg.mxu0
    %v11704 = vmul.f32 %v9803, %v11513
    %v11705 = vmul.f32 %v9804, %v11516
    %v11706 = vmul.f32 %v9805, %v11519
    %v11707 = vmul.f32 %v9806, %v11522
    %v11708 = vmul.f32 %v9807, %v11525
    %v11709 = vmul.f32 %v9808, %v11528
    %v11710 = vmul.f32 %v9809, %v11531
    %v11711 = vmul.f32 %v9810, %v11534
    %v11712 = vmul.f32 %v9811, %v11537
    %v11713 = vmul.f32 %v9812, %v11540
    %v11714 = vmul.f32 %v9813, %v11543
    %v11715 = vmul.f32 %v9814, %v11546
    %v11716 = vmul.f32 %v9815, %v11549
    %v11717 = vmul.f32 %v9816, %v11552
    %v11718 = vmul.f32 %v9817, %v11555
    %v11719 = vmul.f32 %v9818, %v11558
    %v11720 = vmul.f32 %v9819, %v11561
    %v11721 = vmul.f32 %v9820, %v11564
    %v11722 = vmul.f32 %v9821, %v11567
    %v11723 = vmul.f32 %v9822, %v11570
    %v11724 = vmul.f32 %v9823, %v11573
    %v11725 = vmul.f32 %v9824, %v11576
    %v11726 = vmul.f32 %v9825, %v11579
    %v11727 = vmul.f32 %v9826, %v11582
    %v11728 = vmul.f32 %v9827, %v11585
    %v11729 = vmul.f32 %v9828, %v11588
    %v11730 = vmul.f32 %v9829, %v11591
    %v11731 = vmul.f32 %v9830, %v11594
    %v11732 = vmul.f32 %v9831, %v11597
    %v11733 = vmul.f32 %v9832, %v11600
    %v11734 = vmul.f32 %v9833, %v11603
    %v11735 = vmul.f32 %v9834, %v11606
    %v11736 = vmul.f32 %v9835, %v11609
    %v11737 = vmul.f32 %v9836, %v11612
    %v11738 = vmul.f32 %v9837, %v11615
    %v11739 = vmul.f32 %v9838, %v11618
    %v11740 = vmul.f32 %v9839, %v11621
    %v11741 = vmul.f32 %v9840, %v11624
    %v11742 = vmul.f32 %v9841, %v11627
    %v11743 = vmul.f32 %v9842, %v11630
    %v11744 = vmul.f32 %v9843, %v11633
    %v11745 = vmul.f32 %v9844, %v11636
    %v11746 = vmul.f32 %v9845, %v11639
    %v11747 = vmul.f32 %v9846, %v11642
    %v11748 = vmul.f32 %v9847, %v11645
    %v11749 = vmul.f32 %v9848, %v11648
    %v11750 = vmul.f32 %v9849, %v11651
    %v11751 = vmul.f32 %v9850, %v11654
    %v11752 = vmul.f32 %v9851, %v11657
    %v11753 = vmul.f32 %v9852, %v11660
    %v11754 = vmul.f32 %v9853, %v11663
    %v11755 = vmul.f32 %v9854, %v11666
    %v11756 = vmul.f32 %v9855, %v11669
    %v11757 = vmul.f32 %v9856, %v11672
    %v11758 = vmul.f32 %v9857, %v11675
    %v11759 = vmul.f32 %v9858, %v11678
    %v11760 = vmul.f32 %v9859, %v11681
    %v11761 = vmul.f32 %v9860, %v11684
    %v11762 = vmul.f32 %v9861, %v11687
    %v11763 = vmul.f32 %v9862, %v11690
    %v11764 = vmul.f32 %v9863, %v11693
    %v11765 = vmul.f32 %v9864, %v11696
    %v11766 = vmul.f32 %v9865, %v11699
    %v11767 = vmul.f32 %v9866, %v11702
    %v11768 = vadd.f32 %v11704, %v2606
    %v11769 = vadd.f32 %v11705, %v2607
    %v11770 = vadd.f32 %v11706, %v2608
    %v11771 = vadd.f32 %v11707, %v2609
    %v11772 = vadd.f32 %v11708, %v2610
    %v11773 = vadd.f32 %v11709, %v2611
    %v11774 = vadd.f32 %v11710, %v2612
    %v11775 = vadd.f32 %v11711, %v2613
    %v11776 = vadd.f32 %v11712, %v2614
    %v11777 = vadd.f32 %v11713, %v2615
    %v11778 = vadd.f32 %v11714, %v2616
    %v11779 = vadd.f32 %v11715, %v2617
    %v11780 = vadd.f32 %v11716, %v2618
    %v11781 = vadd.f32 %v11717, %v2619
    %v11782 = vadd.f32 %v11718, %v2620
    %v11783 = vadd.f32 %v11719, %v2621
    %v11784 = vadd.f32 %v11720, %v2622
    %v11785 = vadd.f32 %v11721, %v2623
    %v11786 = vadd.f32 %v11722, %v2624
    %v11787 = vadd.f32 %v11723, %v2625
    %v11788 = vadd.f32 %v11724, %v2626
    %v11789 = vadd.f32 %v11725, %v2627
    %v11790 = vadd.f32 %v11726, %v2628
    %v11791 = vadd.f32 %v11727, %v2629
    %v11792 = vadd.f32 %v11728, %v2630
    %v11793 = vadd.f32 %v11729, %v2631
    %v11794 = vadd.f32 %v11730, %v2632
    %v11795 = vadd.f32 %v11731, %v2633
    %v11796 = vadd.f32 %v11732, %v2634
    %v11797 = vadd.f32 %v11733, %v2635
    %v11798 = vadd.f32 %v11734, %v2636
    %v11799 = vadd.f32 %v11735, %v2637
    %v11800 = vadd.f32 %v11736, %v2638
    %v11801 = vadd.f32 %v11737, %v2639
    %v11802 = vadd.f32 %v11738, %v2640
    %v11803 = vadd.f32 %v11739, %v2641
    %v11804 = vadd.f32 %v11740, %v2642
    %v11805 = vadd.f32 %v11741, %v2643
    %v11806 = vadd.f32 %v11742, %v2644
    %v11807 = vadd.f32 %v11743, %v2645
    %v11808 = vadd.f32 %v11744, %v2646
    %v11809 = vadd.f32 %v11745, %v2647
    %v11810 = vadd.f32 %v11746, %v2648
    %v11811 = vadd.f32 %v11747, %v2649
    %v11812 = vadd.f32 %v11748, %v2650
    %v11813 = vadd.f32 %v11749, %v2651
    %v11814 = vadd.f32 %v11750, %v2652
    %v11815 = vadd.f32 %v11751, %v2653
    %v11816 = vadd.f32 %v11752, %v2654
    %v11817 = vadd.f32 %v11753, %v2655
    %v11818 = vadd.f32 %v11754, %v2656
    %v11819 = vadd.f32 %v11755, %v2657
    %v11820 = vadd.f32 %v11756, %v2658
    %v11821 = vadd.f32 %v11757, %v2659
    %v11822 = vadd.f32 %v11758, %v2660
    %v11823 = vadd.f32 %v11759, %v2661
    %v11824 = vadd.f32 %v11760, %v2662
    %v11825 = vadd.f32 %v11761, %v2663
    %v11826 = vadd.f32 %v11762, %v2664
    %v11827 = vadd.f32 %v11763, %v2665
    %v11828 = vadd.f32 %v11764, %v2666
    %v11829 = vadd.f32 %v11765, %v2667
    %v11830 = vadd.f32 %v11766, %v2668
    %v11831 = vadd.f32 %v11767, %v2669
    %v11832 = vmax.f32 %v11768, 0.0
    %v11833 = vmax.f32 %v11769, 0.0
    %v11834 = vmax.f32 %v11770, 0.0
    %v11835 = vmax.f32 %v11771, 0.0
    %v11836 = vmax.f32 %v11772, 0.0
    %v11837 = vmax.f32 %v11773, 0.0
    %v11838 = vmax.f32 %v11774, 0.0
    %v11839 = vmax.f32 %v11775, 0.0
    %v11840 = vmax.f32 %v11776, 0.0
    %v11841 = vmax.f32 %v11777, 0.0
    %v11842 = vmax.f32 %v11778, 0.0
    %v11843 = vmax.f32 %v11779, 0.0
    %v11844 = vmax.f32 %v11780, 0.0
    %v11845 = vmax.f32 %v11781, 0.0
    %v11846 = vmax.f32 %v11782, 0.0
    %v11847 = vmax.f32 %v11783, 0.0
    %v11848 = vmax.f32 %v11784, 0.0
    %v11849 = vmax.f32 %v11785, 0.0
    %v11850 = vmax.f32 %v11786, 0.0
    %v11851 = vmax.f32 %v11787, 0.0
    %v11852 = vmax.f32 %v11788, 0.0
    %v11853 = vmax.f32 %v11789, 0.0
    %v11854 = vmax.f32 %v11790, 0.0
    %v11855 = vmax.f32 %v11791, 0.0
    %v11856 = vmax.f32 %v11792, 0.0
    %v11857 = vmax.f32 %v11793, 0.0
    %v11858 = vmax.f32 %v11794, 0.0
    %v11859 = vmax.f32 %v11795, 0.0
    %v11860 = vmax.f32 %v11796, 0.0
    %v11861 = vmax.f32 %v11797, 0.0
    %v11862 = vmax.f32 %v11798, 0.0
    %v11863 = vmax.f32 %v11799, 0.0
    %v11864 = vmax.f32 %v11800, 0.0
    %v11865 = vmax.f32 %v11801, 0.0
    %v11866 = vmax.f32 %v11802, 0.0
    %v11867 = vmax.f32 %v11803, 0.0
    %v11868 = vmax.f32 %v11804, 0.0
    %v11869 = vmax.f32 %v11805, 0.0
    %v11870 = vmax.f32 %v11806, 0.0
    %v11871 = vmax.f32 %v11807, 0.0
    %v11872 = vmax.f32 %v11808, 0.0
    %v11873 = vmax.f32 %v11809, 0.0
    %v11874 = vmax.f32 %v11810, 0.0
    %v11875 = vmax.f32 %v11811, 0.0
    %v11876 = vmax.f32 %v11812, 0.0
    %v11877 = vmax.f32 %v11813, 0.0
    %v11878 = vmax.f32 %v11814, 0.0
    %v11879 = vmax.f32 %v11815, 0.0
    %v11880 = vmax.f32 %v11816, 0.0
    %v11881 = vmax.f32 %v11817, 0.0
    %v11882 = vmax.f32 %v11818, 0.0
    %v11883 = vmax.f32 %v11819, 0.0
    %v11884 = vmax.f32 %v11820, 0.0
    %v11885 = vmax.f32 %v11821, 0.0
    %v11886 = vmax.f32 %v11822, 0.0
    %v11887 = vmax.f32 %v11823, 0.0
    %v11888 = vmax.f32 %v11824, 0.0
    %v11889 = vmax.f32 %v11825, 0.0
    %v11890 = vmax.f32 %v11826, 0.0
    %v11891 = vmax.f32 %v11827, 0.0
    %v11892 = vmax.f32 %v11828, 0.0
    %v11893 = vmax.f32 %v11829, 0.0
    %v11894 = vmax.f32 %v11830, 0.0
    %v11895 = vmax.f32 %v11831, 0.0
    %11896 = vst [vmem:[#allocation2] sm:$0xff] %v11832
    %11897 = vst [vmem:[#allocation2 + $0x8] sm:$0xff] %v11833
    %11898 = vst [vmem:[#allocation2 + $0x10] sm:$0xff] %v11834
    %11899 = vst [vmem:[#allocation2 + $0x18] sm:$0xff] %v11835
    %11900 = vst [vmem:[#allocation2 + $0x20] sm:$0xff] %v11836
    %11901 = vst [vmem:[#allocation2 + $0x28] sm:$0xff] %v11837
    %11902 = vst [vmem:[#allocation2 + $0x30] sm:$0xff] %v11838
    %11903 = vst [vmem:[#allocation2 + $0x38] sm:$0xff] %v11839
    %11904 = vst [vmem:[#allocation2 + $0x40] sm:$0xff] %v11840
    %11905 = vst [vmem:[#allocation2 + $0x48] sm:$0xff] %v11841
    %11906 = vst [vmem:[#allocation2 + $0x50] sm:$0xff] %v11842
    %11907 = vst [vmem:[#allocation2 + $0x58] sm:$0xff] %v11843
    %11908 = vst [vmem:[#allocation2 + $0x60] sm:$0xff] %v11844
    %11909 = vst [vmem:[#allocation2 + $0x68] sm:$0xff] %v11845
    %11910 = vst [vmem:[#allocation2 + $0x70] sm:$0xff] %v11846
    %11911 = vst [vmem:[#allocation2 + $0x78] sm:$0xff] %v11847
    %11912 = vst [vmem:[#allocation2 + $0x80] sm:$0xff] %v11848
    %11913 = vst [vmem:[#allocation2 + $0x88] sm:$0xff] %v11849
    %11914 = vst [vmem:[#allocation2 + $0x90] sm:$0xff] %v11850
    %11915 = vst [vmem:[#allocation2 + $0x98] sm:$0xff] %v11851
    %11916 = vst [vmem:[#allocation2 + $0xa0] sm:$0xff] %v11852
    %11917 = vst [vmem:[#allocation2 + $0xa8] sm:$0xff] %v11853
    %11918 = vst [vmem:[#allocation2 + $0xb0] sm:$0xff] %v11854
    %11919 = vst [vmem:[#allocation2 + $0xb8] sm:$0xff] %v11855
    %11920 = vst [vmem:[#allocation2 + $0xc0] sm:$0xff] %v11856
    %11921 = vst [vmem:[#allocation2 + $0xc8] sm:$0xff] %v11857
    %11922 = vst [vmem:[#allocation2 + $0xd0] sm:$0xff] %v11858
    %11923 = vst [vmem:[#allocation2 + $0xd8] sm:$0xff] %v11859
    %11924 = vst [vmem:[#allocation2 + $0xe0] sm:$0xff] %v11860
    %11925 = vst [vmem:[#allocation2 + $0xe8] sm:$0xff] %v11861
    %11926 = vst [vmem:[#allocation2 + $0xf0] sm:$0xff] %v11862
    %11927 = vst [vmem:[#allocation2 + $0xf8] sm:$0xff] %v11863
    %11928 = vst [vmem:[#allocation2 + $0x100] sm:$0xff] %v11864
    %11929 = vst [vmem:[#allocation2 + $0x108] sm:$0xff] %v11865
    %11930 = vst [vmem:[#allocation2 + $0x110] sm:$0xff] %v11866
    %11931 = vst [vmem:[#allocation2 + $0x118] sm:$0xff] %v11867
    %11932 = vst [vmem:[#allocation2 + $0x120] sm:$0xff] %v11868
    %11933 = vst [vmem:[#allocation2 + $0x128] sm:$0xff] %v11869
    %11934 = vst [vmem:[#allocation2 + $0x130] sm:$0xff] %v11870
    %11935 = vst [vmem:[#allocation2 + $0x138] sm:$0xff] %v11871
    %11936 = vst [vmem:[#allocation2 + $0x140] sm:$0xff] %v11872
    %11937 = vst [vmem:[#allocation2 + $0x148] sm:$0xff] %v11873
    %11938 = vst [vmem:[#allocation2 + $0x150] sm:$0xff] %v11874
    %11939 = vst [vmem:[#allocation2 + $0x158] sm:$0xff] %v11875
    %11940 = vst [vmem:[#allocation2 + $0x160] sm:$0xff] %v11876
    %11941 = vst [vmem:[#allocation2 + $0x168] sm:$0xff] %v11877
    %11942 = vst [vmem:[#allocation2 + $0x170] sm:$0xff] %v11878
    %11943 = vst [vmem:[#allocation2 + $0x178] sm:$0xff] %v11879
    %11944 = vst [vmem:[#allocation2 + $0x180] sm:$0xff] %v11880
    %11945 = vst [vmem:[#allocation2 + $0x188] sm:$0xff] %v11881
    %11946 = vst [vmem:[#allocation2 + $0x190] sm:$0xff] %v11882
    %11947 = vst [vmem:[#allocation2 + $0x198] sm:$0xff] %v11883
    %11948 = vst [vmem:[#allocation2 + $0x1a0] sm:$0xff] %v11884
    %11949 = vst [vmem:[#allocation2 + $0x1a8] sm:$0xff] %v11885
    %11950 = vst [vmem:[#allocation2 + $0x1b0] sm:$0xff] %v11886
    %11951 = vst [vmem:[#allocation2 + $0x1b8] sm:$0xff] %v11887
    %11952 = vst [vmem:[#allocation2 + $0x1c0] sm:$0xff] %v11888
    %11953 = vst [vmem:[#allocation2 + $0x1c8] sm:$0xff] %v11889
    %11954 = vst [vmem:[#allocation2 + $0x1d0] sm:$0xff] %v11890
    %11955 = vst [vmem:[#allocation2 + $0x1d8] sm:$0xff] %v11891
    %11956 = vst [vmem:[#allocation2 + $0x1e0] sm:$0xff] %v11892
    %11957 = vst [vmem:[#allocation2 + $0x1e8] sm:$0xff] %v11893
    %11958 = vst [vmem:[#allocation2 + $0x1f0] sm:$0xff] %v11894
    %11959 = vst [vmem:[#allocation2 + $0x1f8] sm:$0xff] %v11895
    // Predicated region
    $region46: #{tpu_custom_call.1} parent=1 // pred_check
      _
    $region47: #{tpu_custom_call.1} parent=1 // pred_check_branch
      %11961 = sbr.rel (0) target = $region49
    $region48: #{tpu_custom_call.1} parent=1 // pred_region
      %11963 = vsyncadd [#allocation3], 0
      %s11964 = sshll.u32 [#allocation2], 4
      %s11965 = int_to_ptr.vmem [resolvable:$true] %s11964
      %s11966 = sshll.u32 %s11, 4
      %s11967 = int_to_ptr.hbm [resolvable:$true] %s11966
      %11972 = dma.vmem_to_hbm [thread:$0]  %s11965, 8192, %s11967, [#allocation3], 128, 128, 8
    $region49: #{tpu_custom_call.1} parent=1 // pred_fallthru
      _
    // Predicated region
    $region50: #{tpu_custom_call.1} parent=1 // pred_check
      _
    $region51: #{tpu_custom_call.1} parent=1 // pred_check_branch
      %11974 = sbr.rel (0) target = $region53
    $region52: #{tpu_custom_call.1} parent=1 // pred_region
      %11976 = dma.done [#allocation3], 8192
    $region53: #{tpu_custom_call.1} parent=1 // pred_fallthru
      _
    %11977 = vsyncpa [#allocation3], 1

</llo_original>
